<compile_context>
chip_gen: v7x
topology: tpu7x:2x2x1
jax: 0.10.0
libtpu: 0.0.40
codegen_flags: <defaults>
</compile_context>

<pallas_src>
import functools

import jax
import jax.numpy as jnp
import numpy as np
from jax.experimental import pallas as pl
from jax.experimental.pallas import tpu as pltpu

SUBLANE = 8
LANE = 128


def _round_up(n, m):
    return (n + m - 1) // m * m


# ------------------------------ fused kernel ------------------------------- #

def _fused_kernel(*refs, num_layers):
    """refs = (x, [sel, w, b] * num_layers, fc_w, fc_b, out).

    x     : (R0, C_in)            activations, batch folded into rows (row-padded)
    sel_l : (K_l, R_l, R_{l-1})   0/1 tap-selection matrices, block-diag over batch
    w_l   : (K_l, C_in_l, C_out_l)
    b_l   : (1, C_out_l)          float32
    fc_w  : (64, NC_pad), fc_b : (1, NC_pad) with -1e30 in padded lanes
    out   : (R_last, NC_pad)      float32 log-probs (rows >= B are padding)
    """
    x_ref = refs[0]
    layer_refs = refs[1:1 + 3 * num_layers]
    fcw_ref = refs[1 + 3 * num_layers]
    fcb_ref = refs[2 + 3 * num_layers]
    o_ref = refs[3 + 3 * num_layers]

    op_dtype = x_ref.dtype
    h = x_ref[...]
    for l in range(num_layers):
        sel_ref, w_ref, b_ref = layer_refs[3 * l:3 * l + 3]
        k_size = sel_ref.shape[0]
        acc = None
        for k in range(k_size):                       # static unroll, k_size <= 4
            # Tap gather as an MXU matmul (no strided sublane loads).
            taps = jnp.dot(sel_ref[k], h, preferred_element_type=jnp.float32)
            part = jnp.dot(taps.astype(op_dtype), w_ref[k],
                           preferred_element_type=jnp.float32)
            # Bias folded into the first tap's accumulator (no separate bias add).
            acc = part + b_ref[...] if acc is None else acc + part
        h = jnp.maximum(acc, 0.0).astype(op_dtype)    # ReLU

    # fc + numerically stable log_softmax over a lane-dense 128-wide tile.
    logits = jnp.dot(h, fcw_ref[...], preferred_element_type=jnp.float32) + fcb_ref[...]
    m = jnp.max(logits, axis=-1, keepdims=True)
    z = logits - m
    lse = jnp.log(jnp.sum(jnp.exp(z), axis=-1, keepdims=True))
    o_ref[...] = (z - lse).astype(o_ref.dtype)


# ------------------------------ host helpers ------------------------------- #

def conv_configs(initial_num_channels):
    # (C_in, C_out, kernel_size, stride, padding) — mirrors the nn.Sequential.
    return [
        (initial_num_channels, 512, 4, 3, 0),
        (512, 256, 4, 3, 0),
        (256, 256, 4, 3, 0),
        (256, 256, 3, 2, 0),
        (256, 64, 3, 2, 1),
    ]


def init_params(key, initial_num_channels, num_classes):
    params = {"convs": []}
    for (cin, cout, k, s, p) in conv_configs(initial_num_channels):
        key, kw, kb = jax.random.split(key, 3)
        bound = 1.0 / float(cin * k) ** 0.5            # PyTorch default uniform bound
        w = jax.random.uniform(kw, (k, cin, cout), jnp.float32, -bound, bound)
        b = jax.random.uniform(kb, (cout,), jnp.float32, -bound, bound)
        params["convs"].append({"w": w, "b": b, "stride": s, "padding": p})
    key, kw, kb = jax.random.split(key, 3)
    bound = 1.0 / 64.0 ** 0.5
    params["fc_w"] = jax.random.uniform(kw, (64, num_classes), jnp.float32, -bound, bound)
    params["fc_b"] = jax.random.uniform(kb, (num_classes,), jnp.float32, -bound, bound)
    # TODO(synk): self.fc1 exists in the PyTorch module but is never used in forward(); omitted.
    return params


def _make_sel(batch, l_in, l_out, k_size, stride, padding, r_in, r_out, dtype):
    """(sel[k] @ X)[b*l_out + j] = X[b*l_in + j*stride + k - padding], or zero if the
    source index is out of range (conv zero-padding).  Block-diagonal over the batch;
    trailing rows/columns are sublane padding and stay zero."""
    sel = np.zeros((k_size, r_out, r_in), np.float32)
    for k in range(k_size):
        for b in range(batch):
            for j in range(l_out):
                src = j * stride + k - padding
                if 0 <= src < l_in:
                    sel[k, b * l_out + j, b * l_in + src] = 1.0
    return jnp.asarray(sel, dtype=dtype)


# -------------------------------- forward ----------------------------------- #

def softmax_1d_forward(params, x_ncw, *, compute_dtype=jnp.bfloat16):
    # TODO(synk): Dropout(0.2) layers are identity here (inference semantics).
    B, C_in, L0 = x_ncw.shape
    num_classes = params["fc_w"].shape[1]

    # NCW -> (B*L, C) rows; pad row count to a multiple of 8 sublanes.
    x = jnp.transpose(x_ncw, (0, 2, 1)).reshape(B * L0, C_in)
    r_prev = _round_up(B * L0, SUBLANE)
    if r_prev != B * L0:
        x = jnp.pad(x, ((0, r_prev - B * L0), (0, 0)))
    x = x.astype(compute_dtype)

    args = [x]
    l_prev = L0
    for layer in params["convs"]:
        w, b = layer["w"], layer["b"]
        stride, padding = layer["stride"], layer["padding"]
        k_size, _, c_out = w.shape
        l_out = (l_prev + 2 * padding - k_size) // stride + 1
        r_out = _round_up(B * l_out, SUBLANE)
        sel = _make_sel(B, l_prev, l_out, k_size, stride, padding, r_prev, r_out,
                        compute_dtype)
        args += [sel, w.astype(compute_dtype),
                 b.reshape(1, c_out).astype(jnp.float32)]
        l_prev, r_prev = l_out, r_out

    # PyTorch: .squeeze(dim=2) — the conv stack must end at length 1.
    assert l_prev == 1, f"conv stack ends at length {l_prev}, expected 1"

    # Lane-dense classifier head: pad num_classes up to a multiple of 128 lanes.
    nc_pad = _round_up(num_classes, LANE)
    fc_w = jnp.zeros((params["fc_w"].shape[0], nc_pad), jnp.float32)
    fc_w = fc_w.at[:, :num_classes].set(params["fc_w"]).astype(compute_dtype)
    fc_b = jnp.full((1, nc_pad), -1e30, jnp.float32)
    fc_b = fc_b.at[0, :num_classes].set(params["fc_b"])
    args += [fc_w, fc_b]

    num_layers = len(params["convs"])
    out_pad = pl.pallas_call(
        functools.partial(_fused_kernel, num_layers=num_layers),
        out_shape=jax.ShapeDtypeStruct((r_prev, nc_pad), jnp.float32),
        compiler_params=pltpu.CompilerParams(vmem_limit_bytes=32 * 1024 * 1024),
    )(*args)
    # Valid rows are 0..B-1 (final conv length is 1); padded lanes hold ~-1e30.
    return out_pad[:B, :num_classes]


# ------------------------------- reference ---------------------------------- #

def reference_forward(params, x_ncw, *, compute_dtype=jnp.bfloat16):
    """Pure-JAX reference with the same operand dtypes / fp32 accumulation."""
    h = x_ncw.astype(compute_dtype)                                     # (B, C, L)
    for layer in params["convs"]:
        w = jnp.transpose(layer["w"], (2, 1, 0)).astype(compute_dtype)  # (C_out, C_in, K)
        h = jax.lax.conv_general_dilated(
            h, w, window_strides=(layer["stride"],),
            padding=[(layer["padding"], layer["padding"])],
            dimension_numbers=("NCH", "OIH", "NCH"),
            preferred_element_type=jnp.float32)
        h = jnp.maximum(h + layer["b"][None, :, None], 0.0).astype(compute_dtype)
    feat = h[:, :, 0]                                                   # squeeze(dim=2)
    logits = jnp.dot(feat, params["fc_w"].astype(compute_dtype),
                     preferred_element_type=jnp.float32) + params["fc_b"]
    return jax.nn.log_softmax(logits, axis=-1)


# --------------------------------- main -------------------------------------- #

if __name__ == "__main__":
    B, C_IN, L, NUM_CLASSES = 2, 4, 100, 10   # L=100 -> conv stack ends at length 1

    key = jax.random.PRNGKey(0)
    key, kx = jax.random.split(key)
    x = jax.random.normal(kx, (B, C_IN, L), jnp.float32)   # NCW layout, like PyTorch

    params = init_params(key, C_IN, NUM_CLASSES)

    fwd = jax.jit(functools.partial(softmax_1d_forward, params))
    out = jax.block_until_ready(fwd(x))

    assert out.shape == (B, NUM_CLASSES), out.shape
    assert bool(jnp.all(jnp.isfinite(out)))
    # log_softmax rows must exponentiate to a probability distribution.
    probs_sum = jnp.exp(out).sum(axis=1)
    assert bool(jnp.all(jnp.abs(probs_sum - 1.0) < 1e-3)), probs_sum

    # Cross-check against the pure-JAX reference (same operand dtypes).
    ref = jax.jit(functools.partial(reference_forward, params))(x)
    max_err = float(jnp.max(jnp.abs(out - ref)))
    assert max_err < 1e-2, f"kernel/reference mismatch: {max_err}"

    print("KERNEL_OK")
</pallas_src>

<mosaic_0001>
module attributes {stable_mosaic.version = 11 : i64} {
  func.func @_fused_kernel(%arg0: memref<200x4xbf16, #tpu.memory_space<vmem>>, %arg1: memref<4x72x200xbf16, #tpu.memory_space<vmem>>, %arg2: memref<4x4x512xbf16, #tpu.memory_space<vmem>>, %arg3: memref<1x512xf32, #tpu.memory_space<vmem>>, %arg4: memref<4x24x72xbf16, #tpu.memory_space<vmem>>, %arg5: memref<4x512x256xbf16, #tpu.memory_space<vmem>>, %arg6: memref<1x256xf32, #tpu.memory_space<vmem>>, %arg7: memref<4x8x24xbf16, #tpu.memory_space<vmem>>, %arg8: memref<4x256x256xbf16, #tpu.memory_space<vmem>>, %arg9: memref<1x256xf32, #tpu.memory_space<vmem>>, %arg10: memref<3x8x8xbf16, #tpu.memory_space<vmem>>, %arg11: memref<3x256x256xbf16, #tpu.memory_space<vmem>>, %arg12: memref<1x256xf32, #tpu.memory_space<vmem>>, %arg13: memref<3x8x8xbf16, #tpu.memory_space<vmem>>, %arg14: memref<3x256x64xbf16, #tpu.memory_space<vmem>>, %arg15: memref<1x64xf32, #tpu.memory_space<vmem>>, %arg16: memref<64x128xbf16, #tpu.memory_space<vmem>>, %arg17: memref<1x128xf32, #tpu.memory_space<vmem>>, %arg18: memref<8x128xf32, #tpu.memory_space<vmem>>) attributes {dimension_semantics = [], scalar_prefetch = 0 : i64, scratch_operands = 0 : i64, tpu.core_type = #tpu.core_type<tc>} {
    %c0 = arith.constant 0 : index
    %c0_0 = arith.constant 0 : index
    %0 = vector.load %arg0[%c0, %c0_0] : memref<200x4xbf16, #tpu.memory_space<vmem>>, vector<200x4xbf16>
    %c0_1 = arith.constant 0 : index
    %c0_2 = arith.constant 0 : index
    %c0_3 = arith.constant 0 : index
    %1 = vector.load %arg1[%c0_1, %c0_2, %c0_3] : memref<4x72x200xbf16, #tpu.memory_space<vmem>>, vector<1x72x200xbf16>
    %2 = vector.shape_cast %1 : vector<1x72x200xbf16> to vector<72x200xbf16>
    %cst = arith.constant dense<0.000000e+00> : vector<72x4xf32>
    %3 = tpu.matmul %2, %0, %cst {dimension_numbers = #tpu.dot_dimension_numbers<[1], [0], [0], [1], [0, 0, 1, 1], [], []>} : vector<72x200xbf16>, vector<200x4xbf16>, vector<72x4xf32> -> vector<72x4xf32>
    %4 = arith.truncf %3 : vector<72x4xf32> to vector<72x4xbf16>
    %c0_4 = arith.constant 0 : index
    %c0_5 = arith.constant 0 : index
    %c0_6 = arith.constant 0 : index
    %5 = vector.load %arg2[%c0_4, %c0_5, %c0_6] : memref<4x4x512xbf16, #tpu.memory_space<vmem>>, vector<1x4x512xbf16>
    %6 = vector.shape_cast %5 : vector<1x4x512xbf16> to vector<4x512xbf16>
    %cst_7 = arith.constant dense<0.000000e+00> : vector<72x512xf32>
    %7 = tpu.matmul %4, %6, %cst_7 {dimension_numbers = #tpu.dot_dimension_numbers<[1], [0], [0], [1], [0, 0, 1, 1], [], []>} : vector<72x4xbf16>, vector<4x512xbf16>, vector<72x512xf32> -> vector<72x512xf32>
    %c0_8 = arith.constant 0 : index
    %c0_9 = arith.constant 0 : index
    %8 = vector.load %arg3[%c0_8, %c0_9] : memref<1x512xf32, #tpu.memory_space<vmem>>, vector<1x512xf32>
    %9 = vector.broadcast %8 : vector<1x512xf32> to vector<72x512xf32>
    %10 = arith.addf %7, %9 : vector<72x512xf32>
    %c1 = arith.constant 1 : index
    %c0_10 = arith.constant 0 : index
    %c0_11 = arith.constant 0 : index
    %11 = vector.load %arg1[%c1, %c0_10, %c0_11] : memref<4x72x200xbf16, #tpu.memory_space<vmem>>, vector<1x72x200xbf16>
    %12 = vector.shape_cast %11 : vector<1x72x200xbf16> to vector<72x200xbf16>
    %cst_12 = arith.constant dense<0.000000e+00> : vector<72x4xf32>
    %13 = tpu.matmul %12, %0, %cst_12 {dimension_numbers = #tpu.dot_dimension_numbers<[1], [0], [0], [1], [0, 0, 1, 1], [], []>} : vector<72x200xbf16>, vector<200x4xbf16>, vector<72x4xf32> -> vector<72x4xf32>
    %14 = arith.truncf %13 : vector<72x4xf32> to vector<72x4xbf16>
    %c1_13 = arith.constant 1 : index
    %c0_14 = arith.constant 0 : index
    %c0_15 = arith.constant 0 : index
    %15 = vector.load %arg2[%c1_13, %c0_14, %c0_15] : memref<4x4x512xbf16, #tpu.memory_space<vmem>>, vector<1x4x512xbf16>
    %16 = vector.shape_cast %15 : vector<1x4x512xbf16> to vector<4x512xbf16>
    %cst_16 = arith.constant dense<0.000000e+00> : vector<72x512xf32>
    %17 = tpu.matmul %14, %16, %cst_16 {dimension_numbers = #tpu.dot_dimension_numbers<[1], [0], [0], [1], [0, 0, 1, 1], [], []>} : vector<72x4xbf16>, vector<4x512xbf16>, vector<72x512xf32> -> vector<72x512xf32>
    %18 = arith.addf %10, %17 : vector<72x512xf32>
    %c2 = arith.constant 2 : index
    %c0_17 = arith.constant 0 : index
    %c0_18 = arith.constant 0 : index
    %19 = vector.load %arg1[%c2, %c0_17, %c0_18] : memref<4x72x200xbf16, #tpu.memory_space<vmem>>, vector<1x72x200xbf16>
    %20 = vector.shape_cast %19 : vector<1x72x200xbf16> to vector<72x200xbf16>
    %cst_19 = arith.constant dense<0.000000e+00> : vector<72x4xf32>
    %21 = tpu.matmul %20, %0, %cst_19 {dimension_numbers = #tpu.dot_dimension_numbers<[1], [0], [0], [1], [0, 0, 1, 1], [], []>} : vector<72x200xbf16>, vector<200x4xbf16>, vector<72x4xf32> -> vector<72x4xf32>
    %22 = arith.truncf %21 : vector<72x4xf32> to vector<72x4xbf16>
    %c2_20 = arith.constant 2 : index
    %c0_21 = arith.constant 0 : index
    %c0_22 = arith.constant 0 : index
    %23 = vector.load %arg2[%c2_20, %c0_21, %c0_22] : memref<4x4x512xbf16, #tpu.memory_space<vmem>>, vector<1x4x512xbf16>
    %24 = vector.shape_cast %23 : vector<1x4x512xbf16> to vector<4x512xbf16>
    %cst_23 = arith.constant dense<0.000000e+00> : vector<72x512xf32>
    %25 = tpu.matmul %22, %24, %cst_23 {dimension_numbers = #tpu.dot_dimension_numbers<[1], [0], [0], [1], [0, 0, 1, 1], [], []>} : vector<72x4xbf16>, vector<4x512xbf16>, vector<72x512xf32> -> vector<72x512xf32>
    %26 = arith.addf %18, %25 : vector<72x512xf32>
    %c3 = arith.constant 3 : index
    %c0_24 = arith.constant 0 : index
    %c0_25 = arith.constant 0 : index
    %27 = vector.load %arg1[%c3, %c0_24, %c0_25] : memref<4x72x200xbf16, #tpu.memory_space<vmem>>, vector<1x72x200xbf16>
    %28 = vector.shape_cast %27 : vector<1x72x200xbf16> to vector<72x200xbf16>
    %cst_26 = arith.constant dense<0.000000e+00> : vector<72x4xf32>
    %29 = tpu.matmul %28, %0, %cst_26 {dimension_numbers = #tpu.dot_dimension_numbers<[1], [0], [0], [1], [0, 0, 1, 1], [], []>} : vector<72x200xbf16>, vector<200x4xbf16>, vector<72x4xf32> -> vector<72x4xf32>
    %30 = arith.truncf %29 : vector<72x4xf32> to vector<72x4xbf16>
    %c3_27 = arith.constant 3 : index
    %c0_28 = arith.constant 0 : index
    %c0_29 = arith.constant 0 : index
    %31 = vector.load %arg2[%c3_27, %c0_28, %c0_29] : memref<4x4x512xbf16, #tpu.memory_space<vmem>>, vector<1x4x512xbf16>
    %32 = vector.shape_cast %31 : vector<1x4x512xbf16> to vector<4x512xbf16>
    %cst_30 = arith.constant dense<0.000000e+00> : vector<72x512xf32>
    %33 = tpu.matmul %30, %32, %cst_30 {dimension_numbers = #tpu.dot_dimension_numbers<[1], [0], [0], [1], [0, 0, 1, 1], [], []>} : vector<72x4xbf16>, vector<4x512xbf16>, vector<72x512xf32> -> vector<72x512xf32>
    %34 = arith.addf %26, %33 : vector<72x512xf32>
    %cst_31 = arith.constant 0.000000e+00 : f32
    %35 = vector.broadcast %cst_31 : f32 to vector<72x512xf32>
    %36 = arith.maximumf %34, %35 : vector<72x512xf32>
    %37 = arith.truncf %36 : vector<72x512xf32> to vector<72x512xbf16>
    %c0_32 = arith.constant 0 : index
    %c0_33 = arith.constant 0 : index
    %c0_34 = arith.constant 0 : index
    %38 = vector.load %arg4[%c0_32, %c0_33, %c0_34] : memref<4x24x72xbf16, #tpu.memory_space<vmem>>, vector<1x24x72xbf16>
    %39 = vector.shape_cast %38 : vector<1x24x72xbf16> to vector<24x72xbf16>
    %cst_35 = arith.constant dense<0.000000e+00> : vector<24x512xf32>
    %40 = tpu.matmul %39, %37, %cst_35 {dimension_numbers = #tpu.dot_dimension_numbers<[1], [0], [0], [1], [0, 0, 1, 1], [], []>} : vector<24x72xbf16>, vector<72x512xbf16>, vector<24x512xf32> -> vector<24x512xf32>
    %41 = arith.truncf %40 : vector<24x512xf32> to vector<24x512xbf16>
    %c0_36 = arith.constant 0 : index
    %c0_37 = arith.constant 0 : index
    %c0_38 = arith.constant 0 : index
    %42 = vector.load %arg5[%c0_36, %c0_37, %c0_38] : memref<4x512x256xbf16, #tpu.memory_space<vmem>>, vector<1x512x256xbf16>
    %43 = vector.shape_cast %42 : vector<1x512x256xbf16> to vector<512x256xbf16>
    %cst_39 = arith.constant dense<0.000000e+00> : vector<24x256xf32>
    %44 = tpu.matmul %41, %43, %cst_39 {dimension_numbers = #tpu.dot_dimension_numbers<[1], [0], [0], [1], [0, 0, 1, 1], [], []>} : vector<24x512xbf16>, vector<512x256xbf16>, vector<24x256xf32> -> vector<24x256xf32>
    %c0_40 = arith.constant 0 : index
    %c0_41 = arith.constant 0 : index
    %45 = vector.load %arg6[%c0_40, %c0_41] : memref<1x256xf32, #tpu.memory_space<vmem>>, vector<1x256xf32>
    %46 = vector.broadcast %45 : vector<1x256xf32> to vector<24x256xf32>
    %47 = arith.addf %44, %46 : vector<24x256xf32>
    %c1_42 = arith.constant 1 : index
    %c0_43 = arith.constant 0 : index
    %c0_44 = arith.constant 0 : index
    %48 = vector.load %arg4[%c1_42, %c0_43, %c0_44] : memref<4x24x72xbf16, #tpu.memory_space<vmem>>, vector<1x24x72xbf16>
    %49 = vector.shape_cast %48 : vector<1x24x72xbf16> to vector<24x72xbf16>
    %cst_45 = arith.constant dense<0.000000e+00> : vector<24x512xf32>
    %50 = tpu.matmul %49, %37, %cst_45 {dimension_numbers = #tpu.dot_dimension_numbers<[1], [0], [0], [1], [0, 0, 1, 1], [], []>} : vector<24x72xbf16>, vector<72x512xbf16>, vector<24x512xf32> -> vector<24x512xf32>
    %51 = arith.truncf %50 : vector<24x512xf32> to vector<24x512xbf16>
    %c1_46 = arith.constant 1 : index
    %c0_47 = arith.constant 0 : index
    %c0_48 = arith.constant 0 : index
    %52 = vector.load %arg5[%c1_46, %c0_47, %c0_48] : memref<4x512x256xbf16, #tpu.memory_space<vmem>>, vector<1x512x256xbf16>
    %53 = vector.shape_cast %52 : vector<1x512x256xbf16> to vector<512x256xbf16>
    %cst_49 = arith.constant dense<0.000000e+00> : vector<24x256xf32>
    %54 = tpu.matmul %51, %53, %cst_49 {dimension_numbers = #tpu.dot_dimension_numbers<[1], [0], [0], [1], [0, 0, 1, 1], [], []>} : vector<24x512xbf16>, vector<512x256xbf16>, vector<24x256xf32> -> vector<24x256xf32>
    %55 = arith.addf %47, %54 : vector<24x256xf32>
    %c2_50 = arith.constant 2 : index
    %c0_51 = arith.constant 0 : index
    %c0_52 = arith.constant 0 : index
    %56 = vector.load %arg4[%c2_50, %c0_51, %c0_52] : memref<4x24x72xbf16, #tpu.memory_space<vmem>>, vector<1x24x72xbf16>
    %57 = vector.shape_cast %56 : vector<1x24x72xbf16> to vector<24x72xbf16>
    %cst_53 = arith.constant dense<0.000000e+00> : vector<24x512xf32>
    %58 = tpu.matmul %57, %37, %cst_53 {dimension_numbers = #tpu.dot_dimension_numbers<[1], [0], [0], [1], [0, 0, 1, 1], [], []>} : vector<24x72xbf16>, vector<72x512xbf16>, vector<24x512xf32> -> vector<24x512xf32>
    %59 = arith.truncf %58 : vector<24x512xf32> to vector<24x512xbf16>
    %c2_54 = arith.constant 2 : index
    %c0_55 = arith.constant 0 : index
    %c0_56 = arith.constant 0 : index
    %60 = vector.load %arg5[%c2_54, %c0_55, %c0_56] : memref<4x512x256xbf16, #tpu.memory_space<vmem>>, vector<1x512x256xbf16>
    %61 = vector.shape_cast %60 : vector<1x512x256xbf16> to vector<512x256xbf16>
    %cst_57 = arith.constant dense<0.000000e+00> : vector<24x256xf32>
    %62 = tpu.matmul %59, %61, %cst_57 {dimension_numbers = #tpu.dot_dimension_numbers<[1], [0], [0], [1], [0, 0, 1, 1], [], []>} : vector<24x512xbf16>, vector<512x256xbf16>, vector<24x256xf32> -> vector<24x256xf32>
    %63 = arith.addf %55, %62 : vector<24x256xf32>
    %c3_58 = arith.constant 3 : index
    %c0_59 = arith.constant 0 : index
    %c0_60 = arith.constant 0 : index
    %64 = vector.load %arg4[%c3_58, %c0_59, %c0_60] : memref<4x24x72xbf16, #tpu.memory_space<vmem>>, vector<1x24x72xbf16>
    %65 = vector.shape_cast %64 : vector<1x24x72xbf16> to vector<24x72xbf16>
    %cst_61 = arith.constant dense<0.000000e+00> : vector<24x512xf32>
    %66 = tpu.matmul %65, %37, %cst_61 {dimension_numbers = #tpu.dot_dimension_numbers<[1], [0], [0], [1], [0, 0, 1, 1], [], []>} : vector<24x72xbf16>, vector<72x512xbf16>, vector<24x512xf32> -> vector<24x512xf32>
    %67 = arith.truncf %66 : vector<24x512xf32> to vector<24x512xbf16>
    %c3_62 = arith.constant 3 : index
    %c0_63 = arith.constant 0 : index
    %c0_64 = arith.constant 0 : index
    %68 = vector.load %arg5[%c3_62, %c0_63, %c0_64] : memref<4x512x256xbf16, #tpu.memory_space<vmem>>, vector<1x512x256xbf16>
    %69 = vector.shape_cast %68 : vector<1x512x256xbf16> to vector<512x256xbf16>
    %cst_65 = arith.constant dense<0.000000e+00> : vector<24x256xf32>
    %70 = tpu.matmul %67, %69, %cst_65 {dimension_numbers = #tpu.dot_dimension_numbers<[1], [0], [0], [1], [0, 0, 1, 1], [], []>} : vector<24x512xbf16>, vector<512x256xbf16>, vector<24x256xf32> -> vector<24x256xf32>
    %71 = arith.addf %63, %70 : vector<24x256xf32>
    %cst_66 = arith.constant 0.000000e+00 : f32
    %72 = vector.broadcast %cst_66 : f32 to vector<24x256xf32>
    %73 = arith.maximumf %71, %72 : vector<24x256xf32>
    %74 = arith.truncf %73 : vector<24x256xf32> to vector<24x256xbf16>
    %c0_67 = arith.constant 0 : index
    %c0_68 = arith.constant 0 : index
    %c0_69 = arith.constant 0 : index
    %75 = vector.load %arg7[%c0_67, %c0_68, %c0_69] : memref<4x8x24xbf16, #tpu.memory_space<vmem>>, vector<1x8x24xbf16>
    %76 = vector.shape_cast %75 : vector<1x8x24xbf16> to vector<8x24xbf16>
    %cst_70 = arith.constant dense<0.000000e+00> : vector<8x256xf32>
    %77 = tpu.matmul %76, %74, %cst_70 {dimension_numbers = #tpu.dot_dimension_numbers<[1], [0], [0], [1], [0, 0, 1, 1], [], []>} : vector<8x24xbf16>, vector<24x256xbf16>, vector<8x256xf32> -> vector<8x256xf32>
    %78 = arith.truncf %77 : vector<8x256xf32> to vector<8x256xbf16>
    %c0_71 = arith.constant 0 : index
    %c0_72 = arith.constant 0 : index
    %c0_73 = arith.constant 0 : index
    %79 = vector.load %arg8[%c0_71, %c0_72, %c0_73] : memref<4x256x256xbf16, #tpu.memory_space<vmem>>, vector<1x256x256xbf16>
    %80 = vector.shape_cast %79 : vector<1x256x256xbf16> to vector<256x256xbf16>
    %cst_74 = arith.constant dense<0.000000e+00> : vector<8x256xf32>
    %81 = tpu.matmul %78, %80, %cst_74 {dimension_numbers = #tpu.dot_dimension_numbers<[1], [0], [0], [1], [0, 0, 1, 1], [], []>} : vector<8x256xbf16>, vector<256x256xbf16>, vector<8x256xf32> -> vector<8x256xf32>
    %c0_75 = arith.constant 0 : index
    %c0_76 = arith.constant 0 : index
    %82 = vector.load %arg9[%c0_75, %c0_76] : memref<1x256xf32, #tpu.memory_space<vmem>>, vector<1x256xf32>
    %83 = vector.broadcast %82 : vector<1x256xf32> to vector<8x256xf32>
    %84 = arith.addf %81, %83 : vector<8x256xf32>
    %c1_77 = arith.constant 1 : index
    %c0_78 = arith.constant 0 : index
    %c0_79 = arith.constant 0 : index
    %85 = vector.load %arg7[%c1_77, %c0_78, %c0_79] : memref<4x8x24xbf16, #tpu.memory_space<vmem>>, vector<1x8x24xbf16>
    %86 = vector.shape_cast %85 : vector<1x8x24xbf16> to vector<8x24xbf16>
    %cst_80 = arith.constant dense<0.000000e+00> : vector<8x256xf32>
    %87 = tpu.matmul %86, %74, %cst_80 {dimension_numbers = #tpu.dot_dimension_numbers<[1], [0], [0], [1], [0, 0, 1, 1], [], []>} : vector<8x24xbf16>, vector<24x256xbf16>, vector<8x256xf32> -> vector<8x256xf32>
    %88 = arith.truncf %87 : vector<8x256xf32> to vector<8x256xbf16>
    %c1_81 = arith.constant 1 : index
    %c0_82 = arith.constant 0 : index
    %c0_83 = arith.constant 0 : index
    %89 = vector.load %arg8[%c1_81, %c0_82, %c0_83] : memref<4x256x256xbf16, #tpu.memory_space<vmem>>, vector<1x256x256xbf16>
    %90 = vector.shape_cast %89 : vector<1x256x256xbf16> to vector<256x256xbf16>
    %cst_84 = arith.constant dense<0.000000e+00> : vector<8x256xf32>
    %91 = tpu.matmul %88, %90, %cst_84 {dimension_numbers = #tpu.dot_dimension_numbers<[1], [0], [0], [1], [0, 0, 1, 1], [], []>} : vector<8x256xbf16>, vector<256x256xbf16>, vector<8x256xf32> -> vector<8x256xf32>
    %92 = arith.addf %84, %91 : vector<8x256xf32>
    %c2_85 = arith.constant 2 : index
    %c0_86 = arith.constant 0 : index
    %c0_87 = arith.constant 0 : index
    %93 = vector.load %arg7[%c2_85, %c0_86, %c0_87] : memref<4x8x24xbf16, #tpu.memory_space<vmem>>, vector<1x8x24xbf16>
    %94 = vector.shape_cast %93 : vector<1x8x24xbf16> to vector<8x24xbf16>
    %cst_88 = arith.constant dense<0.000000e+00> : vector<8x256xf32>
    %95 = tpu.matmul %94, %74, %cst_88 {dimension_numbers = #tpu.dot_dimension_numbers<[1], [0], [0], [1], [0, 0, 1, 1], [], []>} : vector<8x24xbf16>, vector<24x256xbf16>, vector<8x256xf32> -> vector<8x256xf32>
    %96 = arith.truncf %95 : vector<8x256xf32> to vector<8x256xbf16>
    %c2_89 = arith.constant 2 : index
    %c0_90 = arith.constant 0 : index
    %c0_91 = arith.constant 0 : index
    %97 = vector.load %arg8[%c2_89, %c0_90, %c0_91] : memref<4x256x256xbf16, #tpu.memory_space<vmem>>, vector<1x256x256xbf16>
    %98 = vector.shape_cast %97 : vector<1x256x256xbf16> to vector<256x256xbf16>
    %cst_92 = arith.constant dense<0.000000e+00> : vector<8x256xf32>
    %99 = tpu.matmul %96, %98, %cst_92 {dimension_numbers = #tpu.dot_dimension_numbers<[1], [0], [0], [1], [0, 0, 1, 1], [], []>} : vector<8x256xbf16>, vector<256x256xbf16>, vector<8x256xf32> -> vector<8x256xf32>
    %100 = arith.addf %92, %99 : vector<8x256xf32>
    %c3_93 = arith.constant 3 : index
    %c0_94 = arith.constant 0 : index
    %c0_95 = arith.constant 0 : index
    %101 = vector.load %arg7[%c3_93, %c0_94, %c0_95] : memref<4x8x24xbf16, #tpu.memory_space<vmem>>, vector<1x8x24xbf16>
    %102 = vector.shape_cast %101 : vector<1x8x24xbf16> to vector<8x24xbf16>
    %cst_96 = arith.constant dense<0.000000e+00> : vector<8x256xf32>
    %103 = tpu.matmul %102, %74, %cst_96 {dimension_numbers = #tpu.dot_dimension_numbers<[1], [0], [0], [1], [0, 0, 1, 1], [], []>} : vector<8x24xbf16>, vector<24x256xbf16>, vector<8x256xf32> -> vector<8x256xf32>
    %104 = arith.truncf %103 : vector<8x256xf32> to vector<8x256xbf16>
    %c3_97 = arith.constant 3 : index
    %c0_98 = arith.constant 0 : index
    %c0_99 = arith.constant 0 : index
    %105 = vector.load %arg8[%c3_97, %c0_98, %c0_99] : memref<4x256x256xbf16, #tpu.memory_space<vmem>>, vector<1x256x256xbf16>
    %106 = vector.shape_cast %105 : vector<1x256x256xbf16> to vector<256x256xbf16>
    %cst_100 = arith.constant dense<0.000000e+00> : vector<8x256xf32>
    %107 = tpu.matmul %104, %106, %cst_100 {dimension_numbers = #tpu.dot_dimension_numbers<[1], [0], [0], [1], [0, 0, 1, 1], [], []>} : vector<8x256xbf16>, vector<256x256xbf16>, vector<8x256xf32> -> vector<8x256xf32>
    %108 = arith.addf %100, %107 : vector<8x256xf32>
    %cst_101 = arith.constant 0.000000e+00 : f32
    %109 = vector.broadcast %cst_101 : f32 to vector<8x256xf32>
    %110 = arith.maximumf %108, %109 : vector<8x256xf32>
    %111 = arith.truncf %110 : vector<8x256xf32> to vector<8x256xbf16>
    %c0_102 = arith.constant 0 : index
    %c0_103 = arith.constant 0 : index
    %c0_104 = arith.constant 0 : index
    %112 = vector.load %arg10[%c0_102, %c0_103, %c0_104] : memref<3x8x8xbf16, #tpu.memory_space<vmem>>, vector<1x8x8xbf16>
    %113 = vector.shape_cast %112 : vector<1x8x8xbf16> to vector<8x8xbf16>
    %cst_105 = arith.constant dense<0.000000e+00> : vector<8x256xf32>
    %114 = tpu.matmul %113, %111, %cst_105 {dimension_numbers = #tpu.dot_dimension_numbers<[1], [0], [0], [1], [0, 0, 1, 1], [], []>} : vector<8x8xbf16>, vector<8x256xbf16>, vector<8x256xf32> -> vector<8x256xf32>
    %115 = arith.truncf %114 : vector<8x256xf32> to vector<8x256xbf16>
    %c0_106 = arith.constant 0 : index
    %c0_107 = arith.constant 0 : index
    %c0_108 = arith.constant 0 : index
    %116 = vector.load %arg11[%c0_106, %c0_107, %c0_108] : memref<3x256x256xbf16, #tpu.memory_space<vmem>>, vector<1x256x256xbf16>
    %117 = vector.shape_cast %116 : vector<1x256x256xbf16> to vector<256x256xbf16>
    %cst_109 = arith.constant dense<0.000000e+00> : vector<8x256xf32>
    %118 = tpu.matmul %115, %117, %cst_109 {dimension_numbers = #tpu.dot_dimension_numbers<[1], [0], [0], [1], [0, 0, 1, 1], [], []>} : vector<8x256xbf16>, vector<256x256xbf16>, vector<8x256xf32> -> vector<8x256xf32>
    %c0_110 = arith.constant 0 : index
    %c0_111 = arith.constant 0 : index
    %119 = vector.load %arg12[%c0_110, %c0_111] : memref<1x256xf32, #tpu.memory_space<vmem>>, vector<1x256xf32>
    %120 = vector.broadcast %119 : vector<1x256xf32> to vector<8x256xf32>
    %121 = arith.addf %118, %120 : vector<8x256xf32>
    %c1_112 = arith.constant 1 : index
    %c0_113 = arith.constant 0 : index
    %c0_114 = arith.constant 0 : index
    %122 = vector.load %arg10[%c1_112, %c0_113, %c0_114] : memref<3x8x8xbf16, #tpu.memory_space<vmem>>, vector<1x8x8xbf16>
    %123 = vector.shape_cast %122 : vector<1x8x8xbf16> to vector<8x8xbf16>
    %cst_115 = arith.constant dense<0.000000e+00> : vector<8x256xf32>
    %124 = tpu.matmul %123, %111, %cst_115 {dimension_numbers = #tpu.dot_dimension_numbers<[1], [0], [0], [1], [0, 0, 1, 1], [], []>} : vector<8x8xbf16>, vector<8x256xbf16>, vector<8x256xf32> -> vector<8x256xf32>
    %125 = arith.truncf %124 : vector<8x256xf32> to vector<8x256xbf16>
    %c1_116 = arith.constant 1 : index
    %c0_117 = arith.constant 0 : index
    %c0_118 = arith.constant 0 : index
    %126 = vector.load %arg11[%c1_116, %c0_117, %c0_118] : memref<3x256x256xbf16, #tpu.memory_space<vmem>>, vector<1x256x256xbf16>
    %127 = vector.shape_cast %126 : vector<1x256x256xbf16> to vector<256x256xbf16>
    %cst_119 = arith.constant dense<0.000000e+00> : vector<8x256xf32>
    %128 = tpu.matmul %125, %127, %cst_119 {dimension_numbers = #tpu.dot_dimension_numbers<[1], [0], [0], [1], [0, 0, 1, 1], [], []>} : vector<8x256xbf16>, vector<256x256xbf16>, vector<8x256xf32> -> vector<8x256xf32>
    %129 = arith.addf %121, %128 : vector<8x256xf32>
    %c2_120 = arith.constant 2 : index
    %c0_121 = arith.constant 0 : index
    %c0_122 = arith.constant 0 : index
    %130 = vector.load %arg10[%c2_120, %c0_121, %c0_122] : memref<3x8x8xbf16, #tpu.memory_space<vmem>>, vector<1x8x8xbf16>
    %131 = vector.shape_cast %130 : vector<1x8x8xbf16> to vector<8x8xbf16>
    %cst_123 = arith.constant dense<0.000000e+00> : vector<8x256xf32>
    %132 = tpu.matmul %131, %111, %cst_123 {dimension_numbers = #tpu.dot_dimension_numbers<[1], [0], [0], [1], [0, 0, 1, 1], [], []>} : vector<8x8xbf16>, vector<8x256xbf16>, vector<8x256xf32> -> vector<8x256xf32>
    %133 = arith.truncf %132 : vector<8x256xf32> to vector<8x256xbf16>
    %c2_124 = arith.constant 2 : index
    %c0_125 = arith.constant 0 : index
    %c0_126 = arith.constant 0 : index
    %134 = vector.load %arg11[%c2_124, %c0_125, %c0_126] : memref<3x256x256xbf16, #tpu.memory_space<vmem>>, vector<1x256x256xbf16>
    %135 = vector.shape_cast %134 : vector<1x256x256xbf16> to vector<256x256xbf16>
    %cst_127 = arith.constant dense<0.000000e+00> : vector<8x256xf32>
    %136 = tpu.matmul %133, %135, %cst_127 {dimension_numbers = #tpu.dot_dimension_numbers<[1], [0], [0], [1], [0, 0, 1, 1], [], []>} : vector<8x256xbf16>, vector<256x256xbf16>, vector<8x256xf32> -> vector<8x256xf32>
    %137 = arith.addf %129, %136 : vector<8x256xf32>
    %cst_128 = arith.constant 0.000000e+00 : f32
    %138 = vector.broadcast %cst_128 : f32 to vector<8x256xf32>
    %139 = arith.maximumf %137, %138 : vector<8x256xf32>
    %140 = arith.truncf %139 : vector<8x256xf32> to vector<8x256xbf16>
    %c0_129 = arith.constant 0 : index
    %c0_130 = arith.constant 0 : index
    %c0_131 = arith.constant 0 : index
    %141 = vector.load %arg13[%c0_129, %c0_130, %c0_131] : memref<3x8x8xbf16, #tpu.memory_space<vmem>>, vector<1x8x8xbf16>
    %142 = vector.shape_cast %141 : vector<1x8x8xbf16> to vector<8x8xbf16>
    %cst_132 = arith.constant dense<0.000000e+00> : vector<8x256xf32>
    %143 = tpu.matmul %142, %140, %cst_132 {dimension_numbers = #tpu.dot_dimension_numbers<[1], [0], [0], [1], [0, 0, 1, 1], [], []>} : vector<8x8xbf16>, vector<8x256xbf16>, vector<8x256xf32> -> vector<8x256xf32>
    %144 = arith.truncf %143 : vector<8x256xf32> to vector<8x256xbf16>
    %c0_133 = arith.constant 0 : index
    %c0_134 = arith.constant 0 : index
    %c0_135 = arith.constant 0 : index
    %145 = vector.load %arg14[%c0_133, %c0_134, %c0_135] : memref<3x256x64xbf16, #tpu.memory_space<vmem>>, vector<1x256x64xbf16>
    %146 = vector.shape_cast %145 : vector<1x256x64xbf16> to vector<256x64xbf16>
    %cst_136 = arith.constant dense<0.000000e+00> : vector<8x64xf32>
    %147 = tpu.matmul %144, %146, %cst_136 {dimension_numbers = #tpu.dot_dimension_numbers<[1], [0], [0], [1], [0, 0, 1, 1], [], []>} : vector<8x256xbf16>, vector<256x64xbf16>, vector<8x64xf32> -> vector<8x64xf32>
    %c0_137 = arith.constant 0 : index
    %c0_138 = arith.constant 0 : index
    %148 = vector.load %arg15[%c0_137, %c0_138] : memref<1x64xf32, #tpu.memory_space<vmem>>, vector<1x64xf32>
    %149 = vector.broadcast %148 : vector<1x64xf32> to vector<8x64xf32>
    %150 = arith.addf %147, %149 : vector<8x64xf32>
    %c1_139 = arith.constant 1 : index
    %c0_140 = arith.constant 0 : index
    %c0_141 = arith.constant 0 : index
    %151 = vector.load %arg13[%c1_139, %c0_140, %c0_141] : memref<3x8x8xbf16, #tpu.memory_space<vmem>>, vector<1x8x8xbf16>
    %152 = vector.shape_cast %151 : vector<1x8x8xbf16> to vector<8x8xbf16>
    %cst_142 = arith.constant dense<0.000000e+00> : vector<8x256xf32>
    %153 = tpu.matmul %152, %140, %cst_142 {dimension_numbers = #tpu.dot_dimension_numbers<[1], [0], [0], [1], [0, 0, 1, 1], [], []>} : vector<8x8xbf16>, vector<8x256xbf16>, vector<8x256xf32> -> vector<8x256xf32>
    %154 = arith.truncf %153 : vector<8x256xf32> to vector<8x256xbf16>
    %c1_143 = arith.constant 1 : index
    %c0_144 = arith.constant 0 : index
    %c0_145 = arith.constant 0 : index
    %155 = vector.load %arg14[%c1_143, %c0_144, %c0_145] : memref<3x256x64xbf16, #tpu.memory_space<vmem>>, vector<1x256x64xbf16>
    %156 = vector.shape_cast %155 : vector<1x256x64xbf16> to vector<256x64xbf16>
    %cst_146 = arith.constant dense<0.000000e+00> : vector<8x64xf32>
    %157 = tpu.matmul %154, %156, %cst_146 {dimension_numbers = #tpu.dot_dimension_numbers<[1], [0], [0], [1], [0, 0, 1, 1], [], []>} : vector<8x256xbf16>, vector<256x64xbf16>, vector<8x64xf32> -> vector<8x64xf32>
    %158 = arith.addf %150, %157 : vector<8x64xf32>
    %c2_147 = arith.constant 2 : index
    %c0_148 = arith.constant 0 : index
    %c0_149 = arith.constant 0 : index
    %159 = vector.load %arg13[%c2_147, %c0_148, %c0_149] : memref<3x8x8xbf16, #tpu.memory_space<vmem>>, vector<1x8x8xbf16>
    %160 = vector.shape_cast %159 : vector<1x8x8xbf16> to vector<8x8xbf16>
    %cst_150 = arith.constant dense<0.000000e+00> : vector<8x256xf32>
    %161 = tpu.matmul %160, %140, %cst_150 {dimension_numbers = #tpu.dot_dimension_numbers<[1], [0], [0], [1], [0, 0, 1, 1], [], []>} : vector<8x8xbf16>, vector<8x256xbf16>, vector<8x256xf32> -> vector<8x256xf32>
    %162 = arith.truncf %161 : vector<8x256xf32> to vector<8x256xbf16>
    %c2_151 = arith.constant 2 : index
    %c0_152 = arith.constant 0 : index
    %c0_153 = arith.constant 0 : index
    %163 = vector.load %arg14[%c2_151, %c0_152, %c0_153] : memref<3x256x64xbf16, #tpu.memory_space<vmem>>, vector<1x256x64xbf16>
    %164 = vector.shape_cast %163 : vector<1x256x64xbf16> to vector<256x64xbf16>
    %cst_154 = arith.constant dense<0.000000e+00> : vector<8x64xf32>
    %165 = tpu.matmul %162, %164, %cst_154 {dimension_numbers = #tpu.dot_dimension_numbers<[1], [0], [0], [1], [0, 0, 1, 1], [], []>} : vector<8x256xbf16>, vector<256x64xbf16>, vector<8x64xf32> -> vector<8x64xf32>
    %166 = arith.addf %158, %165 : vector<8x64xf32>
    %cst_155 = arith.constant 0.000000e+00 : f32
    %167 = vector.broadcast %cst_155 : f32 to vector<8x64xf32>
    %168 = arith.maximumf %166, %167 : vector<8x64xf32>
    %169 = arith.truncf %168 : vector<8x64xf32> to vector<8x64xbf16>
    %c0_156 = arith.constant 0 : index
    %c0_157 = arith.constant 0 : index
    %170 = vector.load %arg16[%c0_156, %c0_157] : memref<64x128xbf16, #tpu.memory_space<vmem>>, vector<64x128xbf16>
    %cst_158 = arith.constant dense<0.000000e+00> : vector<8x128xf32>
    %171 = tpu.matmul %169, %170, %cst_158 {dimension_numbers = #tpu.dot_dimension_numbers<[1], [0], [0], [1], [0, 0, 1, 1], [], []>} : vector<8x64xbf16>, vector<64x128xbf16>, vector<8x128xf32> -> vector<8x128xf32>
    %c0_159 = arith.constant 0 : index
    %c0_160 = arith.constant 0 : index
    %172 = vector.load %arg17[%c0_159, %c0_160] : memref<1x128xf32, #tpu.memory_space<vmem>>, vector<1x128xf32>
    %173 = vector.broadcast %172 : vector<1x128xf32> to vector<8x128xf32>
    %174 = arith.addf %171, %173 : vector<8x128xf32>
    %cst_161 = arith.constant dense<0xFF800000> : vector<8xf32>
    %175 = vector.multi_reduction <maximumf>, %174, %cst_161 [1] : vector<8x128xf32> to vector<8xf32>
    %176 = vector.shape_cast %175 : vector<8xf32> to vector<8x1xf32>
    %177 = vector.broadcast %176 : vector<8x1xf32> to vector<8x128xf32>
    %178 = arith.subf %174, %177 : vector<8x128xf32>
    %179 = math.exp %178 : vector<8x128xf32>
    %cst_162 = arith.constant dense<0.000000e+00> : vector<8xf32>
    %180 = vector.multi_reduction <add>, %179, %cst_162 [1] : vector<8x128xf32> to vector<8xf32>
    %181 = vector.shape_cast %180 : vector<8xf32> to vector<8x1xf32>
    %182 = math.log %181 : vector<8x1xf32>
    %183 = vector.broadcast %182 : vector<8x1xf32> to vector<8x128xf32>
    %184 = arith.subf %178, %183 : vector<8x128xf32>
    %c0_163 = arith.constant 0 : index
    %c0_164 = arith.constant 0 : index
    %185 = vector.load %arg18[%c0_163, %c0_164] : memref<8x128xf32, #tpu.memory_space<vmem>>, vector<8x128xf32>
    tpu.vector_store %arg18[%c0_163, %c0_164], %184 {strides = array<i32>} : memref<8x128xf32, #tpu.memory_space<vmem>>, vector<8x128xf32>,
    return
  }
}

</mosaic_0001>

<llo_original>
// kernel: softmax_1d_forward.1
$region0: #{softmax_1d_forward.1}
  #allocation0 [shape = 'u32[]', space=smem, size = 0x4, offset = 0x4, fixed_abs, tag = 'smem constant byte address 0x4 - core index']
  #allocation1 [shape = 'u32[144,128]{1,0:T(1,128)}', space=vmem, size = 0x12000, scoped, tag = 'internal scratch']
  %s0 = inlined_call_operand.vmem [shape: bf16[200,4], index: 0, kind: input, shape index: {}]
  %s1 = inlined_call_operand.vmem [shape: bf16[4,72,200], index: 1, kind: input, shape index: {}]
  %s2 = inlined_call_operand.vmem [shape: bf16[4,4,512], index: 2, kind: input, shape index: {}]
  %s3 = inlined_call_operand.vmem [shape: f32[1,512], index: 3, kind: input, shape index: {}]
  %s4 = inlined_call_operand.vmem [shape: bf16[4,24,72], index: 4, kind: input, shape index: {}]
  %s5 = inlined_call_operand.vmem [shape: bf16[4,512,256], index: 5, kind: input, shape index: {}]
  %s6 = inlined_call_operand.vmem [shape: f32[1,256], index: 6, kind: input, shape index: {}]
  %s7 = inlined_call_operand.vmem [shape: bf16[4,8,24], index: 7, kind: input, shape index: {}]
  %s8 = inlined_call_operand.vmem [shape: bf16[4,256,256], index: 8, kind: input, shape index: {}]
  %s9 = inlined_call_operand.vmem [shape: f32[1,256], index: 9, kind: input, shape index: {}]
  %s10 = inlined_call_operand.vmem [shape: bf16[3,8,8], index: 10, kind: input, shape index: {}]
  %s11 = inlined_call_operand.vmem [shape: bf16[3,256,256], index: 11, kind: input, shape index: {}]
  %s12 = inlined_call_operand.vmem [shape: f32[1,256], index: 12, kind: input, shape index: {}]
  %s13 = inlined_call_operand.vmem [shape: bf16[3,8,8], index: 13, kind: input, shape index: {}]
  %s14 = inlined_call_operand.vmem [shape: bf16[3,256,64], index: 14, kind: input, shape index: {}]
  %s15 = inlined_call_operand.vmem [shape: f32[1,64], index: 15, kind: input, shape index: {}]
  %s16 = inlined_call_operand.vmem [shape: bf16[64,128], index: 16, kind: input, shape index: {}]
  %s17 = inlined_call_operand.vmem [shape: f32[1,128], index: 17, kind: input, shape index: {}]
  %s18 = inlined_call_operand.vmem [shape: f32[8,128], index: 18, kind: output, shape index: {}]
  %s19 = sld [smem:[#allocation0]]
  $region82: #{softmax_1d_forward.1} parent=0
    _
  %s21 = ssub.s32 1, %s19
  %s22 = scalar_select 0, %s21, %s19
  // Predicated region
  $region2: #{softmax_1d_forward.1} parent=0 // pred_check
    _
  $region3: #{softmax_1d_forward.1} parent=0 // pred_check_branch
    %24 = sbr.rel (0) target = $region5
  $region4: #{softmax_1d_forward.1} parent=0 // pred_region
    _
  $region5: #{softmax_1d_forward.1} parent=0 // pred_fallthru
    _
  // Predicated region
  $region6: #{softmax_1d_forward.1} parent=0 // pred_check
    _
  $region7: #{softmax_1d_forward.1} parent=0 // pred_check_branch
    %26 = sbr.rel (0) target = $region9
  $region8: #{softmax_1d_forward.1} parent=0 // pred_region
    _
  $region9: #{softmax_1d_forward.1} parent=0 // pred_fallthru
    _
  // Predicated region
  $region10: #{softmax_1d_forward.1} parent=0 // pred_check
    _
  $region11: #{softmax_1d_forward.1} parent=0 // pred_check_branch
    %28 = sbr.rel (0) target = $region13
  $region12: #{softmax_1d_forward.1} parent=0 // pred_region
    _
  $region13: #{softmax_1d_forward.1} parent=0 // pred_fallthru
    _
  // Predicated region
  $region14: #{softmax_1d_forward.1} parent=0 // pred_check
    _
  $region15: #{softmax_1d_forward.1} parent=0 // pred_check_branch
    %30 = sbr.rel (0) target = $region17
  $region16: #{softmax_1d_forward.1} parent=0 // pred_region
    _
  $region17: #{softmax_1d_forward.1} parent=0 // pred_fallthru
    _
  // Predicated region
  $region18: #{softmax_1d_forward.1} parent=0 // pred_check
    _
  $region19: #{softmax_1d_forward.1} parent=0 // pred_check_branch
    %32 = sbr.rel (0) target = $region21
  $region20: #{softmax_1d_forward.1} parent=0 // pred_region
    _
  $region21: #{softmax_1d_forward.1} parent=0 // pred_fallthru
    _
  // Predicated region
  $region22: #{softmax_1d_forward.1} parent=0 // pred_check
    _
  $region23: #{softmax_1d_forward.1} parent=0 // pred_check_branch
    %34 = sbr.rel (0) target = $region25
  $region24: #{softmax_1d_forward.1} parent=0 // pred_region
    _
  $region25: #{softmax_1d_forward.1} parent=0 // pred_fallthru
    _
  // Predicated region
  $region26: #{softmax_1d_forward.1} parent=0 // pred_check
    _
  $region27: #{softmax_1d_forward.1} parent=0 // pred_check_branch
    %36 = sbr.rel (0) target = $region29
  $region28: #{softmax_1d_forward.1} parent=0 // pred_region
    _
  $region29: #{softmax_1d_forward.1} parent=0 // pred_fallthru
    _
  // Predicated region
  $region30: #{softmax_1d_forward.1} parent=0 // pred_check
    _
  $region31: #{softmax_1d_forward.1} parent=0 // pred_check_branch
    %38 = sbr.rel (0) target = $region33
  $region32: #{softmax_1d_forward.1} parent=0 // pred_region
    _
  $region33: #{softmax_1d_forward.1} parent=0 // pred_fallthru
    _
  // Predicated region
  $region34: #{softmax_1d_forward.1} parent=0 // pred_check
    _
  $region35: #{softmax_1d_forward.1} parent=0 // pred_check_branch
    %40 = sbr.rel (0) target = $region37
  $region36: #{softmax_1d_forward.1} parent=0 // pred_region
    _
  $region37: #{softmax_1d_forward.1} parent=0 // pred_fallthru
    _
  // Predicated region
  $region38: #{softmax_1d_forward.1} parent=0 // pred_check
    _
  $region39: #{softmax_1d_forward.1} parent=0 // pred_check_branch
    %42 = sbr.rel (0) target = $region41
  $region40: #{softmax_1d_forward.1} parent=0 // pred_region
    _
  $region41: #{softmax_1d_forward.1} parent=0 // pred_fallthru
    _
  // Predicated region
  $region42: #{softmax_1d_forward.1} parent=0 // pred_check
    _
  $region43: #{softmax_1d_forward.1} parent=0 // pred_check_branch
    %44 = sbr.rel (0) target = $region45
  $region44: #{softmax_1d_forward.1} parent=0 // pred_region
    _
  $region45: #{softmax_1d_forward.1} parent=0 // pred_fallthru
    _
  // Predicated region
  $region46: #{softmax_1d_forward.1} parent=0 // pred_check
    _
  $region47: #{softmax_1d_forward.1} parent=0 // pred_check_branch
    %46 = sbr.rel (0) target = $region49
  $region48: #{softmax_1d_forward.1} parent=0 // pred_region
    _
  $region49: #{softmax_1d_forward.1} parent=0 // pred_fallthru
    _
  // Predicated region
  $region50: #{softmax_1d_forward.1} parent=0 // pred_check
    _
  $region51: #{softmax_1d_forward.1} parent=0 // pred_check_branch
    %48 = sbr.rel (0) target = $region53
  $region52: #{softmax_1d_forward.1} parent=0 // pred_region
    _
  $region53: #{softmax_1d_forward.1} parent=0 // pred_fallthru
    _
  // Predicated region
  $region54: #{softmax_1d_forward.1} parent=0 // pred_check
    _
  $region55: #{softmax_1d_forward.1} parent=0 // pred_check_branch
    %50 = sbr.rel (0) target = $region57
  $region56: #{softmax_1d_forward.1} parent=0 // pred_region
    _
  $region57: #{softmax_1d_forward.1} parent=0 // pred_fallthru
    _
  // Predicated region
  $region58: #{softmax_1d_forward.1} parent=0 // pred_check
    _
  $region59: #{softmax_1d_forward.1} parent=0 // pred_check_branch
    %52 = sbr.rel (0) target = $region61
  $region60: #{softmax_1d_forward.1} parent=0 // pred_region
    _
  $region61: #{softmax_1d_forward.1} parent=0 // pred_fallthru
    _
  // Predicated region
  $region62: #{softmax_1d_forward.1} parent=0 // pred_check
    _
  $region63: #{softmax_1d_forward.1} parent=0 // pred_check_branch
    %54 = sbr.rel (0) target = $region65
  $region64: #{softmax_1d_forward.1} parent=0 // pred_region
    _
  $region65: #{softmax_1d_forward.1} parent=0 // pred_fallthru
    _
  // Predicated region
  $region66: #{softmax_1d_forward.1} parent=0 // pred_check
    _
  $region67: #{softmax_1d_forward.1} parent=0 // pred_check_branch
    %56 = sbr.rel (0) target = $region69
  $region68: #{softmax_1d_forward.1} parent=0 // pred_region
    _
  $region69: #{softmax_1d_forward.1} parent=0 // pred_fallthru
    _
  // Predicated region
  $region70: #{softmax_1d_forward.1} parent=0 // pred_check
    _
  $region71: #{softmax_1d_forward.1} parent=0 // pred_check_branch
    %58 = sbr.rel (0) target = $region73
  $region72: #{softmax_1d_forward.1} parent=0 // pred_region
    _
  $region73: #{softmax_1d_forward.1} parent=0 // pred_fallthru
    _
  %v60 = vld [vmem:[%s0] sm:$0xf]
  %v61 = vld [vmem:[%s0 + $0x4] sm:$0xf]
  %v62 = vld [vmem:[%s0 + $0x8] sm:$0xf]
  %v63 = vld [vmem:[%s0 + $0xc] sm:$0xf]
  %v64 = vld [vmem:[%s0 + $0x10] sm:$0xf]
  %v65 = vld [vmem:[%s0 + $0x14] sm:$0xf]
  %v66 = vld [vmem:[%s0 + $0x18] sm:$0xf]
  %v67 = vld [vmem:[%s0 + $0x1c] sm:$0xf]
  %v68 = vld [vmem:[%s0 + $0x20] sm:$0xf]
  %v69 = vld [vmem:[%s0 + $0x24] sm:$0xf]
  %v70 = vld [vmem:[%s0 + $0x28] sm:$0xf]
  %v71 = vld [vmem:[%s0 + $0x2c] sm:$0xf]
  %v72 = vld [vmem:[%s0 + $0x30] sm:$0xf]
  %v73 = vld [vmem:[%s0 + $0x34] sm:$0xf]
  %v74 = vld [vmem:[%s0 + $0x38] sm:$0xf]
  %v75 = vld [vmem:[%s0 + $0x3c] sm:$0xf]
  %v76 = vld [vmem:[%s0 + $0x40] sm:$0xf]
  %v77 = vld [vmem:[%s0 + $0x44] sm:$0xf]
  %v78 = vld [vmem:[%s0 + $0x48] sm:$0xf]
  %v79 = vld [vmem:[%s0 + $0x4c] sm:$0xf]
  %v80 = vld [vmem:[%s0 + $0x50] sm:$0xf]
  %v81 = vld [vmem:[%s0 + $0x54] sm:$0xf]
  %v82 = vld [vmem:[%s0 + $0x58] sm:$0xf]
  %v83 = vld [vmem:[%s0 + $0x5c] sm:$0xf]
  %v84 = vld [vmem:[%s0 + $0x60] sm:$0xf]
  %v85 = vld [vmem:[%s1] sm:$0xff]
  %v86 = vld [vmem:[%s1 + $0x8] sm:$0xff]
  %v87 = vld [vmem:[%s1 + $0x10] sm:$0xff]
  %v88 = vld [vmem:[%s1 + $0x18] sm:$0xff]
  %v89 = vld [vmem:[%s1 + $0x20] sm:$0xff]
  %v90 = vld [vmem:[%s1 + $0x28] sm:$0xff]
  %v91 = vld [vmem:[%s1 + $0x30] sm:$0xff]
  %v92 = vld [vmem:[%s1 + $0x38] sm:$0xff]
  %v93 = vld [vmem:[%s1 + $0x40] sm:$0xff]
  %v103 = vunpack.c.l.b16 %v85
  %v104 = vunpack.c.h.b16 %v85
  %v105 = vunpack.c.l.b16 %v86
  %v106 = vunpack.c.h.b16 %v86
  %v107 = vunpack.c.l.b16 %v87
  %v108 = vunpack.c.h.b16 %v87
  %v109 = vunpack.c.l.b16 %v88
  %v110 = vunpack.c.h.b16 %v88
  %v111 = vunpack.c.l.b16 %v89
  %v112 = vunpack.c.h.b16 %v89
  %v113 = vunpack.c.l.b16 %v90
  %v114 = vunpack.c.h.b16 %v90
  %v115 = vunpack.c.l.b16 %v91
  %v116 = vunpack.c.h.b16 %v91
  %v117 = vunpack.c.l.b16 %v92
  %v118 = vunpack.c.h.b16 %v92
  %v119 = vunpack.c.l.b16 %v93
  %v120 = vunpack.c.h.b16 %v93
  %v121 = vpack.c.b16 %v105, %v103
  %v122 = vpack.c.b16 %v106, %v104
  %v123 = vpack.c.b16 %v109, %v107
  %v124 = vpack.c.b16 %v110, %v108
  %v125 = vpack.c.b16 %v113, %v111
  %v126 = vpack.c.b16 %v114, %v112
  %v127 = vpack.c.b16 %v117, %v115
  %v128 = vpack.c.b16 %v118, %v116
  %v129 = vpack.c.b16 %v119, %v119
  %v130 = vpack.c.b16 %v120, %v120
  %v161 = vunpack.c.l.b16 %v60
  %v162 = vunpack.c.l.b16 %v61
  %v163 = vunpack.c.l.b16 %v62
  %v164 = vunpack.c.l.b16 %v63
  %v165 = vunpack.c.l.b16 %v64
  %v166 = vunpack.c.l.b16 %v65
  %v167 = vunpack.c.l.b16 %v66
  %v168 = vunpack.c.l.b16 %v67
  %v169 = vunpack.c.l.b16 %v68
  %v170 = vunpack.c.l.b16 %v69
  %v171 = vunpack.c.l.b16 %v70
  %v172 = vunpack.c.l.b16 %v71
  %v173 = vunpack.c.l.b16 %v72
  %v174 = vunpack.c.l.b16 %v73
  %v175 = vunpack.c.l.b16 %v74
  %v176 = vunpack.c.l.b16 %v75
  %v177 = vunpack.c.l.b16 %v76
  %v178 = vunpack.c.l.b16 %v77
  %v179 = vunpack.c.l.b16 %v78
  %v180 = vunpack.c.l.b16 %v79
  %v181 = vunpack.c.l.b16 %v80
  %v182 = vunpack.c.l.b16 %v81
  %v183 = vunpack.c.l.b16 %v82
  %v184 = vunpack.c.l.b16 %v83
  %v185 = vunpack.c.l.b16 %v84
  %v186 = vpack.c.b16 %v162, %v161
  %v187 = vpack.c.b16 %v164, %v163
  %v188 = vpack.c.b16 %v166, %v165
  %v189 = vpack.c.b16 %v168, %v167
  %v190 = vpack.c.b16 %v170, %v169
  %v191 = vpack.c.b16 %v172, %v171
  %v192 = vpack.c.b16 %v174, %v173
  %v193 = vpack.c.b16 %v176, %v175
  %v194 = vpack.c.b16 %v178, %v177
  %v195 = vpack.c.b16 %v180, %v179
  %v196 = vpack.c.b16 %v182, %v181
  %v197 = vpack.c.b16 %v184, %v183
  %v198 = vpack.c.b16 %v185, %v185
  %vm211 = vcmask 588800
  %v213 = vsel %vm211, %v122, 0
  %v216 = vsel %vm211, %v124, 0
  %v219 = vsel %vm211, %v126, 0
  %v222 = vsel %vm211, %v128, 0
  %v225 = vsel %vm211, %v130, 0
  %vm227 = vcmask 1043456
  %v229 = vsel %vm227, %v198, 0
  %231 = vmatprep.subr.bf16.mxu0 0
  %232 = vmatpush1.bf16.msra.mxu0 %v186
  %233 = vmatprep.subr.bf16.mxu0 0
  %234 = vmatpush1.bf16.msra.mxu0 %v187
  %235 = vmatprep.subr.bf16.mxu0 0
  %236 = vmatpush1.bf16.msra.mxu0 %v188
  %237 = vmatprep.subr.bf16.mxu0 0
  %238 = vmatpush1.bf16.msra.mxu0 %v189
  %239 = vmatprep.subr.bf16.mxu0 0
  %240 = vmatpush1.bf16.msra.mxu0 %v190
  %241 = vmatprep.subr.bf16.mxu0 0
  %242 = vmatpush1.bf16.msra.mxu0 %v191
  %243 = vmatprep.subr.bf16.mxu0 0
  %244 = vmatpush1.bf16.msra.mxu0 %v192
  %245 = vmatprep.subr.bf16.mxu0 0
  %246 = vmatpush1.bf16.msra.mxu0 %v193
  %247 = vmatprep.subr.bf16.mxu0 0
  %248 = vmatpush1.bf16.msra.mxu0 %v194
  %249 = vmatprep.subr.bf16.mxu0 0
  %250 = vmatpush1.bf16.msra.mxu0 %v195
  %251 = vmatprep.subr.bf16.mxu0 0
  %252 = vmatpush1.bf16.msra.mxu0 %v196
  %253 = vmatprep.subr.bf16.mxu0 0
  %254 = vmatpush1.bf16.msra.mxu0 %v197
  %255 = vmatprep.subr.bf16.mxu0 0
  %256 = vmatpush1.bf16.msra.mxu0 %v229
  %257 = vmatprep.subr.bf16.mxu0 0
  %258 = vmatpush1.bf16.msra.mxu0 0
  %259 = vmatprep.subr.bf16.mxu0 0
  %260 = vmatpush1.bf16.msra.mxu0 0
  %261 = vmatprep.subr.bf16.mxu0 0
  %262 = vmatpush1.bf16.msra.mxu0 0
  %263 = vmatprep.mubr.bf16.mxu0 %v213
  %264 = vmatmul.mubr.bf16.gmra.mrb[0].mxu0 %v121
  %v265 = vpop.f32.mrb[0].mxu0
  %v266 = vadd.f32 0.0, %v265
  %v267 = vpop.f32.mrb[0].mxu0
  %v268 = vpop.f32.mrb[0].mxu0
  %v269 = vadd.f32 0.0, %v268
  %v270 = vpop.f32.mrb[0].mxu0
  %271 = vmatprep.mubr.bf16.mxu0 %v216
  %272 = vmatmul.mubr.bf16.gmra.mrb[0].mxu0 %v123
  %v273 = vpop.f32.mrb[0].mxu0
  %v274 = vadd.f32 0.0, %v273
  %v275 = vpop.f32.mrb[0].mxu0
  %v276 = vpop.f32.mrb[0].mxu0
  %v277 = vadd.f32 0.0, %v276
  %v278 = vpop.f32.mrb[0].mxu0
  %279 = vmatprep.mubr.bf16.mxu0 %v219
  %280 = vmatmul.mubr.bf16.gmra.mrb[0].mxu0 %v125
  %v281 = vpop.f32.mrb[0].mxu0
  %v282 = vadd.f32 0.0, %v281
  %v283 = vpop.f32.mrb[0].mxu0
  %v284 = vpop.f32.mrb[0].mxu0
  %v285 = vadd.f32 0.0, %v284
  %v286 = vpop.f32.mrb[0].mxu0
  %287 = vmatprep.mubr.bf16.mxu0 %v222
  %288 = vmatmul.mubr.bf16.gmra.mrb[0].mxu0 %v127
  %v289 = vpop.f32.mrb[0].mxu0
  %v290 = vadd.f32 0.0, %v289
  %v291 = vpop.f32.mrb[0].mxu0
  %v292 = vpop.f32.mrb[0].mxu0
  %v293 = vadd.f32 0.0, %v292
  %v294 = vpop.f32.mrb[0].mxu0
  %295 = vmatprep.mubr.bf16.mxu0 %v225
  %296 = vmatmul.mubr.bf16.gmra.mrb[0].mxu0 %v129
  %v297 = vpop.f32.mrb[0].mxu0
  %v298 = vadd.f32 0.0, %v297
  %v299 = vpop.f32.mrb[0].mxu0
  %v300 = vpop.f32.mrb[0].mxu0
  %v301 = vpop.f32.mrb[0].mxu0
  %302 = vdwg.mxu0
  %v303 = vpack.c.bf16 %v269, %v266
  %v304 = vpack.c.bf16 %v277, %v274
  %v305 = vpack.c.bf16 %v285, %v282
  %v306 = vpack.c.bf16 %v293, %v290
  %v307 = vpack.c.bf16 %v298, %v298
  %v308 = vld [vmem:[%s2] sm:$0xff]
  %v309 = vld [vmem:[%s3] sm:$0xf]
  %v311 = vlaneseq
  %v312 = vshrl.u32 %v311, 7
  %v313 = vsub.s32 0, %v312
  %v314 = vrot.slane %v309, %v313
  %v315 = vlaneseq
  %v316 = vshrl.u32 %v315, 7
  %v317 = vsub.s32 1, %v316
  %v318 = vrot.slane %v309, %v317
  %v319 = vlaneseq
  %v320 = vshrl.u32 %v319, 7
  %v321 = vsub.s32 2, %v320
  %v322 = vrot.slane %v309, %v321
  %v323 = vlaneseq
  %v324 = vshrl.u32 %v323, 7
  %v325 = vsub.s32 3, %v324
  %v326 = vrot.slane %v309, %v325
  %v332 = vcombine.high %v308, %v308
  %v334 = vunpack.c.l.s4 1983009808
  %v335 = vunpack.c.0.s8 %v334
  %v336 = vlaneseq
  %v337 = vshrl.u32 %v336, 7
  %v338 = vsub.s32 %v335, %v337
  %v339 = vrot.slane %v308, %v338
  %v341 = vunpack.c.l.s4 1983009808
  %v342 = vunpack.c.0.s8 %v341
  %v343 = vlaneseq
  %v344 = vshrl.u32 %v343, 7
  %v345 = vsub.s32 %v342, %v344
  %v346 = vrot.slane %v332, %v345
  %v347 = vcombine.high %v339, %v339
  %v348 = vcombine.high %v346, %v346
  %vm349 = vcmask 31744
  %v351 = vsel %vm349, %v303, 0
  %v354 = vsel %vm349, %v304, 0
  %v357 = vsel %vm349, %v305, 0
  %v360 = vsel %vm349, %v306, 0
  %v363 = vsel %vm349, %v307, 0
  %vm365 = vcmask 1041408
  %v367 = vsel %vm365, %v339, 0
  %v370 = vsel %vm365, %v347, 0
  %v373 = vsel %vm365, %v346, 0
  %v376 = vsel %vm365, %v348, 0
  %378 = vmatprep.subr.bf16.mxu0 %v370
  %379 = vmatpush1.bf16.msra.mxu0 %v367
  %380 = vmatprep.subr.bf16.mxu0 0
  %381 = vmatpush1.bf16.msra.mxu0 0
  %382 = vmatprep.subr.bf16.mxu0 0
  %383 = vmatpush1.bf16.msra.mxu0 0
  %384 = vmatprep.subr.bf16.mxu0 0
  %385 = vmatpush1.bf16.msra.mxu0 0
  %386 = vmatprep.subr.bf16.mxu0 0
  %387 = vmatpush1.bf16.msra.mxu0 0
  %388 = vmatprep.subr.bf16.mxu0 0
  %389 = vmatpush1.bf16.msra.mxu0 0
  %390 = vmatprep.subr.bf16.mxu0 0
  %391 = vmatpush1.bf16.msra.mxu0 0
  %392 = vmatprep.subr.bf16.mxu0 0
  %393 = vmatpush1.bf16.msra.mxu0 0
  %394 = vmatprep.subr.bf16.mxu0 0
  %395 = vmatpush1.bf16.msra.mxu0 0
  %396 = vmatprep.subr.bf16.mxu0 0
  %397 = vmatpush1.bf16.msra.mxu0 0
  %398 = vmatprep.subr.bf16.mxu0 0
  %399 = vmatpush1.bf16.msra.mxu0 0
  %400 = vmatprep.subr.bf16.mxu0 0
  %401 = vmatpush1.bf16.msra.mxu0 0
  %402 = vmatprep.subr.bf16.mxu0 0
  %403 = vmatpush1.bf16.msra.mxu0 0
  %404 = vmatprep.subr.bf16.mxu0 0
  %405 = vmatpush1.bf16.msra.mxu0 0
  %406 = vmatprep.subr.bf16.mxu0 0
  %407 = vmatpush1.bf16.msra.mxu0 0
  %408 = vmatprep.subr.bf16.mxu0 0
  %409 = vmatpush1.bf16.msra.mxu0 0
  %410 = vmatprep.mubr.bf16.mxu0 0
  %411 = vmatmul.mubr.bf16.gmra.mrb[0].mxu0 %v351
  %v412 = vpop.f32.mrb[0].mxu0
  %v413 = vadd.f32 %v314, %v412
  %v414 = vpop.f32.mrb[0].mxu0
  %v415 = vadd.f32 %v318, %v414
  %v416 = vpop.f32.mrb[0].mxu0
  %v417 = vadd.f32 %v314, %v416
  %v418 = vpop.f32.mrb[0].mxu0
  %v419 = vadd.f32 %v318, %v418
  %420 = vmatprep.mubr.bf16.mxu0 0
  %421 = vmatmul.mubr.bf16.gmra.mrb[0].mxu0 %v354
  %v422 = vpop.f32.mrb[0].mxu0
  %v423 = vadd.f32 %v314, %v422
  %v424 = vpop.f32.mrb[0].mxu0
  %v425 = vadd.f32 %v318, %v424
  %v426 = vpop.f32.mrb[0].mxu0
  %v427 = vadd.f32 %v314, %v426
  %v428 = vpop.f32.mrb[0].mxu0
  %v429 = vadd.f32 %v318, %v428
  %430 = vmatprep.mubr.bf16.mxu0 0
  %431 = vmatmul.mubr.bf16.gmra.mrb[0].mxu0 %v357
  %v432 = vpop.f32.mrb[0].mxu0
  %v433 = vadd.f32 %v314, %v432
  %v434 = vpop.f32.mrb[0].mxu0
  %v435 = vadd.f32 %v318, %v434
  %v436 = vpop.f32.mrb[0].mxu0
  %v437 = vadd.f32 %v314, %v436
  %v438 = vpop.f32.mrb[0].mxu0
  %v439 = vadd.f32 %v318, %v438
  %440 = vmatprep.mubr.bf16.mxu0 0
  %441 = vmatmul.mubr.bf16.gmra.mrb[0].mxu0 %v360
  %v442 = vpop.f32.mrb[0].mxu0
  %v443 = vadd.f32 %v314, %v442
  %v444 = vpop.f32.mrb[0].mxu0
  %v445 = vadd.f32 %v318, %v444
  %v446 = vpop.f32.mrb[0].mxu0
  %v447 = vadd.f32 %v314, %v446
  %v448 = vpop.f32.mrb[0].mxu0
  %v449 = vadd.f32 %v318, %v448
  %450 = vmatprep.mubr.bf16.mxu0 0
  %451 = vmatmul.mubr.bf16.gmra.mrb[0].mxu0 %v363
  %v452 = vpop.f32.mrb[0].mxu0
  %v453 = vadd.f32 %v314, %v452
  %v454 = vpop.f32.mrb[0].mxu0
  %v455 = vadd.f32 %v318, %v454
  %v456 = vpop.f32.mrb[0].mxu0
  %v457 = vpop.f32.mrb[0].mxu0
  %458 = vdwg.mxu0
  %459 = vmatprep.subr.bf16.mxu0 %v376
  %460 = vmatpush1.bf16.msra.mxu0 %v373
  %461 = vmatprep.subr.bf16.mxu0 0
  %462 = vmatpush1.bf16.msra.mxu0 0
  %463 = vmatprep.subr.bf16.mxu0 0
  %464 = vmatpush1.bf16.msra.mxu0 0
  %465 = vmatprep.subr.bf16.mxu0 0
  %466 = vmatpush1.bf16.msra.mxu0 0
  %467 = vmatprep.subr.bf16.mxu0 0
  %468 = vmatpush1.bf16.msra.mxu0 0
  %469 = vmatprep.subr.bf16.mxu0 0
  %470 = vmatpush1.bf16.msra.mxu0 0
  %471 = vmatprep.subr.bf16.mxu0 0
  %472 = vmatpush1.bf16.msra.mxu0 0
  %473 = vmatprep.subr.bf16.mxu0 0
  %474 = vmatpush1.bf16.msra.mxu0 0
  %475 = vmatprep.subr.bf16.mxu0 0
  %476 = vmatpush1.bf16.msra.mxu0 0
  %477 = vmatprep.subr.bf16.mxu0 0
  %478 = vmatpush1.bf16.msra.mxu0 0
  %479 = vmatprep.subr.bf16.mxu0 0
  %480 = vmatpush1.bf16.msra.mxu0 0
  %481 = vmatprep.subr.bf16.mxu0 0
  %482 = vmatpush1.bf16.msra.mxu0 0
  %483 = vmatprep.subr.bf16.mxu0 0
  %484 = vmatpush1.bf16.msra.mxu0 0
  %485 = vmatprep.subr.bf16.mxu0 0
  %486 = vmatpush1.bf16.msra.mxu0 0
  %487 = vmatprep.subr.bf16.mxu0 0
  %488 = vmatpush1.bf16.msra.mxu0 0
  %489 = vmatprep.subr.bf16.mxu0 0
  %490 = vmatpush1.bf16.msra.mxu0 0
  %491 = vmatprep.mubr.bf16.mxu0 0
  %492 = vmatmul.mubr.bf16.gmra.mrb[0].mxu0 %v351
  %v493 = vpop.f32.mrb[0].mxu0
  %v494 = vadd.f32 %v322, %v493
  %v495 = vpop.f32.mrb[0].mxu0
  %v496 = vadd.f32 %v326, %v495
  %v497 = vpop.f32.mrb[0].mxu0
  %v498 = vadd.f32 %v322, %v497
  %v499 = vpop.f32.mrb[0].mxu0
  %v500 = vadd.f32 %v326, %v499
  %501 = vmatprep.mubr.bf16.mxu0 0
  %502 = vmatmul.mubr.bf16.gmra.mrb[0].mxu0 %v354
  %v503 = vpop.f32.mrb[0].mxu0
  %v504 = vadd.f32 %v322, %v503
  %v505 = vpop.f32.mrb[0].mxu0
  %v506 = vadd.f32 %v326, %v505
  %v507 = vpop.f32.mrb[0].mxu0
  %v508 = vadd.f32 %v322, %v507
  %v509 = vpop.f32.mrb[0].mxu0
  %v510 = vadd.f32 %v326, %v509
  %511 = vmatprep.mubr.bf16.mxu0 0
  %512 = vmatmul.mubr.bf16.gmra.mrb[0].mxu0 %v357
  %v513 = vpop.f32.mrb[0].mxu0
  %v514 = vadd.f32 %v322, %v513
  %v515 = vpop.f32.mrb[0].mxu0
  %v516 = vadd.f32 %v326, %v515
  %v517 = vpop.f32.mrb[0].mxu0
  %v518 = vadd.f32 %v322, %v517
  %v519 = vpop.f32.mrb[0].mxu0
  %v520 = vadd.f32 %v326, %v519
  %521 = vmatprep.mubr.bf16.mxu0 0
  %522 = vmatmul.mubr.bf16.gmra.mrb[0].mxu0 %v360
  %v523 = vpop.f32.mrb[0].mxu0
  %v524 = vadd.f32 %v322, %v523
  %v525 = vpop.f32.mrb[0].mxu0
  %v526 = vadd.f32 %v326, %v525
  %v527 = vpop.f32.mrb[0].mxu0
  %v528 = vadd.f32 %v322, %v527
  %v529 = vpop.f32.mrb[0].mxu0
  %v530 = vadd.f32 %v326, %v529
  %531 = vmatprep.mubr.bf16.mxu0 0
  %532 = vmatmul.mubr.bf16.gmra.mrb[0].mxu0 %v363
  %v533 = vpop.f32.mrb[0].mxu0
  %v534 = vadd.f32 %v322, %v533
  %v535 = vpop.f32.mrb[0].mxu0
  %v536 = vadd.f32 %v326, %v535
  %v537 = vpop.f32.mrb[0].mxu0
  %v538 = vpop.f32.mrb[0].mxu0
  %539 = vdwg.mxu0
  %s540 = scalar_lea.vmem %s1, 72
  %v541 = vld [vmem:[%s540] sm:$0xff]
  %v542 = vld [vmem:[%s540 + $0x8] sm:$0xff]
  %v543 = vld [vmem:[%s540 + $0x10] sm:$0xff]
  %v544 = vld [vmem:[%s540 + $0x18] sm:$0xff]
  %v545 = vld [vmem:[%s540 + $0x20] sm:$0xff]
  %v546 = vld [vmem:[%s540 + $0x28] sm:$0xff]
  %v547 = vld [vmem:[%s540 + $0x30] sm:$0xff]
  %v548 = vld [vmem:[%s540 + $0x38] sm:$0xff]
  %v549 = vld [vmem:[%s540 + $0x40] sm:$0xff]
  %v559 = vunpack.c.l.b16 %v541
  %v560 = vunpack.c.h.b16 %v541
  %v561 = vunpack.c.l.b16 %v542
  %v562 = vunpack.c.h.b16 %v542
  %v563 = vunpack.c.l.b16 %v543
  %v564 = vunpack.c.h.b16 %v543
  %v565 = vunpack.c.l.b16 %v544
  %v566 = vunpack.c.h.b16 %v544
  %v567 = vunpack.c.l.b16 %v545
  %v568 = vunpack.c.h.b16 %v545
  %v569 = vunpack.c.l.b16 %v546
  %v570 = vunpack.c.h.b16 %v546
  %v571 = vunpack.c.l.b16 %v547
  %v572 = vunpack.c.h.b16 %v547
  %v573 = vunpack.c.l.b16 %v548
  %v574 = vunpack.c.h.b16 %v548
  %v575 = vunpack.c.l.b16 %v549
  %v576 = vunpack.c.h.b16 %v549
  %v577 = vpack.c.b16 %v561, %v559
  %v578 = vpack.c.b16 %v562, %v560
  %v579 = vpack.c.b16 %v565, %v563
  %v580 = vpack.c.b16 %v566, %v564
  %v581 = vpack.c.b16 %v569, %v567
  %v582 = vpack.c.b16 %v570, %v568
  %v583 = vpack.c.b16 %v573, %v571
  %v584 = vpack.c.b16 %v574, %v572
  %v585 = vpack.c.b16 %v575, %v575
  %v586 = vpack.c.b16 %v576, %v576
  %v593 = vsel %vm211, %v578, 0
  %v596 = vsel %vm211, %v580, 0
  %v599 = vsel %vm211, %v582, 0
  %v602 = vsel %vm211, %v584, 0
  %v605 = vsel %vm211, %v586, 0
  %607 = vmatprep.subr.bf16.mxu0 0
  %608 = vmatpush1.bf16.msra.mxu0 %v186
  %609 = vmatprep.subr.bf16.mxu0 0
  %610 = vmatpush1.bf16.msra.mxu0 %v187
  %611 = vmatprep.subr.bf16.mxu0 0
  %612 = vmatpush1.bf16.msra.mxu0 %v188
  %613 = vmatprep.subr.bf16.mxu0 0
  %614 = vmatpush1.bf16.msra.mxu0 %v189
  %615 = vmatprep.subr.bf16.mxu0 0
  %616 = vmatpush1.bf16.msra.mxu0 %v190
  %617 = vmatprep.subr.bf16.mxu0 0
  %618 = vmatpush1.bf16.msra.mxu0 %v191
  %619 = vmatprep.subr.bf16.mxu0 0
  %620 = vmatpush1.bf16.msra.mxu0 %v192
  %621 = vmatprep.subr.bf16.mxu0 0
  %622 = vmatpush1.bf16.msra.mxu0 %v193
  %623 = vmatprep.subr.bf16.mxu0 0
  %624 = vmatpush1.bf16.msra.mxu0 %v194
  %625 = vmatprep.subr.bf16.mxu0 0
  %626 = vmatpush1.bf16.msra.mxu0 %v195
  %627 = vmatprep.subr.bf16.mxu0 0
  %628 = vmatpush1.bf16.msra.mxu0 %v196
  %629 = vmatprep.subr.bf16.mxu0 0
  %630 = vmatpush1.bf16.msra.mxu0 %v197
  %631 = vmatprep.subr.bf16.mxu0 0
  %632 = vmatpush1.bf16.msra.mxu0 %v229
  %633 = vmatprep.subr.bf16.mxu0 0
  %634 = vmatpush1.bf16.msra.mxu0 0
  %635 = vmatprep.subr.bf16.mxu0 0
  %636 = vmatpush1.bf16.msra.mxu0 0
  %637 = vmatprep.subr.bf16.mxu0 0
  %638 = vmatpush1.bf16.msra.mxu0 0
  %639 = vmatprep.mubr.bf16.mxu0 %v593
  %640 = vmatmul.mubr.bf16.gmra.mrb[0].mxu0 %v577
  %v641 = vpop.f32.mrb[0].mxu0
  %v642 = vadd.f32 0.0, %v641
  %v643 = vpop.f32.mrb[0].mxu0
  %v644 = vpop.f32.mrb[0].mxu0
  %v645 = vadd.f32 0.0, %v644
  %v646 = vpop.f32.mrb[0].mxu0
  %647 = vmatprep.mubr.bf16.mxu0 %v596
  %648 = vmatmul.mubr.bf16.gmra.mrb[0].mxu0 %v579
  %v649 = vpop.f32.mrb[0].mxu0
  %v650 = vadd.f32 0.0, %v649
  %v651 = vpop.f32.mrb[0].mxu0
  %v652 = vpop.f32.mrb[0].mxu0
  %v653 = vadd.f32 0.0, %v652
  %v654 = vpop.f32.mrb[0].mxu0
  %655 = vmatprep.mubr.bf16.mxu0 %v599
  %656 = vmatmul.mubr.bf16.gmra.mrb[0].mxu0 %v581
  %v657 = vpop.f32.mrb[0].mxu0
  %v658 = vadd.f32 0.0, %v657
  %v659 = vpop.f32.mrb[0].mxu0
  %v660 = vpop.f32.mrb[0].mxu0
  %v661 = vadd.f32 0.0, %v660
  %v662 = vpop.f32.mrb[0].mxu0
  %663 = vmatprep.mubr.bf16.mxu0 %v602
  %664 = vmatmul.mubr.bf16.gmra.mrb[0].mxu0 %v583
  %v665 = vpop.f32.mrb[0].mxu0
  %v666 = vadd.f32 0.0, %v665
  %v667 = vpop.f32.mrb[0].mxu0
  %v668 = vpop.f32.mrb[0].mxu0
  %v669 = vadd.f32 0.0, %v668
  %v670 = vpop.f32.mrb[0].mxu0
  %671 = vmatprep.mubr.bf16.mxu0 %v605
  %672 = vmatmul.mubr.bf16.gmra.mrb[0].mxu0 %v585
  %v673 = vpop.f32.mrb[0].mxu0
  %v674 = vadd.f32 0.0, %v673
  %v675 = vpop.f32.mrb[0].mxu0
  %v676 = vpop.f32.mrb[0].mxu0
  %v677 = vpop.f32.mrb[0].mxu0
  %678 = vdwg.mxu0
  %v679 = vpack.c.bf16 %v645, %v642
  %v680 = vpack.c.bf16 %v653, %v650
  %v681 = vpack.c.bf16 %v661, %v658
  %v682 = vpack.c.bf16 %v669, %v666
  %v683 = vpack.c.bf16 %v674, %v674
  %s684 = scalar_lea.vmem %s2, 8
  %v685 = vld [vmem:[%s684] sm:$0xff]
  %v687 = vcombine.high %v685, %v685
  %v689 = vunpack.c.l.s4 1983009808
  %v690 = vunpack.c.0.s8 %v689
  %v691 = vlaneseq
  %v692 = vshrl.u32 %v691, 7
  %v693 = vsub.s32 %v690, %v692
  %v694 = vrot.slane %v685, %v693
  %v696 = vunpack.c.l.s4 1983009808
  %v697 = vunpack.c.0.s8 %v696
  %v698 = vlaneseq
  %v699 = vshrl.u32 %v698, 7
  %v700 = vsub.s32 %v697, %v699
  %v701 = vrot.slane %v687, %v700
  %v702 = vcombine.high %v694, %v694
  %v703 = vcombine.high %v701, %v701
  %v705 = vsel %vm349, %v679, 0
  %v708 = vsel %vm349, %v680, 0
  %v711 = vsel %vm349, %v681, 0
  %v714 = vsel %vm349, %v682, 0
  %v717 = vsel %vm349, %v683, 0
  %v720 = vsel %vm365, %v694, 0
  %v723 = vsel %vm365, %v702, 0
  %v726 = vsel %vm365, %v701, 0
  %v729 = vsel %vm365, %v703, 0
  %731 = vmatprep.subr.bf16.mxu0 %v723
  %732 = vmatpush1.bf16.msra.mxu0 %v720
  %733 = vmatprep.subr.bf16.mxu0 0
  %734 = vmatpush1.bf16.msra.mxu0 0
  %735 = vmatprep.subr.bf16.mxu0 0
  %736 = vmatpush1.bf16.msra.mxu0 0
  %737 = vmatprep.subr.bf16.mxu0 0
  %738 = vmatpush1.bf16.msra.mxu0 0
  %739 = vmatprep.subr.bf16.mxu0 0
  %740 = vmatpush1.bf16.msra.mxu0 0
  %741 = vmatprep.subr.bf16.mxu0 0
  %742 = vmatpush1.bf16.msra.mxu0 0
  %743 = vmatprep.subr.bf16.mxu0 0
  %744 = vmatpush1.bf16.msra.mxu0 0
  %745 = vmatprep.subr.bf16.mxu0 0
  %746 = vmatpush1.bf16.msra.mxu0 0
  %747 = vmatprep.subr.bf16.mxu0 0
  %748 = vmatpush1.bf16.msra.mxu0 0
  %749 = vmatprep.subr.bf16.mxu0 0
  %750 = vmatpush1.bf16.msra.mxu0 0
  %751 = vmatprep.subr.bf16.mxu0 0
  %752 = vmatpush1.bf16.msra.mxu0 0
  %753 = vmatprep.subr.bf16.mxu0 0
  %754 = vmatpush1.bf16.msra.mxu0 0
  %755 = vmatprep.subr.bf16.mxu0 0
  %756 = vmatpush1.bf16.msra.mxu0 0
  %757 = vmatprep.subr.bf16.mxu0 0
  %758 = vmatpush1.bf16.msra.mxu0 0
  %759 = vmatprep.subr.bf16.mxu0 0
  %760 = vmatpush1.bf16.msra.mxu0 0
  %761 = vmatprep.subr.bf16.mxu0 0
  %762 = vmatpush1.bf16.msra.mxu0 0
  %763 = vmatprep.mubr.bf16.mxu0 0
  %764 = vmatmul.mubr.bf16.gmra.mrb[0].mxu0 %v705
  %v765 = vpop.f32.mrb[0].mxu0
  %v766 = vadd.f32 0.0, %v765
  %v767 = vpop.f32.mrb[0].mxu0
  %v768 = vadd.f32 0.0, %v767
  %v769 = vpop.f32.mrb[0].mxu0
  %v770 = vadd.f32 0.0, %v769
  %v771 = vpop.f32.mrb[0].mxu0
  %v772 = vadd.f32 0.0, %v771
  %773 = vmatprep.mubr.bf16.mxu0 0
  %774 = vmatmul.mubr.bf16.gmra.mrb[0].mxu0 %v708
  %v775 = vpop.f32.mrb[0].mxu0
  %v776 = vadd.f32 0.0, %v775
  %v777 = vpop.f32.mrb[0].mxu0
  %v778 = vadd.f32 0.0, %v777
  %v779 = vpop.f32.mrb[0].mxu0
  %v780 = vadd.f32 0.0, %v779
  %v781 = vpop.f32.mrb[0].mxu0
  %v782 = vadd.f32 0.0, %v781
  %783 = vmatprep.mubr.bf16.mxu0 0
  %784 = vmatmul.mubr.bf16.gmra.mrb[0].mxu0 %v711
  %v785 = vpop.f32.mrb[0].mxu0
  %v786 = vadd.f32 0.0, %v785
  %v787 = vpop.f32.mrb[0].mxu0
  %v788 = vadd.f32 0.0, %v787
  %v789 = vpop.f32.mrb[0].mxu0
  %v790 = vadd.f32 0.0, %v789
  %v791 = vpop.f32.mrb[0].mxu0
  %v792 = vadd.f32 0.0, %v791
  %793 = vmatprep.mubr.bf16.mxu0 0
  %794 = vmatmul.mubr.bf16.gmra.mrb[0].mxu0 %v714
  %v795 = vpop.f32.mrb[0].mxu0
  %v796 = vadd.f32 0.0, %v795
  %v797 = vpop.f32.mrb[0].mxu0
  %v798 = vadd.f32 0.0, %v797
  %v799 = vpop.f32.mrb[0].mxu0
  %v800 = vadd.f32 0.0, %v799
  %v801 = vpop.f32.mrb[0].mxu0
  %v802 = vadd.f32 0.0, %v801
  %803 = vmatprep.mubr.bf16.mxu0 0
  %804 = vmatmul.mubr.bf16.gmra.mrb[0].mxu0 %v717
  %v805 = vpop.f32.mrb[0].mxu0
  %v806 = vadd.f32 0.0, %v805
  %v807 = vpop.f32.mrb[0].mxu0
  %v808 = vadd.f32 0.0, %v807
  %v809 = vpop.f32.mrb[0].mxu0
  %v810 = vpop.f32.mrb[0].mxu0
  %811 = vdwg.mxu0
  %812 = vmatprep.subr.bf16.mxu0 %v729
  %813 = vmatpush1.bf16.msra.mxu0 %v726
  %814 = vmatprep.subr.bf16.mxu0 0
  %815 = vmatpush1.bf16.msra.mxu0 0
  %816 = vmatprep.subr.bf16.mxu0 0
  %817 = vmatpush1.bf16.msra.mxu0 0
  %818 = vmatprep.subr.bf16.mxu0 0
  %819 = vmatpush1.bf16.msra.mxu0 0
  %820 = vmatprep.subr.bf16.mxu0 0
  %821 = vmatpush1.bf16.msra.mxu0 0
  %822 = vmatprep.subr.bf16.mxu0 0
  %823 = vmatpush1.bf16.msra.mxu0 0
  %824 = vmatprep.subr.bf16.mxu0 0
  %825 = vmatpush1.bf16.msra.mxu0 0
  %826 = vmatprep.subr.bf16.mxu0 0
  %827 = vmatpush1.bf16.msra.mxu0 0
  %828 = vmatprep.subr.bf16.mxu0 0
  %829 = vmatpush1.bf16.msra.mxu0 0
  %830 = vmatprep.subr.bf16.mxu0 0
  %831 = vmatpush1.bf16.msra.mxu0 0
  %832 = vmatprep.subr.bf16.mxu0 0
  %833 = vmatpush1.bf16.msra.mxu0 0
  %834 = vmatprep.subr.bf16.mxu0 0
  %835 = vmatpush1.bf16.msra.mxu0 0
  %836 = vmatprep.subr.bf16.mxu0 0
  %837 = vmatpush1.bf16.msra.mxu0 0
  %838 = vmatprep.subr.bf16.mxu0 0
  %839 = vmatpush1.bf16.msra.mxu0 0
  %840 = vmatprep.subr.bf16.mxu0 0
  %841 = vmatpush1.bf16.msra.mxu0 0
  %842 = vmatprep.subr.bf16.mxu0 0
  %843 = vmatpush1.bf16.msra.mxu0 0
  %844 = vmatprep.mubr.bf16.mxu0 0
  %845 = vmatmul.mubr.bf16.gmra.mrb[0].mxu0 %v705
  %v846 = vpop.f32.mrb[0].mxu0
  %v847 = vadd.f32 0.0, %v846
  %v848 = vpop.f32.mrb[0].mxu0
  %v849 = vadd.f32 0.0, %v848
  %v850 = vpop.f32.mrb[0].mxu0
  %v851 = vadd.f32 0.0, %v850
  %v852 = vpop.f32.mrb[0].mxu0
  %v853 = vadd.f32 0.0, %v852
  %854 = vmatprep.mubr.bf16.mxu0 0
  %855 = vmatmul.mubr.bf16.gmra.mrb[0].mxu0 %v708
  %v856 = vpop.f32.mrb[0].mxu0
  %v857 = vadd.f32 0.0, %v856
  %v858 = vpop.f32.mrb[0].mxu0
  %v859 = vadd.f32 0.0, %v858
  %v860 = vpop.f32.mrb[0].mxu0
  %v861 = vadd.f32 0.0, %v860
  %v862 = vpop.f32.mrb[0].mxu0
  %v863 = vadd.f32 0.0, %v862
  %864 = vmatprep.mubr.bf16.mxu0 0
  %865 = vmatmul.mubr.bf16.gmra.mrb[0].mxu0 %v711
  %v866 = vpop.f32.mrb[0].mxu0
  %v867 = vadd.f32 0.0, %v866
  %v868 = vpop.f32.mrb[0].mxu0
  %v869 = vadd.f32 0.0, %v868
  %v870 = vpop.f32.mrb[0].mxu0
  %v871 = vadd.f32 0.0, %v870
  %v872 = vpop.f32.mrb[0].mxu0
  %v873 = vadd.f32 0.0, %v872
  %874 = vmatprep.mubr.bf16.mxu0 0
  %875 = vmatmul.mubr.bf16.gmra.mrb[0].mxu0 %v714
  %v876 = vpop.f32.mrb[0].mxu0
  %v877 = vadd.f32 0.0, %v876
  %v878 = vpop.f32.mrb[0].mxu0
  %v879 = vadd.f32 0.0, %v878
  %v880 = vpop.f32.mrb[0].mxu0
  %v881 = vadd.f32 0.0, %v880
  %v882 = vpop.f32.mrb[0].mxu0
  %v883 = vadd.f32 0.0, %v882
  %884 = vmatprep.mubr.bf16.mxu0 0
  %885 = vmatmul.mubr.bf16.gmra.mrb[0].mxu0 %v717
  %v886 = vpop.f32.mrb[0].mxu0
  %v887 = vadd.f32 0.0, %v886
  %v888 = vpop.f32.mrb[0].mxu0
  %v889 = vadd.f32 0.0, %v888
  %v890 = vpop.f32.mrb[0].mxu0
  %v891 = vpop.f32.mrb[0].mxu0
  %892 = vdwg.mxu0
  %v893 = vadd.f32 %v413, %v766
  %v894 = vadd.f32 %v415, %v768
  %v895 = vadd.f32 %v494, %v847
  %v896 = vadd.f32 %v496, %v849
  %v897 = vadd.f32 %v417, %v770
  %v898 = vadd.f32 %v419, %v772
  %v899 = vadd.f32 %v498, %v851
  %v900 = vadd.f32 %v500, %v853
  %v901 = vadd.f32 %v423, %v776
  %v902 = vadd.f32 %v425, %v778
  %v903 = vadd.f32 %v504, %v857
  %v904 = vadd.f32 %v506, %v859
  %v905 = vadd.f32 %v427, %v780
  %v906 = vadd.f32 %v429, %v782
  %v907 = vadd.f32 %v508, %v861
  %v908 = vadd.f32 %v510, %v863
  %v909 = vadd.f32 %v433, %v786
  %v910 = vadd.f32 %v435, %v788
  %v911 = vadd.f32 %v514, %v867
  %v912 = vadd.f32 %v516, %v869
  %v913 = vadd.f32 %v437, %v790
  %v914 = vadd.f32 %v439, %v792
  %v915 = vadd.f32 %v518, %v871
  %v916 = vadd.f32 %v520, %v873
  %v917 = vadd.f32 %v443, %v796
  %v918 = vadd.f32 %v445, %v798
  %v919 = vadd.f32 %v524, %v877
  %v920 = vadd.f32 %v526, %v879
  %v921 = vadd.f32 %v447, %v800
  %v922 = vadd.f32 %v449, %v802
  %v923 = vadd.f32 %v528, %v881
  %v924 = vadd.f32 %v530, %v883
  %v925 = vadd.f32 %v453, %v806
  %v926 = vadd.f32 %v455, %v808
  %v927 = vadd.f32 %v534, %v887
  %v928 = vadd.f32 %v536, %v889
  %s929 = scalar_lea.vmem %s1, 144
  %v930 = vld [vmem:[%s929] sm:$0xff]
  %v931 = vld [vmem:[%s929 + $0x8] sm:$0xff]
  %v932 = vld [vmem:[%s929 + $0x10] sm:$0xff]
  %v933 = vld [vmem:[%s929 + $0x18] sm:$0xff]
  %v934 = vld [vmem:[%s929 + $0x20] sm:$0xff]
  %v935 = vld [vmem:[%s929 + $0x28] sm:$0xff]
  %v936 = vld [vmem:[%s929 + $0x30] sm:$0xff]
  %v937 = vld [vmem:[%s929 + $0x38] sm:$0xff]
  %v938 = vld [vmem:[%s929 + $0x40] sm:$0xff]
  %v948 = vunpack.c.l.b16 %v930
  %v949 = vunpack.c.h.b16 %v930
  %v950 = vunpack.c.l.b16 %v931
  %v951 = vunpack.c.h.b16 %v931
  %v952 = vunpack.c.l.b16 %v932
  %v953 = vunpack.c.h.b16 %v932
  %v954 = vunpack.c.l.b16 %v933
  %v955 = vunpack.c.h.b16 %v933
  %v956 = vunpack.c.l.b16 %v934
  %v957 = vunpack.c.h.b16 %v934
  %v958 = vunpack.c.l.b16 %v935
  %v959 = vunpack.c.h.b16 %v935
  %v960 = vunpack.c.l.b16 %v936
  %v961 = vunpack.c.h.b16 %v936
  %v962 = vunpack.c.l.b16 %v937
  %v963 = vunpack.c.h.b16 %v937
  %v964 = vunpack.c.l.b16 %v938
  %v965 = vunpack.c.h.b16 %v938
  %v966 = vpack.c.b16 %v950, %v948
  %v967 = vpack.c.b16 %v951, %v949
  %v968 = vpack.c.b16 %v954, %v952
  %v969 = vpack.c.b16 %v955, %v953
  %v970 = vpack.c.b16 %v958, %v956
  %v971 = vpack.c.b16 %v959, %v957
  %v972 = vpack.c.b16 %v962, %v960
  %v973 = vpack.c.b16 %v963, %v961
  %v974 = vpack.c.b16 %v964, %v964
  %v975 = vpack.c.b16 %v965, %v965
  %v982 = vsel %vm211, %v967, 0
  %v985 = vsel %vm211, %v969, 0
  %v988 = vsel %vm211, %v971, 0
  %v991 = vsel %vm211, %v973, 0
  %v994 = vsel %vm211, %v975, 0
  %996 = vmatprep.subr.bf16.mxu0 0
  %997 = vmatpush1.bf16.msra.mxu0 %v186
  %998 = vmatprep.subr.bf16.mxu0 0
  %999 = vmatpush1.bf16.msra.mxu0 %v187
  %1000 = vmatprep.subr.bf16.mxu0 0
  %1001 = vmatpush1.bf16.msra.mxu0 %v188
  %1002 = vmatprep.subr.bf16.mxu0 0
  %1003 = vmatpush1.bf16.msra.mxu0 %v189
  %1004 = vmatprep.subr.bf16.mxu0 0
  %1005 = vmatpush1.bf16.msra.mxu0 %v190
  %1006 = vmatprep.subr.bf16.mxu0 0
  %1007 = vmatpush1.bf16.msra.mxu0 %v191
  %1008 = vmatprep.subr.bf16.mxu0 0
  %1009 = vmatpush1.bf16.msra.mxu0 %v192
  %1010 = vmatprep.subr.bf16.mxu0 0
  %1011 = vmatpush1.bf16.msra.mxu0 %v193
  %1012 = vmatprep.subr.bf16.mxu0 0
  %1013 = vmatpush1.bf16.msra.mxu0 %v194
  %1014 = vmatprep.subr.bf16.mxu0 0
  %1015 = vmatpush1.bf16.msra.mxu0 %v195
  %1016 = vmatprep.subr.bf16.mxu0 0
  %1017 = vmatpush1.bf16.msra.mxu0 %v196
  %1018 = vmatprep.subr.bf16.mxu0 0
  %1019 = vmatpush1.bf16.msra.mxu0 %v197
  %1020 = vmatprep.subr.bf16.mxu0 0
  %1021 = vmatpush1.bf16.msra.mxu0 %v229
  %1022 = vmatprep.subr.bf16.mxu0 0
  %1023 = vmatpush1.bf16.msra.mxu0 0
  %1024 = vmatprep.subr.bf16.mxu0 0
  %1025 = vmatpush1.bf16.msra.mxu0 0
  %1026 = vmatprep.subr.bf16.mxu0 0
  %1027 = vmatpush1.bf16.msra.mxu0 0
  %1028 = vmatprep.mubr.bf16.mxu0 %v982
  %1029 = vmatmul.mubr.bf16.gmra.mrb[0].mxu0 %v966
  %v1030 = vpop.f32.mrb[0].mxu0
  %v1031 = vadd.f32 0.0, %v1030
  %v1032 = vpop.f32.mrb[0].mxu0
  %v1033 = vpop.f32.mrb[0].mxu0
  %v1034 = vadd.f32 0.0, %v1033
  %v1035 = vpop.f32.mrb[0].mxu0
  %1036 = vmatprep.mubr.bf16.mxu0 %v985
  %1037 = vmatmul.mubr.bf16.gmra.mrb[0].mxu0 %v968
  %v1038 = vpop.f32.mrb[0].mxu0
  %v1039 = vadd.f32 0.0, %v1038
  %v1040 = vpop.f32.mrb[0].mxu0
  %v1041 = vpop.f32.mrb[0].mxu0
  %v1042 = vadd.f32 0.0, %v1041
  %v1043 = vpop.f32.mrb[0].mxu0
  %1044 = vmatprep.mubr.bf16.mxu0 %v988
  %1045 = vmatmul.mubr.bf16.gmra.mrb[0].mxu0 %v970
  %v1046 = vpop.f32.mrb[0].mxu0
  %v1047 = vadd.f32 0.0, %v1046
  %v1048 = vpop.f32.mrb[0].mxu0
  %v1049 = vpop.f32.mrb[0].mxu0
  %v1050 = vadd.f32 0.0, %v1049
  %v1051 = vpop.f32.mrb[0].mxu0
  %1052 = vmatprep.mubr.bf16.mxu0 %v991
  %1053 = vmatmul.mubr.bf16.gmra.mrb[0].mxu0 %v972
  %v1054 = vpop.f32.mrb[0].mxu0
  %v1055 = vadd.f32 0.0, %v1054
  %v1056 = vpop.f32.mrb[0].mxu0
  %v1057 = vpop.f32.mrb[0].mxu0
  %v1058 = vadd.f32 0.0, %v1057
  %v1059 = vpop.f32.mrb[0].mxu0
  %1060 = vmatprep.mubr.bf16.mxu0 %v994
  %1061 = vmatmul.mubr.bf16.gmra.mrb[0].mxu0 %v974
  %v1062 = vpop.f32.mrb[0].mxu0
  %v1063 = vadd.f32 0.0, %v1062
  %v1064 = vpop.f32.mrb[0].mxu0
  %v1065 = vpop.f32.mrb[0].mxu0
  %v1066 = vpop.f32.mrb[0].mxu0
  %1067 = vdwg.mxu0
  %v1068 = vpack.c.bf16 %v1034, %v1031
  %v1069 = vpack.c.bf16 %v1042, %v1039
  %v1070 = vpack.c.bf16 %v1050, %v1047
  %v1071 = vpack.c.bf16 %v1058, %v1055
  %v1072 = vpack.c.bf16 %v1063, %v1063
  %s1073 = scalar_lea.vmem %s2, 16
  %v1074 = vld [vmem:[%s1073] sm:$0xff]
  %v1076 = vcombine.high %v1074, %v1074
  %v1078 = vunpack.c.l.s4 1983009808
  %v1079 = vunpack.c.0.s8 %v1078
  %v1080 = vlaneseq
  %v1081 = vshrl.u32 %v1080, 7
  %v1082 = vsub.s32 %v1079, %v1081
  %v1083 = vrot.slane %v1074, %v1082
  %v1085 = vunpack.c.l.s4 1983009808
  %v1086 = vunpack.c.0.s8 %v1085
  %v1087 = vlaneseq
  %v1088 = vshrl.u32 %v1087, 7
  %v1089 = vsub.s32 %v1086, %v1088
  %v1090 = vrot.slane %v1076, %v1089
  %v1091 = vcombine.high %v1083, %v1083
  %v1092 = vcombine.high %v1090, %v1090
  %v1094 = vsel %vm349, %v1068, 0
  %v1097 = vsel %vm349, %v1069, 0
  %v1100 = vsel %vm349, %v1070, 0
  %v1103 = vsel %vm349, %v1071, 0
  %v1106 = vsel %vm349, %v1072, 0
  %v1109 = vsel %vm365, %v1083, 0
  %v1112 = vsel %vm365, %v1091, 0
  %v1115 = vsel %vm365, %v1090, 0
  %v1118 = vsel %vm365, %v1092, 0
  %1120 = vmatprep.subr.bf16.mxu0 %v1112
  %1121 = vmatpush1.bf16.msra.mxu0 %v1109
  %1122 = vmatprep.subr.bf16.mxu0 0
  %1123 = vmatpush1.bf16.msra.mxu0 0
  %1124 = vmatprep.subr.bf16.mxu0 0
  %1125 = vmatpush1.bf16.msra.mxu0 0
  %1126 = vmatprep.subr.bf16.mxu0 0
  %1127 = vmatpush1.bf16.msra.mxu0 0
  %1128 = vmatprep.subr.bf16.mxu0 0
  %1129 = vmatpush1.bf16.msra.mxu0 0
  %1130 = vmatprep.subr.bf16.mxu0 0
  %1131 = vmatpush1.bf16.msra.mxu0 0
  %1132 = vmatprep.subr.bf16.mxu0 0
  %1133 = vmatpush1.bf16.msra.mxu0 0
  %1134 = vmatprep.subr.bf16.mxu0 0
  %1135 = vmatpush1.bf16.msra.mxu0 0
  %1136 = vmatprep.subr.bf16.mxu0 0
  %1137 = vmatpush1.bf16.msra.mxu0 0
  %1138 = vmatprep.subr.bf16.mxu0 0
  %1139 = vmatpush1.bf16.msra.mxu0 0
  %1140 = vmatprep.subr.bf16.mxu0 0
  %1141 = vmatpush1.bf16.msra.mxu0 0
  %1142 = vmatprep.subr.bf16.mxu0 0
  %1143 = vmatpush1.bf16.msra.mxu0 0
  %1144 = vmatprep.subr.bf16.mxu0 0
  %1145 = vmatpush1.bf16.msra.mxu0 0
  %1146 = vmatprep.subr.bf16.mxu0 0
  %1147 = vmatpush1.bf16.msra.mxu0 0
  %1148 = vmatprep.subr.bf16.mxu0 0
  %1149 = vmatpush1.bf16.msra.mxu0 0
  %1150 = vmatprep.subr.bf16.mxu0 0
  %1151 = vmatpush1.bf16.msra.mxu0 0
  %1152 = vmatprep.mubr.bf16.mxu0 0
  %1153 = vmatmul.mubr.bf16.gmra.mrb[0].mxu0 %v1094
  %v1154 = vpop.f32.mrb[0].mxu0
  %v1155 = vadd.f32 0.0, %v1154
  %v1156 = vpop.f32.mrb[0].mxu0
  %v1157 = vadd.f32 0.0, %v1156
  %v1158 = vpop.f32.mrb[0].mxu0
  %v1159 = vadd.f32 0.0, %v1158
  %v1160 = vpop.f32.mrb[0].mxu0
  %v1161 = vadd.f32 0.0, %v1160
  %1162 = vmatprep.mubr.bf16.mxu0 0
  %1163 = vmatmul.mubr.bf16.gmra.mrb[0].mxu0 %v1097
  %v1164 = vpop.f32.mrb[0].mxu0
  %v1165 = vadd.f32 0.0, %v1164
  %v1166 = vpop.f32.mrb[0].mxu0
  %v1167 = vadd.f32 0.0, %v1166
  %v1168 = vpop.f32.mrb[0].mxu0
  %v1169 = vadd.f32 0.0, %v1168
  %v1170 = vpop.f32.mrb[0].mxu0
  %v1171 = vadd.f32 0.0, %v1170
  %1172 = vmatprep.mubr.bf16.mxu0 0
  %1173 = vmatmul.mubr.bf16.gmra.mrb[0].mxu0 %v1100
  %v1174 = vpop.f32.mrb[0].mxu0
  %v1175 = vadd.f32 0.0, %v1174
  %v1176 = vpop.f32.mrb[0].mxu0
  %v1177 = vadd.f32 0.0, %v1176
  %v1178 = vpop.f32.mrb[0].mxu0
  %v1179 = vadd.f32 0.0, %v1178
  %v1180 = vpop.f32.mrb[0].mxu0
  %v1181 = vadd.f32 0.0, %v1180
  %1182 = vmatprep.mubr.bf16.mxu0 0
  %1183 = vmatmul.mubr.bf16.gmra.mrb[0].mxu0 %v1103
  %v1184 = vpop.f32.mrb[0].mxu0
  %v1185 = vadd.f32 0.0, %v1184
  %v1186 = vpop.f32.mrb[0].mxu0
  %v1187 = vadd.f32 0.0, %v1186
  %v1188 = vpop.f32.mrb[0].mxu0
  %v1189 = vadd.f32 0.0, %v1188
  %v1190 = vpop.f32.mrb[0].mxu0
  %v1191 = vadd.f32 0.0, %v1190
  %1192 = vmatprep.mubr.bf16.mxu0 0
  %1193 = vmatmul.mubr.bf16.gmra.mrb[0].mxu0 %v1106
  %v1194 = vpop.f32.mrb[0].mxu0
  %v1195 = vadd.f32 0.0, %v1194
  %v1196 = vpop.f32.mrb[0].mxu0
  %v1197 = vadd.f32 0.0, %v1196
  %v1198 = vpop.f32.mrb[0].mxu0
  %v1199 = vpop.f32.mrb[0].mxu0
  %1200 = vdwg.mxu0
  %1201 = vmatprep.subr.bf16.mxu0 %v1118
  %1202 = vmatpush1.bf16.msra.mxu0 %v1115
  %1203 = vmatprep.subr.bf16.mxu0 0
  %1204 = vmatpush1.bf16.msra.mxu0 0
  %1205 = vmatprep.subr.bf16.mxu0 0
  %1206 = vmatpush1.bf16.msra.mxu0 0
  %1207 = vmatprep.subr.bf16.mxu0 0
  %1208 = vmatpush1.bf16.msra.mxu0 0
  %1209 = vmatprep.subr.bf16.mxu0 0
  %1210 = vmatpush1.bf16.msra.mxu0 0
  %1211 = vmatprep.subr.bf16.mxu0 0
  %1212 = vmatpush1.bf16.msra.mxu0 0
  %1213 = vmatprep.subr.bf16.mxu0 0
  %1214 = vmatpush1.bf16.msra.mxu0 0
  %1215 = vmatprep.subr.bf16.mxu0 0
  %1216 = vmatpush1.bf16.msra.mxu0 0
  %1217 = vmatprep.subr.bf16.mxu0 0
  %1218 = vmatpush1.bf16.msra.mxu0 0
  %1219 = vmatprep.subr.bf16.mxu0 0
  %1220 = vmatpush1.bf16.msra.mxu0 0
  %1221 = vmatprep.subr.bf16.mxu0 0
  %1222 = vmatpush1.bf16.msra.mxu0 0
  %1223 = vmatprep.subr.bf16.mxu0 0
  %1224 = vmatpush1.bf16.msra.mxu0 0
  %1225 = vmatprep.subr.bf16.mxu0 0
  %1226 = vmatpush1.bf16.msra.mxu0 0
  %1227 = vmatprep.subr.bf16.mxu0 0
  %1228 = vmatpush1.bf16.msra.mxu0 0
  %1229 = vmatprep.subr.bf16.mxu0 0
  %1230 = vmatpush1.bf16.msra.mxu0 0
  %1231 = vmatprep.subr.bf16.mxu0 0
  %1232 = vmatpush1.bf16.msra.mxu0 0
  %1233 = vmatprep.mubr.bf16.mxu0 0
  %1234 = vmatmul.mubr.bf16.gmra.mrb[0].mxu0 %v1094
  %v1235 = vpop.f32.mrb[0].mxu0
  %v1236 = vadd.f32 0.0, %v1235
  %v1237 = vpop.f32.mrb[0].mxu0
  %v1238 = vadd.f32 0.0, %v1237
  %v1239 = vpop.f32.mrb[0].mxu0
  %v1240 = vadd.f32 0.0, %v1239
  %v1241 = vpop.f32.mrb[0].mxu0
  %v1242 = vadd.f32 0.0, %v1241
  %1243 = vmatprep.mubr.bf16.mxu0 0
  %1244 = vmatmul.mubr.bf16.gmra.mrb[0].mxu0 %v1097
  %v1245 = vpop.f32.mrb[0].mxu0
  %v1246 = vadd.f32 0.0, %v1245
  %v1247 = vpop.f32.mrb[0].mxu0
  %v1248 = vadd.f32 0.0, %v1247
  %v1249 = vpop.f32.mrb[0].mxu0
  %v1250 = vadd.f32 0.0, %v1249
  %v1251 = vpop.f32.mrb[0].mxu0
  %v1252 = vadd.f32 0.0, %v1251
  %1253 = vmatprep.mubr.bf16.mxu0 0
  %1254 = vmatmul.mubr.bf16.gmra.mrb[0].mxu0 %v1100
  %v1255 = vpop.f32.mrb[0].mxu0
  %v1256 = vadd.f32 0.0, %v1255
  %v1257 = vpop.f32.mrb[0].mxu0
  %v1258 = vadd.f32 0.0, %v1257
  %v1259 = vpop.f32.mrb[0].mxu0
  %v1260 = vadd.f32 0.0, %v1259
  %v1261 = vpop.f32.mrb[0].mxu0
  %v1262 = vadd.f32 0.0, %v1261
  %1263 = vmatprep.mubr.bf16.mxu0 0
  %1264 = vmatmul.mubr.bf16.gmra.mrb[0].mxu0 %v1103
  %v1265 = vpop.f32.mrb[0].mxu0
  %v1266 = vadd.f32 0.0, %v1265
  %v1267 = vpop.f32.mrb[0].mxu0
  %v1268 = vadd.f32 0.0, %v1267
  %v1269 = vpop.f32.mrb[0].mxu0
  %v1270 = vadd.f32 0.0, %v1269
  %v1271 = vpop.f32.mrb[0].mxu0
  %v1272 = vadd.f32 0.0, %v1271
  %1273 = vmatprep.mubr.bf16.mxu0 0
  %1274 = vmatmul.mubr.bf16.gmra.mrb[0].mxu0 %v1106
  %v1275 = vpop.f32.mrb[0].mxu0
  %v1276 = vadd.f32 0.0, %v1275
  %v1277 = vpop.f32.mrb[0].mxu0
  %v1278 = vadd.f32 0.0, %v1277
  %v1279 = vpop.f32.mrb[0].mxu0
  %v1280 = vpop.f32.mrb[0].mxu0
  %1281 = vdwg.mxu0
  %v1282 = vadd.f32 %v893, %v1155
  %v1283 = vadd.f32 %v894, %v1157
  %v1284 = vadd.f32 %v895, %v1236
  %v1285 = vadd.f32 %v896, %v1238
  %v1286 = vadd.f32 %v897, %v1159
  %v1287 = vadd.f32 %v898, %v1161
  %v1288 = vadd.f32 %v899, %v1240
  %v1289 = vadd.f32 %v900, %v1242
  %v1290 = vadd.f32 %v901, %v1165
  %v1291 = vadd.f32 %v902, %v1167
  %v1292 = vadd.f32 %v903, %v1246
  %v1293 = vadd.f32 %v904, %v1248
  %v1294 = vadd.f32 %v905, %v1169
  %v1295 = vadd.f32 %v906, %v1171
  %v1296 = vadd.f32 %v907, %v1250
  %v1297 = vadd.f32 %v908, %v1252
  %v1298 = vadd.f32 %v909, %v1175
  %v1299 = vadd.f32 %v910, %v1177
  %v1300 = vadd.f32 %v911, %v1256
  %v1301 = vadd.f32 %v912, %v1258
  %v1302 = vadd.f32 %v913, %v1179
  %v1303 = vadd.f32 %v914, %v1181
  %v1304 = vadd.f32 %v915, %v1260
  %v1305 = vadd.f32 %v916, %v1262
  %v1306 = vadd.f32 %v917, %v1185
  %v1307 = vadd.f32 %v918, %v1187
  %v1308 = vadd.f32 %v919, %v1266
  %v1309 = vadd.f32 %v920, %v1268
  %v1310 = vadd.f32 %v921, %v1189
  %v1311 = vadd.f32 %v922, %v1191
  %v1312 = vadd.f32 %v923, %v1270
  %v1313 = vadd.f32 %v924, %v1272
  %v1314 = vadd.f32 %v925, %v1195
  %v1315 = vadd.f32 %v926, %v1197
  %v1316 = vadd.f32 %v927, %v1276
  %v1317 = vadd.f32 %v928, %v1278
  %s1318 = scalar_lea.vmem %s1, 216
  %v1319 = vld [vmem:[%s1318] sm:$0xff]
  %v1320 = vld [vmem:[%s1318 + $0x8] sm:$0xff]
  %v1321 = vld [vmem:[%s1318 + $0x10] sm:$0xff]
  %v1322 = vld [vmem:[%s1318 + $0x18] sm:$0xff]
  %v1323 = vld [vmem:[%s1318 + $0x20] sm:$0xff]
  %v1324 = vld [vmem:[%s1318 + $0x28] sm:$0xff]
  %v1325 = vld [vmem:[%s1318 + $0x30] sm:$0xff]
  %v1326 = vld [vmem:[%s1318 + $0x38] sm:$0xff]
  %v1327 = vld [vmem:[%s1318 + $0x40] sm:$0xff]
  %v1337 = vunpack.c.l.b16 %v1319
  %v1338 = vunpack.c.h.b16 %v1319
  %v1339 = vunpack.c.l.b16 %v1320
  %v1340 = vunpack.c.h.b16 %v1320
  %v1341 = vunpack.c.l.b16 %v1321
  %v1342 = vunpack.c.h.b16 %v1321
  %v1343 = vunpack.c.l.b16 %v1322
  %v1344 = vunpack.c.h.b16 %v1322
  %v1345 = vunpack.c.l.b16 %v1323
  %v1346 = vunpack.c.h.b16 %v1323
  %v1347 = vunpack.c.l.b16 %v1324
  %v1348 = vunpack.c.h.b16 %v1324
  %v1349 = vunpack.c.l.b16 %v1325
  %v1350 = vunpack.c.h.b16 %v1325
  %v1351 = vunpack.c.l.b16 %v1326
  %v1352 = vunpack.c.h.b16 %v1326
  %v1353 = vunpack.c.l.b16 %v1327
  %v1354 = vunpack.c.h.b16 %v1327
  %v1355 = vpack.c.b16 %v1339, %v1337
  %v1356 = vpack.c.b16 %v1340, %v1338
  %v1357 = vpack.c.b16 %v1343, %v1341
  %v1358 = vpack.c.b16 %v1344, %v1342
  %v1359 = vpack.c.b16 %v1347, %v1345
  %v1360 = vpack.c.b16 %v1348, %v1346
  %v1361 = vpack.c.b16 %v1351, %v1349
  %v1362 = vpack.c.b16 %v1352, %v1350
  %v1363 = vpack.c.b16 %v1353, %v1353
  %v1364 = vpack.c.b16 %v1354, %v1354
  %v1371 = vsel %vm211, %v1356, 0
  %v1374 = vsel %vm211, %v1358, 0
  %v1377 = vsel %vm211, %v1360, 0
  %v1380 = vsel %vm211, %v1362, 0
  %v1383 = vsel %vm211, %v1364, 0
  %1385 = vmatprep.subr.bf16.mxu0 0
  %1386 = vmatpush1.bf16.msra.mxu0 %v186
  %1387 = vmatprep.subr.bf16.mxu0 0
  %1388 = vmatpush1.bf16.msra.mxu0 %v187
  %1389 = vmatprep.subr.bf16.mxu0 0
  %1390 = vmatpush1.bf16.msra.mxu0 %v188
  %1391 = vmatprep.subr.bf16.mxu0 0
  %1392 = vmatpush1.bf16.msra.mxu0 %v189
  %1393 = vmatprep.subr.bf16.mxu0 0
  %1394 = vmatpush1.bf16.msra.mxu0 %v190
  %1395 = vmatprep.subr.bf16.mxu0 0
  %1396 = vmatpush1.bf16.msra.mxu0 %v191
  %1397 = vmatprep.subr.bf16.mxu0 0
  %1398 = vmatpush1.bf16.msra.mxu0 %v192
  %1399 = vmatprep.subr.bf16.mxu0 0
  %1400 = vmatpush1.bf16.msra.mxu0 %v193
  %1401 = vmatprep.subr.bf16.mxu0 0
  %1402 = vmatpush1.bf16.msra.mxu0 %v194
  %1403 = vmatprep.subr.bf16.mxu0 0
  %1404 = vmatpush1.bf16.msra.mxu0 %v195
  %1405 = vmatprep.subr.bf16.mxu0 0
  %1406 = vmatpush1.bf16.msra.mxu0 %v196
  %1407 = vmatprep.subr.bf16.mxu0 0
  %1408 = vmatpush1.bf16.msra.mxu0 %v197
  %1409 = vmatprep.subr.bf16.mxu0 0
  %1410 = vmatpush1.bf16.msra.mxu0 %v229
  %1411 = vmatprep.subr.bf16.mxu0 0
  %1412 = vmatpush1.bf16.msra.mxu0 0
  %1413 = vmatprep.subr.bf16.mxu0 0
  %1414 = vmatpush1.bf16.msra.mxu0 0
  %1415 = vmatprep.subr.bf16.mxu0 0
  %1416 = vmatpush1.bf16.msra.mxu0 0
  %1417 = vmatprep.mubr.bf16.mxu0 %v1371
  %1418 = vmatmul.mubr.bf16.gmra.mrb[0].mxu0 %v1355
  %v1419 = vpop.f32.mrb[0].mxu0
  %v1420 = vadd.f32 0.0, %v1419
  %v1421 = vpop.f32.mrb[0].mxu0
  %v1422 = vpop.f32.mrb[0].mxu0
  %v1423 = vadd.f32 0.0, %v1422
  %v1424 = vpop.f32.mrb[0].mxu0
  %1425 = vmatprep.mubr.bf16.mxu0 %v1374
  %1426 = vmatmul.mubr.bf16.gmra.mrb[0].mxu0 %v1357
  %v1427 = vpop.f32.mrb[0].mxu0
  %v1428 = vadd.f32 0.0, %v1427
  %v1429 = vpop.f32.mrb[0].mxu0
  %v1430 = vpop.f32.mrb[0].mxu0
  %v1431 = vadd.f32 0.0, %v1430
  %v1432 = vpop.f32.mrb[0].mxu0
  %1433 = vmatprep.mubr.bf16.mxu0 %v1377
  %1434 = vmatmul.mubr.bf16.gmra.mrb[0].mxu0 %v1359
  %v1435 = vpop.f32.mrb[0].mxu0
  %v1436 = vadd.f32 0.0, %v1435
  %v1437 = vpop.f32.mrb[0].mxu0
  %v1438 = vpop.f32.mrb[0].mxu0
  %v1439 = vadd.f32 0.0, %v1438
  %v1440 = vpop.f32.mrb[0].mxu0
  %1441 = vmatprep.mubr.bf16.mxu0 %v1380
  %1442 = vmatmul.mubr.bf16.gmra.mrb[0].mxu0 %v1361
  %v1443 = vpop.f32.mrb[0].mxu0
  %v1444 = vadd.f32 0.0, %v1443
  %v1445 = vpop.f32.mrb[0].mxu0
  %v1446 = vpop.f32.mrb[0].mxu0
  %v1447 = vadd.f32 0.0, %v1446
  %v1448 = vpop.f32.mrb[0].mxu0
  %1449 = vmatprep.mubr.bf16.mxu0 %v1383
  %1450 = vmatmul.mubr.bf16.gmra.mrb[0].mxu0 %v1363
  %v1451 = vpop.f32.mrb[0].mxu0
  %v1452 = vadd.f32 0.0, %v1451
  %v1453 = vpop.f32.mrb[0].mxu0
  %v1454 = vpop.f32.mrb[0].mxu0
  %v1455 = vpop.f32.mrb[0].mxu0
  %1456 = vdwg.mxu0
  %v1457 = vpack.c.bf16 %v1423, %v1420
  %v1458 = vpack.c.bf16 %v1431, %v1428
  %v1459 = vpack.c.bf16 %v1439, %v1436
  %v1460 = vpack.c.bf16 %v1447, %v1444
  %v1461 = vpack.c.bf16 %v1452, %v1452
  %s1462 = scalar_lea.vmem %s2, 24
  %v1463 = vld [vmem:[%s1462] sm:$0xff]
  %v1465 = vcombine.high %v1463, %v1463
  %v1467 = vunpack.c.l.s4 1983009808
  %v1468 = vunpack.c.0.s8 %v1467
  %v1469 = vlaneseq
  %v1470 = vshrl.u32 %v1469, 7
  %v1471 = vsub.s32 %v1468, %v1470
  %v1472 = vrot.slane %v1463, %v1471
  %v1474 = vunpack.c.l.s4 1983009808
  %v1475 = vunpack.c.0.s8 %v1474
  %v1476 = vlaneseq
  %v1477 = vshrl.u32 %v1476, 7
  %v1478 = vsub.s32 %v1475, %v1477
  %v1479 = vrot.slane %v1465, %v1478
  %v1480 = vcombine.high %v1472, %v1472
  %v1481 = vcombine.high %v1479, %v1479
  %v1483 = vsel %vm349, %v1457, 0
  %v1486 = vsel %vm349, %v1458, 0
  %v1489 = vsel %vm349, %v1459, 0
  %v1492 = vsel %vm349, %v1460, 0
  %v1495 = vsel %vm349, %v1461, 0
  %v1498 = vsel %vm365, %v1472, 0
  %v1501 = vsel %vm365, %v1480, 0
  %v1504 = vsel %vm365, %v1479, 0
  %v1507 = vsel %vm365, %v1481, 0
  %1509 = vmatprep.subr.bf16.mxu0 %v1501
  %1510 = vmatpush1.bf16.msra.mxu0 %v1498
  %1511 = vmatprep.subr.bf16.mxu0 0
  %1512 = vmatpush1.bf16.msra.mxu0 0
  %1513 = vmatprep.subr.bf16.mxu0 0
  %1514 = vmatpush1.bf16.msra.mxu0 0
  %1515 = vmatprep.subr.bf16.mxu0 0
  %1516 = vmatpush1.bf16.msra.mxu0 0
  %1517 = vmatprep.subr.bf16.mxu0 0
  %1518 = vmatpush1.bf16.msra.mxu0 0
  %1519 = vmatprep.subr.bf16.mxu0 0
  %1520 = vmatpush1.bf16.msra.mxu0 0
  %1521 = vmatprep.subr.bf16.mxu0 0
  %1522 = vmatpush1.bf16.msra.mxu0 0
  %1523 = vmatprep.subr.bf16.mxu0 0
  %1524 = vmatpush1.bf16.msra.mxu0 0
  %1525 = vmatprep.subr.bf16.mxu0 0
  %1526 = vmatpush1.bf16.msra.mxu0 0
  %1527 = vmatprep.subr.bf16.mxu0 0
  %1528 = vmatpush1.bf16.msra.mxu0 0
  %1529 = vmatprep.subr.bf16.mxu0 0
  %1530 = vmatpush1.bf16.msra.mxu0 0
  %1531 = vmatprep.subr.bf16.mxu0 0
  %1532 = vmatpush1.bf16.msra.mxu0 0
  %1533 = vmatprep.subr.bf16.mxu0 0
  %1534 = vmatpush1.bf16.msra.mxu0 0
  %1535 = vmatprep.subr.bf16.mxu0 0
  %1536 = vmatpush1.bf16.msra.mxu0 0
  %1537 = vmatprep.subr.bf16.mxu0 0
  %1538 = vmatpush1.bf16.msra.mxu0 0
  %1539 = vmatprep.subr.bf16.mxu0 0
  %1540 = vmatpush1.bf16.msra.mxu0 0
  %1541 = vmatprep.mubr.bf16.mxu0 0
  %1542 = vmatmul.mubr.bf16.gmra.mrb[0].mxu0 %v1483
  %v1543 = vpop.f32.mrb[0].mxu0
  %v1544 = vadd.f32 0.0, %v1543
  %v1545 = vpop.f32.mrb[0].mxu0
  %v1546 = vadd.f32 0.0, %v1545
  %v1547 = vpop.f32.mrb[0].mxu0
  %v1548 = vadd.f32 0.0, %v1547
  %v1549 = vpop.f32.mrb[0].mxu0
  %v1550 = vadd.f32 0.0, %v1549
  %1551 = vmatprep.mubr.bf16.mxu0 0
  %1552 = vmatmul.mubr.bf16.gmra.mrb[0].mxu0 %v1486
  %v1553 = vpop.f32.mrb[0].mxu0
  %v1554 = vadd.f32 0.0, %v1553
  %v1555 = vpop.f32.mrb[0].mxu0
  %v1556 = vadd.f32 0.0, %v1555
  %v1557 = vpop.f32.mrb[0].mxu0
  %v1558 = vadd.f32 0.0, %v1557
  %v1559 = vpop.f32.mrb[0].mxu0
  %v1560 = vadd.f32 0.0, %v1559
  %1561 = vmatprep.mubr.bf16.mxu0 0
  %1562 = vmatmul.mubr.bf16.gmra.mrb[0].mxu0 %v1489
  %v1563 = vpop.f32.mrb[0].mxu0
  %v1564 = vadd.f32 0.0, %v1563
  %v1565 = vpop.f32.mrb[0].mxu0
  %v1566 = vadd.f32 0.0, %v1565
  %v1567 = vpop.f32.mrb[0].mxu0
  %v1568 = vadd.f32 0.0, %v1567
  %v1569 = vpop.f32.mrb[0].mxu0
  %v1570 = vadd.f32 0.0, %v1569
  %1571 = vmatprep.mubr.bf16.mxu0 0
  %1572 = vmatmul.mubr.bf16.gmra.mrb[0].mxu0 %v1492
  %v1573 = vpop.f32.mrb[0].mxu0
  %v1574 = vadd.f32 0.0, %v1573
  %v1575 = vpop.f32.mrb[0].mxu0
  %v1576 = vadd.f32 0.0, %v1575
  %v1577 = vpop.f32.mrb[0].mxu0
  %v1578 = vadd.f32 0.0, %v1577
  %v1579 = vpop.f32.mrb[0].mxu0
  %v1580 = vadd.f32 0.0, %v1579
  %1581 = vmatprep.mubr.bf16.mxu0 0
  %1582 = vmatmul.mubr.bf16.gmra.mrb[0].mxu0 %v1495
  %v1583 = vpop.f32.mrb[0].mxu0
  %v1584 = vadd.f32 0.0, %v1583
  %v1585 = vpop.f32.mrb[0].mxu0
  %v1586 = vadd.f32 0.0, %v1585
  %v1587 = vpop.f32.mrb[0].mxu0
  %v1588 = vpop.f32.mrb[0].mxu0
  %1589 = vdwg.mxu0
  %1590 = vmatprep.subr.bf16.mxu0 %v1507
  %1591 = vmatpush1.bf16.msra.mxu0 %v1504
  %1592 = vmatprep.subr.bf16.mxu0 0
  %1593 = vmatpush1.bf16.msra.mxu0 0
  %1594 = vmatprep.subr.bf16.mxu0 0
  %1595 = vmatpush1.bf16.msra.mxu0 0
  %1596 = vmatprep.subr.bf16.mxu0 0
  %1597 = vmatpush1.bf16.msra.mxu0 0
  %1598 = vmatprep.subr.bf16.mxu0 0
  %1599 = vmatpush1.bf16.msra.mxu0 0
  %1600 = vmatprep.subr.bf16.mxu0 0
  %1601 = vmatpush1.bf16.msra.mxu0 0
  %1602 = vmatprep.subr.bf16.mxu0 0
  %1603 = vmatpush1.bf16.msra.mxu0 0
  %1604 = vmatprep.subr.bf16.mxu0 0
  %1605 = vmatpush1.bf16.msra.mxu0 0
  %1606 = vmatprep.subr.bf16.mxu0 0
  %1607 = vmatpush1.bf16.msra.mxu0 0
  %1608 = vmatprep.subr.bf16.mxu0 0
  %1609 = vmatpush1.bf16.msra.mxu0 0
  %1610 = vmatprep.subr.bf16.mxu0 0
  %1611 = vmatpush1.bf16.msra.mxu0 0
  %1612 = vmatprep.subr.bf16.mxu0 0
  %1613 = vmatpush1.bf16.msra.mxu0 0
  %1614 = vmatprep.subr.bf16.mxu0 0
  %1615 = vmatpush1.bf16.msra.mxu0 0
  %1616 = vmatprep.subr.bf16.mxu0 0
  %1617 = vmatpush1.bf16.msra.mxu0 0
  %1618 = vmatprep.subr.bf16.mxu0 0
  %1619 = vmatpush1.bf16.msra.mxu0 0
  %1620 = vmatprep.subr.bf16.mxu0 0
  %1621 = vmatpush1.bf16.msra.mxu0 0
  %1622 = vmatprep.mubr.bf16.mxu0 0
  %1623 = vmatmul.mubr.bf16.gmra.mrb[0].mxu0 %v1483
  %v1624 = vpop.f32.mrb[0].mxu0
  %v1625 = vadd.f32 0.0, %v1624
  %v1626 = vpop.f32.mrb[0].mxu0
  %v1627 = vadd.f32 0.0, %v1626
  %v1628 = vpop.f32.mrb[0].mxu0
  %v1629 = vadd.f32 0.0, %v1628
  %v1630 = vpop.f32.mrb[0].mxu0
  %v1631 = vadd.f32 0.0, %v1630
  %1632 = vmatprep.mubr.bf16.mxu0 0
  %1633 = vmatmul.mubr.bf16.gmra.mrb[0].mxu0 %v1486
  %v1634 = vpop.f32.mrb[0].mxu0
  %v1635 = vadd.f32 0.0, %v1634
  %v1636 = vpop.f32.mrb[0].mxu0
  %v1637 = vadd.f32 0.0, %v1636
  %v1638 = vpop.f32.mrb[0].mxu0
  %v1639 = vadd.f32 0.0, %v1638
  %v1640 = vpop.f32.mrb[0].mxu0
  %v1641 = vadd.f32 0.0, %v1640
  %1642 = vmatprep.mubr.bf16.mxu0 0
  %1643 = vmatmul.mubr.bf16.gmra.mrb[0].mxu0 %v1489
  %v1644 = vpop.f32.mrb[0].mxu0
  %v1645 = vadd.f32 0.0, %v1644
  %v1646 = vpop.f32.mrb[0].mxu0
  %v1647 = vadd.f32 0.0, %v1646
  %v1648 = vpop.f32.mrb[0].mxu0
  %v1649 = vadd.f32 0.0, %v1648
  %v1650 = vpop.f32.mrb[0].mxu0
  %v1651 = vadd.f32 0.0, %v1650
  %1652 = vmatprep.mubr.bf16.mxu0 0
  %1653 = vmatmul.mubr.bf16.gmra.mrb[0].mxu0 %v1492
  %v1654 = vpop.f32.mrb[0].mxu0
  %v1655 = vadd.f32 0.0, %v1654
  %v1656 = vpop.f32.mrb[0].mxu0
  %v1657 = vadd.f32 0.0, %v1656
  %v1658 = vpop.f32.mrb[0].mxu0
  %v1659 = vadd.f32 0.0, %v1658
  %v1660 = vpop.f32.mrb[0].mxu0
  %v1661 = vadd.f32 0.0, %v1660
  %1662 = vmatprep.mubr.bf16.mxu0 0
  %1663 = vmatmul.mubr.bf16.gmra.mrb[0].mxu0 %v1495
  %v1664 = vpop.f32.mrb[0].mxu0
  %v1665 = vadd.f32 0.0, %v1664
  %v1666 = vpop.f32.mrb[0].mxu0
  %v1667 = vadd.f32 0.0, %v1666
  %v1668 = vpop.f32.mrb[0].mxu0
  %v1669 = vpop.f32.mrb[0].mxu0
  %1670 = vdwg.mxu0
  %v1671 = vadd.f32 %v1282, %v1544
  %v1672 = vadd.f32 %v1283, %v1546
  %v1673 = vadd.f32 %v1284, %v1625
  %v1674 = vadd.f32 %v1285, %v1627
  %v1675 = vadd.f32 %v1286, %v1548
  %v1676 = vadd.f32 %v1287, %v1550
  %v1677 = vadd.f32 %v1288, %v1629
  %v1678 = vadd.f32 %v1289, %v1631
  %v1679 = vadd.f32 %v1290, %v1554
  %v1680 = vadd.f32 %v1291, %v1556
  %v1681 = vadd.f32 %v1292, %v1635
  %v1682 = vadd.f32 %v1293, %v1637
  %v1683 = vadd.f32 %v1294, %v1558
  %v1684 = vadd.f32 %v1295, %v1560
  %v1685 = vadd.f32 %v1296, %v1639
  %v1686 = vadd.f32 %v1297, %v1641
  %v1687 = vadd.f32 %v1298, %v1564
  %v1688 = vadd.f32 %v1299, %v1566
  %v1689 = vadd.f32 %v1300, %v1645
  %v1690 = vadd.f32 %v1301, %v1647
  %v1691 = vadd.f32 %v1302, %v1568
  %v1692 = vadd.f32 %v1303, %v1570
  %v1693 = vadd.f32 %v1304, %v1649
  %v1694 = vadd.f32 %v1305, %v1651
  %v1695 = vadd.f32 %v1306, %v1574
  %v1696 = vadd.f32 %v1307, %v1576
  %v1697 = vadd.f32 %v1308, %v1655
  %v1698 = vadd.f32 %v1309, %v1657
  %v1699 = vadd.f32 %v1310, %v1578
  %v1700 = vadd.f32 %v1311, %v1580
  %v1701 = vadd.f32 %v1312, %v1659
  %v1702 = vadd.f32 %v1313, %v1661
  %v1703 = vadd.f32 %v1314, %v1584
  %v1704 = vadd.f32 %v1315, %v1586
  %v1705 = vadd.f32 %v1316, %v1665
  %v1706 = vadd.f32 %v1317, %v1667
  %v1707 = vmax.f32 %v1671, 0.0
  %v1708 = vmax.f32 %v1672, 0.0
  %v1709 = vmax.f32 %v1673, 0.0
  %v1710 = vmax.f32 %v1674, 0.0
  %v1711 = vmax.f32 %v1675, 0.0
  %v1712 = vmax.f32 %v1676, 0.0
  %v1713 = vmax.f32 %v1677, 0.0
  %v1714 = vmax.f32 %v1678, 0.0
  %v1715 = vmax.f32 %v1679, 0.0
  %v1716 = vmax.f32 %v1680, 0.0
  %v1717 = vmax.f32 %v1681, 0.0
  %v1718 = vmax.f32 %v1682, 0.0
  %v1719 = vmax.f32 %v1683, 0.0
  %v1720 = vmax.f32 %v1684, 0.0
  %v1721 = vmax.f32 %v1685, 0.0
  %v1722 = vmax.f32 %v1686, 0.0
  %v1723 = vmax.f32 %v1687, 0.0
  %v1724 = vmax.f32 %v1688, 0.0
  %v1725 = vmax.f32 %v1689, 0.0
  %v1726 = vmax.f32 %v1690, 0.0
  %v1727 = vmax.f32 %v1691, 0.0
  %v1728 = vmax.f32 %v1692, 0.0
  %v1729 = vmax.f32 %v1693, 0.0
  %v1730 = vmax.f32 %v1694, 0.0
  %v1731 = vmax.f32 %v1695, 0.0
  %v1732 = vmax.f32 %v1696, 0.0
  %v1733 = vmax.f32 %v1697, 0.0
  %v1734 = vmax.f32 %v1698, 0.0
  %v1735 = vmax.f32 %v1699, 0.0
  %v1736 = vmax.f32 %v1700, 0.0
  %v1737 = vmax.f32 %v1701, 0.0
  %v1738 = vmax.f32 %v1702, 0.0
  %v1739 = vmax.f32 %v1703, 0.0
  %v1740 = vmax.f32 %v1704, 0.0
  %v1741 = vmax.f32 %v1705, 0.0
  %v1742 = vmax.f32 %v1706, 0.0
  %v1743 = vpack.c.bf16 %v1711, %v1707
  %v1744 = vpack.c.bf16 %v1712, %v1708
  %v1745 = vpack.c.bf16 %v1713, %v1709
  %v1746 = vpack.c.bf16 %v1714, %v1710
  %v1747 = vpack.c.bf16 %v1719, %v1715
  %v1748 = vpack.c.bf16 %v1720, %v1716
  %v1749 = vpack.c.bf16 %v1721, %v1717
  %v1750 = vpack.c.bf16 %v1722, %v1718
  %v1751 = vpack.c.bf16 %v1727, %v1723
  %v1752 = vpack.c.bf16 %v1728, %v1724
  %v1753 = vpack.c.bf16 %v1729, %v1725
  %v1754 = vpack.c.bf16 %v1730, %v1726
  %v1755 = vpack.c.bf16 %v1735, %v1731
  %v1756 = vpack.c.bf16 %v1736, %v1732
  %v1757 = vpack.c.bf16 %v1737, %v1733
  %v1758 = vpack.c.bf16 %v1738, %v1734
  %v1759 = vpack.c.bf16 %v1739, %v1739
  %v1760 = vpack.c.bf16 %v1740, %v1740
  %v1761 = vpack.c.bf16 %v1741, %v1741
  %v1762 = vpack.c.bf16 %v1742, %v1742
  %v1763 = vld [vmem:[%s4] sm:$0xf]
  %v1764 = vld [vmem:[%s4 + $0x4] sm:$0xf]
  %v1765 = vld [vmem:[%s4 + $0x8] sm:$0xf]
  %v1769 = vunpack.c.l.b16 %v1763
  %v1770 = vunpack.c.l.b16 %v1764
  %v1771 = vunpack.c.l.b16 %v1765
  %v1772 = vpack.c.b16 %v1770, %v1769
  %v1773 = vpack.c.b16 %v1771, %v1771
  %v1775 = vsel %vm211, %v1772, 0
  %v1778 = vsel %vm211, %v1773, 0
  %v1781 = vsel %vm227, %v1759, 0
  %v1784 = vsel %vm227, %v1760, 0
  %v1787 = vsel %vm227, %v1761, 0
  %v1790 = vsel %vm227, %v1762, 0
  %1792 = vmatprep.subr.bf16.mxu0 %v1744
  %1793 = vmatpush1.bf16.msra.mxu0 %v1743
  %1794 = vmatprep.subr.bf16.mxu0 %v1748
  %1795 = vmatpush1.bf16.msra.mxu0 %v1747
  %1796 = vmatprep.subr.bf16.mxu0 %v1752
  %1797 = vmatpush1.bf16.msra.mxu0 %v1751
  %1798 = vmatprep.subr.bf16.mxu0 %v1756
  %1799 = vmatpush1.bf16.msra.mxu0 %v1755
  %1800 = vmatprep.subr.bf16.mxu0 %v1784
  %1801 = vmatpush1.bf16.msra.mxu0 %v1781
  %1802 = vmatprep.subr.bf16.mxu0 0
  %1803 = vmatpush1.bf16.msra.mxu0 0
  %1804 = vmatprep.subr.bf16.mxu0 0
  %1805 = vmatpush1.bf16.msra.mxu0 0
  %1806 = vmatprep.subr.bf16.mxu0 0
  %1807 = vmatpush1.bf16.msra.mxu0 0
  %1808 = vmatprep.subr.bf16.mxu0 0
  %1809 = vmatpush1.bf16.msra.mxu0 0
  %1810 = vmatprep.subr.bf16.mxu0 0
  %1811 = vmatpush1.bf16.msra.mxu0 0
  %1812 = vmatprep.subr.bf16.mxu0 0
  %1813 = vmatpush1.bf16.msra.mxu0 0
  %1814 = vmatprep.subr.bf16.mxu0 0
  %1815 = vmatpush1.bf16.msra.mxu0 0
  %1816 = vmatprep.subr.bf16.mxu0 0
  %1817 = vmatpush1.bf16.msra.mxu0 0
  %1818 = vmatprep.subr.bf16.mxu0 0
  %1819 = vmatpush1.bf16.msra.mxu0 0
  %1820 = vmatprep.subr.bf16.mxu0 0
  %1821 = vmatpush1.bf16.msra.mxu0 0
  %1822 = vmatprep.subr.bf16.mxu0 0
  %1823 = vmatpush1.bf16.msra.mxu0 0
  %1824 = vmatprep.mubr.bf16.mxu0 0
  %1825 = vmatmul.mubr.bf16.gmra.mrb[0].mxu0 %v1775
  %v1826 = vpop.f32.mrb[0].mxu0
  %v1827 = vadd.f32 0.0, %v1826
  %v1828 = vpop.f32.mrb[0].mxu0
  %v1829 = vadd.f32 0.0, %v1828
  %v1830 = vpop.f32.mrb[0].mxu0
  %v1831 = vadd.f32 0.0, %v1830
  %v1832 = vpop.f32.mrb[0].mxu0
  %v1833 = vadd.f32 0.0, %v1832
  %1834 = vmatprep.mubr.bf16.mxu0 0
  %1835 = vmatmul.mubr.bf16.gmra.mrb[0].mxu0 %v1778
  %v1836 = vpop.f32.mrb[0].mxu0
  %v1837 = vadd.f32 0.0, %v1836
  %v1838 = vpop.f32.mrb[0].mxu0
  %v1839 = vadd.f32 0.0, %v1838
  %v1840 = vpop.f32.mrb[0].mxu0
  %v1841 = vpop.f32.mrb[0].mxu0
  %1842 = vdwg.mxu0
  %1843 = vmatprep.subr.bf16.mxu0 %v1746
  %1844 = vmatpush1.bf16.msra.mxu0 %v1745
  %1845 = vmatprep.subr.bf16.mxu0 %v1750
  %1846 = vmatpush1.bf16.msra.mxu0 %v1749
  %1847 = vmatprep.subr.bf16.mxu0 %v1754
  %1848 = vmatpush1.bf16.msra.mxu0 %v1753
  %1849 = vmatprep.subr.bf16.mxu0 %v1758
  %1850 = vmatpush1.bf16.msra.mxu0 %v1757
  %1851 = vmatprep.subr.bf16.mxu0 %v1790
  %1852 = vmatpush1.bf16.msra.mxu0 %v1787
  %1853 = vmatprep.subr.bf16.mxu0 0
  %1854 = vmatpush1.bf16.msra.mxu0 0
  %1855 = vmatprep.subr.bf16.mxu0 0
  %1856 = vmatpush1.bf16.msra.mxu0 0
  %1857 = vmatprep.subr.bf16.mxu0 0
  %1858 = vmatpush1.bf16.msra.mxu0 0
  %1859 = vmatprep.subr.bf16.mxu0 0
  %1860 = vmatpush1.bf16.msra.mxu0 0
  %1861 = vmatprep.subr.bf16.mxu0 0
  %1862 = vmatpush1.bf16.msra.mxu0 0
  %1863 = vmatprep.subr.bf16.mxu0 0
  %1864 = vmatpush1.bf16.msra.mxu0 0
  %1865 = vmatprep.subr.bf16.mxu0 0
  %1866 = vmatpush1.bf16.msra.mxu0 0
  %1867 = vmatprep.subr.bf16.mxu0 0
  %1868 = vmatpush1.bf16.msra.mxu0 0
  %1869 = vmatprep.subr.bf16.mxu0 0
  %1870 = vmatpush1.bf16.msra.mxu0 0
  %1871 = vmatprep.subr.bf16.mxu0 0
  %1872 = vmatpush1.bf16.msra.mxu0 0
  %1873 = vmatprep.subr.bf16.mxu0 0
  %1874 = vmatpush1.bf16.msra.mxu0 0
  %1875 = vmatprep.mubr.bf16.mxu0 0
  %1876 = vmatmul.mubr.bf16.gmra.mrb[0].mxu0 %v1775
  %v1877 = vpop.f32.mrb[0].mxu0
  %v1878 = vadd.f32 0.0, %v1877
  %v1879 = vpop.f32.mrb[0].mxu0
  %v1880 = vadd.f32 0.0, %v1879
  %v1881 = vpop.f32.mrb[0].mxu0
  %v1882 = vadd.f32 0.0, %v1881
  %v1883 = vpop.f32.mrb[0].mxu0
  %v1884 = vadd.f32 0.0, %v1883
  %1885 = vmatprep.mubr.bf16.mxu0 0
  %1886 = vmatmul.mubr.bf16.gmra.mrb[0].mxu0 %v1778
  %v1887 = vpop.f32.mrb[0].mxu0
  %v1888 = vadd.f32 0.0, %v1887
  %v1889 = vpop.f32.mrb[0].mxu0
  %v1890 = vadd.f32 0.0, %v1889
  %v1891 = vpop.f32.mrb[0].mxu0
  %v1892 = vpop.f32.mrb[0].mxu0
  %1893 = vdwg.mxu0
  %v1894 = vpack.c.bf16 %v1831, %v1827
  %v1895 = vpack.c.bf16 %v1833, %v1829
  %v1896 = vpack.c.bf16 %v1882, %v1878
  %v1897 = vpack.c.bf16 %v1884, %v1880
  %v1898 = vpack.c.bf16 %v1837, %v1837
  %v1899 = vpack.c.bf16 %v1839, %v1839
  %v1900 = vpack.c.bf16 %v1888, %v1888
  %v1901 = vpack.c.bf16 %v1890, %v1890
  %v1902 = vld [vmem:[%s5] sm:$0xff]
  %v1903 = vld [vmem:[%s5 + $0x8] sm:$0xff]
  %v1904 = vld [vmem:[%s5 + $0x10] sm:$0xff]
  %v1905 = vld [vmem:[%s5 + $0x18] sm:$0xff]
  %v1906 = vld [vmem:[%s5 + $0x20] sm:$0xff]
  %v1907 = vld [vmem:[%s5 + $0x28] sm:$0xff]
  %v1908 = vld [vmem:[%s5 + $0x30] sm:$0xff]
  %v1909 = vld [vmem:[%s5 + $0x38] sm:$0xff]
  %v1910 = vld [vmem:[%s5 + $0x40] sm:$0xff]
  %v1911 = vld [vmem:[%s5 + $0x48] sm:$0xff]
  %v1912 = vld [vmem:[%s5 + $0x50] sm:$0xff]
  %v1913 = vld [vmem:[%s5 + $0x58] sm:$0xff]
  %v1914 = vld [vmem:[%s5 + $0x60] sm:$0xff]
  %v1915 = vld [vmem:[%s5 + $0x68] sm:$0xff]
  %v1916 = vld [vmem:[%s5 + $0x70] sm:$0xff]
  %v1917 = vld [vmem:[%s5 + $0x78] sm:$0xff]
  %v1918 = vld [vmem:[%s5 + $0x80] sm:$0xff]
  %v1919 = vld [vmem:[%s5 + $0x88] sm:$0xff]
  %v1920 = vld [vmem:[%s5 + $0x90] sm:$0xff]
  %v1921 = vld [vmem:[%s5 + $0x98] sm:$0xff]
  %v1922 = vld [vmem:[%s5 + $0xa0] sm:$0xff]
  %v1923 = vld [vmem:[%s5 + $0xa8] sm:$0xff]
  %v1924 = vld [vmem:[%s5 + $0xb0] sm:$0xff]
  %v1925 = vld [vmem:[%s5 + $0xb8] sm:$0xff]
  %v1926 = vld [vmem:[%s5 + $0xc0] sm:$0xff]
  %v1927 = vld [vmem:[%s5 + $0xc8] sm:$0xff]
  %v1928 = vld [vmem:[%s5 + $0xd0] sm:$0xff]
  %v1929 = vld [vmem:[%s5 + $0xd8] sm:$0xff]
  %v1930 = vld [vmem:[%s5 + $0xe0] sm:$0xff]
  %v1931 = vld [vmem:[%s5 + $0xe8] sm:$0xff]
  %v1932 = vld [vmem:[%s5 + $0xf0] sm:$0xff]
  %v1933 = vld [vmem:[%s5 + $0xf8] sm:$0xff]
  %v1934 = vld [vmem:[%s5 + $0x100] sm:$0xff]
  %v1935 = vld [vmem:[%s5 + $0x108] sm:$0xff]
  %v1936 = vld [vmem:[%s5 + $0x110] sm:$0xff]
  %v1937 = vld [vmem:[%s5 + $0x118] sm:$0xff]
  %v1938 = vld [vmem:[%s5 + $0x120] sm:$0xff]
  %v1939 = vld [vmem:[%s5 + $0x128] sm:$0xff]
  %v1940 = vld [vmem:[%s5 + $0x130] sm:$0xff]
  %v1941 = vld [vmem:[%s5 + $0x138] sm:$0xff]
  %v1942 = vld [vmem:[%s5 + $0x140] sm:$0xff]
  %v1943 = vld [vmem:[%s5 + $0x148] sm:$0xff]
  %v1944 = vld [vmem:[%s5 + $0x150] sm:$0xff]
  %v1945 = vld [vmem:[%s5 + $0x158] sm:$0xff]
  %v1946 = vld [vmem:[%s5 + $0x160] sm:$0xff]
  %v1947 = vld [vmem:[%s5 + $0x168] sm:$0xff]
  %v1948 = vld [vmem:[%s5 + $0x170] sm:$0xff]
  %v1949 = vld [vmem:[%s5 + $0x178] sm:$0xff]
  %v1950 = vld [vmem:[%s5 + $0x180] sm:$0xff]
  %v1951 = vld [vmem:[%s5 + $0x188] sm:$0xff]
  %v1952 = vld [vmem:[%s5 + $0x190] sm:$0xff]
  %v1953 = vld [vmem:[%s5 + $0x198] sm:$0xff]
  %v1954 = vld [vmem:[%s5 + $0x1a0] sm:$0xff]
  %v1955 = vld [vmem:[%s5 + $0x1a8] sm:$0xff]
  %v1956 = vld [vmem:[%s5 + $0x1b0] sm:$0xff]
  %v1957 = vld [vmem:[%s5 + $0x1b8] sm:$0xff]
  %v1958 = vld [vmem:[%s5 + $0x1c0] sm:$0xff]
  %v1959 = vld [vmem:[%s5 + $0x1c8] sm:$0xff]
  %v1960 = vld [vmem:[%s5 + $0x1d0] sm:$0xff]
  %v1961 = vld [vmem:[%s5 + $0x1d8] sm:$0xff]
  %v1962 = vld [vmem:[%s5 + $0x1e0] sm:$0xff]
  %v1963 = vld [vmem:[%s5 + $0x1e8] sm:$0xff]
  %v1964 = vld [vmem:[%s5 + $0x1f0] sm:$0xff]
  %v1965 = vld [vmem:[%s5 + $0x1f8] sm:$0xff]
  %v1966 = vld [vmem:[%s6] sm:$0x3]
  %v1968 = vlaneseq
  %v1969 = vshrl.u32 %v1968, 7
  %v1970 = vsub.s32 0, %v1969
  %v1971 = vrot.slane %v1966, %v1970
  %v1972 = vlaneseq
  %v1973 = vshrl.u32 %v1972, 7
  %v1974 = vsub.s32 1, %v1973
  %v1975 = vrot.slane %v1966, %v1974
  %v2042 = vunpack.c.l.b16 %v1902
  %v2043 = vunpack.c.h.b16 %v1902
  %v2044 = vunpack.c.l.b16 %v1903
  %v2045 = vunpack.c.h.b16 %v1903
  %v2046 = vunpack.c.l.b16 %v1904
  %v2047 = vunpack.c.h.b16 %v1904
  %v2048 = vunpack.c.l.b16 %v1905
  %v2049 = vunpack.c.h.b16 %v1905
  %v2050 = vunpack.c.l.b16 %v1906
  %v2051 = vunpack.c.h.b16 %v1906
  %v2052 = vunpack.c.l.b16 %v1907
  %v2053 = vunpack.c.h.b16 %v1907
  %v2054 = vunpack.c.l.b16 %v1908
  %v2055 = vunpack.c.h.b16 %v1908
  %v2056 = vunpack.c.l.b16 %v1909
  %v2057 = vunpack.c.h.b16 %v1909
  %v2058 = vunpack.c.l.b16 %v1910
  %v2059 = vunpack.c.h.b16 %v1910
  %v2060 = vunpack.c.l.b16 %v1911
  %v2061 = vunpack.c.h.b16 %v1911
  %v2062 = vunpack.c.l.b16 %v1912
  %v2063 = vunpack.c.h.b16 %v1912
  %v2064 = vunpack.c.l.b16 %v1913
  %v2065 = vunpack.c.h.b16 %v1913
  %v2066 = vunpack.c.l.b16 %v1914
  %v2067 = vunpack.c.h.b16 %v1914
  %v2068 = vunpack.c.l.b16 %v1915
  %v2069 = vunpack.c.h.b16 %v1915
  %v2070 = vunpack.c.l.b16 %v1916
  %v2071 = vunpack.c.h.b16 %v1916
  %v2072 = vunpack.c.l.b16 %v1917
  %v2073 = vunpack.c.h.b16 %v1917
  %v2074 = vunpack.c.l.b16 %v1918
  %v2075 = vunpack.c.h.b16 %v1918
  %v2076 = vunpack.c.l.b16 %v1919
  %v2077 = vunpack.c.h.b16 %v1919
  %v2078 = vunpack.c.l.b16 %v1920
  %v2079 = vunpack.c.h.b16 %v1920
  %v2080 = vunpack.c.l.b16 %v1921
  %v2081 = vunpack.c.h.b16 %v1921
  %v2082 = vunpack.c.l.b16 %v1922
  %v2083 = vunpack.c.h.b16 %v1922
  %v2084 = vunpack.c.l.b16 %v1923
  %v2085 = vunpack.c.h.b16 %v1923
  %v2086 = vunpack.c.l.b16 %v1924
  %v2087 = vunpack.c.h.b16 %v1924
  %v2088 = vunpack.c.l.b16 %v1925
  %v2089 = vunpack.c.h.b16 %v1925
  %v2090 = vunpack.c.l.b16 %v1926
  %v2091 = vunpack.c.h.b16 %v1926
  %v2092 = vunpack.c.l.b16 %v1927
  %v2093 = vunpack.c.h.b16 %v1927
  %v2094 = vunpack.c.l.b16 %v1928
  %v2095 = vunpack.c.h.b16 %v1928
  %v2096 = vunpack.c.l.b16 %v1929
  %v2097 = vunpack.c.h.b16 %v1929
  %v2098 = vunpack.c.l.b16 %v1930
  %v2099 = vunpack.c.h.b16 %v1930
  %v2100 = vunpack.c.l.b16 %v1931
  %v2101 = vunpack.c.h.b16 %v1931
  %v2102 = vunpack.c.l.b16 %v1932
  %v2103 = vunpack.c.h.b16 %v1932
  %v2104 = vunpack.c.l.b16 %v1933
  %v2105 = vunpack.c.h.b16 %v1933
  %v2106 = vunpack.c.l.b16 %v1934
  %v2107 = vunpack.c.h.b16 %v1934
  %v2108 = vunpack.c.l.b16 %v1935
  %v2109 = vunpack.c.h.b16 %v1935
  %v2110 = vunpack.c.l.b16 %v1936
  %v2111 = vunpack.c.h.b16 %v1936
  %v2112 = vunpack.c.l.b16 %v1937
  %v2113 = vunpack.c.h.b16 %v1937
  %v2114 = vunpack.c.l.b16 %v1938
  %v2115 = vunpack.c.h.b16 %v1938
  %v2116 = vunpack.c.l.b16 %v1939
  %v2117 = vunpack.c.h.b16 %v1939
  %v2118 = vunpack.c.l.b16 %v1940
  %v2119 = vunpack.c.h.b16 %v1940
  %v2120 = vunpack.c.l.b16 %v1941
  %v2121 = vunpack.c.h.b16 %v1941
  %v2122 = vunpack.c.l.b16 %v1942
  %v2123 = vunpack.c.h.b16 %v1942
  %v2124 = vunpack.c.l.b16 %v1943
  %v2125 = vunpack.c.h.b16 %v1943
  %v2126 = vunpack.c.l.b16 %v1944
  %v2127 = vunpack.c.h.b16 %v1944
  %v2128 = vunpack.c.l.b16 %v1945
  %v2129 = vunpack.c.h.b16 %v1945
  %v2130 = vunpack.c.l.b16 %v1946
  %v2131 = vunpack.c.h.b16 %v1946
  %v2132 = vunpack.c.l.b16 %v1947
  %v2133 = vunpack.c.h.b16 %v1947
  %v2134 = vunpack.c.l.b16 %v1948
  %v2135 = vunpack.c.h.b16 %v1948
  %v2136 = vunpack.c.l.b16 %v1949
  %v2137 = vunpack.c.h.b16 %v1949
  %v2138 = vunpack.c.l.b16 %v1950
  %v2139 = vunpack.c.h.b16 %v1950
  %v2140 = vunpack.c.l.b16 %v1951
  %v2141 = vunpack.c.h.b16 %v1951
  %v2142 = vunpack.c.l.b16 %v1952
  %v2143 = vunpack.c.h.b16 %v1952
  %v2144 = vunpack.c.l.b16 %v1953
  %v2145 = vunpack.c.h.b16 %v1953
  %v2146 = vunpack.c.l.b16 %v1954
  %v2147 = vunpack.c.h.b16 %v1954
  %v2148 = vunpack.c.l.b16 %v1955
  %v2149 = vunpack.c.h.b16 %v1955
  %v2150 = vunpack.c.l.b16 %v1956
  %v2151 = vunpack.c.h.b16 %v1956
  %v2152 = vunpack.c.l.b16 %v1957
  %v2153 = vunpack.c.h.b16 %v1957
  %v2154 = vunpack.c.l.b16 %v1958
  %v2155 = vunpack.c.h.b16 %v1958
  %v2156 = vunpack.c.l.b16 %v1959
  %v2157 = vunpack.c.h.b16 %v1959
  %v2158 = vunpack.c.l.b16 %v1960
  %v2159 = vunpack.c.h.b16 %v1960
  %v2160 = vunpack.c.l.b16 %v1961
  %v2161 = vunpack.c.h.b16 %v1961
  %v2162 = vunpack.c.l.b16 %v1962
  %v2163 = vunpack.c.h.b16 %v1962
  %v2164 = vunpack.c.l.b16 %v1963
  %v2165 = vunpack.c.h.b16 %v1963
  %v2166 = vunpack.c.l.b16 %v1964
  %v2167 = vunpack.c.h.b16 %v1964
  %v2168 = vunpack.c.l.b16 %v1965
  %v2169 = vunpack.c.h.b16 %v1965
  %v2170 = vpack.c.b16 %v2044, %v2042
  %v2171 = vpack.c.b16 %v2045, %v2043
  %v2172 = vpack.c.b16 %v2048, %v2046
  %v2173 = vpack.c.b16 %v2049, %v2047
  %v2174 = vpack.c.b16 %v2052, %v2050
  %v2175 = vpack.c.b16 %v2053, %v2051
  %v2176 = vpack.c.b16 %v2056, %v2054
  %v2177 = vpack.c.b16 %v2057, %v2055
  %v2178 = vpack.c.b16 %v2060, %v2058
  %v2179 = vpack.c.b16 %v2061, %v2059
  %v2180 = vpack.c.b16 %v2064, %v2062
  %v2181 = vpack.c.b16 %v2065, %v2063
  %v2182 = vpack.c.b16 %v2068, %v2066
  %v2183 = vpack.c.b16 %v2069, %v2067
  %v2184 = vpack.c.b16 %v2072, %v2070
  %v2185 = vpack.c.b16 %v2073, %v2071
  %v2186 = vpack.c.b16 %v2076, %v2074
  %v2187 = vpack.c.b16 %v2077, %v2075
  %v2188 = vpack.c.b16 %v2080, %v2078
  %v2189 = vpack.c.b16 %v2081, %v2079
  %v2190 = vpack.c.b16 %v2084, %v2082
  %v2191 = vpack.c.b16 %v2085, %v2083
  %v2192 = vpack.c.b16 %v2088, %v2086
  %v2193 = vpack.c.b16 %v2089, %v2087
  %v2194 = vpack.c.b16 %v2092, %v2090
  %v2195 = vpack.c.b16 %v2093, %v2091
  %v2196 = vpack.c.b16 %v2096, %v2094
  %v2197 = vpack.c.b16 %v2097, %v2095
  %v2198 = vpack.c.b16 %v2100, %v2098
  %v2199 = vpack.c.b16 %v2101, %v2099
  %v2200 = vpack.c.b16 %v2104, %v2102
  %v2201 = vpack.c.b16 %v2105, %v2103
  %v2202 = vpack.c.b16 %v2108, %v2106
  %v2203 = vpack.c.b16 %v2109, %v2107
  %v2204 = vpack.c.b16 %v2112, %v2110
  %v2205 = vpack.c.b16 %v2113, %v2111
  %v2206 = vpack.c.b16 %v2116, %v2114
  %v2207 = vpack.c.b16 %v2117, %v2115
  %v2208 = vpack.c.b16 %v2120, %v2118
  %v2209 = vpack.c.b16 %v2121, %v2119
  %v2210 = vpack.c.b16 %v2124, %v2122
  %v2211 = vpack.c.b16 %v2125, %v2123
  %v2212 = vpack.c.b16 %v2128, %v2126
  %v2213 = vpack.c.b16 %v2129, %v2127
  %v2214 = vpack.c.b16 %v2132, %v2130
  %v2215 = vpack.c.b16 %v2133, %v2131
  %v2216 = vpack.c.b16 %v2136, %v2134
  %v2217 = vpack.c.b16 %v2137, %v2135
  %v2218 = vpack.c.b16 %v2140, %v2138
  %v2219 = vpack.c.b16 %v2141, %v2139
  %v2220 = vpack.c.b16 %v2144, %v2142
  %v2221 = vpack.c.b16 %v2145, %v2143
  %v2222 = vpack.c.b16 %v2148, %v2146
  %v2223 = vpack.c.b16 %v2149, %v2147
  %v2224 = vpack.c.b16 %v2152, %v2150
  %v2225 = vpack.c.b16 %v2153, %v2151
  %v2226 = vpack.c.b16 %v2156, %v2154
  %v2227 = vpack.c.b16 %v2157, %v2155
  %v2228 = vpack.c.b16 %v2160, %v2158
  %v2229 = vpack.c.b16 %v2161, %v2159
  %v2230 = vpack.c.b16 %v2164, %v2162
  %v2231 = vpack.c.b16 %v2165, %v2163
  %v2232 = vpack.c.b16 %v2168, %v2166
  %v2233 = vpack.c.b16 %v2169, %v2167
  %2298 = vmatprep.subr.bf16.mxu0 %v2171
  %2299 = vmatpush1.bf16.msra.mxu0 %v2170
  %2300 = vmatprep.subr.bf16.mxu0 %v2173
  %2301 = vmatpush1.bf16.msra.mxu0 %v2172
  %2302 = vmatprep.subr.bf16.mxu0 %v2175
  %2303 = vmatpush1.bf16.msra.mxu0 %v2174
  %2304 = vmatprep.subr.bf16.mxu0 %v2177
  %2305 = vmatpush1.bf16.msra.mxu0 %v2176
  %2306 = vmatprep.subr.bf16.mxu0 %v2179
  %2307 = vmatpush1.bf16.msra.mxu0 %v2178
  %2308 = vmatprep.subr.bf16.mxu0 %v2181
  %2309 = vmatpush1.bf16.msra.mxu0 %v2180
  %2310 = vmatprep.subr.bf16.mxu0 %v2183
  %2311 = vmatpush1.bf16.msra.mxu0 %v2182
  %2312 = vmatprep.subr.bf16.mxu0 %v2185
  %2313 = vmatpush1.bf16.msra.mxu0 %v2184
  %2314 = vmatprep.subr.bf16.mxu0 %v2187
  %2315 = vmatpush1.bf16.msra.mxu0 %v2186
  %2316 = vmatprep.subr.bf16.mxu0 %v2189
  %2317 = vmatpush1.bf16.msra.mxu0 %v2188
  %2318 = vmatprep.subr.bf16.mxu0 %v2191
  %2319 = vmatpush1.bf16.msra.mxu0 %v2190
  %2320 = vmatprep.subr.bf16.mxu0 %v2193
  %2321 = vmatpush1.bf16.msra.mxu0 %v2192
  %2322 = vmatprep.subr.bf16.mxu0 %v2195
  %2323 = vmatpush1.bf16.msra.mxu0 %v2194
  %2324 = vmatprep.subr.bf16.mxu0 %v2197
  %2325 = vmatpush1.bf16.msra.mxu0 %v2196
  %2326 = vmatprep.subr.bf16.mxu0 %v2199
  %2327 = vmatpush1.bf16.msra.mxu0 %v2198
  %2328 = vmatprep.subr.bf16.mxu0 %v2201
  %2329 = vmatpush1.bf16.msra.mxu0 %v2200
  %2330 = vmatprep.mubr.bf16.mxu0 %v1895
  %2331 = vmatmul.mubr.bf16.gmra.mrb[0].mxu0 %v1894
  %v2332 = vpop.f32.mrb[0].mxu0
  %v2333 = vadd.f32 %v1971, %v2332
  %v2334 = vpop.f32.mrb[0].mxu0
  %v2335 = vadd.f32 %v1975, %v2334
  %v2336 = vpop.f32.mrb[0].mxu0
  %v2337 = vadd.f32 %v1971, %v2336
  %v2338 = vpop.f32.mrb[0].mxu0
  %v2339 = vadd.f32 %v1975, %v2338
  %2340 = vmatprep.mubr.bf16.mxu0 %v1899
  %2341 = vmatmul.mubr.bf16.gmra.mrb[0].mxu0 %v1898
  %v2342 = vpop.f32.mrb[0].mxu0
  %v2343 = vadd.f32 %v1971, %v2342
  %v2344 = vpop.f32.mrb[0].mxu0
  %v2345 = vadd.f32 %v1975, %v2344
  %v2346 = vpop.f32.mrb[0].mxu0
  %v2347 = vpop.f32.mrb[0].mxu0
  %2348 = vdwg.mxu0
  %2349 = vmatprep.subr.bf16.mxu0 %v2203
  %2350 = vmatpush1.bf16.msra.mxu0 %v2202
  %2351 = vmatprep.subr.bf16.mxu0 %v2205
  %2352 = vmatpush1.bf16.msra.mxu0 %v2204
  %2353 = vmatprep.subr.bf16.mxu0 %v2207
  %2354 = vmatpush1.bf16.msra.mxu0 %v2206
  %2355 = vmatprep.subr.bf16.mxu0 %v2209
  %2356 = vmatpush1.bf16.msra.mxu0 %v2208
  %2357 = vmatprep.subr.bf16.mxu0 %v2211
  %2358 = vmatpush1.bf16.msra.mxu0 %v2210
  %2359 = vmatprep.subr.bf16.mxu0 %v2213
  %2360 = vmatpush1.bf16.msra.mxu0 %v2212
  %2361 = vmatprep.subr.bf16.mxu0 %v2215
  %2362 = vmatpush1.bf16.msra.mxu0 %v2214
  %2363 = vmatprep.subr.bf16.mxu0 %v2217
  %2364 = vmatpush1.bf16.msra.mxu0 %v2216
  %2365 = vmatprep.subr.bf16.mxu0 %v2219
  %2366 = vmatpush1.bf16.msra.mxu0 %v2218
  %2367 = vmatprep.subr.bf16.mxu0 %v2221
  %2368 = vmatpush1.bf16.msra.mxu0 %v2220
  %2369 = vmatprep.subr.bf16.mxu0 %v2223
  %2370 = vmatpush1.bf16.msra.mxu0 %v2222
  %2371 = vmatprep.subr.bf16.mxu0 %v2225
  %2372 = vmatpush1.bf16.msra.mxu0 %v2224
  %2373 = vmatprep.subr.bf16.mxu0 %v2227
  %2374 = vmatpush1.bf16.msra.mxu0 %v2226
  %2375 = vmatprep.subr.bf16.mxu0 %v2229
  %2376 = vmatpush1.bf16.msra.mxu0 %v2228
  %2377 = vmatprep.subr.bf16.mxu0 %v2231
  %2378 = vmatpush1.bf16.msra.mxu0 %v2230
  %2379 = vmatprep.subr.bf16.mxu0 %v2233
  %2380 = vmatpush1.bf16.msra.mxu0 %v2232
  %2381 = vmatprep.mubr.bf16.mxu0 %v1897
  %2382 = vmatmul.mubr.bf16.gmra.mrb[0].mxu0 %v1896
  %v2383 = vpop.f32.mrb[0].mxu0
  %v2384 = vadd.f32 %v2333, %v2383
  %v2385 = vpop.f32.mrb[0].mxu0
  %v2386 = vadd.f32 %v2335, %v2385
  %v2387 = vpop.f32.mrb[0].mxu0
  %v2388 = vadd.f32 %v2337, %v2387
  %v2389 = vpop.f32.mrb[0].mxu0
  %v2390 = vadd.f32 %v2339, %v2389
  %2391 = vmatprep.mubr.bf16.mxu0 %v1901
  %2392 = vmatmul.mubr.bf16.gmra.mrb[0].mxu0 %v1900
  %v2393 = vpop.f32.mrb[0].mxu0
  %v2394 = vadd.f32 %v2343, %v2393
  %v2395 = vpop.f32.mrb[0].mxu0
  %v2396 = vadd.f32 %v2345, %v2395
  %v2397 = vpop.f32.mrb[0].mxu0
  %v2398 = vpop.f32.mrb[0].mxu0
  %2399 = vdwg.mxu0
  %s2400 = scalar_lea.vmem %s4, 12
  %v2401 = vld [vmem:[%s2400] sm:$0xf]
  %v2402 = vld [vmem:[%s2400 + $0x4] sm:$0xf]
  %v2403 = vld [vmem:[%s2400 + $0x8] sm:$0xf]
  %v2407 = vunpack.c.l.b16 %v2401
  %v2408 = vunpack.c.l.b16 %v2402
  %v2409 = vunpack.c.l.b16 %v2403
  %v2410 = vpack.c.b16 %v2408, %v2407
  %v2411 = vpack.c.b16 %v2409, %v2409
  %v2413 = vsel %vm211, %v2410, 0
  %v2416 = vsel %vm211, %v2411, 0
  %2418 = vmatprep.subr.bf16.mxu0 %v1744
  %2419 = vmatpush1.bf16.msra.mxu0 %v1743
  %2420 = vmatprep.subr.bf16.mxu0 %v1748
  %2421 = vmatpush1.bf16.msra.mxu0 %v1747
  %2422 = vmatprep.subr.bf16.mxu0 %v1752
  %2423 = vmatpush1.bf16.msra.mxu0 %v1751
  %2424 = vmatprep.subr.bf16.mxu0 %v1756
  %2425 = vmatpush1.bf16.msra.mxu0 %v1755
  %2426 = vmatprep.subr.bf16.mxu0 %v1784
  %2427 = vmatpush1.bf16.msra.mxu0 %v1781
  %2428 = vmatprep.subr.bf16.mxu0 0
  %2429 = vmatpush1.bf16.msra.mxu0 0
  %2430 = vmatprep.subr.bf16.mxu0 0
  %2431 = vmatpush1.bf16.msra.mxu0 0
  %2432 = vmatprep.subr.bf16.mxu0 0
  %2433 = vmatpush1.bf16.msra.mxu0 0
  %2434 = vmatprep.subr.bf16.mxu0 0
  %2435 = vmatpush1.bf16.msra.mxu0 0
  %2436 = vmatprep.subr.bf16.mxu0 0
  %2437 = vmatpush1.bf16.msra.mxu0 0
  %2438 = vmatprep.subr.bf16.mxu0 0
  %2439 = vmatpush1.bf16.msra.mxu0 0
  %2440 = vmatprep.subr.bf16.mxu0 0
  %2441 = vmatpush1.bf16.msra.mxu0 0
  %2442 = vmatprep.subr.bf16.mxu0 0
  %2443 = vmatpush1.bf16.msra.mxu0 0
  %2444 = vmatprep.subr.bf16.mxu0 0
  %2445 = vmatpush1.bf16.msra.mxu0 0
  %2446 = vmatprep.subr.bf16.mxu0 0
  %2447 = vmatpush1.bf16.msra.mxu0 0
  %2448 = vmatprep.subr.bf16.mxu0 0
  %2449 = vmatpush1.bf16.msra.mxu0 0
  %2450 = vmatprep.mubr.bf16.mxu0 0
  %2451 = vmatmul.mubr.bf16.gmra.mrb[0].mxu0 %v2413
  %v2452 = vpop.f32.mrb[0].mxu0
  %v2453 = vadd.f32 0.0, %v2452
  %v2454 = vpop.f32.mrb[0].mxu0
  %v2455 = vadd.f32 0.0, %v2454
  %v2456 = vpop.f32.mrb[0].mxu0
  %v2457 = vadd.f32 0.0, %v2456
  %v2458 = vpop.f32.mrb[0].mxu0
  %v2459 = vadd.f32 0.0, %v2458
  %2460 = vmatprep.mubr.bf16.mxu0 0
  %2461 = vmatmul.mubr.bf16.gmra.mrb[0].mxu0 %v2416
  %v2462 = vpop.f32.mrb[0].mxu0
  %v2463 = vadd.f32 0.0, %v2462
  %v2464 = vpop.f32.mrb[0].mxu0
  %v2465 = vadd.f32 0.0, %v2464
  %v2466 = vpop.f32.mrb[0].mxu0
  %v2467 = vpop.f32.mrb[0].mxu0
  %2468 = vdwg.mxu0
  %2469 = vmatprep.subr.bf16.mxu0 %v1746
  %2470 = vmatpush1.bf16.msra.mxu0 %v1745
  %2471 = vmatprep.subr.bf16.mxu0 %v1750
  %2472 = vmatpush1.bf16.msra.mxu0 %v1749
  %2473 = vmatprep.subr.bf16.mxu0 %v1754
  %2474 = vmatpush1.bf16.msra.mxu0 %v1753
  %2475 = vmatprep.subr.bf16.mxu0 %v1758
  %2476 = vmatpush1.bf16.msra.mxu0 %v1757
  %2477 = vmatprep.subr.bf16.mxu0 %v1790
  %2478 = vmatpush1.bf16.msra.mxu0 %v1787
  %2479 = vmatprep.subr.bf16.mxu0 0
  %2480 = vmatpush1.bf16.msra.mxu0 0
  %2481 = vmatprep.subr.bf16.mxu0 0
  %2482 = vmatpush1.bf16.msra.mxu0 0
  %2483 = vmatprep.subr.bf16.mxu0 0
  %2484 = vmatpush1.bf16.msra.mxu0 0
  %2485 = vmatprep.subr.bf16.mxu0 0
  %2486 = vmatpush1.bf16.msra.mxu0 0
  %2487 = vmatprep.subr.bf16.mxu0 0
  %2488 = vmatpush1.bf16.msra.mxu0 0
  %2489 = vmatprep.subr.bf16.mxu0 0
  %2490 = vmatpush1.bf16.msra.mxu0 0
  %2491 = vmatprep.subr.bf16.mxu0 0
  %2492 = vmatpush1.bf16.msra.mxu0 0
  %2493 = vmatprep.subr.bf16.mxu0 0
  %2494 = vmatpush1.bf16.msra.mxu0 0
  %2495 = vmatprep.subr.bf16.mxu0 0
  %2496 = vmatpush1.bf16.msra.mxu0 0
  %2497 = vmatprep.subr.bf16.mxu0 0
  %2498 = vmatpush1.bf16.msra.mxu0 0
  %2499 = vmatprep.subr.bf16.mxu0 0
  %2500 = vmatpush1.bf16.msra.mxu0 0
  %2501 = vmatprep.mubr.bf16.mxu0 0
  %2502 = vmatmul.mubr.bf16.gmra.mrb[0].mxu0 %v2413
  %v2503 = vpop.f32.mrb[0].mxu0
  %v2504 = vadd.f32 0.0, %v2503
  %v2505 = vpop.f32.mrb[0].mxu0
  %v2506 = vadd.f32 0.0, %v2505
  %v2507 = vpop.f32.mrb[0].mxu0
  %v2508 = vadd.f32 0.0, %v2507
  %v2509 = vpop.f32.mrb[0].mxu0
  %v2510 = vadd.f32 0.0, %v2509
  %2511 = vmatprep.mubr.bf16.mxu0 0
  %2512 = vmatmul.mubr.bf16.gmra.mrb[0].mxu0 %v2416
  %v2513 = vpop.f32.mrb[0].mxu0
  %v2514 = vadd.f32 0.0, %v2513
  %v2515 = vpop.f32.mrb[0].mxu0
  %v2516 = vadd.f32 0.0, %v2515
  %v2517 = vpop.f32.mrb[0].mxu0
  %v2518 = vpop.f32.mrb[0].mxu0
  %2519 = vdwg.mxu0
  %v2520 = vpack.c.bf16 %v2457, %v2453
  %v2521 = vpack.c.bf16 %v2459, %v2455
  %v2522 = vpack.c.bf16 %v2508, %v2504
  %v2523 = vpack.c.bf16 %v2510, %v2506
  %v2524 = vpack.c.bf16 %v2463, %v2463
  %v2525 = vpack.c.bf16 %v2465, %v2465
  %v2526 = vpack.c.bf16 %v2514, %v2514
  %v2527 = vpack.c.bf16 %v2516, %v2516
  %s2528 = scalar_lea.vmem %s5, 512
  %v2529 = vld [vmem:[%s2528] sm:$0xff]
  %v2530 = vld [vmem:[%s2528 + $0x8] sm:$0xff]
  %v2531 = vld [vmem:[%s2528 + $0x10] sm:$0xff]
  %v2532 = vld [vmem:[%s2528 + $0x18] sm:$0xff]
  %v2533 = vld [vmem:[%s2528 + $0x20] sm:$0xff]
  %v2534 = vld [vmem:[%s2528 + $0x28] sm:$0xff]
  %v2535 = vld [vmem:[%s2528 + $0x30] sm:$0xff]
  %v2536 = vld [vmem:[%s2528 + $0x38] sm:$0xff]
  %v2537 = vld [vmem:[%s2528 + $0x40] sm:$0xff]
  %v2538 = vld [vmem:[%s2528 + $0x48] sm:$0xff]
  %v2539 = vld [vmem:[%s2528 + $0x50] sm:$0xff]
  %v2540 = vld [vmem:[%s2528 + $0x58] sm:$0xff]
  %v2541 = vld [vmem:[%s2528 + $0x60] sm:$0xff]
  %v2542 = vld [vmem:[%s2528 + $0x68] sm:$0xff]
  %v2543 = vld [vmem:[%s2528 + $0x70] sm:$0xff]
  %v2544 = vld [vmem:[%s2528 + $0x78] sm:$0xff]
  %v2545 = vld [vmem:[%s2528 + $0x80] sm:$0xff]
  %v2546 = vld [vmem:[%s2528 + $0x88] sm:$0xff]
  %v2547 = vld [vmem:[%s2528 + $0x90] sm:$0xff]
  %v2548 = vld [vmem:[%s2528 + $0x98] sm:$0xff]
  %v2549 = vld [vmem:[%s2528 + $0xa0] sm:$0xff]
  %v2550 = vld [vmem:[%s2528 + $0xa8] sm:$0xff]
  %v2551 = vld [vmem:[%s2528 + $0xb0] sm:$0xff]
  %v2552 = vld [vmem:[%s2528 + $0xb8] sm:$0xff]
  %v2553 = vld [vmem:[%s2528 + $0xc0] sm:$0xff]
  %v2554 = vld [vmem:[%s2528 + $0xc8] sm:$0xff]
  %v2555 = vld [vmem:[%s2528 + $0xd0] sm:$0xff]
  %v2556 = vld [vmem:[%s2528 + $0xd8] sm:$0xff]
  %v2557 = vld [vmem:[%s2528 + $0xe0] sm:$0xff]
  %v2558 = vld [vmem:[%s2528 + $0xe8] sm:$0xff]
  %v2559 = vld [vmem:[%s2528 + $0xf0] sm:$0xff]
  %v2560 = vld [vmem:[%s2528 + $0xf8] sm:$0xff]
  %v2561 = vld [vmem:[%s2528 + $0x100] sm:$0xff]
  %v2562 = vld [vmem:[%s2528 + $0x108] sm:$0xff]
  %v2563 = vld [vmem:[%s2528 + $0x110] sm:$0xff]
  %v2564 = vld [vmem:[%s2528 + $0x118] sm:$0xff]
  %v2565 = vld [vmem:[%s2528 + $0x120] sm:$0xff]
  %v2566 = vld [vmem:[%s2528 + $0x128] sm:$0xff]
  %v2567 = vld [vmem:[%s2528 + $0x130] sm:$0xff]
  %v2568 = vld [vmem:[%s2528 + $0x138] sm:$0xff]
  %v2569 = vld [vmem:[%s2528 + $0x140] sm:$0xff]
  %v2570 = vld [vmem:[%s2528 + $0x148] sm:$0xff]
  %v2571 = vld [vmem:[%s2528 + $0x150] sm:$0xff]
  %v2572 = vld [vmem:[%s2528 + $0x158] sm:$0xff]
  %v2573 = vld [vmem:[%s2528 + $0x160] sm:$0xff]
  %v2574 = vld [vmem:[%s2528 + $0x168] sm:$0xff]
  %v2575 = vld [vmem:[%s2528 + $0x170] sm:$0xff]
  %v2576 = vld [vmem:[%s2528 + $0x178] sm:$0xff]
  %v2577 = vld [vmem:[%s2528 + $0x180] sm:$0xff]
  %v2578 = vld [vmem:[%s2528 + $0x188] sm:$0xff]
  %v2579 = vld [vmem:[%s2528 + $0x190] sm:$0xff]
  %v2580 = vld [vmem:[%s2528 + $0x198] sm:$0xff]
  %v2581 = vld [vmem:[%s2528 + $0x1a0] sm:$0xff]
  %v2582 = vld [vmem:[%s2528 + $0x1a8] sm:$0xff]
  %v2583 = vld [vmem:[%s2528 + $0x1b0] sm:$0xff]
  %v2584 = vld [vmem:[%s2528 + $0x1b8] sm:$0xff]
  %v2585 = vld [vmem:[%s2528 + $0x1c0] sm:$0xff]
  %v2586 = vld [vmem:[%s2528 + $0x1c8] sm:$0xff]
  %v2587 = vld [vmem:[%s2528 + $0x1d0] sm:$0xff]
  %v2588 = vld [vmem:[%s2528 + $0x1d8] sm:$0xff]
  %v2589 = vld [vmem:[%s2528 + $0x1e0] sm:$0xff]
  %v2590 = vld [vmem:[%s2528 + $0x1e8] sm:$0xff]
  %v2591 = vld [vmem:[%s2528 + $0x1f0] sm:$0xff]
  %v2592 = vld [vmem:[%s2528 + $0x1f8] sm:$0xff]
  %v2657 = vunpack.c.l.b16 %v2529
  %v2658 = vunpack.c.h.b16 %v2529
  %v2659 = vunpack.c.l.b16 %v2530
  %v2660 = vunpack.c.h.b16 %v2530
  %v2661 = vunpack.c.l.b16 %v2531
  %v2662 = vunpack.c.h.b16 %v2531
  %v2663 = vunpack.c.l.b16 %v2532
  %v2664 = vunpack.c.h.b16 %v2532
  %v2665 = vunpack.c.l.b16 %v2533
  %v2666 = vunpack.c.h.b16 %v2533
  %v2667 = vunpack.c.l.b16 %v2534
  %v2668 = vunpack.c.h.b16 %v2534
  %v2669 = vunpack.c.l.b16 %v2535
  %v2670 = vunpack.c.h.b16 %v2535
  %v2671 = vunpack.c.l.b16 %v2536
  %v2672 = vunpack.c.h.b16 %v2536
  %v2673 = vunpack.c.l.b16 %v2537
  %v2674 = vunpack.c.h.b16 %v2537
  %v2675 = vunpack.c.l.b16 %v2538
  %v2676 = vunpack.c.h.b16 %v2538
  %v2677 = vunpack.c.l.b16 %v2539
  %v2678 = vunpack.c.h.b16 %v2539
  %v2679 = vunpack.c.l.b16 %v2540
  %v2680 = vunpack.c.h.b16 %v2540
  %v2681 = vunpack.c.l.b16 %v2541
  %v2682 = vunpack.c.h.b16 %v2541
  %v2683 = vunpack.c.l.b16 %v2542
  %v2684 = vunpack.c.h.b16 %v2542
  %v2685 = vunpack.c.l.b16 %v2543
  %v2686 = vunpack.c.h.b16 %v2543
  %v2687 = vunpack.c.l.b16 %v2544
  %v2688 = vunpack.c.h.b16 %v2544
  %v2689 = vunpack.c.l.b16 %v2545
  %v2690 = vunpack.c.h.b16 %v2545
  %v2691 = vunpack.c.l.b16 %v2546
  %v2692 = vunpack.c.h.b16 %v2546
  %v2693 = vunpack.c.l.b16 %v2547
  %v2694 = vunpack.c.h.b16 %v2547
  %v2695 = vunpack.c.l.b16 %v2548
  %v2696 = vunpack.c.h.b16 %v2548
  %v2697 = vunpack.c.l.b16 %v2549
  %v2698 = vunpack.c.h.b16 %v2549
  %v2699 = vunpack.c.l.b16 %v2550
  %v2700 = vunpack.c.h.b16 %v2550
  %v2701 = vunpack.c.l.b16 %v2551
  %v2702 = vunpack.c.h.b16 %v2551
  %v2703 = vunpack.c.l.b16 %v2552
  %v2704 = vunpack.c.h.b16 %v2552
  %v2705 = vunpack.c.l.b16 %v2553
  %v2706 = vunpack.c.h.b16 %v2553
  %v2707 = vunpack.c.l.b16 %v2554
  %v2708 = vunpack.c.h.b16 %v2554
  %v2709 = vunpack.c.l.b16 %v2555
  %v2710 = vunpack.c.h.b16 %v2555
  %v2711 = vunpack.c.l.b16 %v2556
  %v2712 = vunpack.c.h.b16 %v2556
  %v2713 = vunpack.c.l.b16 %v2557
  %v2714 = vunpack.c.h.b16 %v2557
  %v2715 = vunpack.c.l.b16 %v2558
  %v2716 = vunpack.c.h.b16 %v2558
  %v2717 = vunpack.c.l.b16 %v2559
  %v2718 = vunpack.c.h.b16 %v2559
  %v2719 = vunpack.c.l.b16 %v2560
  %v2720 = vunpack.c.h.b16 %v2560
  %v2721 = vunpack.c.l.b16 %v2561
  %v2722 = vunpack.c.h.b16 %v2561
  %v2723 = vunpack.c.l.b16 %v2562
  %v2724 = vunpack.c.h.b16 %v2562
  %v2725 = vunpack.c.l.b16 %v2563
  %v2726 = vunpack.c.h.b16 %v2563
  %v2727 = vunpack.c.l.b16 %v2564
  %v2728 = vunpack.c.h.b16 %v2564
  %v2729 = vunpack.c.l.b16 %v2565
  %v2730 = vunpack.c.h.b16 %v2565
  %v2731 = vunpack.c.l.b16 %v2566
  %v2732 = vunpack.c.h.b16 %v2566
  %v2733 = vunpack.c.l.b16 %v2567
  %v2734 = vunpack.c.h.b16 %v2567
  %v2735 = vunpack.c.l.b16 %v2568
  %v2736 = vunpack.c.h.b16 %v2568
  %v2737 = vunpack.c.l.b16 %v2569
  %v2738 = vunpack.c.h.b16 %v2569
  %v2739 = vunpack.c.l.b16 %v2570
  %v2740 = vunpack.c.h.b16 %v2570
  %v2741 = vunpack.c.l.b16 %v2571
  %v2742 = vunpack.c.h.b16 %v2571
  %v2743 = vunpack.c.l.b16 %v2572
  %v2744 = vunpack.c.h.b16 %v2572
  %v2745 = vunpack.c.l.b16 %v2573
  %v2746 = vunpack.c.h.b16 %v2573
  %v2747 = vunpack.c.l.b16 %v2574
  %v2748 = vunpack.c.h.b16 %v2574
  %v2749 = vunpack.c.l.b16 %v2575
  %v2750 = vunpack.c.h.b16 %v2575
  %v2751 = vunpack.c.l.b16 %v2576
  %v2752 = vunpack.c.h.b16 %v2576
  %v2753 = vunpack.c.l.b16 %v2577
  %v2754 = vunpack.c.h.b16 %v2577
  %v2755 = vunpack.c.l.b16 %v2578
  %v2756 = vunpack.c.h.b16 %v2578
  %v2757 = vunpack.c.l.b16 %v2579
  %v2758 = vunpack.c.h.b16 %v2579
  %v2759 = vunpack.c.l.b16 %v2580
  %v2760 = vunpack.c.h.b16 %v2580
  %v2761 = vunpack.c.l.b16 %v2581
  %v2762 = vunpack.c.h.b16 %v2581
  %v2763 = vunpack.c.l.b16 %v2582
  %v2764 = vunpack.c.h.b16 %v2582
  %v2765 = vunpack.c.l.b16 %v2583
  %v2766 = vunpack.c.h.b16 %v2583
  %v2767 = vunpack.c.l.b16 %v2584
  %v2768 = vunpack.c.h.b16 %v2584
  %v2769 = vunpack.c.l.b16 %v2585
  %v2770 = vunpack.c.h.b16 %v2585
  %v2771 = vunpack.c.l.b16 %v2586
  %v2772 = vunpack.c.h.b16 %v2586
  %v2773 = vunpack.c.l.b16 %v2587
  %v2774 = vunpack.c.h.b16 %v2587
  %v2775 = vunpack.c.l.b16 %v2588
  %v2776 = vunpack.c.h.b16 %v2588
  %v2777 = vunpack.c.l.b16 %v2589
  %v2778 = vunpack.c.h.b16 %v2589
  %v2779 = vunpack.c.l.b16 %v2590
  %v2780 = vunpack.c.h.b16 %v2590
  %v2781 = vunpack.c.l.b16 %v2591
  %v2782 = vunpack.c.h.b16 %v2591
  %v2783 = vunpack.c.l.b16 %v2592
  %v2784 = vunpack.c.h.b16 %v2592
  %v2785 = vpack.c.b16 %v2659, %v2657
  %v2786 = vpack.c.b16 %v2660, %v2658
  %v2787 = vpack.c.b16 %v2663, %v2661
  %v2788 = vpack.c.b16 %v2664, %v2662
  %v2789 = vpack.c.b16 %v2667, %v2665
  %v2790 = vpack.c.b16 %v2668, %v2666
  %v2791 = vpack.c.b16 %v2671, %v2669
  %v2792 = vpack.c.b16 %v2672, %v2670
  %v2793 = vpack.c.b16 %v2675, %v2673
  %v2794 = vpack.c.b16 %v2676, %v2674
  %v2795 = vpack.c.b16 %v2679, %v2677
  %v2796 = vpack.c.b16 %v2680, %v2678
  %v2797 = vpack.c.b16 %v2683, %v2681
  %v2798 = vpack.c.b16 %v2684, %v2682
  %v2799 = vpack.c.b16 %v2687, %v2685
  %v2800 = vpack.c.b16 %v2688, %v2686
  %v2801 = vpack.c.b16 %v2691, %v2689
  %v2802 = vpack.c.b16 %v2692, %v2690
  %v2803 = vpack.c.b16 %v2695, %v2693
  %v2804 = vpack.c.b16 %v2696, %v2694
  %v2805 = vpack.c.b16 %v2699, %v2697
  %v2806 = vpack.c.b16 %v2700, %v2698
  %v2807 = vpack.c.b16 %v2703, %v2701
  %v2808 = vpack.c.b16 %v2704, %v2702
  %v2809 = vpack.c.b16 %v2707, %v2705
  %v2810 = vpack.c.b16 %v2708, %v2706
  %v2811 = vpack.c.b16 %v2711, %v2709
  %v2812 = vpack.c.b16 %v2712, %v2710
  %v2813 = vpack.c.b16 %v2715, %v2713
  %v2814 = vpack.c.b16 %v2716, %v2714
  %v2815 = vpack.c.b16 %v2719, %v2717
  %v2816 = vpack.c.b16 %v2720, %v2718
  %v2817 = vpack.c.b16 %v2723, %v2721
  %v2818 = vpack.c.b16 %v2724, %v2722
  %v2819 = vpack.c.b16 %v2727, %v2725
  %v2820 = vpack.c.b16 %v2728, %v2726
  %v2821 = vpack.c.b16 %v2731, %v2729
  %v2822 = vpack.c.b16 %v2732, %v2730
  %v2823 = vpack.c.b16 %v2735, %v2733
  %v2824 = vpack.c.b16 %v2736, %v2734
  %v2825 = vpack.c.b16 %v2739, %v2737
  %v2826 = vpack.c.b16 %v2740, %v2738
  %v2827 = vpack.c.b16 %v2743, %v2741
  %v2828 = vpack.c.b16 %v2744, %v2742
  %v2829 = vpack.c.b16 %v2747, %v2745
  %v2830 = vpack.c.b16 %v2748, %v2746
  %v2831 = vpack.c.b16 %v2751, %v2749
  %v2832 = vpack.c.b16 %v2752, %v2750
  %v2833 = vpack.c.b16 %v2755, %v2753
  %v2834 = vpack.c.b16 %v2756, %v2754
  %v2835 = vpack.c.b16 %v2759, %v2757
  %v2836 = vpack.c.b16 %v2760, %v2758
  %v2837 = vpack.c.b16 %v2763, %v2761
  %v2838 = vpack.c.b16 %v2764, %v2762
  %v2839 = vpack.c.b16 %v2767, %v2765
  %v2840 = vpack.c.b16 %v2768, %v2766
  %v2841 = vpack.c.b16 %v2771, %v2769
  %v2842 = vpack.c.b16 %v2772, %v2770
  %v2843 = vpack.c.b16 %v2775, %v2773
  %v2844 = vpack.c.b16 %v2776, %v2774
  %v2845 = vpack.c.b16 %v2779, %v2777
  %v2846 = vpack.c.b16 %v2780, %v2778
  %v2847 = vpack.c.b16 %v2783, %v2781
  %v2848 = vpack.c.b16 %v2784, %v2782
  %2913 = vmatprep.subr.bf16.mxu0 %v2786
  %2914 = vmatpush1.bf16.msra.mxu0 %v2785
  %2915 = vmatprep.subr.bf16.mxu0 %v2788
  %2916 = vmatpush1.bf16.msra.mxu0 %v2787
  %2917 = vmatprep.subr.bf16.mxu0 %v2790
  %2918 = vmatpush1.bf16.msra.mxu0 %v2789
  %2919 = vmatprep.subr.bf16.mxu0 %v2792
  %2920 = vmatpush1.bf16.msra.mxu0 %v2791
  %2921 = vmatprep.subr.bf16.mxu0 %v2794
  %2922 = vmatpush1.bf16.msra.mxu0 %v2793
  %2923 = vmatprep.subr.bf16.mxu0 %v2796
  %2924 = vmatpush1.bf16.msra.mxu0 %v2795
  %2925 = vmatprep.subr.bf16.mxu0 %v2798
  %2926 = vmatpush1.bf16.msra.mxu0 %v2797
  %2927 = vmatprep.subr.bf16.mxu0 %v2800
  %2928 = vmatpush1.bf16.msra.mxu0 %v2799
  %2929 = vmatprep.subr.bf16.mxu0 %v2802
  %2930 = vmatpush1.bf16.msra.mxu0 %v2801
  %2931 = vmatprep.subr.bf16.mxu0 %v2804
  %2932 = vmatpush1.bf16.msra.mxu0 %v2803
  %2933 = vmatprep.subr.bf16.mxu0 %v2806
  %2934 = vmatpush1.bf16.msra.mxu0 %v2805
  %2935 = vmatprep.subr.bf16.mxu0 %v2808
  %2936 = vmatpush1.bf16.msra.mxu0 %v2807
  %2937 = vmatprep.subr.bf16.mxu0 %v2810
  %2938 = vmatpush1.bf16.msra.mxu0 %v2809
  %2939 = vmatprep.subr.bf16.mxu0 %v2812
  %2940 = vmatpush1.bf16.msra.mxu0 %v2811
  %2941 = vmatprep.subr.bf16.mxu0 %v2814
  %2942 = vmatpush1.bf16.msra.mxu0 %v2813
  %2943 = vmatprep.subr.bf16.mxu0 %v2816
  %2944 = vmatpush1.bf16.msra.mxu0 %v2815
  %2945 = vmatprep.mubr.bf16.mxu0 %v2521
  %2946 = vmatmul.mubr.bf16.gmra.mrb[0].mxu0 %v2520
  %v2947 = vpop.f32.mrb[0].mxu0
  %v2948 = vadd.f32 0.0, %v2947
  %v2949 = vpop.f32.mrb[0].mxu0
  %v2950 = vadd.f32 0.0, %v2949
  %v2951 = vpop.f32.mrb[0].mxu0
  %v2952 = vadd.f32 0.0, %v2951
  %v2953 = vpop.f32.mrb[0].mxu0
  %v2954 = vadd.f32 0.0, %v2953
  %2955 = vmatprep.mubr.bf16.mxu0 %v2525
  %2956 = vmatmul.mubr.bf16.gmra.mrb[0].mxu0 %v2524
  %v2957 = vpop.f32.mrb[0].mxu0
  %v2958 = vadd.f32 0.0, %v2957
  %v2959 = vpop.f32.mrb[0].mxu0
  %v2960 = vadd.f32 0.0, %v2959
  %v2961 = vpop.f32.mrb[0].mxu0
  %v2962 = vpop.f32.mrb[0].mxu0
  %2963 = vdwg.mxu0
  %2964 = vmatprep.subr.bf16.mxu0 %v2818
  %2965 = vmatpush1.bf16.msra.mxu0 %v2817
  %2966 = vmatprep.subr.bf16.mxu0 %v2820
  %2967 = vmatpush1.bf16.msra.mxu0 %v2819
  %2968 = vmatprep.subr.bf16.mxu0 %v2822
  %2969 = vmatpush1.bf16.msra.mxu0 %v2821
  %2970 = vmatprep.subr.bf16.mxu0 %v2824
  %2971 = vmatpush1.bf16.msra.mxu0 %v2823
  %2972 = vmatprep.subr.bf16.mxu0 %v2826
  %2973 = vmatpush1.bf16.msra.mxu0 %v2825
  %2974 = vmatprep.subr.bf16.mxu0 %v2828
  %2975 = vmatpush1.bf16.msra.mxu0 %v2827
  %2976 = vmatprep.subr.bf16.mxu0 %v2830
  %2977 = vmatpush1.bf16.msra.mxu0 %v2829
  %2978 = vmatprep.subr.bf16.mxu0 %v2832
  %2979 = vmatpush1.bf16.msra.mxu0 %v2831
  %2980 = vmatprep.subr.bf16.mxu0 %v2834
  %2981 = vmatpush1.bf16.msra.mxu0 %v2833
  %2982 = vmatprep.subr.bf16.mxu0 %v2836
  %2983 = vmatpush1.bf16.msra.mxu0 %v2835
  %2984 = vmatprep.subr.bf16.mxu0 %v2838
  %2985 = vmatpush1.bf16.msra.mxu0 %v2837
  %2986 = vmatprep.subr.bf16.mxu0 %v2840
  %2987 = vmatpush1.bf16.msra.mxu0 %v2839
  %2988 = vmatprep.subr.bf16.mxu0 %v2842
  %2989 = vmatpush1.bf16.msra.mxu0 %v2841
  %2990 = vmatprep.subr.bf16.mxu0 %v2844
  %2991 = vmatpush1.bf16.msra.mxu0 %v2843
  %2992 = vmatprep.subr.bf16.mxu0 %v2846
  %2993 = vmatpush1.bf16.msra.mxu0 %v2845
  %2994 = vmatprep.subr.bf16.mxu0 %v2848
  %2995 = vmatpush1.bf16.msra.mxu0 %v2847
  %2996 = vmatprep.mubr.bf16.mxu0 %v2523
  %2997 = vmatmul.mubr.bf16.gmra.mrb[0].mxu0 %v2522
  %v2998 = vpop.f32.mrb[0].mxu0
  %v2999 = vadd.f32 %v2948, %v2998
  %v3000 = vpop.f32.mrb[0].mxu0
  %v3001 = vadd.f32 %v2950, %v3000
  %v3002 = vpop.f32.mrb[0].mxu0
  %v3003 = vadd.f32 %v2952, %v3002
  %v3004 = vpop.f32.mrb[0].mxu0
  %v3005 = vadd.f32 %v2954, %v3004
  %3006 = vmatprep.mubr.bf16.mxu0 %v2527
  %3007 = vmatmul.mubr.bf16.gmra.mrb[0].mxu0 %v2526
  %v3008 = vpop.f32.mrb[0].mxu0
  %v3009 = vadd.f32 %v2958, %v3008
  %v3010 = vpop.f32.mrb[0].mxu0
  %v3011 = vadd.f32 %v2960, %v3010
  %v3012 = vpop.f32.mrb[0].mxu0
  %v3013 = vpop.f32.mrb[0].mxu0
  %3014 = vdwg.mxu0
  %v3015 = vadd.f32 %v2384, %v2999
  %v3016 = vadd.f32 %v2386, %v3001
  %v3017 = vadd.f32 %v2388, %v3003
  %v3018 = vadd.f32 %v2390, %v3005
  %v3019 = vadd.f32 %v2394, %v3009
  %v3020 = vadd.f32 %v2396, %v3011
  %s3021 = scalar_lea.vmem %s4, 24
  %v3022 = vld [vmem:[%s3021] sm:$0xf]
  %v3023 = vld [vmem:[%s3021 + $0x4] sm:$0xf]
  %v3024 = vld [vmem:[%s3021 + $0x8] sm:$0xf]
  %v3028 = vunpack.c.l.b16 %v3022
  %v3029 = vunpack.c.l.b16 %v3023
  %v3030 = vunpack.c.l.b16 %v3024
  %v3031 = vpack.c.b16 %v3029, %v3028
  %v3032 = vpack.c.b16 %v3030, %v3030
  %v3034 = vsel %vm211, %v3031, 0
  %v3037 = vsel %vm211, %v3032, 0
  %3039 = vmatprep.subr.bf16.mxu0 %v1744
  %3040 = vmatpush1.bf16.msra.mxu0 %v1743
  %3041 = vmatprep.subr.bf16.mxu0 %v1748
  %3042 = vmatpush1.bf16.msra.mxu0 %v1747
  %3043 = vmatprep.subr.bf16.mxu0 %v1752
  %3044 = vmatpush1.bf16.msra.mxu0 %v1751
  %3045 = vmatprep.subr.bf16.mxu0 %v1756
  %3046 = vmatpush1.bf16.msra.mxu0 %v1755
  %3047 = vmatprep.subr.bf16.mxu0 %v1784
  %3048 = vmatpush1.bf16.msra.mxu0 %v1781
  %3049 = vmatprep.subr.bf16.mxu0 0
  %3050 = vmatpush1.bf16.msra.mxu0 0
  %3051 = vmatprep.subr.bf16.mxu0 0
  %3052 = vmatpush1.bf16.msra.mxu0 0
  %3053 = vmatprep.subr.bf16.mxu0 0
  %3054 = vmatpush1.bf16.msra.mxu0 0
  %3055 = vmatprep.subr.bf16.mxu0 0
  %3056 = vmatpush1.bf16.msra.mxu0 0
  %3057 = vmatprep.subr.bf16.mxu0 0
  %3058 = vmatpush1.bf16.msra.mxu0 0
  %3059 = vmatprep.subr.bf16.mxu0 0
  %3060 = vmatpush1.bf16.msra.mxu0 0
  %3061 = vmatprep.subr.bf16.mxu0 0
  %3062 = vmatpush1.bf16.msra.mxu0 0
  %3063 = vmatprep.subr.bf16.mxu0 0
  %3064 = vmatpush1.bf16.msra.mxu0 0
  %3065 = vmatprep.subr.bf16.mxu0 0
  %3066 = vmatpush1.bf16.msra.mxu0 0
  %3067 = vmatprep.subr.bf16.mxu0 0
  %3068 = vmatpush1.bf16.msra.mxu0 0
  %3069 = vmatprep.subr.bf16.mxu0 0
  %3070 = vmatpush1.bf16.msra.mxu0 0
  %3071 = vmatprep.mubr.bf16.mxu0 0
  %3072 = vmatmul.mubr.bf16.gmra.mrb[0].mxu0 %v3034
  %v3073 = vpop.f32.mrb[0].mxu0
  %v3074 = vadd.f32 0.0, %v3073
  %v3075 = vpop.f32.mrb[0].mxu0
  %v3076 = vadd.f32 0.0, %v3075
  %v3077 = vpop.f32.mrb[0].mxu0
  %v3078 = vadd.f32 0.0, %v3077
  %v3079 = vpop.f32.mrb[0].mxu0
  %v3080 = vadd.f32 0.0, %v3079
  %3081 = vmatprep.mubr.bf16.mxu0 0
  %3082 = vmatmul.mubr.bf16.gmra.mrb[0].mxu0 %v3037
  %v3083 = vpop.f32.mrb[0].mxu0
  %v3084 = vadd.f32 0.0, %v3083
  %v3085 = vpop.f32.mrb[0].mxu0
  %v3086 = vadd.f32 0.0, %v3085
  %v3087 = vpop.f32.mrb[0].mxu0
  %v3088 = vpop.f32.mrb[0].mxu0
  %3089 = vdwg.mxu0
  %3090 = vmatprep.subr.bf16.mxu0 %v1746
  %3091 = vmatpush1.bf16.msra.mxu0 %v1745
  %3092 = vmatprep.subr.bf16.mxu0 %v1750
  %3093 = vmatpush1.bf16.msra.mxu0 %v1749
  %3094 = vmatprep.subr.bf16.mxu0 %v1754
  %3095 = vmatpush1.bf16.msra.mxu0 %v1753
  %3096 = vmatprep.subr.bf16.mxu0 %v1758
  %3097 = vmatpush1.bf16.msra.mxu0 %v1757
  %3098 = vmatprep.subr.bf16.mxu0 %v1790
  %3099 = vmatpush1.bf16.msra.mxu0 %v1787
  %3100 = vmatprep.subr.bf16.mxu0 0
  %3101 = vmatpush1.bf16.msra.mxu0 0
  %3102 = vmatprep.subr.bf16.mxu0 0
  %3103 = vmatpush1.bf16.msra.mxu0 0
  %3104 = vmatprep.subr.bf16.mxu0 0
  %3105 = vmatpush1.bf16.msra.mxu0 0
  %3106 = vmatprep.subr.bf16.mxu0 0
  %3107 = vmatpush1.bf16.msra.mxu0 0
  %3108 = vmatprep.subr.bf16.mxu0 0
  %3109 = vmatpush1.bf16.msra.mxu0 0
  %3110 = vmatprep.subr.bf16.mxu0 0
  %3111 = vmatpush1.bf16.msra.mxu0 0
  %3112 = vmatprep.subr.bf16.mxu0 0
  %3113 = vmatpush1.bf16.msra.mxu0 0
  %3114 = vmatprep.subr.bf16.mxu0 0
  %3115 = vmatpush1.bf16.msra.mxu0 0
  %3116 = vmatprep.subr.bf16.mxu0 0
  %3117 = vmatpush1.bf16.msra.mxu0 0
  %3118 = vmatprep.subr.bf16.mxu0 0
  %3119 = vmatpush1.bf16.msra.mxu0 0
  %3120 = vmatprep.subr.bf16.mxu0 0
  %3121 = vmatpush1.bf16.msra.mxu0 0
  %3122 = vmatprep.mubr.bf16.mxu0 0
  %3123 = vmatmul.mubr.bf16.gmra.mrb[0].mxu0 %v3034
  %v3124 = vpop.f32.mrb[0].mxu0
  %v3125 = vadd.f32 0.0, %v3124
  %v3126 = vpop.f32.mrb[0].mxu0
  %v3127 = vadd.f32 0.0, %v3126
  %v3128 = vpop.f32.mrb[0].mxu0
  %v3129 = vadd.f32 0.0, %v3128
  %v3130 = vpop.f32.mrb[0].mxu0
  %v3131 = vadd.f32 0.0, %v3130
  %3132 = vmatprep.mubr.bf16.mxu0 0
  %3133 = vmatmul.mubr.bf16.gmra.mrb[0].mxu0 %v3037
  %v3134 = vpop.f32.mrb[0].mxu0
  %v3135 = vadd.f32 0.0, %v3134
  %v3136 = vpop.f32.mrb[0].mxu0
  %v3137 = vadd.f32 0.0, %v3136
  %v3138 = vpop.f32.mrb[0].mxu0
  %v3139 = vpop.f32.mrb[0].mxu0
  %3140 = vdwg.mxu0
  %v3141 = vpack.c.bf16 %v3078, %v3074
  %v3142 = vpack.c.bf16 %v3080, %v3076
  %v3143 = vpack.c.bf16 %v3129, %v3125
  %v3144 = vpack.c.bf16 %v3131, %v3127
  %v3145 = vpack.c.bf16 %v3084, %v3084
  %v3146 = vpack.c.bf16 %v3086, %v3086
  %v3147 = vpack.c.bf16 %v3135, %v3135
  %v3148 = vpack.c.bf16 %v3137, %v3137
  %s3149 = scalar_lea.vmem %s5, 1024
  %v3150 = vld [vmem:[%s3149] sm:$0xff]
  %v3151 = vld [vmem:[%s3149 + $0x8] sm:$0xff]
  %v3152 = vld [vmem:[%s3149 + $0x10] sm:$0xff]
  %v3153 = vld [vmem:[%s3149 + $0x18] sm:$0xff]
  %v3154 = vld [vmem:[%s3149 + $0x20] sm:$0xff]
  %v3155 = vld [vmem:[%s3149 + $0x28] sm:$0xff]
  %v3156 = vld [vmem:[%s3149 + $0x30] sm:$0xff]
  %v3157 = vld [vmem:[%s3149 + $0x38] sm:$0xff]
  %v3158 = vld [vmem:[%s3149 + $0x40] sm:$0xff]
  %v3159 = vld [vmem:[%s3149 + $0x48] sm:$0xff]
  %v3160 = vld [vmem:[%s3149 + $0x50] sm:$0xff]
  %v3161 = vld [vmem:[%s3149 + $0x58] sm:$0xff]
  %v3162 = vld [vmem:[%s3149 + $0x60] sm:$0xff]
  %v3163 = vld [vmem:[%s3149 + $0x68] sm:$0xff]
  %v3164 = vld [vmem:[%s3149 + $0x70] sm:$0xff]
  %v3165 = vld [vmem:[%s3149 + $0x78] sm:$0xff]
  %v3166 = vld [vmem:[%s3149 + $0x80] sm:$0xff]
  %v3167 = vld [vmem:[%s3149 + $0x88] sm:$0xff]
  %v3168 = vld [vmem:[%s3149 + $0x90] sm:$0xff]
  %v3169 = vld [vmem:[%s3149 + $0x98] sm:$0xff]
  %v3170 = vld [vmem:[%s3149 + $0xa0] sm:$0xff]
  %v3171 = vld [vmem:[%s3149 + $0xa8] sm:$0xff]
  %v3172 = vld [vmem:[%s3149 + $0xb0] sm:$0xff]
  %v3173 = vld [vmem:[%s3149 + $0xb8] sm:$0xff]
  %v3174 = vld [vmem:[%s3149 + $0xc0] sm:$0xff]
  %v3175 = vld [vmem:[%s3149 + $0xc8] sm:$0xff]
  %v3176 = vld [vmem:[%s3149 + $0xd0] sm:$0xff]
  %v3177 = vld [vmem:[%s3149 + $0xd8] sm:$0xff]
  %v3178 = vld [vmem:[%s3149 + $0xe0] sm:$0xff]
  %v3179 = vld [vmem:[%s3149 + $0xe8] sm:$0xff]
  %v3180 = vld [vmem:[%s3149 + $0xf0] sm:$0xff]
  %v3181 = vld [vmem:[%s3149 + $0xf8] sm:$0xff]
  %v3182 = vld [vmem:[%s3149 + $0x100] sm:$0xff]
  %v3183 = vld [vmem:[%s3149 + $0x108] sm:$0xff]
  %v3184 = vld [vmem:[%s3149 + $0x110] sm:$0xff]
  %v3185 = vld [vmem:[%s3149 + $0x118] sm:$0xff]
  %v3186 = vld [vmem:[%s3149 + $0x120] sm:$0xff]
  %v3187 = vld [vmem:[%s3149 + $0x128] sm:$0xff]
  %v3188 = vld [vmem:[%s3149 + $0x130] sm:$0xff]
  %v3189 = vld [vmem:[%s3149 + $0x138] sm:$0xff]
  %v3190 = vld [vmem:[%s3149 + $0x140] sm:$0xff]
  %v3191 = vld [vmem:[%s3149 + $0x148] sm:$0xff]
  %v3192 = vld [vmem:[%s3149 + $0x150] sm:$0xff]
  %v3193 = vld [vmem:[%s3149 + $0x158] sm:$0xff]
  %v3194 = vld [vmem:[%s3149 + $0x160] sm:$0xff]
  %v3195 = vld [vmem:[%s3149 + $0x168] sm:$0xff]
  %v3196 = vld [vmem:[%s3149 + $0x170] sm:$0xff]
  %v3197 = vld [vmem:[%s3149 + $0x178] sm:$0xff]
  %v3198 = vld [vmem:[%s3149 + $0x180] sm:$0xff]
  %v3199 = vld [vmem:[%s3149 + $0x188] sm:$0xff]
  %v3200 = vld [vmem:[%s3149 + $0x190] sm:$0xff]
  %v3201 = vld [vmem:[%s3149 + $0x198] sm:$0xff]
  %v3202 = vld [vmem:[%s3149 + $0x1a0] sm:$0xff]
  %v3203 = vld [vmem:[%s3149 + $0x1a8] sm:$0xff]
  %v3204 = vld [vmem:[%s3149 + $0x1b0] sm:$0xff]
  %v3205 = vld [vmem:[%s3149 + $0x1b8] sm:$0xff]
  %v3206 = vld [vmem:[%s3149 + $0x1c0] sm:$0xff]
  %v3207 = vld [vmem:[%s3149 + $0x1c8] sm:$0xff]
  %v3208 = vld [vmem:[%s3149 + $0x1d0] sm:$0xff]
  %v3209 = vld [vmem:[%s3149 + $0x1d8] sm:$0xff]
  %v3210 = vld [vmem:[%s3149 + $0x1e0] sm:$0xff]
  %v3211 = vld [vmem:[%s3149 + $0x1e8] sm:$0xff]
  %v3212 = vld [vmem:[%s3149 + $0x1f0] sm:$0xff]
  %v3213 = vld [vmem:[%s3149 + $0x1f8] sm:$0xff]
  %v3278 = vunpack.c.l.b16 %v3150
  %v3279 = vunpack.c.h.b16 %v3150
  %v3280 = vunpack.c.l.b16 %v3151
  %v3281 = vunpack.c.h.b16 %v3151
  %v3282 = vunpack.c.l.b16 %v3152
  %v3283 = vunpack.c.h.b16 %v3152
  %v3284 = vunpack.c.l.b16 %v3153
  %v3285 = vunpack.c.h.b16 %v3153
  %v3286 = vunpack.c.l.b16 %v3154
  %v3287 = vunpack.c.h.b16 %v3154
  %v3288 = vunpack.c.l.b16 %v3155
  %v3289 = vunpack.c.h.b16 %v3155
  %v3290 = vunpack.c.l.b16 %v3156
  %v3291 = vunpack.c.h.b16 %v3156
  %v3292 = vunpack.c.l.b16 %v3157
  %v3293 = vunpack.c.h.b16 %v3157
  %v3294 = vunpack.c.l.b16 %v3158
  %v3295 = vunpack.c.h.b16 %v3158
  %v3296 = vunpack.c.l.b16 %v3159
  %v3297 = vunpack.c.h.b16 %v3159
  %v3298 = vunpack.c.l.b16 %v3160
  %v3299 = vunpack.c.h.b16 %v3160
  %v3300 = vunpack.c.l.b16 %v3161
  %v3301 = vunpack.c.h.b16 %v3161
  %v3302 = vunpack.c.l.b16 %v3162
  %v3303 = vunpack.c.h.b16 %v3162
  %v3304 = vunpack.c.l.b16 %v3163
  %v3305 = vunpack.c.h.b16 %v3163
  %v3306 = vunpack.c.l.b16 %v3164
  %v3307 = vunpack.c.h.b16 %v3164
  %v3308 = vunpack.c.l.b16 %v3165
  %v3309 = vunpack.c.h.b16 %v3165
  %v3310 = vunpack.c.l.b16 %v3166
  %v3311 = vunpack.c.h.b16 %v3166
  %v3312 = vunpack.c.l.b16 %v3167
  %v3313 = vunpack.c.h.b16 %v3167
  %v3314 = vunpack.c.l.b16 %v3168
  %v3315 = vunpack.c.h.b16 %v3168
  %v3316 = vunpack.c.l.b16 %v3169
  %v3317 = vunpack.c.h.b16 %v3169
  %v3318 = vunpack.c.l.b16 %v3170
  %v3319 = vunpack.c.h.b16 %v3170
  %v3320 = vunpack.c.l.b16 %v3171
  %v3321 = vunpack.c.h.b16 %v3171
  %v3322 = vunpack.c.l.b16 %v3172
  %v3323 = vunpack.c.h.b16 %v3172
  %v3324 = vunpack.c.l.b16 %v3173
  %v3325 = vunpack.c.h.b16 %v3173
  %v3326 = vunpack.c.l.b16 %v3174
  %v3327 = vunpack.c.h.b16 %v3174
  %v3328 = vunpack.c.l.b16 %v3175
  %v3329 = vunpack.c.h.b16 %v3175
  %v3330 = vunpack.c.l.b16 %v3176
  %v3331 = vunpack.c.h.b16 %v3176
  %v3332 = vunpack.c.l.b16 %v3177
  %v3333 = vunpack.c.h.b16 %v3177
  %v3334 = vunpack.c.l.b16 %v3178
  %v3335 = vunpack.c.h.b16 %v3178
  %v3336 = vunpack.c.l.b16 %v3179
  %v3337 = vunpack.c.h.b16 %v3179
  %v3338 = vunpack.c.l.b16 %v3180
  %v3339 = vunpack.c.h.b16 %v3180
  %v3340 = vunpack.c.l.b16 %v3181
  %v3341 = vunpack.c.h.b16 %v3181
  %v3342 = vunpack.c.l.b16 %v3182
  %v3343 = vunpack.c.h.b16 %v3182
  %v3344 = vunpack.c.l.b16 %v3183
  %v3345 = vunpack.c.h.b16 %v3183
  %v3346 = vunpack.c.l.b16 %v3184
  %v3347 = vunpack.c.h.b16 %v3184
  %v3348 = vunpack.c.l.b16 %v3185
  %v3349 = vunpack.c.h.b16 %v3185
  %v3350 = vunpack.c.l.b16 %v3186
  %v3351 = vunpack.c.h.b16 %v3186
  %v3352 = vunpack.c.l.b16 %v3187
  %v3353 = vunpack.c.h.b16 %v3187
  %v3354 = vunpack.c.l.b16 %v3188
  %v3355 = vunpack.c.h.b16 %v3188
  %v3356 = vunpack.c.l.b16 %v3189
  %v3357 = vunpack.c.h.b16 %v3189
  %v3358 = vunpack.c.l.b16 %v3190
  %v3359 = vunpack.c.h.b16 %v3190
  %v3360 = vunpack.c.l.b16 %v3191
  %v3361 = vunpack.c.h.b16 %v3191
  %v3362 = vunpack.c.l.b16 %v3192
  %v3363 = vunpack.c.h.b16 %v3192
  %v3364 = vunpack.c.l.b16 %v3193
  %v3365 = vunpack.c.h.b16 %v3193
  %v3366 = vunpack.c.l.b16 %v3194
  %v3367 = vunpack.c.h.b16 %v3194
  %v3368 = vunpack.c.l.b16 %v3195
  %v3369 = vunpack.c.h.b16 %v3195
  %v3370 = vunpack.c.l.b16 %v3196
  %v3371 = vunpack.c.h.b16 %v3196
  %v3372 = vunpack.c.l.b16 %v3197
  %v3373 = vunpack.c.h.b16 %v3197
  %v3374 = vunpack.c.l.b16 %v3198
  %v3375 = vunpack.c.h.b16 %v3198
  %v3376 = vunpack.c.l.b16 %v3199
  %v3377 = vunpack.c.h.b16 %v3199
  %v3378 = vunpack.c.l.b16 %v3200
  %v3379 = vunpack.c.h.b16 %v3200
  %v3380 = vunpack.c.l.b16 %v3201
  %v3381 = vunpack.c.h.b16 %v3201
  %v3382 = vunpack.c.l.b16 %v3202
  %v3383 = vunpack.c.h.b16 %v3202
  %v3384 = vunpack.c.l.b16 %v3203
  %v3385 = vunpack.c.h.b16 %v3203
  %v3386 = vunpack.c.l.b16 %v3204
  %v3387 = vunpack.c.h.b16 %v3204
  %v3388 = vunpack.c.l.b16 %v3205
  %v3389 = vunpack.c.h.b16 %v3205
  %v3390 = vunpack.c.l.b16 %v3206
  %v3391 = vunpack.c.h.b16 %v3206
  %v3392 = vunpack.c.l.b16 %v3207
  %v3393 = vunpack.c.h.b16 %v3207
  %v3394 = vunpack.c.l.b16 %v3208
  %v3395 = vunpack.c.h.b16 %v3208
  %v3396 = vunpack.c.l.b16 %v3209
  %v3397 = vunpack.c.h.b16 %v3209
  %v3398 = vunpack.c.l.b16 %v3210
  %v3399 = vunpack.c.h.b16 %v3210
  %v3400 = vunpack.c.l.b16 %v3211
  %v3401 = vunpack.c.h.b16 %v3211
  %v3402 = vunpack.c.l.b16 %v3212
  %v3403 = vunpack.c.h.b16 %v3212
  %v3404 = vunpack.c.l.b16 %v3213
  %v3405 = vunpack.c.h.b16 %v3213
  %v3406 = vpack.c.b16 %v3280, %v3278
  %v3407 = vpack.c.b16 %v3281, %v3279
  %v3408 = vpack.c.b16 %v3284, %v3282
  %v3409 = vpack.c.b16 %v3285, %v3283
  %v3410 = vpack.c.b16 %v3288, %v3286
  %v3411 = vpack.c.b16 %v3289, %v3287
  %v3412 = vpack.c.b16 %v3292, %v3290
  %v3413 = vpack.c.b16 %v3293, %v3291
  %v3414 = vpack.c.b16 %v3296, %v3294
  %v3415 = vpack.c.b16 %v3297, %v3295
  %v3416 = vpack.c.b16 %v3300, %v3298
  %v3417 = vpack.c.b16 %v3301, %v3299
  %v3418 = vpack.c.b16 %v3304, %v3302
  %v3419 = vpack.c.b16 %v3305, %v3303
  %v3420 = vpack.c.b16 %v3308, %v3306
  %v3421 = vpack.c.b16 %v3309, %v3307
  %v3422 = vpack.c.b16 %v3312, %v3310
  %v3423 = vpack.c.b16 %v3313, %v3311
  %v3424 = vpack.c.b16 %v3316, %v3314
  %v3425 = vpack.c.b16 %v3317, %v3315
  %v3426 = vpack.c.b16 %v3320, %v3318
  %v3427 = vpack.c.b16 %v3321, %v3319
  %v3428 = vpack.c.b16 %v3324, %v3322
  %v3429 = vpack.c.b16 %v3325, %v3323
  %v3430 = vpack.c.b16 %v3328, %v3326
  %v3431 = vpack.c.b16 %v3329, %v3327
  %v3432 = vpack.c.b16 %v3332, %v3330
  %v3433 = vpack.c.b16 %v3333, %v3331
  %v3434 = vpack.c.b16 %v3336, %v3334
  %v3435 = vpack.c.b16 %v3337, %v3335
  %v3436 = vpack.c.b16 %v3340, %v3338
  %v3437 = vpack.c.b16 %v3341, %v3339
  %v3438 = vpack.c.b16 %v3344, %v3342
  %v3439 = vpack.c.b16 %v3345, %v3343
  %v3440 = vpack.c.b16 %v3348, %v3346
  %v3441 = vpack.c.b16 %v3349, %v3347
  %v3442 = vpack.c.b16 %v3352, %v3350
  %v3443 = vpack.c.b16 %v3353, %v3351
  %v3444 = vpack.c.b16 %v3356, %v3354
  %v3445 = vpack.c.b16 %v3357, %v3355
  %v3446 = vpack.c.b16 %v3360, %v3358
  %v3447 = vpack.c.b16 %v3361, %v3359
  %v3448 = vpack.c.b16 %v3364, %v3362
  %v3449 = vpack.c.b16 %v3365, %v3363
  %v3450 = vpack.c.b16 %v3368, %v3366
  %v3451 = vpack.c.b16 %v3369, %v3367
  %v3452 = vpack.c.b16 %v3372, %v3370
  %v3453 = vpack.c.b16 %v3373, %v3371
  %v3454 = vpack.c.b16 %v3376, %v3374
  %v3455 = vpack.c.b16 %v3377, %v3375
  %v3456 = vpack.c.b16 %v3380, %v3378
  %v3457 = vpack.c.b16 %v3381, %v3379
  %v3458 = vpack.c.b16 %v3384, %v3382
  %v3459 = vpack.c.b16 %v3385, %v3383
  %v3460 = vpack.c.b16 %v3388, %v3386
  %v3461 = vpack.c.b16 %v3389, %v3387
  %v3462 = vpack.c.b16 %v3392, %v3390
  %v3463 = vpack.c.b16 %v3393, %v3391
  %v3464 = vpack.c.b16 %v3396, %v3394
  %v3465 = vpack.c.b16 %v3397, %v3395
  %v3466 = vpack.c.b16 %v3400, %v3398
  %v3467 = vpack.c.b16 %v3401, %v3399
  %v3468 = vpack.c.b16 %v3404, %v3402
  %v3469 = vpack.c.b16 %v3405, %v3403
  %3534 = vmatprep.subr.bf16.mxu0 %v3407
  %3535 = vmatpush1.bf16.msra.mxu0 %v3406
  %3536 = vmatprep.subr.bf16.mxu0 %v3409
  %3537 = vmatpush1.bf16.msra.mxu0 %v3408
  %3538 = vmatprep.subr.bf16.mxu0 %v3411
  %3539 = vmatpush1.bf16.msra.mxu0 %v3410
  %3540 = vmatprep.subr.bf16.mxu0 %v3413
  %3541 = vmatpush1.bf16.msra.mxu0 %v3412
  %3542 = vmatprep.subr.bf16.mxu0 %v3415
  %3543 = vmatpush1.bf16.msra.mxu0 %v3414
  %3544 = vmatprep.subr.bf16.mxu0 %v3417
  %3545 = vmatpush1.bf16.msra.mxu0 %v3416
  %3546 = vmatprep.subr.bf16.mxu0 %v3419
  %3547 = vmatpush1.bf16.msra.mxu0 %v3418
  %3548 = vmatprep.subr.bf16.mxu0 %v3421
  %3549 = vmatpush1.bf16.msra.mxu0 %v3420
  %3550 = vmatprep.subr.bf16.mxu0 %v3423
  %3551 = vmatpush1.bf16.msra.mxu0 %v3422
  %3552 = vmatprep.subr.bf16.mxu0 %v3425
  %3553 = vmatpush1.bf16.msra.mxu0 %v3424
  %3554 = vmatprep.subr.bf16.mxu0 %v3427
  %3555 = vmatpush1.bf16.msra.mxu0 %v3426
  %3556 = vmatprep.subr.bf16.mxu0 %v3429
  %3557 = vmatpush1.bf16.msra.mxu0 %v3428
  %3558 = vmatprep.subr.bf16.mxu0 %v3431
  %3559 = vmatpush1.bf16.msra.mxu0 %v3430
  %3560 = vmatprep.subr.bf16.mxu0 %v3433
  %3561 = vmatpush1.bf16.msra.mxu0 %v3432
  %3562 = vmatprep.subr.bf16.mxu0 %v3435
  %3563 = vmatpush1.bf16.msra.mxu0 %v3434
  %3564 = vmatprep.subr.bf16.mxu0 %v3437
  %3565 = vmatpush1.bf16.msra.mxu0 %v3436
  %3566 = vmatprep.mubr.bf16.mxu0 %v3142
  %3567 = vmatmul.mubr.bf16.gmra.mrb[0].mxu0 %v3141
  %v3568 = vpop.f32.mrb[0].mxu0
  %v3569 = vadd.f32 0.0, %v3568
  %v3570 = vpop.f32.mrb[0].mxu0
  %v3571 = vadd.f32 0.0, %v3570
  %v3572 = vpop.f32.mrb[0].mxu0
  %v3573 = vadd.f32 0.0, %v3572
  %v3574 = vpop.f32.mrb[0].mxu0
  %v3575 = vadd.f32 0.0, %v3574
  %3576 = vmatprep.mubr.bf16.mxu0 %v3146
  %3577 = vmatmul.mubr.bf16.gmra.mrb[0].mxu0 %v3145
  %v3578 = vpop.f32.mrb[0].mxu0
  %v3579 = vadd.f32 0.0, %v3578
  %v3580 = vpop.f32.mrb[0].mxu0
  %v3581 = vadd.f32 0.0, %v3580
  %v3582 = vpop.f32.mrb[0].mxu0
  %v3583 = vpop.f32.mrb[0].mxu0
  %3584 = vdwg.mxu0
  %3585 = vmatprep.subr.bf16.mxu0 %v3439
  %3586 = vmatpush1.bf16.msra.mxu0 %v3438
  %3587 = vmatprep.subr.bf16.mxu0 %v3441
  %3588 = vmatpush1.bf16.msra.mxu0 %v3440
  %3589 = vmatprep.subr.bf16.mxu0 %v3443
  %3590 = vmatpush1.bf16.msra.mxu0 %v3442
  %3591 = vmatprep.subr.bf16.mxu0 %v3445
  %3592 = vmatpush1.bf16.msra.mxu0 %v3444
  %3593 = vmatprep.subr.bf16.mxu0 %v3447
  %3594 = vmatpush1.bf16.msra.mxu0 %v3446
  %3595 = vmatprep.subr.bf16.mxu0 %v3449
  %3596 = vmatpush1.bf16.msra.mxu0 %v3448
  %3597 = vmatprep.subr.bf16.mxu0 %v3451
  %3598 = vmatpush1.bf16.msra.mxu0 %v3450
  %3599 = vmatprep.subr.bf16.mxu0 %v3453
  %3600 = vmatpush1.bf16.msra.mxu0 %v3452
  %3601 = vmatprep.subr.bf16.mxu0 %v3455
  %3602 = vmatpush1.bf16.msra.mxu0 %v3454
  %3603 = vmatprep.subr.bf16.mxu0 %v3457
  %3604 = vmatpush1.bf16.msra.mxu0 %v3456
  %3605 = vmatprep.subr.bf16.mxu0 %v3459
  %3606 = vmatpush1.bf16.msra.mxu0 %v3458
  %3607 = vmatprep.subr.bf16.mxu0 %v3461
  %3608 = vmatpush1.bf16.msra.mxu0 %v3460
  %3609 = vmatprep.subr.bf16.mxu0 %v3463
  %3610 = vmatpush1.bf16.msra.mxu0 %v3462
  %3611 = vmatprep.subr.bf16.mxu0 %v3465
  %3612 = vmatpush1.bf16.msra.mxu0 %v3464
  %3613 = vmatprep.subr.bf16.mxu0 %v3467
  %3614 = vmatpush1.bf16.msra.mxu0 %v3466
  %3615 = vmatprep.subr.bf16.mxu0 %v3469
  %3616 = vmatpush1.bf16.msra.mxu0 %v3468
  %3617 = vmatprep.mubr.bf16.mxu0 %v3144
  %3618 = vmatmul.mubr.bf16.gmra.mrb[0].mxu0 %v3143
  %v3619 = vpop.f32.mrb[0].mxu0
  %v3620 = vadd.f32 %v3569, %v3619
  %v3621 = vpop.f32.mrb[0].mxu0
  %v3622 = vadd.f32 %v3571, %v3621
  %v3623 = vpop.f32.mrb[0].mxu0
  %v3624 = vadd.f32 %v3573, %v3623
  %v3625 = vpop.f32.mrb[0].mxu0
  %v3626 = vadd.f32 %v3575, %v3625
  %3627 = vmatprep.mubr.bf16.mxu0 %v3148
  %3628 = vmatmul.mubr.bf16.gmra.mrb[0].mxu0 %v3147
  %v3629 = vpop.f32.mrb[0].mxu0
  %v3630 = vadd.f32 %v3579, %v3629
  %v3631 = vpop.f32.mrb[0].mxu0
  %v3632 = vadd.f32 %v3581, %v3631
  %v3633 = vpop.f32.mrb[0].mxu0
  %v3634 = vpop.f32.mrb[0].mxu0
  %3635 = vdwg.mxu0
  %v3636 = vadd.f32 %v3015, %v3620
  %v3637 = vadd.f32 %v3016, %v3622
  %v3638 = vadd.f32 %v3017, %v3624
  %v3639 = vadd.f32 %v3018, %v3626
  %v3640 = vadd.f32 %v3019, %v3630
  %v3641 = vadd.f32 %v3020, %v3632
  %s3642 = scalar_lea.vmem %s4, 36
  %v3643 = vld [vmem:[%s3642] sm:$0xf]
  %v3644 = vld [vmem:[%s3642 + $0x4] sm:$0xf]
  %v3645 = vld [vmem:[%s3642 + $0x8] sm:$0xf]
  %v3649 = vunpack.c.l.b16 %v3643
  %v3650 = vunpack.c.l.b16 %v3644
  %v3651 = vunpack.c.l.b16 %v3645
  %v3652 = vpack.c.b16 %v3650, %v3649
  %v3653 = vpack.c.b16 %v3651, %v3651
  %v3655 = vsel %vm211, %v3652, 0
  %v3658 = vsel %vm211, %v3653, 0
  %3660 = vmatprep.subr.bf16.mxu0 %v1744
  %3661 = vmatpush1.bf16.msra.mxu0 %v1743
  %3662 = vmatprep.subr.bf16.mxu0 %v1748
  %3663 = vmatpush1.bf16.msra.mxu0 %v1747
  %3664 = vmatprep.subr.bf16.mxu0 %v1752
  %3665 = vmatpush1.bf16.msra.mxu0 %v1751
  %3666 = vmatprep.subr.bf16.mxu0 %v1756
  %3667 = vmatpush1.bf16.msra.mxu0 %v1755
  %3668 = vmatprep.subr.bf16.mxu0 %v1784
  %3669 = vmatpush1.bf16.msra.mxu0 %v1781
  %3670 = vmatprep.subr.bf16.mxu0 0
  %3671 = vmatpush1.bf16.msra.mxu0 0
  %3672 = vmatprep.subr.bf16.mxu0 0
  %3673 = vmatpush1.bf16.msra.mxu0 0
  %3674 = vmatprep.subr.bf16.mxu0 0
  %3675 = vmatpush1.bf16.msra.mxu0 0
  %3676 = vmatprep.subr.bf16.mxu0 0
  %3677 = vmatpush1.bf16.msra.mxu0 0
  %3678 = vmatprep.subr.bf16.mxu0 0
  %3679 = vmatpush1.bf16.msra.mxu0 0
  %3680 = vmatprep.subr.bf16.mxu0 0
  %3681 = vmatpush1.bf16.msra.mxu0 0
  %3682 = vmatprep.subr.bf16.mxu0 0
  %3683 = vmatpush1.bf16.msra.mxu0 0
  %3684 = vmatprep.subr.bf16.mxu0 0
  %3685 = vmatpush1.bf16.msra.mxu0 0
  %3686 = vmatprep.subr.bf16.mxu0 0
  %3687 = vmatpush1.bf16.msra.mxu0 0
  %3688 = vmatprep.subr.bf16.mxu0 0
  %3689 = vmatpush1.bf16.msra.mxu0 0
  %3690 = vmatprep.subr.bf16.mxu0 0
  %3691 = vmatpush1.bf16.msra.mxu0 0
  %3692 = vmatprep.mubr.bf16.mxu0 0
  %3693 = vmatmul.mubr.bf16.gmra.mrb[0].mxu0 %v3655
  %v3694 = vpop.f32.mrb[0].mxu0
  %v3695 = vadd.f32 0.0, %v3694
  %v3696 = vpop.f32.mrb[0].mxu0
  %v3697 = vadd.f32 0.0, %v3696
  %v3698 = vpop.f32.mrb[0].mxu0
  %v3699 = vadd.f32 0.0, %v3698
  %v3700 = vpop.f32.mrb[0].mxu0
  %v3701 = vadd.f32 0.0, %v3700
  %3702 = vmatprep.mubr.bf16.mxu0 0
  %3703 = vmatmul.mubr.bf16.gmra.mrb[0].mxu0 %v3658
  %v3704 = vpop.f32.mrb[0].mxu0
  %v3705 = vadd.f32 0.0, %v3704
  %v3706 = vpop.f32.mrb[0].mxu0
  %v3707 = vadd.f32 0.0, %v3706
  %v3708 = vpop.f32.mrb[0].mxu0
  %v3709 = vpop.f32.mrb[0].mxu0
  %3710 = vdwg.mxu0
  %3711 = vmatprep.subr.bf16.mxu0 %v1746
  %3712 = vmatpush1.bf16.msra.mxu0 %v1745
  %3713 = vmatprep.subr.bf16.mxu0 %v1750
  %3714 = vmatpush1.bf16.msra.mxu0 %v1749
  %3715 = vmatprep.subr.bf16.mxu0 %v1754
  %3716 = vmatpush1.bf16.msra.mxu0 %v1753
  %3717 = vmatprep.subr.bf16.mxu0 %v1758
  %3718 = vmatpush1.bf16.msra.mxu0 %v1757
  %3719 = vmatprep.subr.bf16.mxu0 %v1790
  %3720 = vmatpush1.bf16.msra.mxu0 %v1787
  %3721 = vmatprep.subr.bf16.mxu0 0
  %3722 = vmatpush1.bf16.msra.mxu0 0
  %3723 = vmatprep.subr.bf16.mxu0 0
  %3724 = vmatpush1.bf16.msra.mxu0 0
  %3725 = vmatprep.subr.bf16.mxu0 0
  %3726 = vmatpush1.bf16.msra.mxu0 0
  %3727 = vmatprep.subr.bf16.mxu0 0
  %3728 = vmatpush1.bf16.msra.mxu0 0
  %3729 = vmatprep.subr.bf16.mxu0 0
  %3730 = vmatpush1.bf16.msra.mxu0 0
  %3731 = vmatprep.subr.bf16.mxu0 0
  %3732 = vmatpush1.bf16.msra.mxu0 0
  %3733 = vmatprep.subr.bf16.mxu0 0
  %3734 = vmatpush1.bf16.msra.mxu0 0
  %3735 = vmatprep.subr.bf16.mxu0 0
  %3736 = vmatpush1.bf16.msra.mxu0 0
  %3737 = vmatprep.subr.bf16.mxu0 0
  %3738 = vmatpush1.bf16.msra.mxu0 0
  %3739 = vmatprep.subr.bf16.mxu0 0
  %3740 = vmatpush1.bf16.msra.mxu0 0
  %3741 = vmatprep.subr.bf16.mxu0 0
  %3742 = vmatpush1.bf16.msra.mxu0 0
  %3743 = vmatprep.mubr.bf16.mxu0 0
  %3744 = vmatmul.mubr.bf16.gmra.mrb[0].mxu0 %v3655
  %v3745 = vpop.f32.mrb[0].mxu0
  %v3746 = vadd.f32 0.0, %v3745
  %v3747 = vpop.f32.mrb[0].mxu0
  %v3748 = vadd.f32 0.0, %v3747
  %v3749 = vpop.f32.mrb[0].mxu0
  %v3750 = vadd.f32 0.0, %v3749
  %v3751 = vpop.f32.mrb[0].mxu0
  %v3752 = vadd.f32 0.0, %v3751
  %3753 = vmatprep.mubr.bf16.mxu0 0
  %3754 = vmatmul.mubr.bf16.gmra.mrb[0].mxu0 %v3658
  %v3755 = vpop.f32.mrb[0].mxu0
  %v3756 = vadd.f32 0.0, %v3755
  %v3757 = vpop.f32.mrb[0].mxu0
  %v3758 = vadd.f32 0.0, %v3757
  %v3759 = vpop.f32.mrb[0].mxu0
  %v3760 = vpop.f32.mrb[0].mxu0
  %3761 = vdwg.mxu0
  %v3762 = vpack.c.bf16 %v3699, %v3695
  %v3763 = vpack.c.bf16 %v3701, %v3697
  %v3764 = vpack.c.bf16 %v3750, %v3746
  %v3765 = vpack.c.bf16 %v3752, %v3748
  %v3766 = vpack.c.bf16 %v3705, %v3705
  %v3767 = vpack.c.bf16 %v3707, %v3707
  %v3768 = vpack.c.bf16 %v3756, %v3756
  %v3769 = vpack.c.bf16 %v3758, %v3758
  %s3770 = scalar_lea.vmem %s5, 1536
  %v3771 = vld [vmem:[%s3770] sm:$0xff]
  %v3772 = vld [vmem:[%s3770 + $0x8] sm:$0xff]
  %v3773 = vld [vmem:[%s3770 + $0x10] sm:$0xff]
  %v3774 = vld [vmem:[%s3770 + $0x18] sm:$0xff]
  %v3775 = vld [vmem:[%s3770 + $0x20] sm:$0xff]
  %v3776 = vld [vmem:[%s3770 + $0x28] sm:$0xff]
  %v3777 = vld [vmem:[%s3770 + $0x30] sm:$0xff]
  %v3778 = vld [vmem:[%s3770 + $0x38] sm:$0xff]
  %v3779 = vld [vmem:[%s3770 + $0x40] sm:$0xff]
  %v3780 = vld [vmem:[%s3770 + $0x48] sm:$0xff]
  %v3781 = vld [vmem:[%s3770 + $0x50] sm:$0xff]
  %v3782 = vld [vmem:[%s3770 + $0x58] sm:$0xff]
  %v3783 = vld [vmem:[%s3770 + $0x60] sm:$0xff]
  %v3784 = vld [vmem:[%s3770 + $0x68] sm:$0xff]
  %v3785 = vld [vmem:[%s3770 + $0x70] sm:$0xff]
  %v3786 = vld [vmem:[%s3770 + $0x78] sm:$0xff]
  %v3787 = vld [vmem:[%s3770 + $0x80] sm:$0xff]
  %v3788 = vld [vmem:[%s3770 + $0x88] sm:$0xff]
  %v3789 = vld [vmem:[%s3770 + $0x90] sm:$0xff]
  %v3790 = vld [vmem:[%s3770 + $0x98] sm:$0xff]
  %v3791 = vld [vmem:[%s3770 + $0xa0] sm:$0xff]
  %v3792 = vld [vmem:[%s3770 + $0xa8] sm:$0xff]
  %v3793 = vld [vmem:[%s3770 + $0xb0] sm:$0xff]
  %v3794 = vld [vmem:[%s3770 + $0xb8] sm:$0xff]
  %v3795 = vld [vmem:[%s3770 + $0xc0] sm:$0xff]
  %v3796 = vld [vmem:[%s3770 + $0xc8] sm:$0xff]
  %v3797 = vld [vmem:[%s3770 + $0xd0] sm:$0xff]
  %v3798 = vld [vmem:[%s3770 + $0xd8] sm:$0xff]
  %v3799 = vld [vmem:[%s3770 + $0xe0] sm:$0xff]
  %v3800 = vld [vmem:[%s3770 + $0xe8] sm:$0xff]
  %v3801 = vld [vmem:[%s3770 + $0xf0] sm:$0xff]
  %v3802 = vld [vmem:[%s3770 + $0xf8] sm:$0xff]
  %v3803 = vld [vmem:[%s3770 + $0x100] sm:$0xff]
  %v3804 = vld [vmem:[%s3770 + $0x108] sm:$0xff]
  %v3805 = vld [vmem:[%s3770 + $0x110] sm:$0xff]
  %v3806 = vld [vmem:[%s3770 + $0x118] sm:$0xff]
  %v3807 = vld [vmem:[%s3770 + $0x120] sm:$0xff]
  %v3808 = vld [vmem:[%s3770 + $0x128] sm:$0xff]
  %v3809 = vld [vmem:[%s3770 + $0x130] sm:$0xff]
  %v3810 = vld [vmem:[%s3770 + $0x138] sm:$0xff]
  %v3811 = vld [vmem:[%s3770 + $0x140] sm:$0xff]
  %v3812 = vld [vmem:[%s3770 + $0x148] sm:$0xff]
  %v3813 = vld [vmem:[%s3770 + $0x150] sm:$0xff]
  %v3814 = vld [vmem:[%s3770 + $0x158] sm:$0xff]
  %v3815 = vld [vmem:[%s3770 + $0x160] sm:$0xff]
  %v3816 = vld [vmem:[%s3770 + $0x168] sm:$0xff]
  %v3817 = vld [vmem:[%s3770 + $0x170] sm:$0xff]
  %v3818 = vld [vmem:[%s3770 + $0x178] sm:$0xff]
  %v3819 = vld [vmem:[%s3770 + $0x180] sm:$0xff]
  %v3820 = vld [vmem:[%s3770 + $0x188] sm:$0xff]
  %v3821 = vld [vmem:[%s3770 + $0x190] sm:$0xff]
  %v3822 = vld [vmem:[%s3770 + $0x198] sm:$0xff]
  %v3823 = vld [vmem:[%s3770 + $0x1a0] sm:$0xff]
  %v3824 = vld [vmem:[%s3770 + $0x1a8] sm:$0xff]
  %v3825 = vld [vmem:[%s3770 + $0x1b0] sm:$0xff]
  %v3826 = vld [vmem:[%s3770 + $0x1b8] sm:$0xff]
  %v3827 = vld [vmem:[%s3770 + $0x1c0] sm:$0xff]
  %v3828 = vld [vmem:[%s3770 + $0x1c8] sm:$0xff]
  %v3829 = vld [vmem:[%s3770 + $0x1d0] sm:$0xff]
  %v3830 = vld [vmem:[%s3770 + $0x1d8] sm:$0xff]
  %v3831 = vld [vmem:[%s3770 + $0x1e0] sm:$0xff]
  %v3832 = vld [vmem:[%s3770 + $0x1e8] sm:$0xff]
  %v3833 = vld [vmem:[%s3770 + $0x1f0] sm:$0xff]
  %v3834 = vld [vmem:[%s3770 + $0x1f8] sm:$0xff]
  %v3899 = vunpack.c.l.b16 %v3771
  %v3900 = vunpack.c.h.b16 %v3771
  %v3901 = vunpack.c.l.b16 %v3772
  %v3902 = vunpack.c.h.b16 %v3772
  %v3903 = vunpack.c.l.b16 %v3773
  %v3904 = vunpack.c.h.b16 %v3773
  %v3905 = vunpack.c.l.b16 %v3774
  %v3906 = vunpack.c.h.b16 %v3774
  %v3907 = vunpack.c.l.b16 %v3775
  %v3908 = vunpack.c.h.b16 %v3775
  %v3909 = vunpack.c.l.b16 %v3776
  %v3910 = vunpack.c.h.b16 %v3776
  %v3911 = vunpack.c.l.b16 %v3777
  %v3912 = vunpack.c.h.b16 %v3777
  %v3913 = vunpack.c.l.b16 %v3778
  %v3914 = vunpack.c.h.b16 %v3778
  %v3915 = vunpack.c.l.b16 %v3779
  %v3916 = vunpack.c.h.b16 %v3779
  %v3917 = vunpack.c.l.b16 %v3780
  %v3918 = vunpack.c.h.b16 %v3780
  %v3919 = vunpack.c.l.b16 %v3781
  %v3920 = vunpack.c.h.b16 %v3781
  %v3921 = vunpack.c.l.b16 %v3782
  %v3922 = vunpack.c.h.b16 %v3782
  %v3923 = vunpack.c.l.b16 %v3783
  %v3924 = vunpack.c.h.b16 %v3783
  %v3925 = vunpack.c.l.b16 %v3784
  %v3926 = vunpack.c.h.b16 %v3784
  %v3927 = vunpack.c.l.b16 %v3785
  %v3928 = vunpack.c.h.b16 %v3785
  %v3929 = vunpack.c.l.b16 %v3786
  %v3930 = vunpack.c.h.b16 %v3786
  %v3931 = vunpack.c.l.b16 %v3787
  %v3932 = vunpack.c.h.b16 %v3787
  %v3933 = vunpack.c.l.b16 %v3788
  %v3934 = vunpack.c.h.b16 %v3788
  %v3935 = vunpack.c.l.b16 %v3789
  %v3936 = vunpack.c.h.b16 %v3789
  %v3937 = vunpack.c.l.b16 %v3790
  %v3938 = vunpack.c.h.b16 %v3790
  %v3939 = vunpack.c.l.b16 %v3791
  %v3940 = vunpack.c.h.b16 %v3791
  %v3941 = vunpack.c.l.b16 %v3792
  %v3942 = vunpack.c.h.b16 %v3792
  %v3943 = vunpack.c.l.b16 %v3793
  %v3944 = vunpack.c.h.b16 %v3793
  %v3945 = vunpack.c.l.b16 %v3794
  %v3946 = vunpack.c.h.b16 %v3794
  %v3947 = vunpack.c.l.b16 %v3795
  %v3948 = vunpack.c.h.b16 %v3795
  %v3949 = vunpack.c.l.b16 %v3796
  %v3950 = vunpack.c.h.b16 %v3796
  %v3951 = vunpack.c.l.b16 %v3797
  %v3952 = vunpack.c.h.b16 %v3797
  %v3953 = vunpack.c.l.b16 %v3798
  %v3954 = vunpack.c.h.b16 %v3798
  %v3955 = vunpack.c.l.b16 %v3799
  %v3956 = vunpack.c.h.b16 %v3799
  %v3957 = vunpack.c.l.b16 %v3800
  %v3958 = vunpack.c.h.b16 %v3800
  %v3959 = vunpack.c.l.b16 %v3801
  %v3960 = vunpack.c.h.b16 %v3801
  %v3961 = vunpack.c.l.b16 %v3802
  %v3962 = vunpack.c.h.b16 %v3802
  %v3963 = vunpack.c.l.b16 %v3803
  %v3964 = vunpack.c.h.b16 %v3803
  %v3965 = vunpack.c.l.b16 %v3804
  %v3966 = vunpack.c.h.b16 %v3804
  %v3967 = vunpack.c.l.b16 %v3805
  %v3968 = vunpack.c.h.b16 %v3805
  %v3969 = vunpack.c.l.b16 %v3806
  %v3970 = vunpack.c.h.b16 %v3806
  %v3971 = vunpack.c.l.b16 %v3807
  %v3972 = vunpack.c.h.b16 %v3807
  %v3973 = vunpack.c.l.b16 %v3808
  %v3974 = vunpack.c.h.b16 %v3808
  %v3975 = vunpack.c.l.b16 %v3809
  %v3976 = vunpack.c.h.b16 %v3809
  %v3977 = vunpack.c.l.b16 %v3810
  %v3978 = vunpack.c.h.b16 %v3810
  %v3979 = vunpack.c.l.b16 %v3811
  %v3980 = vunpack.c.h.b16 %v3811
  %v3981 = vunpack.c.l.b16 %v3812
  %v3982 = vunpack.c.h.b16 %v3812
  %v3983 = vunpack.c.l.b16 %v3813
  %v3984 = vunpack.c.h.b16 %v3813
  %v3985 = vunpack.c.l.b16 %v3814
  %v3986 = vunpack.c.h.b16 %v3814
  %v3987 = vunpack.c.l.b16 %v3815
  %v3988 = vunpack.c.h.b16 %v3815
  %v3989 = vunpack.c.l.b16 %v3816
  %v3990 = vunpack.c.h.b16 %v3816
  %v3991 = vunpack.c.l.b16 %v3817
  %v3992 = vunpack.c.h.b16 %v3817
  %v3993 = vunpack.c.l.b16 %v3818
  %v3994 = vunpack.c.h.b16 %v3818
  %v3995 = vunpack.c.l.b16 %v3819
  %v3996 = vunpack.c.h.b16 %v3819
  %v3997 = vunpack.c.l.b16 %v3820
  %v3998 = vunpack.c.h.b16 %v3820
  %v3999 = vunpack.c.l.b16 %v3821
  %v4000 = vunpack.c.h.b16 %v3821
  %v4001 = vunpack.c.l.b16 %v3822
  %v4002 = vunpack.c.h.b16 %v3822
  %v4003 = vunpack.c.l.b16 %v3823
  %v4004 = vunpack.c.h.b16 %v3823
  %v4005 = vunpack.c.l.b16 %v3824
  %v4006 = vunpack.c.h.b16 %v3824
  %v4007 = vunpack.c.l.b16 %v3825
  %v4008 = vunpack.c.h.b16 %v3825
  %v4009 = vunpack.c.l.b16 %v3826
  %v4010 = vunpack.c.h.b16 %v3826
  %v4011 = vunpack.c.l.b16 %v3827
  %v4012 = vunpack.c.h.b16 %v3827
  %v4013 = vunpack.c.l.b16 %v3828
  %v4014 = vunpack.c.h.b16 %v3828
  %v4015 = vunpack.c.l.b16 %v3829
  %v4016 = vunpack.c.h.b16 %v3829
  %v4017 = vunpack.c.l.b16 %v3830
  %v4018 = vunpack.c.h.b16 %v3830
  %v4019 = vunpack.c.l.b16 %v3831
  %v4020 = vunpack.c.h.b16 %v3831
  %v4021 = vunpack.c.l.b16 %v3832
  %v4022 = vunpack.c.h.b16 %v3832
  %v4023 = vunpack.c.l.b16 %v3833
  %v4024 = vunpack.c.h.b16 %v3833
  %v4025 = vunpack.c.l.b16 %v3834
  %v4026 = vunpack.c.h.b16 %v3834
  %v4027 = vpack.c.b16 %v3901, %v3899
  %v4028 = vpack.c.b16 %v3902, %v3900
  %v4029 = vpack.c.b16 %v3905, %v3903
  %v4030 = vpack.c.b16 %v3906, %v3904
  %v4031 = vpack.c.b16 %v3909, %v3907
  %v4032 = vpack.c.b16 %v3910, %v3908
  %v4033 = vpack.c.b16 %v3913, %v3911
  %v4034 = vpack.c.b16 %v3914, %v3912
  %v4035 = vpack.c.b16 %v3917, %v3915
  %v4036 = vpack.c.b16 %v3918, %v3916
  %v4037 = vpack.c.b16 %v3921, %v3919
  %v4038 = vpack.c.b16 %v3922, %v3920
  %v4039 = vpack.c.b16 %v3925, %v3923
  %v4040 = vpack.c.b16 %v3926, %v3924
  %v4041 = vpack.c.b16 %v3929, %v3927
  %v4042 = vpack.c.b16 %v3930, %v3928
  %v4043 = vpack.c.b16 %v3933, %v3931
  %v4044 = vpack.c.b16 %v3934, %v3932
  %v4045 = vpack.c.b16 %v3937, %v3935
  %v4046 = vpack.c.b16 %v3938, %v3936
  %v4047 = vpack.c.b16 %v3941, %v3939
  %v4048 = vpack.c.b16 %v3942, %v3940
  %v4049 = vpack.c.b16 %v3945, %v3943
  %v4050 = vpack.c.b16 %v3946, %v3944
  %v4051 = vpack.c.b16 %v3949, %v3947
  %v4052 = vpack.c.b16 %v3950, %v3948
  %v4053 = vpack.c.b16 %v3953, %v3951
  %v4054 = vpack.c.b16 %v3954, %v3952
  %v4055 = vpack.c.b16 %v3957, %v3955
  %v4056 = vpack.c.b16 %v3958, %v3956
  %v4057 = vpack.c.b16 %v3961, %v3959
  %v4058 = vpack.c.b16 %v3962, %v3960
  %v4059 = vpack.c.b16 %v3965, %v3963
  %v4060 = vpack.c.b16 %v3966, %v3964
  %v4061 = vpack.c.b16 %v3969, %v3967
  %v4062 = vpack.c.b16 %v3970, %v3968
  %v4063 = vpack.c.b16 %v3973, %v3971
  %v4064 = vpack.c.b16 %v3974, %v3972
  %v4065 = vpack.c.b16 %v3977, %v3975
  %v4066 = vpack.c.b16 %v3978, %v3976
  %v4067 = vpack.c.b16 %v3981, %v3979
  %v4068 = vpack.c.b16 %v3982, %v3980
  %v4069 = vpack.c.b16 %v3985, %v3983
  %v4070 = vpack.c.b16 %v3986, %v3984
  %v4071 = vpack.c.b16 %v3989, %v3987
  %v4072 = vpack.c.b16 %v3990, %v3988
  %v4073 = vpack.c.b16 %v3993, %v3991
  %v4074 = vpack.c.b16 %v3994, %v3992
  %v4075 = vpack.c.b16 %v3997, %v3995
  %v4076 = vpack.c.b16 %v3998, %v3996
  %v4077 = vpack.c.b16 %v4001, %v3999
  %v4078 = vpack.c.b16 %v4002, %v4000
  %v4079 = vpack.c.b16 %v4005, %v4003
  %v4080 = vpack.c.b16 %v4006, %v4004
  %v4081 = vpack.c.b16 %v4009, %v4007
  %v4082 = vpack.c.b16 %v4010, %v4008
  %v4083 = vpack.c.b16 %v4013, %v4011
  %v4084 = vpack.c.b16 %v4014, %v4012
  %v4085 = vpack.c.b16 %v4017, %v4015
  %v4086 = vpack.c.b16 %v4018, %v4016
  %v4087 = vpack.c.b16 %v4021, %v4019
  %v4088 = vpack.c.b16 %v4022, %v4020
  %v4089 = vpack.c.b16 %v4025, %v4023
  %v4090 = vpack.c.b16 %v4026, %v4024
  %4155 = vmatprep.subr.bf16.mxu0 %v4028
  %4156 = vmatpush1.bf16.msra.mxu0 %v4027
  %4157 = vmatprep.subr.bf16.mxu0 %v4030
  %4158 = vmatpush1.bf16.msra.mxu0 %v4029
  %4159 = vmatprep.subr.bf16.mxu0 %v4032
  %4160 = vmatpush1.bf16.msra.mxu0 %v4031
  %4161 = vmatprep.subr.bf16.mxu0 %v4034
  %4162 = vmatpush1.bf16.msra.mxu0 %v4033
  %4163 = vmatprep.subr.bf16.mxu0 %v4036
  %4164 = vmatpush1.bf16.msra.mxu0 %v4035
  %4165 = vmatprep.subr.bf16.mxu0 %v4038
  %4166 = vmatpush1.bf16.msra.mxu0 %v4037
  %4167 = vmatprep.subr.bf16.mxu0 %v4040
  %4168 = vmatpush1.bf16.msra.mxu0 %v4039
  %4169 = vmatprep.subr.bf16.mxu0 %v4042
  %4170 = vmatpush1.bf16.msra.mxu0 %v4041
  %4171 = vmatprep.subr.bf16.mxu0 %v4044
  %4172 = vmatpush1.bf16.msra.mxu0 %v4043
  %4173 = vmatprep.subr.bf16.mxu0 %v4046
  %4174 = vmatpush1.bf16.msra.mxu0 %v4045
  %4175 = vmatprep.subr.bf16.mxu0 %v4048
  %4176 = vmatpush1.bf16.msra.mxu0 %v4047
  %4177 = vmatprep.subr.bf16.mxu0 %v4050
  %4178 = vmatpush1.bf16.msra.mxu0 %v4049
  %4179 = vmatprep.subr.bf16.mxu0 %v4052
  %4180 = vmatpush1.bf16.msra.mxu0 %v4051
  %4181 = vmatprep.subr.bf16.mxu0 %v4054
  %4182 = vmatpush1.bf16.msra.mxu0 %v4053
  %4183 = vmatprep.subr.bf16.mxu0 %v4056
  %4184 = vmatpush1.bf16.msra.mxu0 %v4055
  %4185 = vmatprep.subr.bf16.mxu0 %v4058
  %4186 = vmatpush1.bf16.msra.mxu0 %v4057
  %4187 = vmatprep.mubr.bf16.mxu0 %v3763
  %4188 = vmatmul.mubr.bf16.gmra.mrb[0].mxu0 %v3762
  %v4189 = vpop.f32.mrb[0].mxu0
  %v4190 = vadd.f32 0.0, %v4189
  %v4191 = vpop.f32.mrb[0].mxu0
  %v4192 = vadd.f32 0.0, %v4191
  %v4193 = vpop.f32.mrb[0].mxu0
  %v4194 = vadd.f32 0.0, %v4193
  %v4195 = vpop.f32.mrb[0].mxu0
  %v4196 = vadd.f32 0.0, %v4195
  %4197 = vmatprep.mubr.bf16.mxu0 %v3767
  %4198 = vmatmul.mubr.bf16.gmra.mrb[0].mxu0 %v3766
  %v4199 = vpop.f32.mrb[0].mxu0
  %v4200 = vadd.f32 0.0, %v4199
  %v4201 = vpop.f32.mrb[0].mxu0
  %v4202 = vadd.f32 0.0, %v4201
  %v4203 = vpop.f32.mrb[0].mxu0
  %v4204 = vpop.f32.mrb[0].mxu0
  %4205 = vdwg.mxu0
  %4206 = vmatprep.subr.bf16.mxu0 %v4060
  %4207 = vmatpush1.bf16.msra.mxu0 %v4059
  %4208 = vmatprep.subr.bf16.mxu0 %v4062
  %4209 = vmatpush1.bf16.msra.mxu0 %v4061
  %4210 = vmatprep.subr.bf16.mxu0 %v4064
  %4211 = vmatpush1.bf16.msra.mxu0 %v4063
  %4212 = vmatprep.subr.bf16.mxu0 %v4066
  %4213 = vmatpush1.bf16.msra.mxu0 %v4065
  %4214 = vmatprep.subr.bf16.mxu0 %v4068
  %4215 = vmatpush1.bf16.msra.mxu0 %v4067
  %4216 = vmatprep.subr.bf16.mxu0 %v4070
  %4217 = vmatpush1.bf16.msra.mxu0 %v4069
  %4218 = vmatprep.subr.bf16.mxu0 %v4072
  %4219 = vmatpush1.bf16.msra.mxu0 %v4071
  %4220 = vmatprep.subr.bf16.mxu0 %v4074
  %4221 = vmatpush1.bf16.msra.mxu0 %v4073
  %4222 = vmatprep.subr.bf16.mxu0 %v4076
  %4223 = vmatpush1.bf16.msra.mxu0 %v4075
  %4224 = vmatprep.subr.bf16.mxu0 %v4078
  %4225 = vmatpush1.bf16.msra.mxu0 %v4077
  %4226 = vmatprep.subr.bf16.mxu0 %v4080
  %4227 = vmatpush1.bf16.msra.mxu0 %v4079
  %4228 = vmatprep.subr.bf16.mxu0 %v4082
  %4229 = vmatpush1.bf16.msra.mxu0 %v4081
  %4230 = vmatprep.subr.bf16.mxu0 %v4084
  %4231 = vmatpush1.bf16.msra.mxu0 %v4083
  %4232 = vmatprep.subr.bf16.mxu0 %v4086
  %4233 = vmatpush1.bf16.msra.mxu0 %v4085
  %4234 = vmatprep.subr.bf16.mxu0 %v4088
  %4235 = vmatpush1.bf16.msra.mxu0 %v4087
  %4236 = vmatprep.subr.bf16.mxu0 %v4090
  %4237 = vmatpush1.bf16.msra.mxu0 %v4089
  %4238 = vmatprep.mubr.bf16.mxu0 %v3765
  %4239 = vmatmul.mubr.bf16.gmra.mrb[0].mxu0 %v3764
  %v4240 = vpop.f32.mrb[0].mxu0
  %v4241 = vadd.f32 %v4190, %v4240
  %v4242 = vpop.f32.mrb[0].mxu0
  %v4243 = vadd.f32 %v4192, %v4242
  %v4244 = vpop.f32.mrb[0].mxu0
  %v4245 = vadd.f32 %v4194, %v4244
  %v4246 = vpop.f32.mrb[0].mxu0
  %v4247 = vadd.f32 %v4196, %v4246
  %4248 = vmatprep.mubr.bf16.mxu0 %v3769
  %4249 = vmatmul.mubr.bf16.gmra.mrb[0].mxu0 %v3768
  %v4250 = vpop.f32.mrb[0].mxu0
  %v4251 = vadd.f32 %v4200, %v4250
  %v4252 = vpop.f32.mrb[0].mxu0
  %v4253 = vadd.f32 %v4202, %v4252
  %v4254 = vpop.f32.mrb[0].mxu0
  %v4255 = vpop.f32.mrb[0].mxu0
  %4256 = vdwg.mxu0
  %v4257 = vadd.f32 %v3636, %v4241
  %v4258 = vadd.f32 %v3637, %v4243
  %v4259 = vadd.f32 %v3638, %v4245
  %v4260 = vadd.f32 %v3639, %v4247
  %v4261 = vadd.f32 %v3640, %v4251
  %v4262 = vadd.f32 %v3641, %v4253
  %v4263 = vmax.f32 %v4257, 0.0
  %v4264 = vmax.f32 %v4258, 0.0
  %v4265 = vmax.f32 %v4259, 0.0
  %v4266 = vmax.f32 %v4260, 0.0
  %v4267 = vmax.f32 %v4261, 0.0
  %v4268 = vmax.f32 %v4262, 0.0
  %v4269 = vpack.c.bf16 %v4265, %v4263
  %v4270 = vpack.c.bf16 %v4266, %v4264
  %v4271 = vpack.c.bf16 %v4267, %v4267
  %v4272 = vpack.c.bf16 %v4268, %v4268
  %v4273 = vld [vmem:[%s7] sm:$0xf]
  %vm4274 = vcmask 195584
  %v4276 = vsel %vm4274, %v4273, 0
  %v4279 = vsel %vm227, %v4271, 0
  %v4282 = vsel %vm227, %v4272, 0
  %4284 = vmatprep.subr.bf16.mxu0 %v4270
  %4285 = vmatpush1.bf16.msra.mxu0 %v4269
  %4286 = vmatprep.subr.bf16.mxu0 %v4282
  %4287 = vmatpush1.bf16.msra.mxu0 %v4279
  %4288 = vmatprep.subr.bf16.mxu0 0
  %4289 = vmatpush1.bf16.msra.mxu0 0
  %4290 = vmatprep.subr.bf16.mxu0 0
  %4291 = vmatpush1.bf16.msra.mxu0 0
  %4292 = vmatprep.subr.bf16.mxu0 0
  %4293 = vmatpush1.bf16.msra.mxu0 0
  %4294 = vmatprep.subr.bf16.mxu0 0
  %4295 = vmatpush1.bf16.msra.mxu0 0
  %4296 = vmatprep.subr.bf16.mxu0 0
  %4297 = vmatpush1.bf16.msra.mxu0 0
  %4298 = vmatprep.subr.bf16.mxu0 0
  %4299 = vmatpush1.bf16.msra.mxu0 0
  %4300 = vmatprep.subr.bf16.mxu0 0
  %4301 = vmatpush1.bf16.msra.mxu0 0
  %4302 = vmatprep.subr.bf16.mxu0 0
  %4303 = vmatpush1.bf16.msra.mxu0 0
  %4304 = vmatprep.subr.bf16.mxu0 0
  %4305 = vmatpush1.bf16.msra.mxu0 0
  %4306 = vmatprep.subr.bf16.mxu0 0
  %4307 = vmatpush1.bf16.msra.mxu0 0
  %4308 = vmatprep.subr.bf16.mxu0 0
  %4309 = vmatpush1.bf16.msra.mxu0 0
  %4310 = vmatprep.subr.bf16.mxu0 0
  %4311 = vmatpush1.bf16.msra.mxu0 0
  %4312 = vmatprep.subr.bf16.mxu0 0
  %4313 = vmatpush1.bf16.msra.mxu0 0
  %4314 = vmatprep.subr.bf16.mxu0 0
  %4315 = vmatpush1.bf16.msra.mxu0 0
  %4316 = vmatprep.mubr.bf16.mxu0 0
  %4317 = vmatmul.mubr.bf16.gmra.mrb[0].mxu0 %v4276
  %v4318 = vpop.f32.mrb[0].mxu0
  %v4319 = vadd.f32 0.0, %v4318
  %v4320 = vpop.f32.mrb[0].mxu0
  %v4321 = vadd.f32 0.0, %v4320
  %v4322 = vpop.f32.mrb[0].mxu0
  %v4323 = vpop.f32.mrb[0].mxu0
  %4324 = vdwg.mxu0
  %v4325 = vpack.c.bf16 %v4319, %v4319
  %v4326 = vpack.c.bf16 %v4321, %v4321
  %v4327 = vld [vmem:[%s8] sm:$0xff]
  %v4328 = vld [vmem:[%s8 + $0x8] sm:$0xff]
  %v4329 = vld [vmem:[%s8 + $0x10] sm:$0xff]
  %v4330 = vld [vmem:[%s8 + $0x18] sm:$0xff]
  %v4331 = vld [vmem:[%s8 + $0x20] sm:$0xff]
  %v4332 = vld [vmem:[%s8 + $0x28] sm:$0xff]
  %v4333 = vld [vmem:[%s8 + $0x30] sm:$0xff]
  %v4334 = vld [vmem:[%s8 + $0x38] sm:$0xff]
  %v4335 = vld [vmem:[%s8 + $0x40] sm:$0xff]
  %v4336 = vld [vmem:[%s8 + $0x48] sm:$0xff]
  %v4337 = vld [vmem:[%s8 + $0x50] sm:$0xff]
  %v4338 = vld [vmem:[%s8 + $0x58] sm:$0xff]
  %v4339 = vld [vmem:[%s8 + $0x60] sm:$0xff]
  %v4340 = vld [vmem:[%s8 + $0x68] sm:$0xff]
  %v4341 = vld [vmem:[%s8 + $0x70] sm:$0xff]
  %v4342 = vld [vmem:[%s8 + $0x78] sm:$0xff]
  %v4343 = vld [vmem:[%s8 + $0x80] sm:$0xff]
  %v4344 = vld [vmem:[%s8 + $0x88] sm:$0xff]
  %v4345 = vld [vmem:[%s8 + $0x90] sm:$0xff]
  %v4346 = vld [vmem:[%s8 + $0x98] sm:$0xff]
  %v4347 = vld [vmem:[%s8 + $0xa0] sm:$0xff]
  %v4348 = vld [vmem:[%s8 + $0xa8] sm:$0xff]
  %v4349 = vld [vmem:[%s8 + $0xb0] sm:$0xff]
  %v4350 = vld [vmem:[%s8 + $0xb8] sm:$0xff]
  %v4351 = vld [vmem:[%s8 + $0xc0] sm:$0xff]
  %v4352 = vld [vmem:[%s8 + $0xc8] sm:$0xff]
  %v4353 = vld [vmem:[%s8 + $0xd0] sm:$0xff]
  %v4354 = vld [vmem:[%s8 + $0xd8] sm:$0xff]
  %v4355 = vld [vmem:[%s8 + $0xe0] sm:$0xff]
  %v4356 = vld [vmem:[%s8 + $0xe8] sm:$0xff]
  %v4357 = vld [vmem:[%s8 + $0xf0] sm:$0xff]
  %v4358 = vld [vmem:[%s8 + $0xf8] sm:$0xff]
  %v4359 = vld [vmem:[%s9] sm:$0x3]
  %v4361 = vlaneseq
  %v4362 = vshrl.u32 %v4361, 7
  %v4363 = vsub.s32 0, %v4362
  %v4364 = vrot.slane %v4359, %v4363
  %v4365 = vlaneseq
  %v4366 = vshrl.u32 %v4365, 7
  %v4367 = vsub.s32 1, %v4366
  %v4368 = vrot.slane %v4359, %v4367
  %v4403 = vunpack.c.l.b16 %v4327
  %v4404 = vunpack.c.h.b16 %v4327
  %v4405 = vunpack.c.l.b16 %v4328
  %v4406 = vunpack.c.h.b16 %v4328
  %v4407 = vunpack.c.l.b16 %v4329
  %v4408 = vunpack.c.h.b16 %v4329
  %v4409 = vunpack.c.l.b16 %v4330
  %v4410 = vunpack.c.h.b16 %v4330
  %v4411 = vunpack.c.l.b16 %v4331
  %v4412 = vunpack.c.h.b16 %v4331
  %v4413 = vunpack.c.l.b16 %v4332
  %v4414 = vunpack.c.h.b16 %v4332
  %v4415 = vunpack.c.l.b16 %v4333
  %v4416 = vunpack.c.h.b16 %v4333
  %v4417 = vunpack.c.l.b16 %v4334
  %v4418 = vunpack.c.h.b16 %v4334
  %v4419 = vunpack.c.l.b16 %v4335
  %v4420 = vunpack.c.h.b16 %v4335
  %v4421 = vunpack.c.l.b16 %v4336
  %v4422 = vunpack.c.h.b16 %v4336
  %v4423 = vunpack.c.l.b16 %v4337
  %v4424 = vunpack.c.h.b16 %v4337
  %v4425 = vunpack.c.l.b16 %v4338
  %v4426 = vunpack.c.h.b16 %v4338
  %v4427 = vunpack.c.l.b16 %v4339
  %v4428 = vunpack.c.h.b16 %v4339
  %v4429 = vunpack.c.l.b16 %v4340
  %v4430 = vunpack.c.h.b16 %v4340
  %v4431 = vunpack.c.l.b16 %v4341
  %v4432 = vunpack.c.h.b16 %v4341
  %v4433 = vunpack.c.l.b16 %v4342
  %v4434 = vunpack.c.h.b16 %v4342
  %v4435 = vunpack.c.l.b16 %v4343
  %v4436 = vunpack.c.h.b16 %v4343
  %v4437 = vunpack.c.l.b16 %v4344
  %v4438 = vunpack.c.h.b16 %v4344
  %v4439 = vunpack.c.l.b16 %v4345
  %v4440 = vunpack.c.h.b16 %v4345
  %v4441 = vunpack.c.l.b16 %v4346
  %v4442 = vunpack.c.h.b16 %v4346
  %v4443 = vunpack.c.l.b16 %v4347
  %v4444 = vunpack.c.h.b16 %v4347
  %v4445 = vunpack.c.l.b16 %v4348
  %v4446 = vunpack.c.h.b16 %v4348
  %v4447 = vunpack.c.l.b16 %v4349
  %v4448 = vunpack.c.h.b16 %v4349
  %v4449 = vunpack.c.l.b16 %v4350
  %v4450 = vunpack.c.h.b16 %v4350
  %v4451 = vunpack.c.l.b16 %v4351
  %v4452 = vunpack.c.h.b16 %v4351
  %v4453 = vunpack.c.l.b16 %v4352
  %v4454 = vunpack.c.h.b16 %v4352
  %v4455 = vunpack.c.l.b16 %v4353
  %v4456 = vunpack.c.h.b16 %v4353
  %v4457 = vunpack.c.l.b16 %v4354
  %v4458 = vunpack.c.h.b16 %v4354
  %v4459 = vunpack.c.l.b16 %v4355
  %v4460 = vunpack.c.h.b16 %v4355
  %v4461 = vunpack.c.l.b16 %v4356
  %v4462 = vunpack.c.h.b16 %v4356
  %v4463 = vunpack.c.l.b16 %v4357
  %v4464 = vunpack.c.h.b16 %v4357
  %v4465 = vunpack.c.l.b16 %v4358
  %v4466 = vunpack.c.h.b16 %v4358
  %v4467 = vpack.c.b16 %v4405, %v4403
  %v4468 = vpack.c.b16 %v4406, %v4404
  %v4469 = vpack.c.b16 %v4409, %v4407
  %v4470 = vpack.c.b16 %v4410, %v4408
  %v4471 = vpack.c.b16 %v4413, %v4411
  %v4472 = vpack.c.b16 %v4414, %v4412
  %v4473 = vpack.c.b16 %v4417, %v4415
  %v4474 = vpack.c.b16 %v4418, %v4416
  %v4475 = vpack.c.b16 %v4421, %v4419
  %v4476 = vpack.c.b16 %v4422, %v4420
  %v4477 = vpack.c.b16 %v4425, %v4423
  %v4478 = vpack.c.b16 %v4426, %v4424
  %v4479 = vpack.c.b16 %v4429, %v4427
  %v4480 = vpack.c.b16 %v4430, %v4428
  %v4481 = vpack.c.b16 %v4433, %v4431
  %v4482 = vpack.c.b16 %v4434, %v4432
  %v4483 = vpack.c.b16 %v4437, %v4435
  %v4484 = vpack.c.b16 %v4438, %v4436
  %v4485 = vpack.c.b16 %v4441, %v4439
  %v4486 = vpack.c.b16 %v4442, %v4440
  %v4487 = vpack.c.b16 %v4445, %v4443
  %v4488 = vpack.c.b16 %v4446, %v4444
  %v4489 = vpack.c.b16 %v4449, %v4447
  %v4490 = vpack.c.b16 %v4450, %v4448
  %v4491 = vpack.c.b16 %v4453, %v4451
  %v4492 = vpack.c.b16 %v4454, %v4452
  %v4493 = vpack.c.b16 %v4457, %v4455
  %v4494 = vpack.c.b16 %v4458, %v4456
  %v4495 = vpack.c.b16 %v4461, %v4459
  %v4496 = vpack.c.b16 %v4462, %v4460
  %v4497 = vpack.c.b16 %v4465, %v4463
  %v4498 = vpack.c.b16 %v4466, %v4464
  %4531 = vmatprep.subr.bf16.mxu0 %v4468
  %4532 = vmatpush1.bf16.msra.mxu0 %v4467
  %4533 = vmatprep.subr.bf16.mxu0 %v4470
  %4534 = vmatpush1.bf16.msra.mxu0 %v4469
  %4535 = vmatprep.subr.bf16.mxu0 %v4472
  %4536 = vmatpush1.bf16.msra.mxu0 %v4471
  %4537 = vmatprep.subr.bf16.mxu0 %v4474
  %4538 = vmatpush1.bf16.msra.mxu0 %v4473
  %4539 = vmatprep.subr.bf16.mxu0 %v4476
  %4540 = vmatpush1.bf16.msra.mxu0 %v4475
  %4541 = vmatprep.subr.bf16.mxu0 %v4478
  %4542 = vmatpush1.bf16.msra.mxu0 %v4477
  %4543 = vmatprep.subr.bf16.mxu0 %v4480
  %4544 = vmatpush1.bf16.msra.mxu0 %v4479
  %4545 = vmatprep.subr.bf16.mxu0 %v4482
  %4546 = vmatpush1.bf16.msra.mxu0 %v4481
  %4547 = vmatprep.subr.bf16.mxu0 %v4484
  %4548 = vmatpush1.bf16.msra.mxu0 %v4483
  %4549 = vmatprep.subr.bf16.mxu0 %v4486
  %4550 = vmatpush1.bf16.msra.mxu0 %v4485
  %4551 = vmatprep.subr.bf16.mxu0 %v4488
  %4552 = vmatpush1.bf16.msra.mxu0 %v4487
  %4553 = vmatprep.subr.bf16.mxu0 %v4490
  %4554 = vmatpush1.bf16.msra.mxu0 %v4489
  %4555 = vmatprep.subr.bf16.mxu0 %v4492
  %4556 = vmatpush1.bf16.msra.mxu0 %v4491
  %4557 = vmatprep.subr.bf16.mxu0 %v4494
  %4558 = vmatpush1.bf16.msra.mxu0 %v4493
  %4559 = vmatprep.subr.bf16.mxu0 %v4496
  %4560 = vmatpush1.bf16.msra.mxu0 %v4495
  %4561 = vmatprep.subr.bf16.mxu0 %v4498
  %4562 = vmatpush1.bf16.msra.mxu0 %v4497
  %4563 = vmatprep.mubr.bf16.mxu0 %v4326
  %4564 = vmatmul.mubr.bf16.gmra.mrb[0].mxu0 %v4325
  %v4565 = vpop.f32.mrb[0].mxu0
  %v4566 = vadd.f32 %v4364, %v4565
  %v4567 = vpop.f32.mrb[0].mxu0
  %v4568 = vadd.f32 %v4368, %v4567
  %v4569 = vpop.f32.mrb[0].mxu0
  %v4570 = vpop.f32.mrb[0].mxu0
  %4571 = vdwg.mxu0
  %s4572 = scalar_lea.vmem %s7, 4
  %v4573 = vld [vmem:[%s4572] sm:$0xf]
  %v4575 = vsel %vm4274, %v4573, 0
  %4577 = vmatprep.subr.bf16.mxu0 %v4270
  %4578 = vmatpush1.bf16.msra.mxu0 %v4269
  %4579 = vmatprep.subr.bf16.mxu0 %v4282
  %4580 = vmatpush1.bf16.msra.mxu0 %v4279
  %4581 = vmatprep.subr.bf16.mxu0 0
  %4582 = vmatpush1.bf16.msra.mxu0 0
  %4583 = vmatprep.subr.bf16.mxu0 0
  %4584 = vmatpush1.bf16.msra.mxu0 0
  %4585 = vmatprep.subr.bf16.mxu0 0
  %4586 = vmatpush1.bf16.msra.mxu0 0
  %4587 = vmatprep.subr.bf16.mxu0 0
  %4588 = vmatpush1.bf16.msra.mxu0 0
  %4589 = vmatprep.subr.bf16.mxu0 0
  %4590 = vmatpush1.bf16.msra.mxu0 0
  %4591 = vmatprep.subr.bf16.mxu0 0
  %4592 = vmatpush1.bf16.msra.mxu0 0
  %4593 = vmatprep.subr.bf16.mxu0 0
  %4594 = vmatpush1.bf16.msra.mxu0 0
  %4595 = vmatprep.subr.bf16.mxu0 0
  %4596 = vmatpush1.bf16.msra.mxu0 0
  %4597 = vmatprep.subr.bf16.mxu0 0
  %4598 = vmatpush1.bf16.msra.mxu0 0
  %4599 = vmatprep.subr.bf16.mxu0 0
  %4600 = vmatpush1.bf16.msra.mxu0 0
  %4601 = vmatprep.subr.bf16.mxu0 0
  %4602 = vmatpush1.bf16.msra.mxu0 0
  %4603 = vmatprep.subr.bf16.mxu0 0
  %4604 = vmatpush1.bf16.msra.mxu0 0
  %4605 = vmatprep.subr.bf16.mxu0 0
  %4606 = vmatpush1.bf16.msra.mxu0 0
  %4607 = vmatprep.subr.bf16.mxu0 0
  %4608 = vmatpush1.bf16.msra.mxu0 0
  %4609 = vmatprep.mubr.bf16.mxu0 0
  %4610 = vmatmul.mubr.bf16.gmra.mrb[0].mxu0 %v4575
  %v4611 = vpop.f32.mrb[0].mxu0
  %v4612 = vadd.f32 0.0, %v4611
  %v4613 = vpop.f32.mrb[0].mxu0
  %v4614 = vadd.f32 0.0, %v4613
  %v4615 = vpop.f32.mrb[0].mxu0
  %v4616 = vpop.f32.mrb[0].mxu0
  %4617 = vdwg.mxu0
  %v4618 = vpack.c.bf16 %v4612, %v4612
  %v4619 = vpack.c.bf16 %v4614, %v4614
  %s4620 = scalar_lea.vmem %s8, 256
  %v4621 = vld [vmem:[%s4620] sm:$0xff]
  %v4622 = vld [vmem:[%s4620 + $0x8] sm:$0xff]
  %v4623 = vld [vmem:[%s4620 + $0x10] sm:$0xff]
  %v4624 = vld [vmem:[%s4620 + $0x18] sm:$0xff]
  %v4625 = vld [vmem:[%s4620 + $0x20] sm:$0xff]
  %v4626 = vld [vmem:[%s4620 + $0x28] sm:$0xff]
  %v4627 = vld [vmem:[%s4620 + $0x30] sm:$0xff]
  %v4628 = vld [vmem:[%s4620 + $0x38] sm:$0xff]
  %v4629 = vld [vmem:[%s4620 + $0x40] sm:$0xff]
  %v4630 = vld [vmem:[%s4620 + $0x48] sm:$0xff]
  %v4631 = vld [vmem:[%s4620 + $0x50] sm:$0xff]
  %v4632 = vld [vmem:[%s4620 + $0x58] sm:$0xff]
  %v4633 = vld [vmem:[%s4620 + $0x60] sm:$0xff]
  %v4634 = vld [vmem:[%s4620 + $0x68] sm:$0xff]
  %v4635 = vld [vmem:[%s4620 + $0x70] sm:$0xff]
  %v4636 = vld [vmem:[%s4620 + $0x78] sm:$0xff]
  %v4637 = vld [vmem:[%s4620 + $0x80] sm:$0xff]
  %v4638 = vld [vmem:[%s4620 + $0x88] sm:$0xff]
  %v4639 = vld [vmem:[%s4620 + $0x90] sm:$0xff]
  %v4640 = vld [vmem:[%s4620 + $0x98] sm:$0xff]
  %v4641 = vld [vmem:[%s4620 + $0xa0] sm:$0xff]
  %v4642 = vld [vmem:[%s4620 + $0xa8] sm:$0xff]
  %v4643 = vld [vmem:[%s4620 + $0xb0] sm:$0xff]
  %v4644 = vld [vmem:[%s4620 + $0xb8] sm:$0xff]
  %v4645 = vld [vmem:[%s4620 + $0xc0] sm:$0xff]
  %v4646 = vld [vmem:[%s4620 + $0xc8] sm:$0xff]
  %v4647 = vld [vmem:[%s4620 + $0xd0] sm:$0xff]
  %v4648 = vld [vmem:[%s4620 + $0xd8] sm:$0xff]
  %v4649 = vld [vmem:[%s4620 + $0xe0] sm:$0xff]
  %v4650 = vld [vmem:[%s4620 + $0xe8] sm:$0xff]
  %v4651 = vld [vmem:[%s4620 + $0xf0] sm:$0xff]
  %v4652 = vld [vmem:[%s4620 + $0xf8] sm:$0xff]
  %v4685 = vunpack.c.l.b16 %v4621
  %v4686 = vunpack.c.h.b16 %v4621
  %v4687 = vunpack.c.l.b16 %v4622
  %v4688 = vunpack.c.h.b16 %v4622
  %v4689 = vunpack.c.l.b16 %v4623
  %v4690 = vunpack.c.h.b16 %v4623
  %v4691 = vunpack.c.l.b16 %v4624
  %v4692 = vunpack.c.h.b16 %v4624
  %v4693 = vunpack.c.l.b16 %v4625
  %v4694 = vunpack.c.h.b16 %v4625
  %v4695 = vunpack.c.l.b16 %v4626
  %v4696 = vunpack.c.h.b16 %v4626
  %v4697 = vunpack.c.l.b16 %v4627
  %v4698 = vunpack.c.h.b16 %v4627
  %v4699 = vunpack.c.l.b16 %v4628
  %v4700 = vunpack.c.h.b16 %v4628
  %v4701 = vunpack.c.l.b16 %v4629
  %v4702 = vunpack.c.h.b16 %v4629
  %v4703 = vunpack.c.l.b16 %v4630
  %v4704 = vunpack.c.h.b16 %v4630
  %v4705 = vunpack.c.l.b16 %v4631
  %v4706 = vunpack.c.h.b16 %v4631
  %v4707 = vunpack.c.l.b16 %v4632
  %v4708 = vunpack.c.h.b16 %v4632
  %v4709 = vunpack.c.l.b16 %v4633
  %v4710 = vunpack.c.h.b16 %v4633
  %v4711 = vunpack.c.l.b16 %v4634
  %v4712 = vunpack.c.h.b16 %v4634
  %v4713 = vunpack.c.l.b16 %v4635
  %v4714 = vunpack.c.h.b16 %v4635
  %v4715 = vunpack.c.l.b16 %v4636
  %v4716 = vunpack.c.h.b16 %v4636
  %v4717 = vunpack.c.l.b16 %v4637
  %v4718 = vunpack.c.h.b16 %v4637
  %v4719 = vunpack.c.l.b16 %v4638
  %v4720 = vunpack.c.h.b16 %v4638
  %v4721 = vunpack.c.l.b16 %v4639
  %v4722 = vunpack.c.h.b16 %v4639
  %v4723 = vunpack.c.l.b16 %v4640
  %v4724 = vunpack.c.h.b16 %v4640
  %v4725 = vunpack.c.l.b16 %v4641
  %v4726 = vunpack.c.h.b16 %v4641
  %v4727 = vunpack.c.l.b16 %v4642
  %v4728 = vunpack.c.h.b16 %v4642
  %v4729 = vunpack.c.l.b16 %v4643
  %v4730 = vunpack.c.h.b16 %v4643
  %v4731 = vunpack.c.l.b16 %v4644
  %v4732 = vunpack.c.h.b16 %v4644
  %v4733 = vunpack.c.l.b16 %v4645
  %v4734 = vunpack.c.h.b16 %v4645
  %v4735 = vunpack.c.l.b16 %v4646
  %v4736 = vunpack.c.h.b16 %v4646
  %v4737 = vunpack.c.l.b16 %v4647
  %v4738 = vunpack.c.h.b16 %v4647
  %v4739 = vunpack.c.l.b16 %v4648
  %v4740 = vunpack.c.h.b16 %v4648
  %v4741 = vunpack.c.l.b16 %v4649
  %v4742 = vunpack.c.h.b16 %v4649
  %v4743 = vunpack.c.l.b16 %v4650
  %v4744 = vunpack.c.h.b16 %v4650
  %v4745 = vunpack.c.l.b16 %v4651
  %v4746 = vunpack.c.h.b16 %v4651
  %v4747 = vunpack.c.l.b16 %v4652
  %v4748 = vunpack.c.h.b16 %v4652
  %v4749 = vpack.c.b16 %v4687, %v4685
  %v4750 = vpack.c.b16 %v4688, %v4686
  %v4751 = vpack.c.b16 %v4691, %v4689
  %v4752 = vpack.c.b16 %v4692, %v4690
  %v4753 = vpack.c.b16 %v4695, %v4693
  %v4754 = vpack.c.b16 %v4696, %v4694
  %v4755 = vpack.c.b16 %v4699, %v4697
  %v4756 = vpack.c.b16 %v4700, %v4698
  %v4757 = vpack.c.b16 %v4703, %v4701
  %v4758 = vpack.c.b16 %v4704, %v4702
  %v4759 = vpack.c.b16 %v4707, %v4705
  %v4760 = vpack.c.b16 %v4708, %v4706
  %v4761 = vpack.c.b16 %v4711, %v4709
  %v4762 = vpack.c.b16 %v4712, %v4710
  %v4763 = vpack.c.b16 %v4715, %v4713
  %v4764 = vpack.c.b16 %v4716, %v4714
  %v4765 = vpack.c.b16 %v4719, %v4717
  %v4766 = vpack.c.b16 %v4720, %v4718
  %v4767 = vpack.c.b16 %v4723, %v4721
  %v4768 = vpack.c.b16 %v4724, %v4722
  %v4769 = vpack.c.b16 %v4727, %v4725
  %v4770 = vpack.c.b16 %v4728, %v4726
  %v4771 = vpack.c.b16 %v4731, %v4729
  %v4772 = vpack.c.b16 %v4732, %v4730
  %v4773 = vpack.c.b16 %v4735, %v4733
  %v4774 = vpack.c.b16 %v4736, %v4734
  %v4775 = vpack.c.b16 %v4739, %v4737
  %v4776 = vpack.c.b16 %v4740, %v4738
  %v4777 = vpack.c.b16 %v4743, %v4741
  %v4778 = vpack.c.b16 %v4744, %v4742
  %v4779 = vpack.c.b16 %v4747, %v4745
  %v4780 = vpack.c.b16 %v4748, %v4746
  %4813 = vmatprep.subr.bf16.mxu0 %v4750
  %4814 = vmatpush1.bf16.msra.mxu0 %v4749
  %4815 = vmatprep.subr.bf16.mxu0 %v4752
  %4816 = vmatpush1.bf16.msra.mxu0 %v4751
  %4817 = vmatprep.subr.bf16.mxu0 %v4754
  %4818 = vmatpush1.bf16.msra.mxu0 %v4753
  %4819 = vmatprep.subr.bf16.mxu0 %v4756
  %4820 = vmatpush1.bf16.msra.mxu0 %v4755
  %4821 = vmatprep.subr.bf16.mxu0 %v4758
  %4822 = vmatpush1.bf16.msra.mxu0 %v4757
  %4823 = vmatprep.subr.bf16.mxu0 %v4760
  %4824 = vmatpush1.bf16.msra.mxu0 %v4759
  %4825 = vmatprep.subr.bf16.mxu0 %v4762
  %4826 = vmatpush1.bf16.msra.mxu0 %v4761
  %4827 = vmatprep.subr.bf16.mxu0 %v4764
  %4828 = vmatpush1.bf16.msra.mxu0 %v4763
  %4829 = vmatprep.subr.bf16.mxu0 %v4766
  %4830 = vmatpush1.bf16.msra.mxu0 %v4765
  %4831 = vmatprep.subr.bf16.mxu0 %v4768
  %4832 = vmatpush1.bf16.msra.mxu0 %v4767
  %4833 = vmatprep.subr.bf16.mxu0 %v4770
  %4834 = vmatpush1.bf16.msra.mxu0 %v4769
  %4835 = vmatprep.subr.bf16.mxu0 %v4772
  %4836 = vmatpush1.bf16.msra.mxu0 %v4771
  %4837 = vmatprep.subr.bf16.mxu0 %v4774
  %4838 = vmatpush1.bf16.msra.mxu0 %v4773
  %4839 = vmatprep.subr.bf16.mxu0 %v4776
  %4840 = vmatpush1.bf16.msra.mxu0 %v4775
  %4841 = vmatprep.subr.bf16.mxu0 %v4778
  %4842 = vmatpush1.bf16.msra.mxu0 %v4777
  %4843 = vmatprep.subr.bf16.mxu0 %v4780
  %4844 = vmatpush1.bf16.msra.mxu0 %v4779
  %4845 = vmatprep.mubr.bf16.mxu0 %v4619
  %4846 = vmatmul.mubr.bf16.gmra.mrb[0].mxu0 %v4618
  %v4847 = vpop.f32.mrb[0].mxu0
  %v4848 = vadd.f32 0.0, %v4847
  %v4849 = vpop.f32.mrb[0].mxu0
  %v4850 = vadd.f32 0.0, %v4849
  %v4851 = vpop.f32.mrb[0].mxu0
  %v4852 = vpop.f32.mrb[0].mxu0
  %4853 = vdwg.mxu0
  %v4854 = vadd.f32 %v4566, %v4848
  %v4855 = vadd.f32 %v4568, %v4850
  %s4856 = scalar_lea.vmem %s7, 8
  %v4857 = vld [vmem:[%s4856] sm:$0xf]
  %v4859 = vsel %vm4274, %v4857, 0
  %4861 = vmatprep.subr.bf16.mxu0 %v4270
  %4862 = vmatpush1.bf16.msra.mxu0 %v4269
  %4863 = vmatprep.subr.bf16.mxu0 %v4282
  %4864 = vmatpush1.bf16.msra.mxu0 %v4279
  %4865 = vmatprep.subr.bf16.mxu0 0
  %4866 = vmatpush1.bf16.msra.mxu0 0
  %4867 = vmatprep.subr.bf16.mxu0 0
  %4868 = vmatpush1.bf16.msra.mxu0 0
  %4869 = vmatprep.subr.bf16.mxu0 0
  %4870 = vmatpush1.bf16.msra.mxu0 0
  %4871 = vmatprep.subr.bf16.mxu0 0
  %4872 = vmatpush1.bf16.msra.mxu0 0
  %4873 = vmatprep.subr.bf16.mxu0 0
  %4874 = vmatpush1.bf16.msra.mxu0 0
  %4875 = vmatprep.subr.bf16.mxu0 0
  %4876 = vmatpush1.bf16.msra.mxu0 0
  %4877 = vmatprep.subr.bf16.mxu0 0
  %4878 = vmatpush1.bf16.msra.mxu0 0
  %4879 = vmatprep.subr.bf16.mxu0 0
  %4880 = vmatpush1.bf16.msra.mxu0 0
  %4881 = vmatprep.subr.bf16.mxu0 0
  %4882 = vmatpush1.bf16.msra.mxu0 0
  %4883 = vmatprep.subr.bf16.mxu0 0
  %4884 = vmatpush1.bf16.msra.mxu0 0
  %4885 = vmatprep.subr.bf16.mxu0 0
  %4886 = vmatpush1.bf16.msra.mxu0 0
  %4887 = vmatprep.subr.bf16.mxu0 0
  %4888 = vmatpush1.bf16.msra.mxu0 0
  %4889 = vmatprep.subr.bf16.mxu0 0
  %4890 = vmatpush1.bf16.msra.mxu0 0
  %4891 = vmatprep.subr.bf16.mxu0 0
  %4892 = vmatpush1.bf16.msra.mxu0 0
  %4893 = vmatprep.mubr.bf16.mxu0 0
  %4894 = vmatmul.mubr.bf16.gmra.mrb[0].mxu0 %v4859
  %v4895 = vpop.f32.mrb[0].mxu0
  %v4896 = vadd.f32 0.0, %v4895
  %v4897 = vpop.f32.mrb[0].mxu0
  %v4898 = vadd.f32 0.0, %v4897
  %v4899 = vpop.f32.mrb[0].mxu0
  %v4900 = vpop.f32.mrb[0].mxu0
  %4901 = vdwg.mxu0
  %v4902 = vpack.c.bf16 %v4896, %v4896
  %v4903 = vpack.c.bf16 %v4898, %v4898
  %s4904 = scalar_lea.vmem %s8, 512
  %v4905 = vld [vmem:[%s4904] sm:$0xff]
  %v4906 = vld [vmem:[%s4904 + $0x8] sm:$0xff]
  %v4907 = vld [vmem:[%s4904 + $0x10] sm:$0xff]
  %v4908 = vld [vmem:[%s4904 + $0x18] sm:$0xff]
  %v4909 = vld [vmem:[%s4904 + $0x20] sm:$0xff]
  %v4910 = vld [vmem:[%s4904 + $0x28] sm:$0xff]
  %v4911 = vld [vmem:[%s4904 + $0x30] sm:$0xff]
  %v4912 = vld [vmem:[%s4904 + $0x38] sm:$0xff]
  %v4913 = vld [vmem:[%s4904 + $0x40] sm:$0xff]
  %v4914 = vld [vmem:[%s4904 + $0x48] sm:$0xff]
  %v4915 = vld [vmem:[%s4904 + $0x50] sm:$0xff]
  %v4916 = vld [vmem:[%s4904 + $0x58] sm:$0xff]
  %v4917 = vld [vmem:[%s4904 + $0x60] sm:$0xff]
  %v4918 = vld [vmem:[%s4904 + $0x68] sm:$0xff]
  %v4919 = vld [vmem:[%s4904 + $0x70] sm:$0xff]
  %v4920 = vld [vmem:[%s4904 + $0x78] sm:$0xff]
  %v4921 = vld [vmem:[%s4904 + $0x80] sm:$0xff]
  %v4922 = vld [vmem:[%s4904 + $0x88] sm:$0xff]
  %v4923 = vld [vmem:[%s4904 + $0x90] sm:$0xff]
  %v4924 = vld [vmem:[%s4904 + $0x98] sm:$0xff]
  %v4925 = vld [vmem:[%s4904 + $0xa0] sm:$0xff]
  %v4926 = vld [vmem:[%s4904 + $0xa8] sm:$0xff]
  %v4927 = vld [vmem:[%s4904 + $0xb0] sm:$0xff]
  %v4928 = vld [vmem:[%s4904 + $0xb8] sm:$0xff]
  %v4929 = vld [vmem:[%s4904 + $0xc0] sm:$0xff]
  %v4930 = vld [vmem:[%s4904 + $0xc8] sm:$0xff]
  %v4931 = vld [vmem:[%s4904 + $0xd0] sm:$0xff]
  %v4932 = vld [vmem:[%s4904 + $0xd8] sm:$0xff]
  %v4933 = vld [vmem:[%s4904 + $0xe0] sm:$0xff]
  %v4934 = vld [vmem:[%s4904 + $0xe8] sm:$0xff]
  %v4935 = vld [vmem:[%s4904 + $0xf0] sm:$0xff]
  %v4936 = vld [vmem:[%s4904 + $0xf8] sm:$0xff]
  %v4969 = vunpack.c.l.b16 %v4905
  %v4970 = vunpack.c.h.b16 %v4905
  %v4971 = vunpack.c.l.b16 %v4906
  %v4972 = vunpack.c.h.b16 %v4906
  %v4973 = vunpack.c.l.b16 %v4907
  %v4974 = vunpack.c.h.b16 %v4907
  %v4975 = vunpack.c.l.b16 %v4908
  %v4976 = vunpack.c.h.b16 %v4908
  %v4977 = vunpack.c.l.b16 %v4909
  %v4978 = vunpack.c.h.b16 %v4909
  %v4979 = vunpack.c.l.b16 %v4910
  %v4980 = vunpack.c.h.b16 %v4910
  %v4981 = vunpack.c.l.b16 %v4911
  %v4982 = vunpack.c.h.b16 %v4911
  %v4983 = vunpack.c.l.b16 %v4912
  %v4984 = vunpack.c.h.b16 %v4912
  %v4985 = vunpack.c.l.b16 %v4913
  %v4986 = vunpack.c.h.b16 %v4913
  %v4987 = vunpack.c.l.b16 %v4914
  %v4988 = vunpack.c.h.b16 %v4914
  %v4989 = vunpack.c.l.b16 %v4915
  %v4990 = vunpack.c.h.b16 %v4915
  %v4991 = vunpack.c.l.b16 %v4916
  %v4992 = vunpack.c.h.b16 %v4916
  %v4993 = vunpack.c.l.b16 %v4917
  %v4994 = vunpack.c.h.b16 %v4917
  %v4995 = vunpack.c.l.b16 %v4918
  %v4996 = vunpack.c.h.b16 %v4918
  %v4997 = vunpack.c.l.b16 %v4919
  %v4998 = vunpack.c.h.b16 %v4919
  %v4999 = vunpack.c.l.b16 %v4920
  %v5000 = vunpack.c.h.b16 %v4920
  %v5001 = vunpack.c.l.b16 %v4921
  %v5002 = vunpack.c.h.b16 %v4921
  %v5003 = vunpack.c.l.b16 %v4922
  %v5004 = vunpack.c.h.b16 %v4922
  %v5005 = vunpack.c.l.b16 %v4923
  %v5006 = vunpack.c.h.b16 %v4923
  %v5007 = vunpack.c.l.b16 %v4924
  %v5008 = vunpack.c.h.b16 %v4924
  %v5009 = vunpack.c.l.b16 %v4925
  %v5010 = vunpack.c.h.b16 %v4925
  %v5011 = vunpack.c.l.b16 %v4926
  %v5012 = vunpack.c.h.b16 %v4926
  %v5013 = vunpack.c.l.b16 %v4927
  %v5014 = vunpack.c.h.b16 %v4927
  %v5015 = vunpack.c.l.b16 %v4928
  %v5016 = vunpack.c.h.b16 %v4928
  %v5017 = vunpack.c.l.b16 %v4929
  %v5018 = vunpack.c.h.b16 %v4929
  %v5019 = vunpack.c.l.b16 %v4930
  %v5020 = vunpack.c.h.b16 %v4930
  %v5021 = vunpack.c.l.b16 %v4931
  %v5022 = vunpack.c.h.b16 %v4931
  %v5023 = vunpack.c.l.b16 %v4932
  %v5024 = vunpack.c.h.b16 %v4932
  %v5025 = vunpack.c.l.b16 %v4933
  %v5026 = vunpack.c.h.b16 %v4933
  %v5027 = vunpack.c.l.b16 %v4934
  %v5028 = vunpack.c.h.b16 %v4934
  %v5029 = vunpack.c.l.b16 %v4935
  %v5030 = vunpack.c.h.b16 %v4935
  %v5031 = vunpack.c.l.b16 %v4936
  %v5032 = vunpack.c.h.b16 %v4936
  %v5033 = vpack.c.b16 %v4971, %v4969
  %v5034 = vpack.c.b16 %v4972, %v4970
  %v5035 = vpack.c.b16 %v4975, %v4973
  %v5036 = vpack.c.b16 %v4976, %v4974
  %v5037 = vpack.c.b16 %v4979, %v4977
  %v5038 = vpack.c.b16 %v4980, %v4978
  %v5039 = vpack.c.b16 %v4983, %v4981
  %v5040 = vpack.c.b16 %v4984, %v4982
  %v5041 = vpack.c.b16 %v4987, %v4985
  %v5042 = vpack.c.b16 %v4988, %v4986
  %v5043 = vpack.c.b16 %v4991, %v4989
  %v5044 = vpack.c.b16 %v4992, %v4990
  %v5045 = vpack.c.b16 %v4995, %v4993
  %v5046 = vpack.c.b16 %v4996, %v4994
  %v5047 = vpack.c.b16 %v4999, %v4997
  %v5048 = vpack.c.b16 %v5000, %v4998
  %v5049 = vpack.c.b16 %v5003, %v5001
  %v5050 = vpack.c.b16 %v5004, %v5002
  %v5051 = vpack.c.b16 %v5007, %v5005
  %v5052 = vpack.c.b16 %v5008, %v5006
  %v5053 = vpack.c.b16 %v5011, %v5009
  %v5054 = vpack.c.b16 %v5012, %v5010
  %v5055 = vpack.c.b16 %v5015, %v5013
  %v5056 = vpack.c.b16 %v5016, %v5014
  %v5057 = vpack.c.b16 %v5019, %v5017
  %v5058 = vpack.c.b16 %v5020, %v5018
  %v5059 = vpack.c.b16 %v5023, %v5021
  %v5060 = vpack.c.b16 %v5024, %v5022
  %v5061 = vpack.c.b16 %v5027, %v5025
  %v5062 = vpack.c.b16 %v5028, %v5026
  %v5063 = vpack.c.b16 %v5031, %v5029
  %v5064 = vpack.c.b16 %v5032, %v5030
  %5097 = vmatprep.subr.bf16.mxu0 %v5034
  %5098 = vmatpush1.bf16.msra.mxu0 %v5033
  %5099 = vmatprep.subr.bf16.mxu0 %v5036
  %5100 = vmatpush1.bf16.msra.mxu0 %v5035
  %5101 = vmatprep.subr.bf16.mxu0 %v5038
  %5102 = vmatpush1.bf16.msra.mxu0 %v5037
  %5103 = vmatprep.subr.bf16.mxu0 %v5040
  %5104 = vmatpush1.bf16.msra.mxu0 %v5039
  %5105 = vmatprep.subr.bf16.mxu0 %v5042
  %5106 = vmatpush1.bf16.msra.mxu0 %v5041
  %5107 = vmatprep.subr.bf16.mxu0 %v5044
  %5108 = vmatpush1.bf16.msra.mxu0 %v5043
  %5109 = vmatprep.subr.bf16.mxu0 %v5046
  %5110 = vmatpush1.bf16.msra.mxu0 %v5045
  %5111 = vmatprep.subr.bf16.mxu0 %v5048
  %5112 = vmatpush1.bf16.msra.mxu0 %v5047
  %5113 = vmatprep.subr.bf16.mxu0 %v5050
  %5114 = vmatpush1.bf16.msra.mxu0 %v5049
  %5115 = vmatprep.subr.bf16.mxu0 %v5052
  %5116 = vmatpush1.bf16.msra.mxu0 %v5051
  %5117 = vmatprep.subr.bf16.mxu0 %v5054
  %5118 = vmatpush1.bf16.msra.mxu0 %v5053
  %5119 = vmatprep.subr.bf16.mxu0 %v5056
  %5120 = vmatpush1.bf16.msra.mxu0 %v5055
  %5121 = vmatprep.subr.bf16.mxu0 %v5058
  %5122 = vmatpush1.bf16.msra.mxu0 %v5057
  %5123 = vmatprep.subr.bf16.mxu0 %v5060
  %5124 = vmatpush1.bf16.msra.mxu0 %v5059
  %5125 = vmatprep.subr.bf16.mxu0 %v5062
  %5126 = vmatpush1.bf16.msra.mxu0 %v5061
  %5127 = vmatprep.subr.bf16.mxu0 %v5064
  %5128 = vmatpush1.bf16.msra.mxu0 %v5063
  %5129 = vmatprep.mubr.bf16.mxu0 %v4903
  %5130 = vmatmul.mubr.bf16.gmra.mrb[0].mxu0 %v4902
  %v5131 = vpop.f32.mrb[0].mxu0
  %v5132 = vadd.f32 0.0, %v5131
  %v5133 = vpop.f32.mrb[0].mxu0
  %v5134 = vadd.f32 0.0, %v5133
  %v5135 = vpop.f32.mrb[0].mxu0
  %v5136 = vpop.f32.mrb[0].mxu0
  %5137 = vdwg.mxu0
  %v5138 = vadd.f32 %v4854, %v5132
  %v5139 = vadd.f32 %v4855, %v5134
  %s5140 = scalar_lea.vmem %s7, 12
  %v5141 = vld [vmem:[%s5140] sm:$0xf]
  %v5143 = vsel %vm4274, %v5141, 0
  %5145 = vmatprep.subr.bf16.mxu0 %v4270
  %5146 = vmatpush1.bf16.msra.mxu0 %v4269
  %5147 = vmatprep.subr.bf16.mxu0 %v4282
  %5148 = vmatpush1.bf16.msra.mxu0 %v4279
  %5149 = vmatprep.subr.bf16.mxu0 0
  %5150 = vmatpush1.bf16.msra.mxu0 0
  %5151 = vmatprep.subr.bf16.mxu0 0
  %5152 = vmatpush1.bf16.msra.mxu0 0
  %5153 = vmatprep.subr.bf16.mxu0 0
  %5154 = vmatpush1.bf16.msra.mxu0 0
  %5155 = vmatprep.subr.bf16.mxu0 0
  %5156 = vmatpush1.bf16.msra.mxu0 0
  %5157 = vmatprep.subr.bf16.mxu0 0
  %5158 = vmatpush1.bf16.msra.mxu0 0
  %5159 = vmatprep.subr.bf16.mxu0 0
  %5160 = vmatpush1.bf16.msra.mxu0 0
  %5161 = vmatprep.subr.bf16.mxu0 0
  %5162 = vmatpush1.bf16.msra.mxu0 0
  %5163 = vmatprep.subr.bf16.mxu0 0
  %5164 = vmatpush1.bf16.msra.mxu0 0
  %5165 = vmatprep.subr.bf16.mxu0 0
  %5166 = vmatpush1.bf16.msra.mxu0 0
  %5167 = vmatprep.subr.bf16.mxu0 0
  %5168 = vmatpush1.bf16.msra.mxu0 0
  %5169 = vmatprep.subr.bf16.mxu0 0
  %5170 = vmatpush1.bf16.msra.mxu0 0
  %5171 = vmatprep.subr.bf16.mxu0 0
  %5172 = vmatpush1.bf16.msra.mxu0 0
  %5173 = vmatprep.subr.bf16.mxu0 0
  %5174 = vmatpush1.bf16.msra.mxu0 0
  %5175 = vmatprep.subr.bf16.mxu0 0
  %5176 = vmatpush1.bf16.msra.mxu0 0
  %5177 = vmatprep.mubr.bf16.mxu0 0
  %5178 = vmatmul.mubr.bf16.gmra.mrb[0].mxu0 %v5143
  %v5179 = vpop.f32.mrb[0].mxu0
  %v5180 = vadd.f32 0.0, %v5179
  %v5181 = vpop.f32.mrb[0].mxu0
  %v5182 = vadd.f32 0.0, %v5181
  %v5183 = vpop.f32.mrb[0].mxu0
  %v5184 = vpop.f32.mrb[0].mxu0
  %5185 = vdwg.mxu0
  %v5186 = vpack.c.bf16 %v5180, %v5180
  %v5187 = vpack.c.bf16 %v5182, %v5182
  %s5188 = scalar_lea.vmem %s8, 768
  %v5189 = vld [vmem:[%s5188] sm:$0xff]
  %v5190 = vld [vmem:[%s5188 + $0x8] sm:$0xff]
  %v5191 = vld [vmem:[%s5188 + $0x10] sm:$0xff]
  %v5192 = vld [vmem:[%s5188 + $0x18] sm:$0xff]
  %v5193 = vld [vmem:[%s5188 + $0x20] sm:$0xff]
  %v5194 = vld [vmem:[%s5188 + $0x28] sm:$0xff]
  %v5195 = vld [vmem:[%s5188 + $0x30] sm:$0xff]
  %v5196 = vld [vmem:[%s5188 + $0x38] sm:$0xff]
  %v5197 = vld [vmem:[%s5188 + $0x40] sm:$0xff]
  %v5198 = vld [vmem:[%s5188 + $0x48] sm:$0xff]
  %v5199 = vld [vmem:[%s5188 + $0x50] sm:$0xff]
  %v5200 = vld [vmem:[%s5188 + $0x58] sm:$0xff]
  %v5201 = vld [vmem:[%s5188 + $0x60] sm:$0xff]
  %v5202 = vld [vmem:[%s5188 + $0x68] sm:$0xff]
  %v5203 = vld [vmem:[%s5188 + $0x70] sm:$0xff]
  %v5204 = vld [vmem:[%s5188 + $0x78] sm:$0xff]
  %v5205 = vld [vmem:[%s5188 + $0x80] sm:$0xff]
  %v5206 = vld [vmem:[%s5188 + $0x88] sm:$0xff]
  %v5207 = vld [vmem:[%s5188 + $0x90] sm:$0xff]
  %v5208 = vld [vmem:[%s5188 + $0x98] sm:$0xff]
  %v5209 = vld [vmem:[%s5188 + $0xa0] sm:$0xff]
  %v5210 = vld [vmem:[%s5188 + $0xa8] sm:$0xff]
  %v5211 = vld [vmem:[%s5188 + $0xb0] sm:$0xff]
  %v5212 = vld [vmem:[%s5188 + $0xb8] sm:$0xff]
  %v5213 = vld [vmem:[%s5188 + $0xc0] sm:$0xff]
  %v5214 = vld [vmem:[%s5188 + $0xc8] sm:$0xff]
  %v5215 = vld [vmem:[%s5188 + $0xd0] sm:$0xff]
  %v5216 = vld [vmem:[%s5188 + $0xd8] sm:$0xff]
  %v5217 = vld [vmem:[%s5188 + $0xe0] sm:$0xff]
  %v5218 = vld [vmem:[%s5188 + $0xe8] sm:$0xff]
  %v5219 = vld [vmem:[%s5188 + $0xf0] sm:$0xff]
  %v5220 = vld [vmem:[%s5188 + $0xf8] sm:$0xff]
  %v5253 = vunpack.c.l.b16 %v5189
  %v5254 = vunpack.c.h.b16 %v5189
  %v5255 = vunpack.c.l.b16 %v5190
  %v5256 = vunpack.c.h.b16 %v5190
  %v5257 = vunpack.c.l.b16 %v5191
  %v5258 = vunpack.c.h.b16 %v5191
  %v5259 = vunpack.c.l.b16 %v5192
  %v5260 = vunpack.c.h.b16 %v5192
  %v5261 = vunpack.c.l.b16 %v5193
  %v5262 = vunpack.c.h.b16 %v5193
  %v5263 = vunpack.c.l.b16 %v5194
  %v5264 = vunpack.c.h.b16 %v5194
  %v5265 = vunpack.c.l.b16 %v5195
  %v5266 = vunpack.c.h.b16 %v5195
  %v5267 = vunpack.c.l.b16 %v5196
  %v5268 = vunpack.c.h.b16 %v5196
  %v5269 = vunpack.c.l.b16 %v5197
  %v5270 = vunpack.c.h.b16 %v5197
  %v5271 = vunpack.c.l.b16 %v5198
  %v5272 = vunpack.c.h.b16 %v5198
  %v5273 = vunpack.c.l.b16 %v5199
  %v5274 = vunpack.c.h.b16 %v5199
  %v5275 = vunpack.c.l.b16 %v5200
  %v5276 = vunpack.c.h.b16 %v5200
  %v5277 = vunpack.c.l.b16 %v5201
  %v5278 = vunpack.c.h.b16 %v5201
  %v5279 = vunpack.c.l.b16 %v5202
  %v5280 = vunpack.c.h.b16 %v5202
  %v5281 = vunpack.c.l.b16 %v5203
  %v5282 = vunpack.c.h.b16 %v5203
  %v5283 = vunpack.c.l.b16 %v5204
  %v5284 = vunpack.c.h.b16 %v5204
  %v5285 = vunpack.c.l.b16 %v5205
  %v5286 = vunpack.c.h.b16 %v5205
  %v5287 = vunpack.c.l.b16 %v5206
  %v5288 = vunpack.c.h.b16 %v5206
  %v5289 = vunpack.c.l.b16 %v5207
  %v5290 = vunpack.c.h.b16 %v5207
  %v5291 = vunpack.c.l.b16 %v5208
  %v5292 = vunpack.c.h.b16 %v5208
  %v5293 = vunpack.c.l.b16 %v5209
  %v5294 = vunpack.c.h.b16 %v5209
  %v5295 = vunpack.c.l.b16 %v5210
  %v5296 = vunpack.c.h.b16 %v5210
  %v5297 = vunpack.c.l.b16 %v5211
  %v5298 = vunpack.c.h.b16 %v5211
  %v5299 = vunpack.c.l.b16 %v5212
  %v5300 = vunpack.c.h.b16 %v5212
  %v5301 = vunpack.c.l.b16 %v5213
  %v5302 = vunpack.c.h.b16 %v5213
  %v5303 = vunpack.c.l.b16 %v5214
  %v5304 = vunpack.c.h.b16 %v5214
  %v5305 = vunpack.c.l.b16 %v5215
  %v5306 = vunpack.c.h.b16 %v5215
  %v5307 = vunpack.c.l.b16 %v5216
  %v5308 = vunpack.c.h.b16 %v5216
  %v5309 = vunpack.c.l.b16 %v5217
  %v5310 = vunpack.c.h.b16 %v5217
  %v5311 = vunpack.c.l.b16 %v5218
  %v5312 = vunpack.c.h.b16 %v5218
  %v5313 = vunpack.c.l.b16 %v5219
  %v5314 = vunpack.c.h.b16 %v5219
  %v5315 = vunpack.c.l.b16 %v5220
  %v5316 = vunpack.c.h.b16 %v5220
  %v5317 = vpack.c.b16 %v5255, %v5253
  %v5318 = vpack.c.b16 %v5256, %v5254
  %v5319 = vpack.c.b16 %v5259, %v5257
  %v5320 = vpack.c.b16 %v5260, %v5258
  %v5321 = vpack.c.b16 %v5263, %v5261
  %v5322 = vpack.c.b16 %v5264, %v5262
  %v5323 = vpack.c.b16 %v5267, %v5265
  %v5324 = vpack.c.b16 %v5268, %v5266
  %v5325 = vpack.c.b16 %v5271, %v5269
  %v5326 = vpack.c.b16 %v5272, %v5270
  %v5327 = vpack.c.b16 %v5275, %v5273
  %v5328 = vpack.c.b16 %v5276, %v5274
  %v5329 = vpack.c.b16 %v5279, %v5277
  %v5330 = vpack.c.b16 %v5280, %v5278
  %v5331 = vpack.c.b16 %v5283, %v5281
  %v5332 = vpack.c.b16 %v5284, %v5282
  %v5333 = vpack.c.b16 %v5287, %v5285
  %v5334 = vpack.c.b16 %v5288, %v5286
  %v5335 = vpack.c.b16 %v5291, %v5289
  %v5336 = vpack.c.b16 %v5292, %v5290
  %v5337 = vpack.c.b16 %v5295, %v5293
  %v5338 = vpack.c.b16 %v5296, %v5294
  %v5339 = vpack.c.b16 %v5299, %v5297
  %v5340 = vpack.c.b16 %v5300, %v5298
  %v5341 = vpack.c.b16 %v5303, %v5301
  %v5342 = vpack.c.b16 %v5304, %v5302
  %v5343 = vpack.c.b16 %v5307, %v5305
  %v5344 = vpack.c.b16 %v5308, %v5306
  %v5345 = vpack.c.b16 %v5311, %v5309
  %v5346 = vpack.c.b16 %v5312, %v5310
  %v5347 = vpack.c.b16 %v5315, %v5313
  %v5348 = vpack.c.b16 %v5316, %v5314
  %5381 = vmatprep.subr.bf16.mxu0 %v5318
  %5382 = vmatpush1.bf16.msra.mxu0 %v5317
  %5383 = vmatprep.subr.bf16.mxu0 %v5320
  %5384 = vmatpush1.bf16.msra.mxu0 %v5319
  %5385 = vmatprep.subr.bf16.mxu0 %v5322
  %5386 = vmatpush1.bf16.msra.mxu0 %v5321
  %5387 = vmatprep.subr.bf16.mxu0 %v5324
  %5388 = vmatpush1.bf16.msra.mxu0 %v5323
  %5389 = vmatprep.subr.bf16.mxu0 %v5326
  %5390 = vmatpush1.bf16.msra.mxu0 %v5325
  %5391 = vmatprep.subr.bf16.mxu0 %v5328
  %5392 = vmatpush1.bf16.msra.mxu0 %v5327
  %5393 = vmatprep.subr.bf16.mxu0 %v5330
  %5394 = vmatpush1.bf16.msra.mxu0 %v5329
  %5395 = vmatprep.subr.bf16.mxu0 %v5332
  %5396 = vmatpush1.bf16.msra.mxu0 %v5331
  %5397 = vmatprep.subr.bf16.mxu0 %v5334
  %5398 = vmatpush1.bf16.msra.mxu0 %v5333
  %5399 = vmatprep.subr.bf16.mxu0 %v5336
  %5400 = vmatpush1.bf16.msra.mxu0 %v5335
  %5401 = vmatprep.subr.bf16.mxu0 %v5338
  %5402 = vmatpush1.bf16.msra.mxu0 %v5337
  %5403 = vmatprep.subr.bf16.mxu0 %v5340
  %5404 = vmatpush1.bf16.msra.mxu0 %v5339
  %5405 = vmatprep.subr.bf16.mxu0 %v5342
  %5406 = vmatpush1.bf16.msra.mxu0 %v5341
  %5407 = vmatprep.subr.bf16.mxu0 %v5344
  %5408 = vmatpush1.bf16.msra.mxu0 %v5343
  %5409 = vmatprep.subr.bf16.mxu0 %v5346
  %5410 = vmatpush1.bf16.msra.mxu0 %v5345
  %5411 = vmatprep.subr.bf16.mxu0 %v5348
  %5412 = vmatpush1.bf16.msra.mxu0 %v5347
  %5413 = vmatprep.mubr.bf16.mxu0 %v5187
  %5414 = vmatmul.mubr.bf16.gmra.mrb[0].mxu0 %v5186
  %v5415 = vpop.f32.mrb[0].mxu0
  %v5416 = vadd.f32 0.0, %v5415
  %v5417 = vpop.f32.mrb[0].mxu0
  %v5418 = vadd.f32 0.0, %v5417
  %v5419 = vpop.f32.mrb[0].mxu0
  %v5420 = vpop.f32.mrb[0].mxu0
  %5421 = vdwg.mxu0
  %v5422 = vadd.f32 %v5138, %v5416
  %v5423 = vadd.f32 %v5139, %v5418
  %v5424 = vmax.f32 %v5422, 0.0
  %v5425 = vmax.f32 %v5423, 0.0
  %v5426 = vpack.c.bf16 %v5424, %v5424
  %v5427 = vpack.c.bf16 %v5425, %v5425
  %v5428 = vld [vmem:[%s10] sm:$0xf]
  %vm5429 = vcmask 64512
  %v5431 = vsel %vm5429, %v5428, 0
  %v5434 = vsel %vm227, %v5426, 0
  %v5437 = vsel %vm227, %v5427, 0
  %5439 = vmatprep.subr.bf16.mxu0 %v5437
  %5440 = vmatpush1.bf16.msra.mxu0 %v5434
  %5441 = vmatprep.subr.bf16.mxu0 0
  %5442 = vmatpush1.bf16.msra.mxu0 0
  %5443 = vmatprep.subr.bf16.mxu0 0
  %5444 = vmatpush1.bf16.msra.mxu0 0
  %5445 = vmatprep.subr.bf16.mxu0 0
  %5446 = vmatpush1.bf16.msra.mxu0 0
  %5447 = vmatprep.subr.bf16.mxu0 0
  %5448 = vmatpush1.bf16.msra.mxu0 0
  %5449 = vmatprep.subr.bf16.mxu0 0
  %5450 = vmatpush1.bf16.msra.mxu0 0
  %5451 = vmatprep.subr.bf16.mxu0 0
  %5452 = vmatpush1.bf16.msra.mxu0 0
  %5453 = vmatprep.subr.bf16.mxu0 0
  %5454 = vmatpush1.bf16.msra.mxu0 0
  %5455 = vmatprep.subr.bf16.mxu0 0
  %5456 = vmatpush1.bf16.msra.mxu0 0
  %5457 = vmatprep.subr.bf16.mxu0 0
  %5458 = vmatpush1.bf16.msra.mxu0 0
  %5459 = vmatprep.subr.bf16.mxu0 0
  %5460 = vmatpush1.bf16.msra.mxu0 0
  %5461 = vmatprep.subr.bf16.mxu0 0
  %5462 = vmatpush1.bf16.msra.mxu0 0
  %5463 = vmatprep.subr.bf16.mxu0 0
  %5464 = vmatpush1.bf16.msra.mxu0 0
  %5465 = vmatprep.subr.bf16.mxu0 0
  %5466 = vmatpush1.bf16.msra.mxu0 0
  %5467 = vmatprep.subr.bf16.mxu0 0
  %5468 = vmatpush1.bf16.msra.mxu0 0
  %5469 = vmatprep.subr.bf16.mxu0 0
  %5470 = vmatpush1.bf16.msra.mxu0 0
  %5471 = vmatprep.mubr.bf16.mxu0 0
  %5472 = vmatmul.mubr.bf16.gmra.mrb[0].mxu0 %v5431
  %v5473 = vpop.f32.mrb[0].mxu0
  %v5474 = vadd.f32 0.0, %v5473
  %v5475 = vpop.f32.mrb[0].mxu0
  %v5476 = vadd.f32 0.0, %v5475
  %v5477 = vpop.f32.mrb[0].mxu0
  %v5478 = vpop.f32.mrb[0].mxu0
  %5479 = vdwg.mxu0
  %v5480 = vpack.c.bf16 %v5474, %v5474
  %v5481 = vpack.c.bf16 %v5476, %v5476
  %v5482 = vld [vmem:[%s11] sm:$0xff]
  %v5483 = vld [vmem:[%s11 + $0x8] sm:$0xff]
  %v5484 = vld [vmem:[%s11 + $0x10] sm:$0xff]
  %v5485 = vld [vmem:[%s11 + $0x18] sm:$0xff]
  %v5486 = vld [vmem:[%s11 + $0x20] sm:$0xff]
  %v5487 = vld [vmem:[%s11 + $0x28] sm:$0xff]
  %v5488 = vld [vmem:[%s11 + $0x30] sm:$0xff]
  %v5489 = vld [vmem:[%s11 + $0x38] sm:$0xff]
  %v5490 = vld [vmem:[%s11 + $0x40] sm:$0xff]
  %v5491 = vld [vmem:[%s11 + $0x48] sm:$0xff]
  %v5492 = vld [vmem:[%s11 + $0x50] sm:$0xff]
  %v5493 = vld [vmem:[%s11 + $0x58] sm:$0xff]
  %v5494 = vld [vmem:[%s11 + $0x60] sm:$0xff]
  %v5495 = vld [vmem:[%s11 + $0x68] sm:$0xff]
  %v5496 = vld [vmem:[%s11 + $0x70] sm:$0xff]
  %v5497 = vld [vmem:[%s11 + $0x78] sm:$0xff]
  %v5498 = vld [vmem:[%s11 + $0x80] sm:$0xff]
  %v5499 = vld [vmem:[%s11 + $0x88] sm:$0xff]
  %v5500 = vld [vmem:[%s11 + $0x90] sm:$0xff]
  %v5501 = vld [vmem:[%s11 + $0x98] sm:$0xff]
  %v5502 = vld [vmem:[%s11 + $0xa0] sm:$0xff]
  %v5503 = vld [vmem:[%s11 + $0xa8] sm:$0xff]
  %v5504 = vld [vmem:[%s11 + $0xb0] sm:$0xff]
  %v5505 = vld [vmem:[%s11 + $0xb8] sm:$0xff]
  %v5506 = vld [vmem:[%s11 + $0xc0] sm:$0xff]
  %v5507 = vld [vmem:[%s11 + $0xc8] sm:$0xff]
  %v5508 = vld [vmem:[%s11 + $0xd0] sm:$0xff]
  %v5509 = vld [vmem:[%s11 + $0xd8] sm:$0xff]
  %v5510 = vld [vmem:[%s11 + $0xe0] sm:$0xff]
  %v5511 = vld [vmem:[%s11 + $0xe8] sm:$0xff]
  %v5512 = vld [vmem:[%s11 + $0xf0] sm:$0xff]
  %v5513 = vld [vmem:[%s11 + $0xf8] sm:$0xff]
  %v5514 = vld [vmem:[%s12] sm:$0x3]
  %v5516 = vlaneseq
  %v5517 = vshrl.u32 %v5516, 7
  %v5518 = vsub.s32 0, %v5517
  %v5519 = vrot.slane %v5514, %v5518
  %v5520 = vlaneseq
  %v5521 = vshrl.u32 %v5520, 7
  %v5522 = vsub.s32 1, %v5521
  %v5523 = vrot.slane %v5514, %v5522
  %v5558 = vunpack.c.l.b16 %v5482
  %v5559 = vunpack.c.h.b16 %v5482
  %v5560 = vunpack.c.l.b16 %v5483
  %v5561 = vunpack.c.h.b16 %v5483
  %v5562 = vunpack.c.l.b16 %v5484
  %v5563 = vunpack.c.h.b16 %v5484
  %v5564 = vunpack.c.l.b16 %v5485
  %v5565 = vunpack.c.h.b16 %v5485
  %v5566 = vunpack.c.l.b16 %v5486
  %v5567 = vunpack.c.h.b16 %v5486
  %v5568 = vunpack.c.l.b16 %v5487
  %v5569 = vunpack.c.h.b16 %v5487
  %v5570 = vunpack.c.l.b16 %v5488
  %v5571 = vunpack.c.h.b16 %v5488
  %v5572 = vunpack.c.l.b16 %v5489
  %v5573 = vunpack.c.h.b16 %v5489
  %v5574 = vunpack.c.l.b16 %v5490
  %v5575 = vunpack.c.h.b16 %v5490
  %v5576 = vunpack.c.l.b16 %v5491
  %v5577 = vunpack.c.h.b16 %v5491
  %v5578 = vunpack.c.l.b16 %v5492
  %v5579 = vunpack.c.h.b16 %v5492
  %v5580 = vunpack.c.l.b16 %v5493
  %v5581 = vunpack.c.h.b16 %v5493
  %v5582 = vunpack.c.l.b16 %v5494
  %v5583 = vunpack.c.h.b16 %v5494
  %v5584 = vunpack.c.l.b16 %v5495
  %v5585 = vunpack.c.h.b16 %v5495
  %v5586 = vunpack.c.l.b16 %v5496
  %v5587 = vunpack.c.h.b16 %v5496
  %v5588 = vunpack.c.l.b16 %v5497
  %v5589 = vunpack.c.h.b16 %v5497
  %v5590 = vunpack.c.l.b16 %v5498
  %v5591 = vunpack.c.h.b16 %v5498
  %v5592 = vunpack.c.l.b16 %v5499
  %v5593 = vunpack.c.h.b16 %v5499
  %v5594 = vunpack.c.l.b16 %v5500
  %v5595 = vunpack.c.h.b16 %v5500
  %v5596 = vunpack.c.l.b16 %v5501
  %v5597 = vunpack.c.h.b16 %v5501
  %v5598 = vunpack.c.l.b16 %v5502
  %v5599 = vunpack.c.h.b16 %v5502
  %v5600 = vunpack.c.l.b16 %v5503
  %v5601 = vunpack.c.h.b16 %v5503
  %v5602 = vunpack.c.l.b16 %v5504
  %v5603 = vunpack.c.h.b16 %v5504
  %v5604 = vunpack.c.l.b16 %v5505
  %v5605 = vunpack.c.h.b16 %v5505
  %v5606 = vunpack.c.l.b16 %v5506
  %v5607 = vunpack.c.h.b16 %v5506
  %v5608 = vunpack.c.l.b16 %v5507
  %v5609 = vunpack.c.h.b16 %v5507
  %v5610 = vunpack.c.l.b16 %v5508
  %v5611 = vunpack.c.h.b16 %v5508
  %v5612 = vunpack.c.l.b16 %v5509
  %v5613 = vunpack.c.h.b16 %v5509
  %v5614 = vunpack.c.l.b16 %v5510
  %v5615 = vunpack.c.h.b16 %v5510
  %v5616 = vunpack.c.l.b16 %v5511
  %v5617 = vunpack.c.h.b16 %v5511
  %v5618 = vunpack.c.l.b16 %v5512
  %v5619 = vunpack.c.h.b16 %v5512
  %v5620 = vunpack.c.l.b16 %v5513
  %v5621 = vunpack.c.h.b16 %v5513
  %v5622 = vpack.c.b16 %v5560, %v5558
  %v5623 = vpack.c.b16 %v5561, %v5559
  %v5624 = vpack.c.b16 %v5564, %v5562
  %v5625 = vpack.c.b16 %v5565, %v5563
  %v5626 = vpack.c.b16 %v5568, %v5566
  %v5627 = vpack.c.b16 %v5569, %v5567
  %v5628 = vpack.c.b16 %v5572, %v5570
  %v5629 = vpack.c.b16 %v5573, %v5571
  %v5630 = vpack.c.b16 %v5576, %v5574
  %v5631 = vpack.c.b16 %v5577, %v5575
  %v5632 = vpack.c.b16 %v5580, %v5578
  %v5633 = vpack.c.b16 %v5581, %v5579
  %v5634 = vpack.c.b16 %v5584, %v5582
  %v5635 = vpack.c.b16 %v5585, %v5583
  %v5636 = vpack.c.b16 %v5588, %v5586
  %v5637 = vpack.c.b16 %v5589, %v5587
  %v5638 = vpack.c.b16 %v5592, %v5590
  %v5639 = vpack.c.b16 %v5593, %v5591
  %v5640 = vpack.c.b16 %v5596, %v5594
  %v5641 = vpack.c.b16 %v5597, %v5595
  %v5642 = vpack.c.b16 %v5600, %v5598
  %v5643 = vpack.c.b16 %v5601, %v5599
  %v5644 = vpack.c.b16 %v5604, %v5602
  %v5645 = vpack.c.b16 %v5605, %v5603
  %v5646 = vpack.c.b16 %v5608, %v5606
  %v5647 = vpack.c.b16 %v5609, %v5607
  %v5648 = vpack.c.b16 %v5612, %v5610
  %v5649 = vpack.c.b16 %v5613, %v5611
  %v5650 = vpack.c.b16 %v5616, %v5614
  %v5651 = vpack.c.b16 %v5617, %v5615
  %v5652 = vpack.c.b16 %v5620, %v5618
  %v5653 = vpack.c.b16 %v5621, %v5619
  %5686 = vmatprep.subr.bf16.mxu0 %v5623
  %5687 = vmatpush1.bf16.msra.mxu0 %v5622
  %5688 = vmatprep.subr.bf16.mxu0 %v5625
  %5689 = vmatpush1.bf16.msra.mxu0 %v5624
  %5690 = vmatprep.subr.bf16.mxu0 %v5627
  %5691 = vmatpush1.bf16.msra.mxu0 %v5626
  %5692 = vmatprep.subr.bf16.mxu0 %v5629
  %5693 = vmatpush1.bf16.msra.mxu0 %v5628
  %5694 = vmatprep.subr.bf16.mxu0 %v5631
  %5695 = vmatpush1.bf16.msra.mxu0 %v5630
  %5696 = vmatprep.subr.bf16.mxu0 %v5633
  %5697 = vmatpush1.bf16.msra.mxu0 %v5632
  %5698 = vmatprep.subr.bf16.mxu0 %v5635
  %5699 = vmatpush1.bf16.msra.mxu0 %v5634
  %5700 = vmatprep.subr.bf16.mxu0 %v5637
  %5701 = vmatpush1.bf16.msra.mxu0 %v5636
  %5702 = vmatprep.subr.bf16.mxu0 %v5639
  %5703 = vmatpush1.bf16.msra.mxu0 %v5638
  %5704 = vmatprep.subr.bf16.mxu0 %v5641
  %5705 = vmatpush1.bf16.msra.mxu0 %v5640
  %5706 = vmatprep.subr.bf16.mxu0 %v5643
  %5707 = vmatpush1.bf16.msra.mxu0 %v5642
  %5708 = vmatprep.subr.bf16.mxu0 %v5645
  %5709 = vmatpush1.bf16.msra.mxu0 %v5644
  %5710 = vmatprep.subr.bf16.mxu0 %v5647
  %5711 = vmatpush1.bf16.msra.mxu0 %v5646
  %5712 = vmatprep.subr.bf16.mxu0 %v5649
  %5713 = vmatpush1.bf16.msra.mxu0 %v5648
  %5714 = vmatprep.subr.bf16.mxu0 %v5651
  %5715 = vmatpush1.bf16.msra.mxu0 %v5650
  %5716 = vmatprep.subr.bf16.mxu0 %v5653
  %5717 = vmatpush1.bf16.msra.mxu0 %v5652
  %5718 = vmatprep.mubr.bf16.mxu0 %v5481
  %5719 = vmatmul.mubr.bf16.gmra.mrb[0].mxu0 %v5480
  %v5720 = vpop.f32.mrb[0].mxu0
  %v5721 = vadd.f32 %v5519, %v5720
  %v5722 = vpop.f32.mrb[0].mxu0
  %v5723 = vadd.f32 %v5523, %v5722
  %v5724 = vpop.f32.mrb[0].mxu0
  %v5725 = vpop.f32.mrb[0].mxu0
  %5726 = vdwg.mxu0
  %s5727 = scalar_lea.vmem %s10, 4
  %v5728 = vld [vmem:[%s5727] sm:$0xf]
  %v5730 = vsel %vm5429, %v5728, 0
  %5732 = vmatprep.subr.bf16.mxu0 %v5437
  %5733 = vmatpush1.bf16.msra.mxu0 %v5434
  %5734 = vmatprep.subr.bf16.mxu0 0
  %5735 = vmatpush1.bf16.msra.mxu0 0
  %5736 = vmatprep.subr.bf16.mxu0 0
  %5737 = vmatpush1.bf16.msra.mxu0 0
  %5738 = vmatprep.subr.bf16.mxu0 0
  %5739 = vmatpush1.bf16.msra.mxu0 0
  %5740 = vmatprep.subr.bf16.mxu0 0
  %5741 = vmatpush1.bf16.msra.mxu0 0
  %5742 = vmatprep.subr.bf16.mxu0 0
  %5743 = vmatpush1.bf16.msra.mxu0 0
  %5744 = vmatprep.subr.bf16.mxu0 0
  %5745 = vmatpush1.bf16.msra.mxu0 0
  %5746 = vmatprep.subr.bf16.mxu0 0
  %5747 = vmatpush1.bf16.msra.mxu0 0
  %5748 = vmatprep.subr.bf16.mxu0 0
  %5749 = vmatpush1.bf16.msra.mxu0 0
  %5750 = vmatprep.subr.bf16.mxu0 0
  %5751 = vmatpush1.bf16.msra.mxu0 0
  %5752 = vmatprep.subr.bf16.mxu0 0
  %5753 = vmatpush1.bf16.msra.mxu0 0
  %5754 = vmatprep.subr.bf16.mxu0 0
  %5755 = vmatpush1.bf16.msra.mxu0 0
  %5756 = vmatprep.subr.bf16.mxu0 0
  %5757 = vmatpush1.bf16.msra.mxu0 0
  %5758 = vmatprep.subr.bf16.mxu0 0
  %5759 = vmatpush1.bf16.msra.mxu0 0
  %5760 = vmatprep.subr.bf16.mxu0 0
  %5761 = vmatpush1.bf16.msra.mxu0 0
  %5762 = vmatprep.subr.bf16.mxu0 0
  %5763 = vmatpush1.bf16.msra.mxu0 0
  %5764 = vmatprep.mubr.bf16.mxu0 0
  %5765 = vmatmul.mubr.bf16.gmra.mrb[0].mxu0 %v5730
  %v5766 = vpop.f32.mrb[0].mxu0
  %v5767 = vadd.f32 0.0, %v5766
  %v5768 = vpop.f32.mrb[0].mxu0
  %v5769 = vadd.f32 0.0, %v5768
  %v5770 = vpop.f32.mrb[0].mxu0
  %v5771 = vpop.f32.mrb[0].mxu0
  %5772 = vdwg.mxu0
  %v5773 = vpack.c.bf16 %v5767, %v5767
  %v5774 = vpack.c.bf16 %v5769, %v5769
  %s5775 = scalar_lea.vmem %s11, 256
  %v5776 = vld [vmem:[%s5775] sm:$0xff]
  %v5777 = vld [vmem:[%s5775 + $0x8] sm:$0xff]
  %v5778 = vld [vmem:[%s5775 + $0x10] sm:$0xff]
  %v5779 = vld [vmem:[%s5775 + $0x18] sm:$0xff]
  %v5780 = vld [vmem:[%s5775 + $0x20] sm:$0xff]
  %v5781 = vld [vmem:[%s5775 + $0x28] sm:$0xff]
  %v5782 = vld [vmem:[%s5775 + $0x30] sm:$0xff]
  %v5783 = vld [vmem:[%s5775 + $0x38] sm:$0xff]
  %v5784 = vld [vmem:[%s5775 + $0x40] sm:$0xff]
  %v5785 = vld [vmem:[%s5775 + $0x48] sm:$0xff]
  %v5786 = vld [vmem:[%s5775 + $0x50] sm:$0xff]
  %v5787 = vld [vmem:[%s5775 + $0x58] sm:$0xff]
  %v5788 = vld [vmem:[%s5775 + $0x60] sm:$0xff]
  %v5789 = vld [vmem:[%s5775 + $0x68] sm:$0xff]
  %v5790 = vld [vmem:[%s5775 + $0x70] sm:$0xff]
  %v5791 = vld [vmem:[%s5775 + $0x78] sm:$0xff]
  %v5792 = vld [vmem:[%s5775 + $0x80] sm:$0xff]
  %v5793 = vld [vmem:[%s5775 + $0x88] sm:$0xff]
  %v5794 = vld [vmem:[%s5775 + $0x90] sm:$0xff]
  %v5795 = vld [vmem:[%s5775 + $0x98] sm:$0xff]
  %v5796 = vld [vmem:[%s5775 + $0xa0] sm:$0xff]
  %v5797 = vld [vmem:[%s5775 + $0xa8] sm:$0xff]
  %v5798 = vld [vmem:[%s5775 + $0xb0] sm:$0xff]
  %v5799 = vld [vmem:[%s5775 + $0xb8] sm:$0xff]
  %v5800 = vld [vmem:[%s5775 + $0xc0] sm:$0xff]
  %v5801 = vld [vmem:[%s5775 + $0xc8] sm:$0xff]
  %v5802 = vld [vmem:[%s5775 + $0xd0] sm:$0xff]
  %v5803 = vld [vmem:[%s5775 + $0xd8] sm:$0xff]
  %v5804 = vld [vmem:[%s5775 + $0xe0] sm:$0xff]
  %v5805 = vld [vmem:[%s5775 + $0xe8] sm:$0xff]
  %v5806 = vld [vmem:[%s5775 + $0xf0] sm:$0xff]
  %v5807 = vld [vmem:[%s5775 + $0xf8] sm:$0xff]
  %v5840 = vunpack.c.l.b16 %v5776
  %v5841 = vunpack.c.h.b16 %v5776
  %v5842 = vunpack.c.l.b16 %v5777
  %v5843 = vunpack.c.h.b16 %v5777
  %v5844 = vunpack.c.l.b16 %v5778
  %v5845 = vunpack.c.h.b16 %v5778
  %v5846 = vunpack.c.l.b16 %v5779
  %v5847 = vunpack.c.h.b16 %v5779
  %v5848 = vunpack.c.l.b16 %v5780
  %v5849 = vunpack.c.h.b16 %v5780
  %v5850 = vunpack.c.l.b16 %v5781
  %v5851 = vunpack.c.h.b16 %v5781
  %v5852 = vunpack.c.l.b16 %v5782
  %v5853 = vunpack.c.h.b16 %v5782
  %v5854 = vunpack.c.l.b16 %v5783
  %v5855 = vunpack.c.h.b16 %v5783
  %v5856 = vunpack.c.l.b16 %v5784
  %v5857 = vunpack.c.h.b16 %v5784
  %v5858 = vunpack.c.l.b16 %v5785
  %v5859 = vunpack.c.h.b16 %v5785
  %v5860 = vunpack.c.l.b16 %v5786
  %v5861 = vunpack.c.h.b16 %v5786
  %v5862 = vunpack.c.l.b16 %v5787
  %v5863 = vunpack.c.h.b16 %v5787
  %v5864 = vunpack.c.l.b16 %v5788
  %v5865 = vunpack.c.h.b16 %v5788
  %v5866 = vunpack.c.l.b16 %v5789
  %v5867 = vunpack.c.h.b16 %v5789
  %v5868 = vunpack.c.l.b16 %v5790
  %v5869 = vunpack.c.h.b16 %v5790
  %v5870 = vunpack.c.l.b16 %v5791
  %v5871 = vunpack.c.h.b16 %v5791
  %v5872 = vunpack.c.l.b16 %v5792
  %v5873 = vunpack.c.h.b16 %v5792
  %v5874 = vunpack.c.l.b16 %v5793
  %v5875 = vunpack.c.h.b16 %v5793
  %v5876 = vunpack.c.l.b16 %v5794
  %v5877 = vunpack.c.h.b16 %v5794
  %v5878 = vunpack.c.l.b16 %v5795
  %v5879 = vunpack.c.h.b16 %v5795
  %v5880 = vunpack.c.l.b16 %v5796
  %v5881 = vunpack.c.h.b16 %v5796
  %v5882 = vunpack.c.l.b16 %v5797
  %v5883 = vunpack.c.h.b16 %v5797
  %v5884 = vunpack.c.l.b16 %v5798
  %v5885 = vunpack.c.h.b16 %v5798
  %v5886 = vunpack.c.l.b16 %v5799
  %v5887 = vunpack.c.h.b16 %v5799
  %v5888 = vunpack.c.l.b16 %v5800
  %v5889 = vunpack.c.h.b16 %v5800
  %v5890 = vunpack.c.l.b16 %v5801
  %v5891 = vunpack.c.h.b16 %v5801
  %v5892 = vunpack.c.l.b16 %v5802
  %v5893 = vunpack.c.h.b16 %v5802
  %v5894 = vunpack.c.l.b16 %v5803
  %v5895 = vunpack.c.h.b16 %v5803
  %v5896 = vunpack.c.l.b16 %v5804
  %v5897 = vunpack.c.h.b16 %v5804
  %v5898 = vunpack.c.l.b16 %v5805
  %v5899 = vunpack.c.h.b16 %v5805
  %v5900 = vunpack.c.l.b16 %v5806
  %v5901 = vunpack.c.h.b16 %v5806
  %v5902 = vunpack.c.l.b16 %v5807
  %v5903 = vunpack.c.h.b16 %v5807
  %v5904 = vpack.c.b16 %v5842, %v5840
  %v5905 = vpack.c.b16 %v5843, %v5841
  %v5906 = vpack.c.b16 %v5846, %v5844
  %v5907 = vpack.c.b16 %v5847, %v5845
  %v5908 = vpack.c.b16 %v5850, %v5848
  %v5909 = vpack.c.b16 %v5851, %v5849
  %v5910 = vpack.c.b16 %v5854, %v5852
  %v5911 = vpack.c.b16 %v5855, %v5853
  %v5912 = vpack.c.b16 %v5858, %v5856
  %v5913 = vpack.c.b16 %v5859, %v5857
  %v5914 = vpack.c.b16 %v5862, %v5860
  %v5915 = vpack.c.b16 %v5863, %v5861
  %v5916 = vpack.c.b16 %v5866, %v5864
  %v5917 = vpack.c.b16 %v5867, %v5865
  %v5918 = vpack.c.b16 %v5870, %v5868
  %v5919 = vpack.c.b16 %v5871, %v5869
  %v5920 = vpack.c.b16 %v5874, %v5872
  %v5921 = vpack.c.b16 %v5875, %v5873
  %v5922 = vpack.c.b16 %v5878, %v5876
  %v5923 = vpack.c.b16 %v5879, %v5877
  %v5924 = vpack.c.b16 %v5882, %v5880
  %v5925 = vpack.c.b16 %v5883, %v5881
  %v5926 = vpack.c.b16 %v5886, %v5884
  %v5927 = vpack.c.b16 %v5887, %v5885
  %v5928 = vpack.c.b16 %v5890, %v5888
  %v5929 = vpack.c.b16 %v5891, %v5889
  %v5930 = vpack.c.b16 %v5894, %v5892
  %v5931 = vpack.c.b16 %v5895, %v5893
  %v5932 = vpack.c.b16 %v5898, %v5896
  %v5933 = vpack.c.b16 %v5899, %v5897
  %v5934 = vpack.c.b16 %v5902, %v5900
  %v5935 = vpack.c.b16 %v5903, %v5901
  %5968 = vmatprep.subr.bf16.mxu0 %v5905
  %5969 = vmatpush1.bf16.msra.mxu0 %v5904
  %5970 = vmatprep.subr.bf16.mxu0 %v5907
  %5971 = vmatpush1.bf16.msra.mxu0 %v5906
  %5972 = vmatprep.subr.bf16.mxu0 %v5909
  %5973 = vmatpush1.bf16.msra.mxu0 %v5908
  %5974 = vmatprep.subr.bf16.mxu0 %v5911
  %5975 = vmatpush1.bf16.msra.mxu0 %v5910
  %5976 = vmatprep.subr.bf16.mxu0 %v5913
  %5977 = vmatpush1.bf16.msra.mxu0 %v5912
  %5978 = vmatprep.subr.bf16.mxu0 %v5915
  %5979 = vmatpush1.bf16.msra.mxu0 %v5914
  %5980 = vmatprep.subr.bf16.mxu0 %v5917
  %5981 = vmatpush1.bf16.msra.mxu0 %v5916
  %5982 = vmatprep.subr.bf16.mxu0 %v5919
  %5983 = vmatpush1.bf16.msra.mxu0 %v5918
  %5984 = vmatprep.subr.bf16.mxu0 %v5921
  %5985 = vmatpush1.bf16.msra.mxu0 %v5920
  %5986 = vmatprep.subr.bf16.mxu0 %v5923
  %5987 = vmatpush1.bf16.msra.mxu0 %v5922
  %5988 = vmatprep.subr.bf16.mxu0 %v5925
  %5989 = vmatpush1.bf16.msra.mxu0 %v5924
  %5990 = vmatprep.subr.bf16.mxu0 %v5927
  %5991 = vmatpush1.bf16.msra.mxu0 %v5926
  %5992 = vmatprep.subr.bf16.mxu0 %v5929
  %5993 = vmatpush1.bf16.msra.mxu0 %v5928
  %5994 = vmatprep.subr.bf16.mxu0 %v5931
  %5995 = vmatpush1.bf16.msra.mxu0 %v5930
  %5996 = vmatprep.subr.bf16.mxu0 %v5933
  %5997 = vmatpush1.bf16.msra.mxu0 %v5932
  %5998 = vmatprep.subr.bf16.mxu0 %v5935
  %5999 = vmatpush1.bf16.msra.mxu0 %v5934
  %6000 = vmatprep.mubr.bf16.mxu0 %v5774
  %6001 = vmatmul.mubr.bf16.gmra.mrb[0].mxu0 %v5773
  %v6002 = vpop.f32.mrb[0].mxu0
  %v6003 = vadd.f32 0.0, %v6002
  %v6004 = vpop.f32.mrb[0].mxu0
  %v6005 = vadd.f32 0.0, %v6004
  %v6006 = vpop.f32.mrb[0].mxu0
  %v6007 = vpop.f32.mrb[0].mxu0
  %6008 = vdwg.mxu0
  %v6009 = vadd.f32 %v5721, %v6003
  %v6010 = vadd.f32 %v5723, %v6005
  %s6011 = scalar_lea.vmem %s10, 8
  %v6012 = vld [vmem:[%s6011] sm:$0xf]
  %v6014 = vsel %vm5429, %v6012, 0
  %6016 = vmatprep.subr.bf16.mxu0 %v5437
  %6017 = vmatpush1.bf16.msra.mxu0 %v5434
  %6018 = vmatprep.subr.bf16.mxu0 0
  %6019 = vmatpush1.bf16.msra.mxu0 0
  %6020 = vmatprep.subr.bf16.mxu0 0
  %6021 = vmatpush1.bf16.msra.mxu0 0
  %6022 = vmatprep.subr.bf16.mxu0 0
  %6023 = vmatpush1.bf16.msra.mxu0 0
  %6024 = vmatprep.subr.bf16.mxu0 0
  %6025 = vmatpush1.bf16.msra.mxu0 0
  %6026 = vmatprep.subr.bf16.mxu0 0
  %6027 = vmatpush1.bf16.msra.mxu0 0
  %6028 = vmatprep.subr.bf16.mxu0 0
  %6029 = vmatpush1.bf16.msra.mxu0 0
  %6030 = vmatprep.subr.bf16.mxu0 0
  %6031 = vmatpush1.bf16.msra.mxu0 0
  %6032 = vmatprep.subr.bf16.mxu0 0
  %6033 = vmatpush1.bf16.msra.mxu0 0
  %6034 = vmatprep.subr.bf16.mxu0 0
  %6035 = vmatpush1.bf16.msra.mxu0 0
  %6036 = vmatprep.subr.bf16.mxu0 0
  %6037 = vmatpush1.bf16.msra.mxu0 0
  %6038 = vmatprep.subr.bf16.mxu0 0
  %6039 = vmatpush1.bf16.msra.mxu0 0
  %6040 = vmatprep.subr.bf16.mxu0 0
  %6041 = vmatpush1.bf16.msra.mxu0 0
  %6042 = vmatprep.subr.bf16.mxu0 0
  %6043 = vmatpush1.bf16.msra.mxu0 0
  %6044 = vmatprep.subr.bf16.mxu0 0
  %6045 = vmatpush1.bf16.msra.mxu0 0
  %6046 = vmatprep.subr.bf16.mxu0 0
  %6047 = vmatpush1.bf16.msra.mxu0 0
  %6048 = vmatprep.mubr.bf16.mxu0 0
  %6049 = vmatmul.mubr.bf16.gmra.mrb[0].mxu0 %v6014
  %v6050 = vpop.f32.mrb[0].mxu0
  %v6051 = vadd.f32 0.0, %v6050
  %v6052 = vpop.f32.mrb[0].mxu0
  %v6053 = vadd.f32 0.0, %v6052
  %v6054 = vpop.f32.mrb[0].mxu0
  %v6055 = vpop.f32.mrb[0].mxu0
  %6056 = vdwg.mxu0
  %v6057 = vpack.c.bf16 %v6051, %v6051
  %v6058 = vpack.c.bf16 %v6053, %v6053
  %s6059 = scalar_lea.vmem %s11, 512
  %v6060 = vld [vmem:[%s6059] sm:$0xff]
  %v6061 = vld [vmem:[%s6059 + $0x8] sm:$0xff]
  %v6062 = vld [vmem:[%s6059 + $0x10] sm:$0xff]
  %v6063 = vld [vmem:[%s6059 + $0x18] sm:$0xff]
  %v6064 = vld [vmem:[%s6059 + $0x20] sm:$0xff]
  %v6065 = vld [vmem:[%s6059 + $0x28] sm:$0xff]
  %v6066 = vld [vmem:[%s6059 + $0x30] sm:$0xff]
  %v6067 = vld [vmem:[%s6059 + $0x38] sm:$0xff]
  %v6068 = vld [vmem:[%s6059 + $0x40] sm:$0xff]
  %v6069 = vld [vmem:[%s6059 + $0x48] sm:$0xff]
  %v6070 = vld [vmem:[%s6059 + $0x50] sm:$0xff]
  %v6071 = vld [vmem:[%s6059 + $0x58] sm:$0xff]
  %v6072 = vld [vmem:[%s6059 + $0x60] sm:$0xff]
  %v6073 = vld [vmem:[%s6059 + $0x68] sm:$0xff]
  %v6074 = vld [vmem:[%s6059 + $0x70] sm:$0xff]
  %v6075 = vld [vmem:[%s6059 + $0x78] sm:$0xff]
  %v6076 = vld [vmem:[%s6059 + $0x80] sm:$0xff]
  %v6077 = vld [vmem:[%s6059 + $0x88] sm:$0xff]
  %v6078 = vld [vmem:[%s6059 + $0x90] sm:$0xff]
  %v6079 = vld [vmem:[%s6059 + $0x98] sm:$0xff]
  %v6080 = vld [vmem:[%s6059 + $0xa0] sm:$0xff]
  %v6081 = vld [vmem:[%s6059 + $0xa8] sm:$0xff]
  %v6082 = vld [vmem:[%s6059 + $0xb0] sm:$0xff]
  %v6083 = vld [vmem:[%s6059 + $0xb8] sm:$0xff]
  %v6084 = vld [vmem:[%s6059 + $0xc0] sm:$0xff]
  %v6085 = vld [vmem:[%s6059 + $0xc8] sm:$0xff]
  %v6086 = vld [vmem:[%s6059 + $0xd0] sm:$0xff]
  %v6087 = vld [vmem:[%s6059 + $0xd8] sm:$0xff]
  %v6088 = vld [vmem:[%s6059 + $0xe0] sm:$0xff]
  %v6089 = vld [vmem:[%s6059 + $0xe8] sm:$0xff]
  %v6090 = vld [vmem:[%s6059 + $0xf0] sm:$0xff]
  %v6091 = vld [vmem:[%s6059 + $0xf8] sm:$0xff]
  %v6124 = vunpack.c.l.b16 %v6060
  %v6125 = vunpack.c.h.b16 %v6060
  %v6126 = vunpack.c.l.b16 %v6061
  %v6127 = vunpack.c.h.b16 %v6061
  %v6128 = vunpack.c.l.b16 %v6062
  %v6129 = vunpack.c.h.b16 %v6062
  %v6130 = vunpack.c.l.b16 %v6063
  %v6131 = vunpack.c.h.b16 %v6063
  %v6132 = vunpack.c.l.b16 %v6064
  %v6133 = vunpack.c.h.b16 %v6064
  %v6134 = vunpack.c.l.b16 %v6065
  %v6135 = vunpack.c.h.b16 %v6065
  %v6136 = vunpack.c.l.b16 %v6066
  %v6137 = vunpack.c.h.b16 %v6066
  %v6138 = vunpack.c.l.b16 %v6067
  %v6139 = vunpack.c.h.b16 %v6067
  %v6140 = vunpack.c.l.b16 %v6068
  %v6141 = vunpack.c.h.b16 %v6068
  %v6142 = vunpack.c.l.b16 %v6069
  %v6143 = vunpack.c.h.b16 %v6069
  %v6144 = vunpack.c.l.b16 %v6070
  %v6145 = vunpack.c.h.b16 %v6070
  %v6146 = vunpack.c.l.b16 %v6071
  %v6147 = vunpack.c.h.b16 %v6071
  %v6148 = vunpack.c.l.b16 %v6072
  %v6149 = vunpack.c.h.b16 %v6072
  %v6150 = vunpack.c.l.b16 %v6073
  %v6151 = vunpack.c.h.b16 %v6073
  %v6152 = vunpack.c.l.b16 %v6074
  %v6153 = vunpack.c.h.b16 %v6074
  %v6154 = vunpack.c.l.b16 %v6075
  %v6155 = vunpack.c.h.b16 %v6075
  %v6156 = vunpack.c.l.b16 %v6076
  %v6157 = vunpack.c.h.b16 %v6076
  %v6158 = vunpack.c.l.b16 %v6077
  %v6159 = vunpack.c.h.b16 %v6077
  %v6160 = vunpack.c.l.b16 %v6078
  %v6161 = vunpack.c.h.b16 %v6078
  %v6162 = vunpack.c.l.b16 %v6079
  %v6163 = vunpack.c.h.b16 %v6079
  %v6164 = vunpack.c.l.b16 %v6080
  %v6165 = vunpack.c.h.b16 %v6080
  %v6166 = vunpack.c.l.b16 %v6081
  %v6167 = vunpack.c.h.b16 %v6081
  %v6168 = vunpack.c.l.b16 %v6082
  %v6169 = vunpack.c.h.b16 %v6082
  %v6170 = vunpack.c.l.b16 %v6083
  %v6171 = vunpack.c.h.b16 %v6083
  %v6172 = vunpack.c.l.b16 %v6084
  %v6173 = vunpack.c.h.b16 %v6084
  %v6174 = vunpack.c.l.b16 %v6085
  %v6175 = vunpack.c.h.b16 %v6085
  %v6176 = vunpack.c.l.b16 %v6086
  %v6177 = vunpack.c.h.b16 %v6086
  %v6178 = vunpack.c.l.b16 %v6087
  %v6179 = vunpack.c.h.b16 %v6087
  %v6180 = vunpack.c.l.b16 %v6088
  %v6181 = vunpack.c.h.b16 %v6088
  %v6182 = vunpack.c.l.b16 %v6089
  %v6183 = vunpack.c.h.b16 %v6089
  %v6184 = vunpack.c.l.b16 %v6090
  %v6185 = vunpack.c.h.b16 %v6090
  %v6186 = vunpack.c.l.b16 %v6091
  %v6187 = vunpack.c.h.b16 %v6091
  %v6188 = vpack.c.b16 %v6126, %v6124
  %v6189 = vpack.c.b16 %v6127, %v6125
  %v6190 = vpack.c.b16 %v6130, %v6128
  %v6191 = vpack.c.b16 %v6131, %v6129
  %v6192 = vpack.c.b16 %v6134, %v6132
  %v6193 = vpack.c.b16 %v6135, %v6133
  %v6194 = vpack.c.b16 %v6138, %v6136
  %v6195 = vpack.c.b16 %v6139, %v6137
  %v6196 = vpack.c.b16 %v6142, %v6140
  %v6197 = vpack.c.b16 %v6143, %v6141
  %v6198 = vpack.c.b16 %v6146, %v6144
  %v6199 = vpack.c.b16 %v6147, %v6145
  %v6200 = vpack.c.b16 %v6150, %v6148
  %v6201 = vpack.c.b16 %v6151, %v6149
  %v6202 = vpack.c.b16 %v6154, %v6152
  %v6203 = vpack.c.b16 %v6155, %v6153
  %v6204 = vpack.c.b16 %v6158, %v6156
  %v6205 = vpack.c.b16 %v6159, %v6157
  %v6206 = vpack.c.b16 %v6162, %v6160
  %v6207 = vpack.c.b16 %v6163, %v6161
  %v6208 = vpack.c.b16 %v6166, %v6164
  %v6209 = vpack.c.b16 %v6167, %v6165
  %v6210 = vpack.c.b16 %v6170, %v6168
  %v6211 = vpack.c.b16 %v6171, %v6169
  %v6212 = vpack.c.b16 %v6174, %v6172
  %v6213 = vpack.c.b16 %v6175, %v6173
  %v6214 = vpack.c.b16 %v6178, %v6176
  %v6215 = vpack.c.b16 %v6179, %v6177
  %v6216 = vpack.c.b16 %v6182, %v6180
  %v6217 = vpack.c.b16 %v6183, %v6181
  %v6218 = vpack.c.b16 %v6186, %v6184
  %v6219 = vpack.c.b16 %v6187, %v6185
  %6252 = vmatprep.subr.bf16.mxu0 %v6189
  %6253 = vmatpush1.bf16.msra.mxu0 %v6188
  %6254 = vmatprep.subr.bf16.mxu0 %v6191
  %6255 = vmatpush1.bf16.msra.mxu0 %v6190
  %6256 = vmatprep.subr.bf16.mxu0 %v6193
  %6257 = vmatpush1.bf16.msra.mxu0 %v6192
  %6258 = vmatprep.subr.bf16.mxu0 %v6195
  %6259 = vmatpush1.bf16.msra.mxu0 %v6194
  %6260 = vmatprep.subr.bf16.mxu0 %v6197
  %6261 = vmatpush1.bf16.msra.mxu0 %v6196
  %6262 = vmatprep.subr.bf16.mxu0 %v6199
  %6263 = vmatpush1.bf16.msra.mxu0 %v6198
  %6264 = vmatprep.subr.bf16.mxu0 %v6201
  %6265 = vmatpush1.bf16.msra.mxu0 %v6200
  %6266 = vmatprep.subr.bf16.mxu0 %v6203
  %6267 = vmatpush1.bf16.msra.mxu0 %v6202
  %6268 = vmatprep.subr.bf16.mxu0 %v6205
  %6269 = vmatpush1.bf16.msra.mxu0 %v6204
  %6270 = vmatprep.subr.bf16.mxu0 %v6207
  %6271 = vmatpush1.bf16.msra.mxu0 %v6206
  %6272 = vmatprep.subr.bf16.mxu0 %v6209
  %6273 = vmatpush1.bf16.msra.mxu0 %v6208
  %6274 = vmatprep.subr.bf16.mxu0 %v6211
  %6275 = vmatpush1.bf16.msra.mxu0 %v6210
  %6276 = vmatprep.subr.bf16.mxu0 %v6213
  %6277 = vmatpush1.bf16.msra.mxu0 %v6212
  %6278 = vmatprep.subr.bf16.mxu0 %v6215
  %6279 = vmatpush1.bf16.msra.mxu0 %v6214
  %6280 = vmatprep.subr.bf16.mxu0 %v6217
  %6281 = vmatpush1.bf16.msra.mxu0 %v6216
  %6282 = vmatprep.subr.bf16.mxu0 %v6219
  %6283 = vmatpush1.bf16.msra.mxu0 %v6218
  %6284 = vmatprep.mubr.bf16.mxu0 %v6058
  %6285 = vmatmul.mubr.bf16.gmra.mrb[0].mxu0 %v6057
  %v6286 = vpop.f32.mrb[0].mxu0
  %v6287 = vadd.f32 0.0, %v6286
  %v6288 = vpop.f32.mrb[0].mxu0
  %v6289 = vadd.f32 0.0, %v6288
  %v6290 = vpop.f32.mrb[0].mxu0
  %v6291 = vpop.f32.mrb[0].mxu0
  %6292 = vdwg.mxu0
  %v6293 = vadd.f32 %v6009, %v6287
  %v6294 = vadd.f32 %v6010, %v6289
  %v6295 = vmax.f32 %v6293, 0.0
  %v6296 = vmax.f32 %v6294, 0.0
  %v6297 = vpack.c.bf16 %v6295, %v6295
  %v6298 = vpack.c.bf16 %v6296, %v6296
  %v6299 = vld [vmem:[%s13] sm:$0xf]
  %v6301 = vsel %vm5429, %v6299, 0
  %v6304 = vsel %vm227, %v6297, 0
  %v6307 = vsel %vm227, %v6298, 0
  %6309 = vmatprep.subr.bf16.mxu0 %v6307
  %6310 = vmatpush1.bf16.msra.mxu0 %v6304
  %6311 = vmatprep.subr.bf16.mxu0 0
  %6312 = vmatpush1.bf16.msra.mxu0 0
  %6313 = vmatprep.subr.bf16.mxu0 0
  %6314 = vmatpush1.bf16.msra.mxu0 0
  %6315 = vmatprep.subr.bf16.mxu0 0
  %6316 = vmatpush1.bf16.msra.mxu0 0
  %6317 = vmatprep.subr.bf16.mxu0 0
  %6318 = vmatpush1.bf16.msra.mxu0 0
  %6319 = vmatprep.subr.bf16.mxu0 0
  %6320 = vmatpush1.bf16.msra.mxu0 0
  %6321 = vmatprep.subr.bf16.mxu0 0
  %6322 = vmatpush1.bf16.msra.mxu0 0
  %6323 = vmatprep.subr.bf16.mxu0 0
  %6324 = vmatpush1.bf16.msra.mxu0 0
  %6325 = vmatprep.subr.bf16.mxu0 0
  %6326 = vmatpush1.bf16.msra.mxu0 0
  %6327 = vmatprep.subr.bf16.mxu0 0
  %6328 = vmatpush1.bf16.msra.mxu0 0
  %6329 = vmatprep.subr.bf16.mxu0 0
  %6330 = vmatpush1.bf16.msra.mxu0 0
  %6331 = vmatprep.subr.bf16.mxu0 0
  %6332 = vmatpush1.bf16.msra.mxu0 0
  %6333 = vmatprep.subr.bf16.mxu0 0
  %6334 = vmatpush1.bf16.msra.mxu0 0
  %6335 = vmatprep.subr.bf16.mxu0 0
  %6336 = vmatpush1.bf16.msra.mxu0 0
  %6337 = vmatprep.subr.bf16.mxu0 0
  %6338 = vmatpush1.bf16.msra.mxu0 0
  %6339 = vmatprep.subr.bf16.mxu0 0
  %6340 = vmatpush1.bf16.msra.mxu0 0
  %6341 = vmatprep.mubr.bf16.mxu0 0
  %6342 = vmatmul.mubr.bf16.gmra.mrb[0].mxu0 %v6301
  %v6343 = vpop.f32.mrb[0].mxu0
  %v6344 = vadd.f32 0.0, %v6343
  %v6345 = vpop.f32.mrb[0].mxu0
  %v6346 = vadd.f32 0.0, %v6345
  %v6347 = vpop.f32.mrb[0].mxu0
  %v6348 = vpop.f32.mrb[0].mxu0
  %6349 = vdwg.mxu0
  %v6350 = vpack.c.bf16 %v6344, %v6344
  %v6351 = vpack.c.bf16 %v6346, %v6346
  %v6352 = vld [vmem:[%s14] sm:$0xf]
  %v6353 = vld [vmem:[%s14 + $0x4] sm:$0xf]
  %v6354 = vld [vmem:[%s14 + $0x8] sm:$0xf]
  %v6355 = vld [vmem:[%s14 + $0xc] sm:$0xf]
  %v6356 = vld [vmem:[%s14 + $0x10] sm:$0xf]
  %v6357 = vld [vmem:[%s14 + $0x14] sm:$0xf]
  %v6358 = vld [vmem:[%s14 + $0x18] sm:$0xf]
  %v6359 = vld [vmem:[%s14 + $0x1c] sm:$0xf]
  %v6360 = vld [vmem:[%s14 + $0x20] sm:$0xf]
  %v6361 = vld [vmem:[%s14 + $0x24] sm:$0xf]
  %v6362 = vld [vmem:[%s14 + $0x28] sm:$0xf]
  %v6363 = vld [vmem:[%s14 + $0x2c] sm:$0xf]
  %v6364 = vld [vmem:[%s14 + $0x30] sm:$0xf]
  %v6365 = vld [vmem:[%s14 + $0x34] sm:$0xf]
  %v6366 = vld [vmem:[%s14 + $0x38] sm:$0xf]
  %v6367 = vld [vmem:[%s14 + $0x3c] sm:$0xf]
  %v6368 = vld [vmem:[%s14 + $0x40] sm:$0xf]
  %v6369 = vld [vmem:[%s14 + $0x44] sm:$0xf]
  %v6370 = vld [vmem:[%s14 + $0x48] sm:$0xf]
  %v6371 = vld [vmem:[%s14 + $0x4c] sm:$0xf]
  %v6372 = vld [vmem:[%s14 + $0x50] sm:$0xf]
  %v6373 = vld [vmem:[%s14 + $0x54] sm:$0xf]
  %v6374 = vld [vmem:[%s14 + $0x58] sm:$0xf]
  %v6375 = vld [vmem:[%s14 + $0x5c] sm:$0xf]
  %v6376 = vld [vmem:[%s14 + $0x60] sm:$0xf]
  %v6377 = vld [vmem:[%s14 + $0x64] sm:$0xf]
  %v6378 = vld [vmem:[%s14 + $0x68] sm:$0xf]
  %v6379 = vld [vmem:[%s14 + $0x6c] sm:$0xf]
  %v6380 = vld [vmem:[%s14 + $0x70] sm:$0xf]
  %v6381 = vld [vmem:[%s14 + $0x74] sm:$0xf]
  %v6382 = vld [vmem:[%s14 + $0x78] sm:$0xf]
  %v6383 = vld [vmem:[%s14 + $0x7c] sm:$0xf]
  %v6384 = vld [vmem:[%s15] sm:$0x1]
  %v6386 = vlaneseq
  %v6387 = vshrl.u32 %v6386, 7
  %v6388 = vsub.s32 0, %v6387
  %v6389 = vrot.slane %v6384, %v6388
  %v6423 = vunpack.c.l.b16 %v6352
  %v6424 = vunpack.c.l.b16 %v6353
  %v6425 = vunpack.c.l.b16 %v6354
  %v6426 = vunpack.c.l.b16 %v6355
  %v6427 = vunpack.c.l.b16 %v6356
  %v6428 = vunpack.c.l.b16 %v6357
  %v6429 = vunpack.c.l.b16 %v6358
  %v6430 = vunpack.c.l.b16 %v6359
  %v6431 = vunpack.c.l.b16 %v6360
  %v6432 = vunpack.c.l.b16 %v6361
  %v6433 = vunpack.c.l.b16 %v6362
  %v6434 = vunpack.c.l.b16 %v6363
  %v6435 = vunpack.c.l.b16 %v6364
  %v6436 = vunpack.c.l.b16 %v6365
  %v6437 = vunpack.c.l.b16 %v6366
  %v6438 = vunpack.c.l.b16 %v6367
  %v6439 = vunpack.c.l.b16 %v6368
  %v6440 = vunpack.c.l.b16 %v6369
  %v6441 = vunpack.c.l.b16 %v6370
  %v6442 = vunpack.c.l.b16 %v6371
  %v6443 = vunpack.c.l.b16 %v6372
  %v6444 = vunpack.c.l.b16 %v6373
  %v6445 = vunpack.c.l.b16 %v6374
  %v6446 = vunpack.c.l.b16 %v6375
  %v6447 = vunpack.c.l.b16 %v6376
  %v6448 = vunpack.c.l.b16 %v6377
  %v6449 = vunpack.c.l.b16 %v6378
  %v6450 = vunpack.c.l.b16 %v6379
  %v6451 = vunpack.c.l.b16 %v6380
  %v6452 = vunpack.c.l.b16 %v6381
  %v6453 = vunpack.c.l.b16 %v6382
  %v6454 = vunpack.c.l.b16 %v6383
  %v6455 = vpack.c.b16 %v6424, %v6423
  %v6456 = vpack.c.b16 %v6426, %v6425
  %v6457 = vpack.c.b16 %v6428, %v6427
  %v6458 = vpack.c.b16 %v6430, %v6429
  %v6459 = vpack.c.b16 %v6432, %v6431
  %v6460 = vpack.c.b16 %v6434, %v6433
  %v6461 = vpack.c.b16 %v6436, %v6435
  %v6462 = vpack.c.b16 %v6438, %v6437
  %v6463 = vpack.c.b16 %v6440, %v6439
  %v6464 = vpack.c.b16 %v6442, %v6441
  %v6465 = vpack.c.b16 %v6444, %v6443
  %v6466 = vpack.c.b16 %v6446, %v6445
  %v6467 = vpack.c.b16 %v6448, %v6447
  %v6468 = vpack.c.b16 %v6450, %v6449
  %v6469 = vpack.c.b16 %v6452, %v6451
  %v6470 = vpack.c.b16 %v6454, %v6453
  %6487 = vmatprep.subr.bf16.mxu0 0
  %6488 = vmatpush1.bf16.msra.mxu0 %v6455
  %6489 = vmatprep.subr.bf16.mxu0 0
  %6490 = vmatpush1.bf16.msra.mxu0 %v6456
  %6491 = vmatprep.subr.bf16.mxu0 0
  %6492 = vmatpush1.bf16.msra.mxu0 %v6457
  %6493 = vmatprep.subr.bf16.mxu0 0
  %6494 = vmatpush1.bf16.msra.mxu0 %v6458
  %6495 = vmatprep.subr.bf16.mxu0 0
  %6496 = vmatpush1.bf16.msra.mxu0 %v6459
  %6497 = vmatprep.subr.bf16.mxu0 0
  %6498 = vmatpush1.bf16.msra.mxu0 %v6460
  %6499 = vmatprep.subr.bf16.mxu0 0
  %6500 = vmatpush1.bf16.msra.mxu0 %v6461
  %6501 = vmatprep.subr.bf16.mxu0 0
  %6502 = vmatpush1.bf16.msra.mxu0 %v6462
  %6503 = vmatprep.subr.bf16.mxu0 0
  %6504 = vmatpush1.bf16.msra.mxu0 %v6463
  %6505 = vmatprep.subr.bf16.mxu0 0
  %6506 = vmatpush1.bf16.msra.mxu0 %v6464
  %6507 = vmatprep.subr.bf16.mxu0 0
  %6508 = vmatpush1.bf16.msra.mxu0 %v6465
  %6509 = vmatprep.subr.bf16.mxu0 0
  %6510 = vmatpush1.bf16.msra.mxu0 %v6466
  %6511 = vmatprep.subr.bf16.mxu0 0
  %6512 = vmatpush1.bf16.msra.mxu0 %v6467
  %6513 = vmatprep.subr.bf16.mxu0 0
  %6514 = vmatpush1.bf16.msra.mxu0 %v6468
  %6515 = vmatprep.subr.bf16.mxu0 0
  %6516 = vmatpush1.bf16.msra.mxu0 %v6469
  %6517 = vmatprep.subr.bf16.mxu0 0
  %6518 = vmatpush1.bf16.msra.mxu0 %v6470
  %6519 = vmatprep.mubr.bf16.mxu0 %v6351
  %6520 = vmatmul.mubr.bf16.gmra.mrb[0].mxu0 %v6350
  %v6521 = vpop.f32.mrb[0].mxu0
  %v6522 = vadd.f32 %v6389, %v6521
  %v6523 = vpop.f32.mrb[0].mxu0
  %v6524 = vpop.f32.mrb[0].mxu0
  %v6525 = vpop.f32.mrb[0].mxu0
  %6526 = vdwg.mxu0
  %s6527 = scalar_lea.vmem %s13, 4
  %v6528 = vld [vmem:[%s6527] sm:$0xf]
  %v6530 = vsel %vm5429, %v6528, 0
  %6532 = vmatprep.subr.bf16.mxu0 %v6307
  %6533 = vmatpush1.bf16.msra.mxu0 %v6304
  %6534 = vmatprep.subr.bf16.mxu0 0
  %6535 = vmatpush1.bf16.msra.mxu0 0
  %6536 = vmatprep.subr.bf16.mxu0 0
  %6537 = vmatpush1.bf16.msra.mxu0 0
  %6538 = vmatprep.subr.bf16.mxu0 0
  %6539 = vmatpush1.bf16.msra.mxu0 0
  %6540 = vmatprep.subr.bf16.mxu0 0
  %6541 = vmatpush1.bf16.msra.mxu0 0
  %6542 = vmatprep.subr.bf16.mxu0 0
  %6543 = vmatpush1.bf16.msra.mxu0 0
  %6544 = vmatprep.subr.bf16.mxu0 0
  %6545 = vmatpush1.bf16.msra.mxu0 0
  %6546 = vmatprep.subr.bf16.mxu0 0
  %6547 = vmatpush1.bf16.msra.mxu0 0
  %6548 = vmatprep.subr.bf16.mxu0 0
  %6549 = vmatpush1.bf16.msra.mxu0 0
  %6550 = vmatprep.subr.bf16.mxu0 0
  %6551 = vmatpush1.bf16.msra.mxu0 0
  %6552 = vmatprep.subr.bf16.mxu0 0
  %6553 = vmatpush1.bf16.msra.mxu0 0
  %6554 = vmatprep.subr.bf16.mxu0 0
  %6555 = vmatpush1.bf16.msra.mxu0 0
  %6556 = vmatprep.subr.bf16.mxu0 0
  %6557 = vmatpush1.bf16.msra.mxu0 0
  %6558 = vmatprep.subr.bf16.mxu0 0
  %6559 = vmatpush1.bf16.msra.mxu0 0
  %6560 = vmatprep.subr.bf16.mxu0 0
  %6561 = vmatpush1.bf16.msra.mxu0 0
  %6562 = vmatprep.subr.bf16.mxu0 0
  %6563 = vmatpush1.bf16.msra.mxu0 0
  %6564 = vmatprep.mubr.bf16.mxu0 0
  %6565 = vmatmul.mubr.bf16.gmra.mrb[0].mxu0 %v6530
  %v6566 = vpop.f32.mrb[0].mxu0
  %v6567 = vadd.f32 0.0, %v6566
  %v6568 = vpop.f32.mrb[0].mxu0
  %v6569 = vadd.f32 0.0, %v6568
  %v6570 = vpop.f32.mrb[0].mxu0
  %v6571 = vpop.f32.mrb[0].mxu0
  %6572 = vdwg.mxu0
  %v6573 = vpack.c.bf16 %v6567, %v6567
  %v6574 = vpack.c.bf16 %v6569, %v6569
  %s6575 = scalar_lea.vmem %s14, 128
  %v6576 = vld [vmem:[%s6575] sm:$0xf]
  %v6577 = vld [vmem:[%s6575 + $0x4] sm:$0xf]
  %v6578 = vld [vmem:[%s6575 + $0x8] sm:$0xf]
  %v6579 = vld [vmem:[%s6575 + $0xc] sm:$0xf]
  %v6580 = vld [vmem:[%s6575 + $0x10] sm:$0xf]
  %v6581 = vld [vmem:[%s6575 + $0x14] sm:$0xf]
  %v6582 = vld [vmem:[%s6575 + $0x18] sm:$0xf]
  %v6583 = vld [vmem:[%s6575 + $0x1c] sm:$0xf]
  %v6584 = vld [vmem:[%s6575 + $0x20] sm:$0xf]
  %v6585 = vld [vmem:[%s6575 + $0x24] sm:$0xf]
  %v6586 = vld [vmem:[%s6575 + $0x28] sm:$0xf]
  %v6587 = vld [vmem:[%s6575 + $0x2c] sm:$0xf]
  %v6588 = vld [vmem:[%s6575 + $0x30] sm:$0xf]
  %v6589 = vld [vmem:[%s6575 + $0x34] sm:$0xf]
  %v6590 = vld [vmem:[%s6575 + $0x38] sm:$0xf]
  %v6591 = vld [vmem:[%s6575 + $0x3c] sm:$0xf]
  %v6592 = vld [vmem:[%s6575 + $0x40] sm:$0xf]
  %v6593 = vld [vmem:[%s6575 + $0x44] sm:$0xf]
  %v6594 = vld [vmem:[%s6575 + $0x48] sm:$0xf]
  %v6595 = vld [vmem:[%s6575 + $0x4c] sm:$0xf]
  %v6596 = vld [vmem:[%s6575 + $0x50] sm:$0xf]
  %v6597 = vld [vmem:[%s6575 + $0x54] sm:$0xf]
  %v6598 = vld [vmem:[%s6575 + $0x58] sm:$0xf]
  %v6599 = vld [vmem:[%s6575 + $0x5c] sm:$0xf]
  %v6600 = vld [vmem:[%s6575 + $0x60] sm:$0xf]
  %v6601 = vld [vmem:[%s6575 + $0x64] sm:$0xf]
  %v6602 = vld [vmem:[%s6575 + $0x68] sm:$0xf]
  %v6603 = vld [vmem:[%s6575 + $0x6c] sm:$0xf]
  %v6604 = vld [vmem:[%s6575 + $0x70] sm:$0xf]
  %v6605 = vld [vmem:[%s6575 + $0x74] sm:$0xf]
  %v6606 = vld [vmem:[%s6575 + $0x78] sm:$0xf]
  %v6607 = vld [vmem:[%s6575 + $0x7c] sm:$0xf]
  %v6640 = vunpack.c.l.b16 %v6576
  %v6641 = vunpack.c.l.b16 %v6577
  %v6642 = vunpack.c.l.b16 %v6578
  %v6643 = vunpack.c.l.b16 %v6579
  %v6644 = vunpack.c.l.b16 %v6580
  %v6645 = vunpack.c.l.b16 %v6581
  %v6646 = vunpack.c.l.b16 %v6582
  %v6647 = vunpack.c.l.b16 %v6583
  %v6648 = vunpack.c.l.b16 %v6584
  %v6649 = vunpack.c.l.b16 %v6585
  %v6650 = vunpack.c.l.b16 %v6586
  %v6651 = vunpack.c.l.b16 %v6587
  %v6652 = vunpack.c.l.b16 %v6588
  %v6653 = vunpack.c.l.b16 %v6589
  %v6654 = vunpack.c.l.b16 %v6590
  %v6655 = vunpack.c.l.b16 %v6591
  %v6656 = vunpack.c.l.b16 %v6592
  %v6657 = vunpack.c.l.b16 %v6593
  %v6658 = vunpack.c.l.b16 %v6594
  %v6659 = vunpack.c.l.b16 %v6595
  %v6660 = vunpack.c.l.b16 %v6596
  %v6661 = vunpack.c.l.b16 %v6597
  %v6662 = vunpack.c.l.b16 %v6598
  %v6663 = vunpack.c.l.b16 %v6599
  %v6664 = vunpack.c.l.b16 %v6600
  %v6665 = vunpack.c.l.b16 %v6601
  %v6666 = vunpack.c.l.b16 %v6602
  %v6667 = vunpack.c.l.b16 %v6603
  %v6668 = vunpack.c.l.b16 %v6604
  %v6669 = vunpack.c.l.b16 %v6605
  %v6670 = vunpack.c.l.b16 %v6606
  %v6671 = vunpack.c.l.b16 %v6607
  %v6672 = vpack.c.b16 %v6641, %v6640
  %v6673 = vpack.c.b16 %v6643, %v6642
  %v6674 = vpack.c.b16 %v6645, %v6644
  %v6675 = vpack.c.b16 %v6647, %v6646
  %v6676 = vpack.c.b16 %v6649, %v6648
  %v6677 = vpack.c.b16 %v6651, %v6650
  %v6678 = vpack.c.b16 %v6653, %v6652
  %v6679 = vpack.c.b16 %v6655, %v6654
  %v6680 = vpack.c.b16 %v6657, %v6656
  %v6681 = vpack.c.b16 %v6659, %v6658
  %v6682 = vpack.c.b16 %v6661, %v6660
  %v6683 = vpack.c.b16 %v6663, %v6662
  %v6684 = vpack.c.b16 %v6665, %v6664
  %v6685 = vpack.c.b16 %v6667, %v6666
  %v6686 = vpack.c.b16 %v6669, %v6668
  %v6687 = vpack.c.b16 %v6671, %v6670
  %6704 = vmatprep.subr.bf16.mxu0 0
  %6705 = vmatpush1.bf16.msra.mxu0 %v6672
  %6706 = vmatprep.subr.bf16.mxu0 0
  %6707 = vmatpush1.bf16.msra.mxu0 %v6673
  %6708 = vmatprep.subr.bf16.mxu0 0
  %6709 = vmatpush1.bf16.msra.mxu0 %v6674
  %6710 = vmatprep.subr.bf16.mxu0 0
  %6711 = vmatpush1.bf16.msra.mxu0 %v6675
  %6712 = vmatprep.subr.bf16.mxu0 0
  %6713 = vmatpush1.bf16.msra.mxu0 %v6676
  %6714 = vmatprep.subr.bf16.mxu0 0
  %6715 = vmatpush1.bf16.msra.mxu0 %v6677
  %6716 = vmatprep.subr.bf16.mxu0 0
  %6717 = vmatpush1.bf16.msra.mxu0 %v6678
  %6718 = vmatprep.subr.bf16.mxu0 0
  %6719 = vmatpush1.bf16.msra.mxu0 %v6679
  %6720 = vmatprep.subr.bf16.mxu0 0
  %6721 = vmatpush1.bf16.msra.mxu0 %v6680
  %6722 = vmatprep.subr.bf16.mxu0 0
  %6723 = vmatpush1.bf16.msra.mxu0 %v6681
  %6724 = vmatprep.subr.bf16.mxu0 0
  %6725 = vmatpush1.bf16.msra.mxu0 %v6682
  %6726 = vmatprep.subr.bf16.mxu0 0
  %6727 = vmatpush1.bf16.msra.mxu0 %v6683
  %6728 = vmatprep.subr.bf16.mxu0 0
  %6729 = vmatpush1.bf16.msra.mxu0 %v6684
  %6730 = vmatprep.subr.bf16.mxu0 0
  %6731 = vmatpush1.bf16.msra.mxu0 %v6685
  %6732 = vmatprep.subr.bf16.mxu0 0
  %6733 = vmatpush1.bf16.msra.mxu0 %v6686
  %6734 = vmatprep.subr.bf16.mxu0 0
  %6735 = vmatpush1.bf16.msra.mxu0 %v6687
  %6736 = vmatprep.mubr.bf16.mxu0 %v6574
  %6737 = vmatmul.mubr.bf16.gmra.mrb[0].mxu0 %v6573
  %v6738 = vpop.f32.mrb[0].mxu0
  %v6739 = vadd.f32 0.0, %v6738
  %v6740 = vpop.f32.mrb[0].mxu0
  %v6741 = vpop.f32.mrb[0].mxu0
  %v6742 = vpop.f32.mrb[0].mxu0
  %6743 = vdwg.mxu0
  %v6744 = vadd.f32 %v6522, %v6739
  %s6745 = scalar_lea.vmem %s13, 8
  %v6746 = vld [vmem:[%s6745] sm:$0xf]
  %v6748 = vsel %vm5429, %v6746, 0
  %6750 = vmatprep.subr.bf16.mxu0 %v6307
  %6751 = vmatpush1.bf16.msra.mxu0 %v6304
  %6752 = vmatprep.subr.bf16.mxu0 0
  %6753 = vmatpush1.bf16.msra.mxu0 0
  %6754 = vmatprep.subr.bf16.mxu0 0
  %6755 = vmatpush1.bf16.msra.mxu0 0
  %6756 = vmatprep.subr.bf16.mxu0 0
  %6757 = vmatpush1.bf16.msra.mxu0 0
  %6758 = vmatprep.subr.bf16.mxu0 0
  %6759 = vmatpush1.bf16.msra.mxu0 0
  %6760 = vmatprep.subr.bf16.mxu0 0
  %6761 = vmatpush1.bf16.msra.mxu0 0
  %6762 = vmatprep.subr.bf16.mxu0 0
  %6763 = vmatpush1.bf16.msra.mxu0 0
  %6764 = vmatprep.subr.bf16.mxu0 0
  %6765 = vmatpush1.bf16.msra.mxu0 0
  %6766 = vmatprep.subr.bf16.mxu0 0
  %6767 = vmatpush1.bf16.msra.mxu0 0
  %6768 = vmatprep.subr.bf16.mxu0 0
  %6769 = vmatpush1.bf16.msra.mxu0 0
  %6770 = vmatprep.subr.bf16.mxu0 0
  %6771 = vmatpush1.bf16.msra.mxu0 0
  %6772 = vmatprep.subr.bf16.mxu0 0
  %6773 = vmatpush1.bf16.msra.mxu0 0
  %6774 = vmatprep.subr.bf16.mxu0 0
  %6775 = vmatpush1.bf16.msra.mxu0 0
  %6776 = vmatprep.subr.bf16.mxu0 0
  %6777 = vmatpush1.bf16.msra.mxu0 0
  %6778 = vmatprep.subr.bf16.mxu0 0
  %6779 = vmatpush1.bf16.msra.mxu0 0
  %6780 = vmatprep.subr.bf16.mxu0 0
  %6781 = vmatpush1.bf16.msra.mxu0 0
  %6782 = vmatprep.mubr.bf16.mxu0 0
  %6783 = vmatmul.mubr.bf16.gmra.mrb[0].mxu0 %v6748
  %v6784 = vpop.f32.mrb[0].mxu0
  %v6785 = vadd.f32 0.0, %v6784
  %v6786 = vpop.f32.mrb[0].mxu0
  %v6787 = vadd.f32 0.0, %v6786
  %v6788 = vpop.f32.mrb[0].mxu0
  %v6789 = vpop.f32.mrb[0].mxu0
  %6790 = vdwg.mxu0
  %v6791 = vpack.c.bf16 %v6785, %v6785
  %v6792 = vpack.c.bf16 %v6787, %v6787
  %s6793 = scalar_lea.vmem %s14, 256
  %v6794 = vld [vmem:[%s6793] sm:$0xf]
  %v6795 = vld [vmem:[%s6793 + $0x4] sm:$0xf]
  %v6796 = vld [vmem:[%s6793 + $0x8] sm:$0xf]
  %v6797 = vld [vmem:[%s6793 + $0xc] sm:$0xf]
  %v6798 = vld [vmem:[%s6793 + $0x10] sm:$0xf]
  %v6799 = vld [vmem:[%s6793 + $0x14] sm:$0xf]
  %v6800 = vld [vmem:[%s6793 + $0x18] sm:$0xf]
  %v6801 = vld [vmem:[%s6793 + $0x1c] sm:$0xf]
  %v6802 = vld [vmem:[%s6793 + $0x20] sm:$0xf]
  %v6803 = vld [vmem:[%s6793 + $0x24] sm:$0xf]
  %v6804 = vld [vmem:[%s6793 + $0x28] sm:$0xf]
  %v6805 = vld [vmem:[%s6793 + $0x2c] sm:$0xf]
  %v6806 = vld [vmem:[%s6793 + $0x30] sm:$0xf]
  %v6807 = vld [vmem:[%s6793 + $0x34] sm:$0xf]
  %v6808 = vld [vmem:[%s6793 + $0x38] sm:$0xf]
  %v6809 = vld [vmem:[%s6793 + $0x3c] sm:$0xf]
  %v6810 = vld [vmem:[%s6793 + $0x40] sm:$0xf]
  %v6811 = vld [vmem:[%s6793 + $0x44] sm:$0xf]
  %v6812 = vld [vmem:[%s6793 + $0x48] sm:$0xf]
  %v6813 = vld [vmem:[%s6793 + $0x4c] sm:$0xf]
  %v6814 = vld [vmem:[%s6793 + $0x50] sm:$0xf]
  %v6815 = vld [vmem:[%s6793 + $0x54] sm:$0xf]
  %v6816 = vld [vmem:[%s6793 + $0x58] sm:$0xf]
  %v6817 = vld [vmem:[%s6793 + $0x5c] sm:$0xf]
  %v6818 = vld [vmem:[%s6793 + $0x60] sm:$0xf]
  %v6819 = vld [vmem:[%s6793 + $0x64] sm:$0xf]
  %v6820 = vld [vmem:[%s6793 + $0x68] sm:$0xf]
  %v6821 = vld [vmem:[%s6793 + $0x6c] sm:$0xf]
  %v6822 = vld [vmem:[%s6793 + $0x70] sm:$0xf]
  %v6823 = vld [vmem:[%s6793 + $0x74] sm:$0xf]
  %v6824 = vld [vmem:[%s6793 + $0x78] sm:$0xf]
  %v6825 = vld [vmem:[%s6793 + $0x7c] sm:$0xf]
  %v6858 = vunpack.c.l.b16 %v6794
  %v6859 = vunpack.c.l.b16 %v6795
  %v6860 = vunpack.c.l.b16 %v6796
  %v6861 = vunpack.c.l.b16 %v6797
  %v6862 = vunpack.c.l.b16 %v6798
  %v6863 = vunpack.c.l.b16 %v6799
  %v6864 = vunpack.c.l.b16 %v6800
  %v6865 = vunpack.c.l.b16 %v6801
  %v6866 = vunpack.c.l.b16 %v6802
  %v6867 = vunpack.c.l.b16 %v6803
  %v6868 = vunpack.c.l.b16 %v6804
  %v6869 = vunpack.c.l.b16 %v6805
  %v6870 = vunpack.c.l.b16 %v6806
  %v6871 = vunpack.c.l.b16 %v6807
  %v6872 = vunpack.c.l.b16 %v6808
  %v6873 = vunpack.c.l.b16 %v6809
  %v6874 = vunpack.c.l.b16 %v6810
  %v6875 = vunpack.c.l.b16 %v6811
  %v6876 = vunpack.c.l.b16 %v6812
  %v6877 = vunpack.c.l.b16 %v6813
  %v6878 = vunpack.c.l.b16 %v6814
  %v6879 = vunpack.c.l.b16 %v6815
  %v6880 = vunpack.c.l.b16 %v6816
  %v6881 = vunpack.c.l.b16 %v6817
  %v6882 = vunpack.c.l.b16 %v6818
  %v6883 = vunpack.c.l.b16 %v6819
  %v6884 = vunpack.c.l.b16 %v6820
  %v6885 = vunpack.c.l.b16 %v6821
  %v6886 = vunpack.c.l.b16 %v6822
  %v6887 = vunpack.c.l.b16 %v6823
  %v6888 = vunpack.c.l.b16 %v6824
  %v6889 = vunpack.c.l.b16 %v6825
  %v6890 = vpack.c.b16 %v6859, %v6858
  %v6891 = vpack.c.b16 %v6861, %v6860
  %v6892 = vpack.c.b16 %v6863, %v6862
  %v6893 = vpack.c.b16 %v6865, %v6864
  %v6894 = vpack.c.b16 %v6867, %v6866
  %v6895 = vpack.c.b16 %v6869, %v6868
  %v6896 = vpack.c.b16 %v6871, %v6870
  %v6897 = vpack.c.b16 %v6873, %v6872
  %v6898 = vpack.c.b16 %v6875, %v6874
  %v6899 = vpack.c.b16 %v6877, %v6876
  %v6900 = vpack.c.b16 %v6879, %v6878
  %v6901 = vpack.c.b16 %v6881, %v6880
  %v6902 = vpack.c.b16 %v6883, %v6882
  %v6903 = vpack.c.b16 %v6885, %v6884
  %v6904 = vpack.c.b16 %v6887, %v6886
  %v6905 = vpack.c.b16 %v6889, %v6888
  %6922 = vmatprep.subr.bf16.mxu0 0
  %6923 = vmatpush1.bf16.msra.mxu0 %v6890
  %6924 = vmatprep.subr.bf16.mxu0 0
  %6925 = vmatpush1.bf16.msra.mxu0 %v6891
  %6926 = vmatprep.subr.bf16.mxu0 0
  %6927 = vmatpush1.bf16.msra.mxu0 %v6892
  %6928 = vmatprep.subr.bf16.mxu0 0
  %6929 = vmatpush1.bf16.msra.mxu0 %v6893
  %6930 = vmatprep.subr.bf16.mxu0 0
  %6931 = vmatpush1.bf16.msra.mxu0 %v6894
  %6932 = vmatprep.subr.bf16.mxu0 0
  %6933 = vmatpush1.bf16.msra.mxu0 %v6895
  %6934 = vmatprep.subr.bf16.mxu0 0
  %6935 = vmatpush1.bf16.msra.mxu0 %v6896
  %6936 = vmatprep.subr.bf16.mxu0 0
  %6937 = vmatpush1.bf16.msra.mxu0 %v6897
  %6938 = vmatprep.subr.bf16.mxu0 0
  %6939 = vmatpush1.bf16.msra.mxu0 %v6898
  %6940 = vmatprep.subr.bf16.mxu0 0
  %6941 = vmatpush1.bf16.msra.mxu0 %v6899
  %6942 = vmatprep.subr.bf16.mxu0 0
  %6943 = vmatpush1.bf16.msra.mxu0 %v6900
  %6944 = vmatprep.subr.bf16.mxu0 0
  %6945 = vmatpush1.bf16.msra.mxu0 %v6901
  %6946 = vmatprep.subr.bf16.mxu0 0
  %6947 = vmatpush1.bf16.msra.mxu0 %v6902
  %6948 = vmatprep.subr.bf16.mxu0 0
  %6949 = vmatpush1.bf16.msra.mxu0 %v6903
  %6950 = vmatprep.subr.bf16.mxu0 0
  %6951 = vmatpush1.bf16.msra.mxu0 %v6904
  %6952 = vmatprep.subr.bf16.mxu0 0
  %6953 = vmatpush1.bf16.msra.mxu0 %v6905
  %6954 = vmatprep.mubr.bf16.mxu0 %v6792
  %6955 = vmatmul.mubr.bf16.gmra.mrb[0].mxu0 %v6791
  %v6956 = vpop.f32.mrb[0].mxu0
  %v6957 = vadd.f32 0.0, %v6956
  %v6958 = vpop.f32.mrb[0].mxu0
  %v6959 = vpop.f32.mrb[0].mxu0
  %v6960 = vpop.f32.mrb[0].mxu0
  %6961 = vdwg.mxu0
  %v6962 = vadd.f32 %v6744, %v6957
  %v6963 = vmax.f32 %v6962, 0.0
  %v6964 = vpack.c.bf16 %v6963, %v6963
  %v6965 = vld [vmem:[%s16] sm:$0xf]
  %v6966 = vld [vmem:[%s16 + $0x4] sm:$0xf]
  %v6967 = vld [vmem:[%s16 + $0x8] sm:$0xf]
  %v6968 = vld [vmem:[%s16 + $0xc] sm:$0xf]
  %v6969 = vld [vmem:[%s16 + $0x10] sm:$0xf]
  %v6970 = vld [vmem:[%s16 + $0x14] sm:$0xf]
  %v6971 = vld [vmem:[%s16 + $0x18] sm:$0xf]
  %v6972 = vld [vmem:[%s16 + $0x1c] sm:$0xf]
  %v6973 = vld [vmem:[%s17] sm:$0x1]
  %v6975 = vlaneseq
  %v6976 = vshrl.u32 %v6975, 7
  %v6977 = vsub.s32 0, %v6976
  %v6978 = vrot.slane %v6973, %v6977
  %v6988 = vunpack.c.l.b16 %v6965
  %v6989 = vunpack.c.l.b16 %v6966
  %v6990 = vunpack.c.l.b16 %v6967
  %v6991 = vunpack.c.l.b16 %v6968
  %v6992 = vunpack.c.l.b16 %v6969
  %v6993 = vunpack.c.l.b16 %v6970
  %v6994 = vunpack.c.l.b16 %v6971
  %v6995 = vunpack.c.l.b16 %v6972
  %v6996 = vpack.c.b16 %v6989, %v6988
  %v6997 = vpack.c.b16 %v6991, %v6990
  %v6998 = vpack.c.b16 %v6993, %v6992
  %v6999 = vpack.c.b16 %v6995, %v6994
  %vm7004 = vcmask 523264
  %v7006 = vsel %vm7004, %v6964, 0
  %7008 = vmatprep.subr.bf16.mxu0 0
  %7009 = vmatpush1.bf16.msra.mxu0 %v6996
  %7010 = vmatprep.subr.bf16.mxu0 0
  %7011 = vmatpush1.bf16.msra.mxu0 %v6997
  %7012 = vmatprep.subr.bf16.mxu0 0
  %7013 = vmatpush1.bf16.msra.mxu0 %v6998
  %7014 = vmatprep.subr.bf16.mxu0 0
  %7015 = vmatpush1.bf16.msra.mxu0 %v6999
  %7016 = vmatprep.subr.bf16.mxu0 0
  %7017 = vmatpush1.bf16.msra.mxu0 0
  %7018 = vmatprep.subr.bf16.mxu0 0
  %7019 = vmatpush1.bf16.msra.mxu0 0
  %7020 = vmatprep.subr.bf16.mxu0 0
  %7021 = vmatpush1.bf16.msra.mxu0 0
  %7022 = vmatprep.subr.bf16.mxu0 0
  %7023 = vmatpush1.bf16.msra.mxu0 0
  %7024 = vmatprep.subr.bf16.mxu0 0
  %7025 = vmatpush1.bf16.msra.mxu0 0
  %7026 = vmatprep.subr.bf16.mxu0 0
  %7027 = vmatpush1.bf16.msra.mxu0 0
  %7028 = vmatprep.subr.bf16.mxu0 0
  %7029 = vmatpush1.bf16.msra.mxu0 0
  %7030 = vmatprep.subr.bf16.mxu0 0
  %7031 = vmatpush1.bf16.msra.mxu0 0
  %7032 = vmatprep.subr.bf16.mxu0 0
  %7033 = vmatpush1.bf16.msra.mxu0 0
  %7034 = vmatprep.subr.bf16.mxu0 0
  %7035 = vmatpush1.bf16.msra.mxu0 0
  %7036 = vmatprep.subr.bf16.mxu0 0
  %7037 = vmatpush1.bf16.msra.mxu0 0
  %7038 = vmatprep.subr.bf16.mxu0 0
  %7039 = vmatpush1.bf16.msra.mxu0 0
  %7040 = vmatprep.mubr.bf16.mxu0 0
  %7041 = vmatmul.mubr.bf16.gmra.mrb[0].mxu0 %v7006
  %v7042 = vpop.f32.mrb[0].mxu0
  %v7043 = vadd.f32 %v6978, %v7042
  %v7044 = vpop.f32.mrb[0].mxu0
  %v7045 = vpop.f32.mrb[0].mxu0
  %v7046 = vpop.f32.mrb[0].mxu0
  %7047 = vdwg.mxu0
  %7048 = vmax.xlane.f32.xlu0 %v7043
  %v7049 = vpop.xlane.xlu0 %7048
  %v7050 = vsub.f32 %v7043, %v7049
  %v7051 = vmul.f32 %v7050, 1.442695
  %v7052 = vpow.pop %v7051
  %7053 = vadd.xlane.f32.xlu0 %v7052
  %v7054 = vpop.xlane.xlu0 %7053
  %v7055 = vlog2.pop %v7054
  %v7056 = vmul.f32 %v7055, 0.6931472
  %v7057 = vsub.f32 %v7050, %v7056
  %7058 = vst [vmem:[%s18] sm:$0xff] %v7057
  // Predicated region
  $region74: #{softmax_1d_forward.1} parent=0 // pred_check
    _
  $region75: #{softmax_1d_forward.1} parent=0 // pred_check_branch
    %7060 = sbr.rel (0) target = $region77
  $region76: #{softmax_1d_forward.1} parent=0 // pred_region
    _
  $region77: #{softmax_1d_forward.1} parent=0 // pred_fallthru
    _
  // Predicated region
  $region78: #{softmax_1d_forward.1} parent=0 // pred_check
    _
  $region79: #{softmax_1d_forward.1} parent=0 // pred_check_branch
    %7062 = sbr.rel (0) target = $region81
  $region80: #{softmax_1d_forward.1} parent=0 // pred_region
    _
  $region81: #{softmax_1d_forward.1} parent=0 // pred_fallthru
    _

</llo_original>
